<compile_context>
chip_gen: v7x
topology: tpu7x:2x2x1
jax: 0.10.0
libtpu: 0.0.40
codegen_flags: <defaults>
</compile_context>

<pallas_src>
import math
import functools

import jax
import jax.numpy as jnp
from jax.experimental import pallas as pl
from jax.experimental.pallas import tpu as pltpu

EPS = 1e-5  # torch.nn.LayerNorm default eps


# ----------------------------------------------------------------------------- helpers
def _layernorm(x, g, b):
    mu = jnp.mean(x, axis=-1, keepdims=True)
    d = x - mu
    var = jnp.mean(d * d, axis=-1, keepdims=True)
    return d * jax.lax.rsqrt(var + EPS) * g + b          # rsqrt -> EUP slot


def _gelu(x):
    # torch.nn.GELU default = exact (erf) form
    return 0.5 * x * (1.0 + jax.lax.erf(x / math.sqrt(2.0)))


def _zero_map(nd):
    return lambda i: (0,) * nd


def _tree(terms, op):
    """Balanced reduction (breaks long serially-dependent accumulation chains)."""
    terms = list(terms)
    while len(terms) > 1:
        nxt = [op(terms[i], terms[i + 1]) for i in range(0, len(terms) - 1, 2)]
        if len(terms) % 2:
            nxt.append(terms[-1])
        terms = nxt
    return terms[0]


# -------------------------------------------- fused conv + bias + ReLU + maxpool (in-kernel)
def _conv_pool_stage(F, w, b, m0, mW, sel, *, H, W, Cin, k):
    """'same' kxk stride-1 conv (+bias+ReLU) then 3x3/stride-2/pad-1 maxpool.

    F: flat (H*W, Cin) map.  Spatial shifts = row shifts of an 8-aligned zero-padded
    copy; m0/mW (HW,1) masks zero the taps that would wrap across image-row edges.
    The stride-2 window selection is one small matmul with the constant 0/1 matrix
    `sel` (Ho*Wo, HW), so no layout-changing reshapes/transposes are needed.
    Returns the pooled (Ho*Wo, Cout) map.
    """
    HW = H * W
    r = k // 2
    P = W + 8                                   # 8-row-aligned top/bottom zero pad
    Cout = w.shape[-1]

    # ---- convolution: one (HW, Cout) term per tap, combined on a balanced add tree ----
    G = jnp.concatenate([jnp.zeros((P, Cin), jnp.float32), F,
                         jnp.zeros((P, Cin), jnp.float32)], axis=0)
    terms = []
    for dy in range(-r, r + 1):
        for dx in range(-r, r + 1):                     # TODO(synk): masks assume k == 3
            t = (dy + r) * k + (dx + r)
            off = P + dy * W + dx
            sl = G[off:off + HW, :]
            if dx < 0:
                sl = sl * m0                            # would read previous image row
            elif dx > 0:
                sl = sl * mW                            # would read next image row
            wt = w[t * Cin:(t + 1) * Cin, :]            # (Cin, Cout)
            if Cin == 1:                                # K=1: a VPU broadcast is cheaper
                terms.append(sl * wt.astype(jnp.float32))
            else:                                       # per-tap (HW,Cin)@(Cin,Cout) MXU dot
                terms.append(jnp.dot(sl.astype(w.dtype), wt,
                                     preferred_element_type=jnp.float32))
    y = jnp.maximum(_tree(terms, jnp.add) + b, 0.0)     # (HW, Cout): bias + ReLU

    # ---- 3x3 / stride-2 / pad-1 maxpool (values >= 0, so 0-padding == -inf padding) ----
    Gp = jnp.concatenate([jnp.zeros((P, Cout), jnp.float32), y,
                          jnp.zeros((P, Cout), jnp.float32)], axis=0)
    wins = []
    for dy in (-1, 0, 1):
        for dx in (-1, 0, 1):
            off = P + dy * W + dx
            sl = Gp[off:off + HW, :]
            if dx < 0:
                sl = sl * m0
            elif dx > 0:
                sl = sl * mW
            wins.append(sl)
    mx = _tree(wins, jnp.maximum)                       # stride-1 3x3 window max, all centers
    # even-row / even-col center selection = one constant-matrix matmul
    return jnp.dot(sel, mx, preferred_element_type=jnp.float32)


# ----------------------------------------- the single fused CCT forward kernel (per sample)
def _cct_kernel(x_ref,
                cw1, cb1, cw2, cb2,
                m0a, mWa, sela, m0b, mWb, selb,
                pos_ref,
                ln1_g, ln1_b, wqkv, wo_w, wo_b,
                ln2_g, ln2_b, w1_w, w1_b, w2_w, w2_b,
                lnp_g, lnp_b, wp, bp, wc, bc,
                o_ref, att_sc,
                *, H1, W1, C0, C1, k, num_layer, head):
    H2 = (H1 - 1) // 2 + 1
    W2 = (W1 - 1) // 2 + 1

    # ---- Conv_Block: both conv+ReLU+maxpool stages, flat (H*W, C) spatial layout ----
    F = x_ref[0].astype(jnp.float32)                                     # (H1*W1, C0)
    F = _conv_pool_stage(F, cw1[...], cb1[...], m0a[...], mWa[...], sela[...],
                         H=H1, W=W1, Cin=C0, k=k)                        # (H2*W2, C1)
    F = _conv_pool_stage(F, cw2[...], cb2[...], m0b[...], mWb[...], selb[...],
                         H=H2, W=W2, Cin=C1, k=k)                        # (S, D)

    # ---- pos_emb add (+ dropout = identity) and the full encoder stack ----
    D = pos_ref.shape[-1]
    hd = D // head
    inv_scale = 1.0 / math.sqrt(D // head)                               # sqrt(emb_dim//head)
    x = F + pos_ref[...]                                                 # (S, D) f32 residual

    for l in range(num_layer):                                           # static layer loop
        # Multi_Head_ATT: shared pre-LN, fused QKV (no bias), WO + bias, residual
        xn = _layernorm(x, ln1_g[l], ln1_b[l])
        qkv = jnp.dot(xn.astype(jnp.bfloat16), wqkv[l],
                      preferred_element_type=jnp.float32)                # (S, 3D)
        for h in range(head):                                            # static head unroll
            qh = qkv[:, h * hd:(h + 1) * hd]
            kh = qkv[:, D + h * hd:D + (h + 1) * hd]
            vh = qkv[:, 2 * D + h * hd:2 * D + (h + 1) * hd]
            s = jax.lax.dot_general(qh.astype(jnp.bfloat16), kh.astype(jnp.bfloat16),
                                    (((1,), (1,)), ((), ())),            # q @ k^T
                                    preferred_element_type=jnp.float32) * inv_scale
            s = s - jnp.max(s, axis=-1, keepdims=True)
            p = jnp.exp(s)
            p = p * pl.reciprocal(jnp.sum(p, axis=-1, keepdims=True), approx=True)
            oh = jnp.dot(p.astype(jnp.bfloat16), vh.astype(jnp.bfloat16),
                         preferred_element_type=jnp.float32)             # (S, hd)
            att_sc[:, h * hd:(h + 1) * hd] = oh                          # lane-half store
        att = jnp.dot(att_sc[...].astype(jnp.bfloat16), wo_w[l],
                      preferred_element_type=jnp.float32) + wo_b[l]      # single WO matmul
        x = x + att                               # dropout / StochasticDepth = identity (eval)

        # Feed_Forward: pre-LN, GELU, residual
        xn2 = _layernorm(x, ln2_g[l], ln2_b[l])
        h1 = _gelu(jnp.dot(xn2.astype(jnp.bfloat16), w1_w[l],
                           preferred_element_type=jnp.float32) + w1_b[l])
        x = x + jnp.dot(h1.astype(jnp.bfloat16), w2_w[l],
                        preferred_element_type=jnp.float32) + w2_b[l]

    # ---- Seq_Pooling (softmax over seq of a learned score, applied to the normed tokens) ----
    xn = _layernorm(x, lnp_g[...], lnp_b[...])                           # (S, D)
    sc = jnp.sum(xn * wp[...], axis=-1, keepdims=True) + bp[...]         # (S, 1)
    sc = sc - jnp.max(sc, axis=0, keepdims=True)
    e = jnp.exp(sc)
    a = e * pl.reciprocal(jnp.sum(e, axis=0, keepdims=True), approx=True)
    pooled = jnp.sum(a * xn, axis=0, keepdims=True)                      # (1, D)

    # ---- classifier ----
    logits = jnp.dot(pooled.astype(jnp.bfloat16), wc[...],
                     preferred_element_type=jnp.float32) + bc[...]       # (1, class_num)
    o_ref[0] = logits.astype(o_ref.dtype)


_ENC_NAMES = ["ln1_g", "ln1_b", "wqkv", "wo_w", "wo_b",
              "ln2_g", "ln2_b", "w1_w", "w1_b", "w2_w", "w2_b"]
_HEAD_NAMES = ["ln_g", "ln_b", "wp", "bp", "wc", "bc"]


# ----------------------------------------------------------------------------- parameters
def _stage_sizes(cfg):
    sizes = [cfg["img_size"]]
    for i in range(cfg["conv_layer"]):
        s = (sizes[-1] + 2 * cfg["padding"][i] - cfg["k_size"][i]) // cfg["stride"][i] + 1
        s = (s + 2 * 1 - 3) // 2 + 1                      # maxpool(3, 2, 1)
        sizes.append(s)
    return sizes


def _pool_consts(H, W):
    """Edge masks for the flat-shift conv/pool and the stride-2 center-selection matrix."""
    HW = H * W
    Ho = (H - 1) // 2 + 1
    Wo = (W - 1) // 2 + 1
    xcol = jnp.arange(HW, dtype=jnp.int32) % W
    m0 = (xcol != 0).astype(jnp.float32)[:, None]         # kill dx=-1 taps at x == 0
    mW = (xcol != W - 1).astype(jnp.float32)[:, None]      # kill dx=+1 taps at x == W-1
    q = jnp.arange(Ho * Wo, dtype=jnp.int32)[:, None]
    p = jnp.arange(HW, dtype=jnp.int32)[None, :]
    tgt = 2 * (q // Wo) * W + 2 * (q % Wo)                 # flat index of each pool center
    sel = (p == tgt).astype(jnp.float32)                   # (Ho*Wo, HW) 0/1 selection
    return {"m0": m0, "mW": mW, "sel": sel}


def init_params(key, cfg):
    D = cfg["emb_dim"][-1]
    E = cfg["dim_expan"]
    Ccls = cfg["class_num"]
    L = cfg["num_layer"]
    sizes = _stage_sizes(cfg)
    S = sizes[-1] * sizes[-1]
    keys = iter(jax.random.split(key, 128))

    def u(shape, fan_in, dtype=jnp.float32):
        s = 1.0 / math.sqrt(fan_in)
        return jax.random.uniform(next(keys), shape, jnp.float32, -s, s).astype(dtype)

    params = {"conv": [], "pool_const": []}
    for i in range(cfg["conv_layer"]):
        kk = cfg["k_size"][i]
        cin = cfg["in_channel"][i]
        cout = cfg["emb_dim"][i]
        K = kk * kk * cin
        # weight rows ordered (ky, kx, cin); bf16 for the MXU per-tap dots when Cin > 1
        wdtype = jnp.float32 if cin == 1 else jnp.bfloat16
        params["conv"].append({"w": u((K, cout), K, wdtype), "b": u((1, cout), K)})
        params["pool_const"].append(_pool_consts(sizes[i], sizes[i]))

    params["pos_emb"] = jax.random.normal(next(keys), (S, D), jnp.float32)

    def stack(fn):
        return jnp.stack([fn() for _ in range(L)], axis=0)

    bf = jnp.bfloat16
    params["enc"] = {
        "ln1_g": jnp.ones((L, 1, D), jnp.float32),
        "ln1_b": jnp.zeros((L, 1, D), jnp.float32),
        "wqkv": stack(lambda: u((D, 3 * D), D, bf)),       # fused Wq|Wk|Wv (no bias)
        "wo_w": stack(lambda: u((D, D), D, bf)),
        "wo_b": stack(lambda: u((1, D), D)),
        "ln2_g": jnp.ones((L, 1, D), jnp.float32),
        "ln2_b": jnp.zeros((L, 1, D), jnp.float32),
        "w1_w": stack(lambda: u((D, E * D), D, bf)),
        "w1_b": stack(lambda: u((1, E * D), D)),
        "w2_w": stack(lambda: u((E * D, D), E * D, bf)),
        "w2_b": stack(lambda: u((1, D), E * D)),
    }
    params["head"] = {
        "ln_g": jnp.ones((1, D), jnp.float32), "ln_b": jnp.zeros((1, D), jnp.float32),
        "wp": u((1, D), D),                                # torch Linear(D, 1).weight = (1, D)
        "bp": u((1, 1), D),
        "wc": u((D, Ccls), D, bf), "bc": u((1, Ccls), D),
    }
    return params


# ------------------------------------------------------------------------------- forward
def cct_forward(x_nchw, params, cfg):
    assert cfg["conv_layer"] == 2, "fused kernel is written for the 2-stage conv block"
    assert all(s == 1 for s in cfg["stride"]), "stride-1 'same' convolutions only"
    assert all(kk == 3 for kk in cfg["k_size"]), "edge masks assume 3x3 kernels"
    assert all(cfg["padding"][i] == cfg["k_size"][i] // 2 for i in range(cfg["conv_layer"]))

    sizes = _stage_sizes(cfg)                    # e.g. [16, 8, 4]
    H1 = W1 = sizes[0]
    D = cfg["emb_dim"][-1]
    S = sizes[-1] * sizes[-1]
    C0 = cfg["in_channel"][0]
    C1 = cfg["emb_dim"][0]
    Ccls = cfg["class_num"]
    B = x_nchw.shape[0]

    # NCHW -> flat (B, H*W, C) tokens-of-pixels layout (free reshape for C0 == 1)
    if C0 == 1:
        x_flat = x_nchw.reshape(B, H1 * W1, 1).astype(jnp.float32)
    else:
        x_flat = jnp.transpose(x_nchw, (0, 2, 3, 1)).reshape(B, H1 * W1, C0).astype(jnp.float32)

    consts = [params["conv"][0]["w"], params["conv"][0]["b"],
              params["conv"][1]["w"], params["conv"][1]["b"]]
    for st in params["pool_const"]:
        consts += [st["m0"], st["mW"], st["sel"]]
    consts.append(params["pos_emb"])
    consts += [params["enc"][n] for n in _ENC_NAMES]
    consts += [params["head"][n] for n in _HEAD_NAMES]

    kern = functools.partial(_cct_kernel, H1=H1, W1=W1, C0=C0, C1=C1,
                             k=cfg["k_size"][0], num_layer=cfg["num_layer"],
                             head=cfg["head"])

    out = pl.pallas_call(
        kern,
        out_shape=jax.ShapeDtypeStruct((B, 1, Ccls), jnp.float32),
        grid=(B,),
        in_specs=[pl.BlockSpec((1, H1 * W1, C0), lambda i: (i, 0, 0))]
                 + [pl.BlockSpec(a.shape, _zero_map(a.ndim)) for a in consts],
        out_specs=pl.BlockSpec((1, 1, Ccls), lambda i: (i, 0, 0)),
        scratch_shapes=[pltpu.VMEM((S, D), jnp.float32)],   # per-layer head-concat buffer
        compiler_params=pltpu.CompilerParams(dimension_semantics=("parallel",)),
    )(x_flat, *consts)
    return out.reshape(B, Ccls)


# ----------------------------------------------------------------------------------- main
if __name__ == "__main__":
    cfg = dict(img_size=16, head=2, class_num=4,
               in_channel=[1, 8], emb_dim=[8, 32],
               k_size=[3, 3], stride=[1, 1], padding=[1, 1],
               conv_layer=2, num_layer=2, dim_expan=2)

    key = jax.random.PRNGKey(0)
    pkey, xkey = jax.random.split(key)
    params = init_params(pkey, cfg)

    x = jax.random.normal(
        xkey, (2, cfg["in_channel"][0], cfg["img_size"], cfg["img_size"]), jnp.float32)

    fwd = jax.jit(functools.partial(cct_forward, cfg=cfg))
    logits = fwd(x, params)
    jax.block_until_ready(logits)

    assert logits.shape == (2, cfg["class_num"]), logits.shape
    assert bool(jnp.all(jnp.isfinite(logits)))
    print("KERNEL_OK")
</pallas_src>

<mosaic_0001>
module attributes {stable_mosaic.version = 11 : i64} {
  func.func @_cct_kernel(%arg0: i32, %arg1: memref<1x256x1xf32, #tpu.memory_space<vmem>>, %arg2: memref<9x8xf32, #tpu.memory_space<vmem>>, %arg3: memref<1x8xf32, #tpu.memory_space<vmem>>, %arg4: memref<72x32xbf16, #tpu.memory_space<vmem>>, %arg5: memref<1x32xf32, #tpu.memory_space<vmem>>, %arg6: memref<256x1xf32, #tpu.memory_space<vmem>>, %arg7: memref<256x1xf32, #tpu.memory_space<vmem>>, %arg8: memref<64x256xf32, #tpu.memory_space<vmem>>, %arg9: memref<64x1xf32, #tpu.memory_space<vmem>>, %arg10: memref<64x1xf32, #tpu.memory_space<vmem>>, %arg11: memref<16x64xf32, #tpu.memory_space<vmem>>, %arg12: memref<16x32xf32, #tpu.memory_space<vmem>>, %arg13: memref<2x1x32xf32, #tpu.memory_space<vmem>>, %arg14: memref<2x1x32xf32, #tpu.memory_space<vmem>>, %arg15: memref<2x32x96xbf16, #tpu.memory_space<vmem>>, %arg16: memref<2x32x32xbf16, #tpu.memory_space<vmem>>, %arg17: memref<2x1x32xf32, #tpu.memory_space<vmem>>, %arg18: memref<2x1x32xf32, #tpu.memory_space<vmem>>, %arg19: memref<2x1x32xf32, #tpu.memory_space<vmem>>, %arg20: memref<2x32x64xbf16, #tpu.memory_space<vmem>>, %arg21: memref<2x1x64xf32, #tpu.memory_space<vmem>>, %arg22: memref<2x64x32xbf16, #tpu.memory_space<vmem>>, %arg23: memref<2x1x32xf32, #tpu.memory_space<vmem>>, %arg24: memref<1x32xf32, #tpu.memory_space<vmem>>, %arg25: memref<1x32xf32, #tpu.memory_space<vmem>>, %arg26: memref<1x32xf32, #tpu.memory_space<vmem>>, %arg27: memref<1x1xf32, #tpu.memory_space<vmem>>, %arg28: memref<32x4xbf16, #tpu.memory_space<vmem>>, %arg29: memref<1x4xf32, #tpu.memory_space<vmem>>, %arg30: memref<1x1x4xf32, #tpu.memory_space<vmem>>, %arg31: memref<16x32xf32, #tpu.memory_space<vmem>>) attributes {dimension_semantics = [#tpu.dimension_semantics<parallel>], iteration_bounds = array<i64: 2>, scalar_prefetch = 0 : i64, scratch_operands = 1 : i64, tpu.core_type = #tpu.core_type<tc>, window_params = [{transform_indices = @transform_0, window_bounds = array<i64: 1, 256, 1>}, {pipeline_mode = #tpu.pipeline_mode<synchronous>, transform_indices = @transform_1, window_bounds = array<i64: 9, 8>}, {pipeline_mode = #tpu.pipeline_mode<synchronous>, transform_indices = @transform_2, window_bounds = array<i64: 1, 8>}, {pipeline_mode = #tpu.pipeline_mode<synchronous>, transform_indices = @transform_3, window_bounds = array<i64: 72, 32>}, {pipeline_mode = #tpu.pipeline_mode<synchronous>, transform_indices = @transform_4, window_bounds = array<i64: 1, 32>}, {pipeline_mode = #tpu.pipeline_mode<synchronous>, transform_indices = @transform_5, window_bounds = array<i64: 256, 1>}, {pipeline_mode = #tpu.pipeline_mode<synchronous>, transform_indices = @transform_6, window_bounds = array<i64: 256, 1>}, {pipeline_mode = #tpu.pipeline_mode<synchronous>, transform_indices = @transform_7, window_bounds = array<i64: 64, 256>}, {pipeline_mode = #tpu.pipeline_mode<synchronous>, transform_indices = @transform_8, window_bounds = array<i64: 64, 1>}, {pipeline_mode = #tpu.pipeline_mode<synchronous>, transform_indices = @transform_9, window_bounds = array<i64: 64, 1>}, {pipeline_mode = #tpu.pipeline_mode<synchronous>, transform_indices = @transform_10, window_bounds = array<i64: 16, 64>}, {pipeline_mode = #tpu.pipeline_mode<synchronous>, transform_indices = @transform_11, window_bounds = array<i64: 16, 32>}, {pipeline_mode = #tpu.pipeline_mode<synchronous>, transform_indices = @transform_12, window_bounds = array<i64: 2, 1, 32>}, {pipeline_mode = #tpu.pipeline_mode<synchronous>, transform_indices = @transform_13, window_bounds = array<i64: 2, 1, 32>}, {pipeline_mode = #tpu.pipeline_mode<synchronous>, transform_indices = @transform_14, window_bounds = array<i64: 2, 32, 96>}, {pipeline_mode = #tpu.pipeline_mode<synchronous>, transform_indices = @transform_15, window_bounds = array<i64: 2, 32, 32>}, {pipeline_mode = #tpu.pipeline_mode<synchronous>, transform_indices = @transform_16, window_bounds = array<i64: 2, 1, 32>}, {pipeline_mode = #tpu.pipeline_mode<synchronous>, transform_indices = @transform_17, window_bounds = array<i64: 2, 1, 32>}, {pipeline_mode = #tpu.pipeline_mode<synchronous>, transform_indices = @transform_18, window_bounds = array<i64: 2, 1, 32>}, {pipeline_mode = #tpu.pipeline_mode<synchronous>, transform_indices = @transform_19, window_bounds = array<i64: 2, 32, 64>}, {pipeline_mode = #tpu.pipeline_mode<synchronous>, transform_indices = @transform_20, window_bounds = array<i64: 2, 1, 64>}, {pipeline_mode = #tpu.pipeline_mode<synchronous>, transform_indices = @transform_21, window_bounds = array<i64: 2, 64, 32>}, {pipeline_mode = #tpu.pipeline_mode<synchronous>, transform_indices = @transform_22, window_bounds = array<i64: 2, 1, 32>}, {pipeline_mode = #tpu.pipeline_mode<synchronous>, transform_indices = @transform_23, window_bounds = array<i64: 1, 32>}, {pipeline_mode = #tpu.pipeline_mode<synchronous>, transform_indices = @transform_24, window_bounds = array<i64: 1, 32>}, {pipeline_mode = #tpu.pipeline_mode<synchronous>, transform_indices = @transform_25, window_bounds = array<i64: 1, 32>}, {pipeline_mode = #tpu.pipeline_mode<synchronous>, transform_indices = @transform_26, window_bounds = array<i64: 1, 1>}, {pipeline_mode = #tpu.pipeline_mode<synchronous>, transform_indices = @transform_27, window_bounds = array<i64: 32, 4>}, {pipeline_mode = #tpu.pipeline_mode<synchronous>, transform_indices = @transform_28, window_bounds = array<i64: 1, 4>}, {transform_indices = @transform_29, window_bounds = array<i64: 1, 1, 4>}]} {
    %c0 = arith.constant 0 : index
    %c0_0 = arith.constant 0 : index
    %c0_1 = arith.constant 0 : index
    %0 = vector.load %arg1[%c0, %c0_0, %c0_1] : memref<1x256x1xf32, #tpu.memory_space<vmem>>, vector<1x256x1xf32>
    %1 = vector.shape_cast %0 : vector<1x256x1xf32> to vector<256x1xf32>
    %c0_2 = arith.constant 0 : index
    %c0_3 = arith.constant 0 : index
    %2 = vector.load %arg2[%c0_2, %c0_3] : memref<9x8xf32, #tpu.memory_space<vmem>>, vector<9x8xf32>
    %c0_4 = arith.constant 0 : index
    %c0_5 = arith.constant 0 : index
    %3 = vector.load %arg3[%c0_4, %c0_5] : memref<1x8xf32, #tpu.memory_space<vmem>>, vector<1x8xf32>
    %c0_6 = arith.constant 0 : index
    %c0_7 = arith.constant 0 : index
    %4 = vector.load %arg6[%c0_6, %c0_7] : memref<256x1xf32, #tpu.memory_space<vmem>>, vector<256x1xf32>
    %c0_8 = arith.constant 0 : index
    %c0_9 = arith.constant 0 : index
    %5 = vector.load %arg7[%c0_8, %c0_9] : memref<256x1xf32, #tpu.memory_space<vmem>>, vector<256x1xf32>
    %c0_10 = arith.constant 0 : index
    %c0_11 = arith.constant 0 : index
    %6 = vector.load %arg8[%c0_10, %c0_11] : memref<64x256xf32, #tpu.memory_space<vmem>>, vector<64x256xf32>
    %cst = arith.constant 0.000000e+00 : f32
    %7 = vector.broadcast %cst : f32 to vector<24x1xf32>
    %cst_12 = arith.constant 0.000000e+00 : f32
    %8 = vector.broadcast %cst_12 : f32 to vector<24x1xf32>
    %9 = tpu.concatenate %7, %1, %8 in 0 : vector<24x1xf32>, vector<256x1xf32>, vector<24x1xf32> -> vector<304x1xf32>
    %10 = vector.extract_strided_slice %9 {offsets = [7, 0], sizes = [256, 1], strides = [1, 1]} : vector<304x1xf32> to vector<256x1xf32>
    %11 = arith.mulf %10, %4 : vector<256x1xf32>
    %12 = vector.extract_strided_slice %2 {offsets = [0, 0], sizes = [1, 8], strides = [1, 1]} : vector<9x8xf32> to vector<1x8xf32>
    %13 = vector.broadcast %11 : vector<256x1xf32> to vector<256x8xf32>
    %14 = vector.broadcast %12 : vector<1x8xf32> to vector<256x8xf32>
    %15 = arith.mulf %13, %14 : vector<256x8xf32>
    %16 = vector.extract_strided_slice %9 {offsets = [8, 0], sizes = [256, 1], strides = [1, 1]} : vector<304x1xf32> to vector<256x1xf32>
    %17 = vector.extract_strided_slice %2 {offsets = [1, 0], sizes = [1, 8], strides = [1, 1]} : vector<9x8xf32> to vector<1x8xf32>
    %18 = vector.broadcast %16 : vector<256x1xf32> to vector<256x8xf32>
    %19 = vector.broadcast %17 : vector<1x8xf32> to vector<256x8xf32>
    %20 = arith.mulf %18, %19 : vector<256x8xf32>
    %21 = vector.extract_strided_slice %9 {offsets = [9, 0], sizes = [256, 1], strides = [1, 1]} : vector<304x1xf32> to vector<256x1xf32>
    %22 = arith.mulf %21, %5 : vector<256x1xf32>
    %23 = vector.extract_strided_slice %2 {offsets = [2, 0], sizes = [1, 8], strides = [1, 1]} : vector<9x8xf32> to vector<1x8xf32>
    %24 = vector.broadcast %22 : vector<256x1xf32> to vector<256x8xf32>
    %25 = vector.broadcast %23 : vector<1x8xf32> to vector<256x8xf32>
    %26 = arith.mulf %24, %25 : vector<256x8xf32>
    %27 = vector.extract_strided_slice %9 {offsets = [23, 0], sizes = [256, 1], strides = [1, 1]} : vector<304x1xf32> to vector<256x1xf32>
    %28 = arith.mulf %27, %4 : vector<256x1xf32>
    %29 = vector.extract_strided_slice %2 {offsets = [3, 0], sizes = [1, 8], strides = [1, 1]} : vector<9x8xf32> to vector<1x8xf32>
    %30 = vector.broadcast %28 : vector<256x1xf32> to vector<256x8xf32>
    %31 = vector.broadcast %29 : vector<1x8xf32> to vector<256x8xf32>
    %32 = arith.mulf %30, %31 : vector<256x8xf32>
    %33 = vector.extract_strided_slice %9 {offsets = [24, 0], sizes = [256, 1], strides = [1, 1]} : vector<304x1xf32> to vector<256x1xf32>
    %34 = vector.extract_strided_slice %2 {offsets = [4, 0], sizes = [1, 8], strides = [1, 1]} : vector<9x8xf32> to vector<1x8xf32>
    %35 = vector.broadcast %33 : vector<256x1xf32> to vector<256x8xf32>
    %36 = vector.broadcast %34 : vector<1x8xf32> to vector<256x8xf32>
    %37 = arith.mulf %35, %36 : vector<256x8xf32>
    %38 = vector.extract_strided_slice %9 {offsets = [25, 0], sizes = [256, 1], strides = [1, 1]} : vector<304x1xf32> to vector<256x1xf32>
    %39 = arith.mulf %38, %5 : vector<256x1xf32>
    %40 = vector.extract_strided_slice %2 {offsets = [5, 0], sizes = [1, 8], strides = [1, 1]} : vector<9x8xf32> to vector<1x8xf32>
    %41 = vector.broadcast %39 : vector<256x1xf32> to vector<256x8xf32>
    %42 = vector.broadcast %40 : vector<1x8xf32> to vector<256x8xf32>
    %43 = arith.mulf %41, %42 : vector<256x8xf32>
    %44 = vector.extract_strided_slice %9 {offsets = [39, 0], sizes = [256, 1], strides = [1, 1]} : vector<304x1xf32> to vector<256x1xf32>
    %45 = arith.mulf %44, %4 : vector<256x1xf32>
    %46 = vector.extract_strided_slice %2 {offsets = [6, 0], sizes = [1, 8], strides = [1, 1]} : vector<9x8xf32> to vector<1x8xf32>
    %47 = vector.broadcast %45 : vector<256x1xf32> to vector<256x8xf32>
    %48 = vector.broadcast %46 : vector<1x8xf32> to vector<256x8xf32>
    %49 = arith.mulf %47, %48 : vector<256x8xf32>
    %50 = vector.extract_strided_slice %9 {offsets = [40, 0], sizes = [256, 1], strides = [1, 1]} : vector<304x1xf32> to vector<256x1xf32>
    %51 = vector.extract_strided_slice %2 {offsets = [7, 0], sizes = [1, 8], strides = [1, 1]} : vector<9x8xf32> to vector<1x8xf32>
    %52 = vector.broadcast %50 : vector<256x1xf32> to vector<256x8xf32>
    %53 = vector.broadcast %51 : vector<1x8xf32> to vector<256x8xf32>
    %54 = arith.mulf %52, %53 : vector<256x8xf32>
    %55 = vector.extract_strided_slice %9 {offsets = [41, 0], sizes = [256, 1], strides = [1, 1]} : vector<304x1xf32> to vector<256x1xf32>
    %56 = arith.mulf %55, %5 : vector<256x1xf32>
    %57 = vector.extract_strided_slice %2 {offsets = [8, 0], sizes = [1, 8], strides = [1, 1]} : vector<9x8xf32> to vector<1x8xf32>
    %58 = vector.broadcast %56 : vector<256x1xf32> to vector<256x8xf32>
    %59 = vector.broadcast %57 : vector<1x8xf32> to vector<256x8xf32>
    %60 = arith.mulf %58, %59 : vector<256x8xf32>
    %61 = arith.addf %15, %20 : vector<256x8xf32>
    %62 = arith.addf %26, %32 : vector<256x8xf32>
    %63 = arith.addf %37, %43 : vector<256x8xf32>
    %64 = arith.addf %49, %54 : vector<256x8xf32>
    %65 = arith.addf %61, %62 : vector<256x8xf32>
    %66 = arith.addf %63, %64 : vector<256x8xf32>
    %67 = arith.addf %65, %66 : vector<256x8xf32>
    %68 = arith.addf %67, %60 : vector<256x8xf32>
    %69 = vector.broadcast %3 : vector<1x8xf32> to vector<256x8xf32>
    %70 = arith.addf %68, %69 : vector<256x8xf32>
    %cst_13 = arith.constant 0.000000e+00 : f32
    %71 = vector.broadcast %cst_13 : f32 to vector<256x8xf32>
    %72 = arith.maximumf %70, %71 : vector<256x8xf32>
    %cst_14 = arith.constant 0.000000e+00 : f32
    %73 = vector.broadcast %cst_14 : f32 to vector<24x8xf32>
    %cst_15 = arith.constant 0.000000e+00 : f32
    %74 = vector.broadcast %cst_15 : f32 to vector<24x8xf32>
    %75 = tpu.concatenate %73, %72, %74 in 0 : vector<24x8xf32>, vector<256x8xf32>, vector<24x8xf32> -> vector<304x8xf32>
    %76 = vector.extract_strided_slice %75 {offsets = [7, 0], sizes = [256, 8], strides = [1, 1]} : vector<304x8xf32> to vector<256x8xf32>
    %77 = vector.broadcast %4 : vector<256x1xf32> to vector<256x8xf32>
    %78 = arith.mulf %76, %77 : vector<256x8xf32>
    %79 = vector.extract_strided_slice %75 {offsets = [8, 0], sizes = [256, 8], strides = [1, 1]} : vector<304x8xf32> to vector<256x8xf32>
    %80 = vector.extract_strided_slice %75 {offsets = [9, 0], sizes = [256, 8], strides = [1, 1]} : vector<304x8xf32> to vector<256x8xf32>
    %81 = vector.broadcast %5 : vector<256x1xf32> to vector<256x8xf32>
    %82 = arith.mulf %80, %81 : vector<256x8xf32>
    %83 = vector.extract_strided_slice %75 {offsets = [23, 0], sizes = [256, 8], strides = [1, 1]} : vector<304x8xf32> to vector<256x8xf32>
    %84 = vector.broadcast %4 : vector<256x1xf32> to vector<256x8xf32>
    %85 = arith.mulf %83, %84 : vector<256x8xf32>
    %86 = vector.extract_strided_slice %75 {offsets = [24, 0], sizes = [256, 8], strides = [1, 1]} : vector<304x8xf32> to vector<256x8xf32>
    %87 = vector.extract_strided_slice %75 {offsets = [25, 0], sizes = [256, 8], strides = [1, 1]} : vector<304x8xf32> to vector<256x8xf32>
    %88 = vector.broadcast %5 : vector<256x1xf32> to vector<256x8xf32>
    %89 = arith.mulf %87, %88 : vector<256x8xf32>
    %90 = vector.extract_strided_slice %75 {offsets = [39, 0], sizes = [256, 8], strides = [1, 1]} : vector<304x8xf32> to vector<256x8xf32>
    %91 = vector.broadcast %4 : vector<256x1xf32> to vector<256x8xf32>
    %92 = arith.mulf %90, %91 : vector<256x8xf32>
    %93 = vector.extract_strided_slice %75 {offsets = [40, 0], sizes = [256, 8], strides = [1, 1]} : vector<304x8xf32> to vector<256x8xf32>
    %94 = vector.extract_strided_slice %75 {offsets = [41, 0], sizes = [256, 8], strides = [1, 1]} : vector<304x8xf32> to vector<256x8xf32>
    %95 = vector.broadcast %5 : vector<256x1xf32> to vector<256x8xf32>
    %96 = arith.mulf %94, %95 : vector<256x8xf32>
    %97 = arith.maximumf %78, %79 : vector<256x8xf32>
    %98 = arith.maximumf %82, %85 : vector<256x8xf32>
    %99 = arith.maximumf %86, %89 : vector<256x8xf32>
    %100 = arith.maximumf %92, %93 : vector<256x8xf32>
    %101 = arith.maximumf %97, %98 : vector<256x8xf32>
    %102 = arith.maximumf %99, %100 : vector<256x8xf32>
    %103 = arith.maximumf %101, %102 : vector<256x8xf32>
    %104 = arith.maximumf %103, %96 : vector<256x8xf32>
    %cst_16 = arith.constant dense<0.000000e+00> : vector<64x8xf32>
    %105 = tpu.matmul %6, %104, %cst_16 {dimension_numbers = #tpu.dot_dimension_numbers<[1], [0], [0], [1], [0, 0, 1, 1], [], []>} : vector<64x256xf32>, vector<256x8xf32>, vector<64x8xf32> -> vector<64x8xf32>
    %c0_17 = arith.constant 0 : index
    %c0_18 = arith.constant 0 : index
    %106 = vector.load %arg4[%c0_17, %c0_18] : memref<72x32xbf16, #tpu.memory_space<vmem>>, vector<72x32xbf16>
    %c0_19 = arith.constant 0 : index
    %c0_20 = arith.constant 0 : index
    %107 = vector.load %arg5[%c0_19, %c0_20] : memref<1x32xf32, #tpu.memory_space<vmem>>, vector<1x32xf32>
    %c0_21 = arith.constant 0 : index
    %c0_22 = arith.constant 0 : index
    %108 = vector.load %arg9[%c0_21, %c0_22] : memref<64x1xf32, #tpu.memory_space<vmem>>, vector<64x1xf32>
    %c0_23 = arith.constant 0 : index
    %c0_24 = arith.constant 0 : index
    %109 = vector.load %arg10[%c0_23, %c0_24] : memref<64x1xf32, #tpu.memory_space<vmem>>, vector<64x1xf32>
    %c0_25 = arith.constant 0 : index
    %c0_26 = arith.constant 0 : index
    %110 = vector.load %arg11[%c0_25, %c0_26] : memref<16x64xf32, #tpu.memory_space<vmem>>, vector<16x64xf32>
    %cst_27 = arith.constant 0.000000e+00 : f32
    %111 = vector.broadcast %cst_27 : f32 to vector<16x8xf32>
    %cst_28 = arith.constant 0.000000e+00 : f32
    %112 = vector.broadcast %cst_28 : f32 to vector<16x8xf32>
    %113 = tpu.concatenate %111, %105, %112 in 0 : vector<16x8xf32>, vector<64x8xf32>, vector<16x8xf32> -> vector<96x8xf32>
    %114 = vector.extract_strided_slice %113 {offsets = [7, 0], sizes = [64, 8], strides = [1, 1]} : vector<96x8xf32> to vector<64x8xf32>
    %115 = vector.broadcast %108 : vector<64x1xf32> to vector<64x8xf32>
    %116 = arith.mulf %114, %115 : vector<64x8xf32>
    %117 = vector.extract_strided_slice %106 {offsets = [0, 0], sizes = [8, 32], strides = [1, 1]} : vector<72x32xbf16> to vector<8x32xbf16>
    %118 = arith.truncf %116 : vector<64x8xf32> to vector<64x8xbf16>
    %cst_29 = arith.constant dense<0.000000e+00> : vector<64x32xf32>
    %119 = tpu.matmul %118, %117, %cst_29 {dimension_numbers = #tpu.dot_dimension_numbers<[1], [0], [0], [1], [0, 0, 1, 1], [], []>} : vector<64x8xbf16>, vector<8x32xbf16>, vector<64x32xf32> -> vector<64x32xf32>
    %120 = vector.extract_strided_slice %113 {offsets = [8, 0], sizes = [64, 8], strides = [1, 1]} : vector<96x8xf32> to vector<64x8xf32>
    %121 = vector.extract_strided_slice %106 {offsets = [8, 0], sizes = [8, 32], strides = [1, 1]} : vector<72x32xbf16> to vector<8x32xbf16>
    %122 = arith.truncf %120 : vector<64x8xf32> to vector<64x8xbf16>
    %cst_30 = arith.constant dense<0.000000e+00> : vector<64x32xf32>
    %123 = tpu.matmul %122, %121, %cst_30 {dimension_numbers = #tpu.dot_dimension_numbers<[1], [0], [0], [1], [0, 0, 1, 1], [], []>} : vector<64x8xbf16>, vector<8x32xbf16>, vector<64x32xf32> -> vector<64x32xf32>
    %124 = vector.extract_strided_slice %113 {offsets = [9, 0], sizes = [64, 8], strides = [1, 1]} : vector<96x8xf32> to vector<64x8xf32>
    %125 = vector.broadcast %109 : vector<64x1xf32> to vector<64x8xf32>
    %126 = arith.mulf %124, %125 : vector<64x8xf32>
    %127 = vector.extract_strided_slice %106 {offsets = [16, 0], sizes = [8, 32], strides = [1, 1]} : vector<72x32xbf16> to vector<8x32xbf16>
    %128 = arith.truncf %126 : vector<64x8xf32> to vector<64x8xbf16>
    %cst_31 = arith.constant dense<0.000000e+00> : vector<64x32xf32>
    %129 = tpu.matmul %128, %127, %cst_31 {dimension_numbers = #tpu.dot_dimension_numbers<[1], [0], [0], [1], [0, 0, 1, 1], [], []>} : vector<64x8xbf16>, vector<8x32xbf16>, vector<64x32xf32> -> vector<64x32xf32>
    %130 = vector.extract_strided_slice %113 {offsets = [15, 0], sizes = [64, 8], strides = [1, 1]} : vector<96x8xf32> to vector<64x8xf32>
    %131 = vector.broadcast %108 : vector<64x1xf32> to vector<64x8xf32>
    %132 = arith.mulf %130, %131 : vector<64x8xf32>
    %133 = vector.extract_strided_slice %106 {offsets = [24, 0], sizes = [8, 32], strides = [1, 1]} : vector<72x32xbf16> to vector<8x32xbf16>
    %134 = arith.truncf %132 : vector<64x8xf32> to vector<64x8xbf16>
    %cst_32 = arith.constant dense<0.000000e+00> : vector<64x32xf32>
    %135 = tpu.matmul %134, %133, %cst_32 {dimension_numbers = #tpu.dot_dimension_numbers<[1], [0], [0], [1], [0, 0, 1, 1], [], []>} : vector<64x8xbf16>, vector<8x32xbf16>, vector<64x32xf32> -> vector<64x32xf32>
    %136 = vector.extract_strided_slice %113 {offsets = [16, 0], sizes = [64, 8], strides = [1, 1]} : vector<96x8xf32> to vector<64x8xf32>
    %137 = vector.extract_strided_slice %106 {offsets = [32, 0], sizes = [8, 32], strides = [1, 1]} : vector<72x32xbf16> to vector<8x32xbf16>
    %138 = arith.truncf %136 : vector<64x8xf32> to vector<64x8xbf16>
    %cst_33 = arith.constant dense<0.000000e+00> : vector<64x32xf32>
    %139 = tpu.matmul %138, %137, %cst_33 {dimension_numbers = #tpu.dot_dimension_numbers<[1], [0], [0], [1], [0, 0, 1, 1], [], []>} : vector<64x8xbf16>, vector<8x32xbf16>, vector<64x32xf32> -> vector<64x32xf32>
    %140 = vector.extract_strided_slice %113 {offsets = [17, 0], sizes = [64, 8], strides = [1, 1]} : vector<96x8xf32> to vector<64x8xf32>
    %141 = vector.broadcast %109 : vector<64x1xf32> to vector<64x8xf32>
    %142 = arith.mulf %140, %141 : vector<64x8xf32>
    %143 = vector.extract_strided_slice %106 {offsets = [40, 0], sizes = [8, 32], strides = [1, 1]} : vector<72x32xbf16> to vector<8x32xbf16>
    %144 = arith.truncf %142 : vector<64x8xf32> to vector<64x8xbf16>
    %cst_34 = arith.constant dense<0.000000e+00> : vector<64x32xf32>
    %145 = tpu.matmul %144, %143, %cst_34 {dimension_numbers = #tpu.dot_dimension_numbers<[1], [0], [0], [1], [0, 0, 1, 1], [], []>} : vector<64x8xbf16>, vector<8x32xbf16>, vector<64x32xf32> -> vector<64x32xf32>
    %146 = vector.extract_strided_slice %113 {offsets = [23, 0], sizes = [64, 8], strides = [1, 1]} : vector<96x8xf32> to vector<64x8xf32>
    %147 = vector.broadcast %108 : vector<64x1xf32> to vector<64x8xf32>
    %148 = arith.mulf %146, %147 : vector<64x8xf32>
    %149 = vector.extract_strided_slice %106 {offsets = [48, 0], sizes = [8, 32], strides = [1, 1]} : vector<72x32xbf16> to vector<8x32xbf16>
    %150 = arith.truncf %148 : vector<64x8xf32> to vector<64x8xbf16>
    %cst_35 = arith.constant dense<0.000000e+00> : vector<64x32xf32>
    %151 = tpu.matmul %150, %149, %cst_35 {dimension_numbers = #tpu.dot_dimension_numbers<[1], [0], [0], [1], [0, 0, 1, 1], [], []>} : vector<64x8xbf16>, vector<8x32xbf16>, vector<64x32xf32> -> vector<64x32xf32>
    %152 = vector.extract_strided_slice %113 {offsets = [24, 0], sizes = [64, 8], strides = [1, 1]} : vector<96x8xf32> to vector<64x8xf32>
    %153 = vector.extract_strided_slice %106 {offsets = [56, 0], sizes = [8, 32], strides = [1, 1]} : vector<72x32xbf16> to vector<8x32xbf16>
    %154 = arith.truncf %152 : vector<64x8xf32> to vector<64x8xbf16>
    %cst_36 = arith.constant dense<0.000000e+00> : vector<64x32xf32>
    %155 = tpu.matmul %154, %153, %cst_36 {dimension_numbers = #tpu.dot_dimension_numbers<[1], [0], [0], [1], [0, 0, 1, 1], [], []>} : vector<64x8xbf16>, vector<8x32xbf16>, vector<64x32xf32> -> vector<64x32xf32>
    %156 = vector.extract_strided_slice %113 {offsets = [25, 0], sizes = [64, 8], strides = [1, 1]} : vector<96x8xf32> to vector<64x8xf32>
    %157 = vector.broadcast %109 : vector<64x1xf32> to vector<64x8xf32>
    %158 = arith.mulf %156, %157 : vector<64x8xf32>
    %159 = vector.extract_strided_slice %106 {offsets = [64, 0], sizes = [8, 32], strides = [1, 1]} : vector<72x32xbf16> to vector<8x32xbf16>
    %160 = arith.truncf %158 : vector<64x8xf32> to vector<64x8xbf16>
    %cst_37 = arith.constant dense<0.000000e+00> : vector<64x32xf32>
    %161 = tpu.matmul %160, %159, %cst_37 {dimension_numbers = #tpu.dot_dimension_numbers<[1], [0], [0], [1], [0, 0, 1, 1], [], []>} : vector<64x8xbf16>, vector<8x32xbf16>, vector<64x32xf32> -> vector<64x32xf32>
    %162 = arith.addf %119, %123 : vector<64x32xf32>
    %163 = arith.addf %129, %135 : vector<64x32xf32>
    %164 = arith.addf %139, %145 : vector<64x32xf32>
    %165 = arith.addf %151, %155 : vector<64x32xf32>
    %166 = arith.addf %162, %163 : vector<64x32xf32>
    %167 = arith.addf %164, %165 : vector<64x32xf32>
    %168 = arith.addf %166, %167 : vector<64x32xf32>
    %169 = arith.addf %168, %161 : vector<64x32xf32>
    %170 = vector.broadcast %107 : vector<1x32xf32> to vector<64x32xf32>
    %171 = arith.addf %169, %170 : vector<64x32xf32>
    %cst_38 = arith.constant 0.000000e+00 : f32
    %172 = vector.broadcast %cst_38 : f32 to vector<64x32xf32>
    %173 = arith.maximumf %171, %172 : vector<64x32xf32>
    %cst_39 = arith.constant 0.000000e+00 : f32
    %174 = vector.broadcast %cst_39 : f32 to vector<16x32xf32>
    %cst_40 = arith.constant 0.000000e+00 : f32
    %175 = vector.broadcast %cst_40 : f32 to vector<16x32xf32>
    %176 = tpu.concatenate %174, %173, %175 in 0 : vector<16x32xf32>, vector<64x32xf32>, vector<16x32xf32> -> vector<96x32xf32>
    %177 = vector.extract_strided_slice %176 {offsets = [7, 0], sizes = [64, 32], strides = [1, 1]} : vector<96x32xf32> to vector<64x32xf32>
    %178 = vector.broadcast %108 : vector<64x1xf32> to vector<64x32xf32>
    %179 = arith.mulf %177, %178 : vector<64x32xf32>
    %180 = vector.extract_strided_slice %176 {offsets = [8, 0], sizes = [64, 32], strides = [1, 1]} : vector<96x32xf32> to vector<64x32xf32>
    %181 = vector.extract_strided_slice %176 {offsets = [9, 0], sizes = [64, 32], strides = [1, 1]} : vector<96x32xf32> to vector<64x32xf32>
    %182 = vector.broadcast %109 : vector<64x1xf32> to vector<64x32xf32>
    %183 = arith.mulf %181, %182 : vector<64x32xf32>
    %184 = vector.extract_strided_slice %176 {offsets = [15, 0], sizes = [64, 32], strides = [1, 1]} : vector<96x32xf32> to vector<64x32xf32>
    %185 = vector.broadcast %108 : vector<64x1xf32> to vector<64x32xf32>
    %186 = arith.mulf %184, %185 : vector<64x32xf32>
    %187 = vector.extract_strided_slice %176 {offsets = [16, 0], sizes = [64, 32], strides = [1, 1]} : vector<96x32xf32> to vector<64x32xf32>
    %188 = vector.extract_strided_slice %176 {offsets = [17, 0], sizes = [64, 32], strides = [1, 1]} : vector<96x32xf32> to vector<64x32xf32>
    %189 = vector.broadcast %109 : vector<64x1xf32> to vector<64x32xf32>
    %190 = arith.mulf %188, %189 : vector<64x32xf32>
    %191 = vector.extract_strided_slice %176 {offsets = [23, 0], sizes = [64, 32], strides = [1, 1]} : vector<96x32xf32> to vector<64x32xf32>
    %192 = vector.broadcast %108 : vector<64x1xf32> to vector<64x32xf32>
    %193 = arith.mulf %191, %192 : vector<64x32xf32>
    %194 = vector.extract_strided_slice %176 {offsets = [24, 0], sizes = [64, 32], strides = [1, 1]} : vector<96x32xf32> to vector<64x32xf32>
    %195 = vector.extract_strided_slice %176 {offsets = [25, 0], sizes = [64, 32], strides = [1, 1]} : vector<96x32xf32> to vector<64x32xf32>
    %196 = vector.broadcast %109 : vector<64x1xf32> to vector<64x32xf32>
    %197 = arith.mulf %195, %196 : vector<64x32xf32>
    %198 = arith.maximumf %179, %180 : vector<64x32xf32>
    %199 = arith.maximumf %183, %186 : vector<64x32xf32>
    %200 = arith.maximumf %187, %190 : vector<64x32xf32>
    %201 = arith.maximumf %193, %194 : vector<64x32xf32>
    %202 = arith.maximumf %198, %199 : vector<64x32xf32>
    %203 = arith.maximumf %200, %201 : vector<64x32xf32>
    %204 = arith.maximumf %202, %203 : vector<64x32xf32>
    %205 = arith.maximumf %204, %197 : vector<64x32xf32>
    %cst_41 = arith.constant dense<0.000000e+00> : vector<16x32xf32>
    %206 = tpu.matmul %110, %205, %cst_41 {dimension_numbers = #tpu.dot_dimension_numbers<[1], [0], [0], [1], [0, 0, 1, 1], [], []>} : vector<16x64xf32>, vector<64x32xf32>, vector<16x32xf32> -> vector<16x32xf32>
    %c0_42 = arith.constant 0 : index
    %c0_43 = arith.constant 0 : index
    %207 = vector.load %arg12[%c0_42, %c0_43] : memref<16x32xf32, #tpu.memory_space<vmem>>, vector<16x32xf32>
    %208 = arith.addf %206, %207 : vector<16x32xf32>
    %c0_44 = arith.constant 0 : index
    %c0_45 = arith.constant 0 : index
    %c0_46 = arith.constant 0 : index
    %209 = vector.load %arg13[%c0_44, %c0_45, %c0_46] : memref<2x1x32xf32, #tpu.memory_space<vmem>>, vector<1x1x32xf32>
    %210 = vector.shape_cast %209 : vector<1x1x32xf32> to vector<1x32xf32>
    %c0_47 = arith.constant 0 : index
    %c0_48 = arith.constant 0 : index
    %c0_49 = arith.constant 0 : index
    %211 = vector.load %arg14[%c0_47, %c0_48, %c0_49] : memref<2x1x32xf32, #tpu.memory_space<vmem>>, vector<1x1x32xf32>
    %212 = vector.shape_cast %211 : vector<1x1x32xf32> to vector<1x32xf32>
    %cst_50 = arith.constant dense<0.000000e+00> : vector<16xf32>
    %213 = vector.multi_reduction <add>, %208, %cst_50 [1] : vector<16x32xf32> to vector<16xf32>
    %214 = vector.shape_cast %213 : vector<16xf32> to vector<16x1xf32>
    %cst_51 = arith.constant 3.200000e+01 : f32
    %215 = vector.broadcast %cst_51 : f32 to vector<16x1xf32>
    %216 = arith.divf %214, %215 : vector<16x1xf32>
    %217 = vector.broadcast %216 : vector<16x1xf32> to vector<16x32xf32>
    %218 = arith.subf %208, %217 : vector<16x32xf32>
    %219 = arith.mulf %218, %218 : vector<16x32xf32>
    %cst_52 = arith.constant dense<0.000000e+00> : vector<16xf32>
    %220 = vector.multi_reduction <add>, %219, %cst_52 [1] : vector<16x32xf32> to vector<16xf32>
    %221 = vector.shape_cast %220 : vector<16xf32> to vector<16x1xf32>
    %cst_53 = arith.constant 3.200000e+01 : f32
    %222 = vector.broadcast %cst_53 : f32 to vector<16x1xf32>
    %223 = arith.divf %221, %222 : vector<16x1xf32>
    %cst_54 = arith.constant 9.99999974E-6 : f32
    %224 = vector.broadcast %cst_54 : f32 to vector<16x1xf32>
    %225 = arith.addf %223, %224 : vector<16x1xf32>
    %226 = math.rsqrt %225 : vector<16x1xf32>
    %227 = vector.broadcast %226 : vector<16x1xf32> to vector<16x32xf32>
    %228 = arith.mulf %218, %227 : vector<16x32xf32>
    %229 = vector.broadcast %210 : vector<1x32xf32> to vector<16x32xf32>
    %230 = arith.mulf %228, %229 : vector<16x32xf32>
    %231 = vector.broadcast %212 : vector<1x32xf32> to vector<16x32xf32>
    %232 = arith.addf %230, %231 : vector<16x32xf32>
    %233 = arith.truncf %232 : vector<16x32xf32> to vector<16x32xbf16>
    %c0_55 = arith.constant 0 : index
    %c0_56 = arith.constant 0 : index
    %c0_57 = arith.constant 0 : index
    %234 = vector.load %arg15[%c0_55, %c0_56, %c0_57] : memref<2x32x96xbf16, #tpu.memory_space<vmem>>, vector<1x32x96xbf16>
    %235 = vector.shape_cast %234 : vector<1x32x96xbf16> to vector<32x96xbf16>
    %cst_58 = arith.constant dense<0.000000e+00> : vector<16x96xf32>
    %236 = tpu.matmul %233, %235, %cst_58 {dimension_numbers = #tpu.dot_dimension_numbers<[1], [0], [0], [1], [0, 0, 1, 1], [], []>} : vector<16x32xbf16>, vector<32x96xbf16>, vector<16x96xf32> -> vector<16x96xf32>
    %237 = vector.extract_strided_slice %236 {offsets = [0, 0], sizes = [16, 16], strides = [1, 1]} : vector<16x96xf32> to vector<16x16xf32>
    %238 = vector.extract_strided_slice %236 {offsets = [0, 32], sizes = [16, 16], strides = [1, 1]} : vector<16x96xf32> to vector<16x16xf32>
    %239 = vector.extract_strided_slice %236 {offsets = [0, 64], sizes = [16, 16], strides = [1, 1]} : vector<16x96xf32> to vector<16x16xf32>
    %240 = arith.truncf %237 : vector<16x16xf32> to vector<16x16xbf16>
    %241 = arith.truncf %238 : vector<16x16xf32> to vector<16x16xbf16>
    %cst_59 = arith.constant dense<0.000000e+00> : vector<16x16xf32>
    %242 = tpu.matmul %240, %241, %cst_59 {dimension_numbers = #tpu.dot_dimension_numbers<[1], [1], [0], [0], [0, 0, 1, 0], [], []>} : vector<16x16xbf16>, vector<16x16xbf16>, vector<16x16xf32> -> vector<16x16xf32>
    %cst_60 = arith.constant 2.500000e-01 : f32
    %243 = vector.broadcast %cst_60 : f32 to vector<16x16xf32>
    %244 = arith.mulf %242, %243 : vector<16x16xf32>
    %cst_61 = arith.constant dense<0xFF800000> : vector<16xf32>
    %245 = vector.multi_reduction <maximumf>, %244, %cst_61 [1] : vector<16x16xf32> to vector<16xf32>
    %246 = vector.shape_cast %245 : vector<16xf32> to vector<16x1xf32>
    %247 = vector.broadcast %246 : vector<16x1xf32> to vector<16x16xf32>
    %248 = arith.subf %244, %247 : vector<16x16xf32>
    %249 = math.exp %248 : vector<16x16xf32>
    %cst_62 = arith.constant dense<0.000000e+00> : vector<16xf32>
    %250 = vector.multi_reduction <add>, %249, %cst_62 [1] : vector<16x16xf32> to vector<16xf32>
    %251 = vector.shape_cast %250 : vector<16xf32> to vector<16x1xf32>
    %252 = tpu.reciprocal %251 {approx = true} : vector<16x1xf32> -> vector<16x1xf32>
    %253 = vector.broadcast %252 : vector<16x1xf32> to vector<16x16xf32>
    %254 = arith.mulf %249, %253 : vector<16x16xf32>
    %255 = arith.truncf %254 : vector<16x16xf32> to vector<16x16xbf16>
    %256 = arith.truncf %239 : vector<16x16xf32> to vector<16x16xbf16>
    %cst_63 = arith.constant dense<0.000000e+00> : vector<16x16xf32>
    %257 = tpu.matmul %255, %256, %cst_63 {dimension_numbers = #tpu.dot_dimension_numbers<[1], [0], [0], [1], [0, 0, 1, 1], [], []>} : vector<16x16xbf16>, vector<16x16xbf16>, vector<16x16xf32> -> vector<16x16xf32>
    %c0_64 = arith.constant 0 : index
    %c0_65 = arith.constant 0 : index
    %258 = vector.load %arg31[%c0_64, %c0_65] : memref<16x32xf32, #tpu.memory_space<vmem>>, vector<16x16xf32>
    tpu.vector_store %arg31[%c0_64, %c0_65], %257 {strides = array<i32>} : memref<16x32xf32, #tpu.memory_space<vmem>>, vector<16x16xf32>,
    %259 = vector.extract_strided_slice %236 {offsets = [0, 16], sizes = [16, 16], strides = [1, 1]} : vector<16x96xf32> to vector<16x16xf32>
    %260 = vector.extract_strided_slice %236 {offsets = [0, 48], sizes = [16, 16], strides = [1, 1]} : vector<16x96xf32> to vector<16x16xf32>
    %261 = vector.extract_strided_slice %236 {offsets = [0, 80], sizes = [16, 16], strides = [1, 1]} : vector<16x96xf32> to vector<16x16xf32>
    %262 = arith.truncf %259 : vector<16x16xf32> to vector<16x16xbf16>
    %263 = arith.truncf %260 : vector<16x16xf32> to vector<16x16xbf16>
    %cst_66 = arith.constant dense<0.000000e+00> : vector<16x16xf32>
    %264 = tpu.matmul %262, %263, %cst_66 {dimension_numbers = #tpu.dot_dimension_numbers<[1], [1], [0], [0], [0, 0, 1, 0], [], []>} : vector<16x16xbf16>, vector<16x16xbf16>, vector<16x16xf32> -> vector<16x16xf32>
    %cst_67 = arith.constant 2.500000e-01 : f32
    %265 = vector.broadcast %cst_67 : f32 to vector<16x16xf32>
    %266 = arith.mulf %264, %265 : vector<16x16xf32>
    %cst_68 = arith.constant dense<0xFF800000> : vector<16xf32>
    %267 = vector.multi_reduction <maximumf>, %266, %cst_68 [1] : vector<16x16xf32> to vector<16xf32>
    %268 = vector.shape_cast %267 : vector<16xf32> to vector<16x1xf32>
    %269 = vector.broadcast %268 : vector<16x1xf32> to vector<16x16xf32>
    %270 = arith.subf %266, %269 : vector<16x16xf32>
    %271 = math.exp %270 : vector<16x16xf32>
    %cst_69 = arith.constant dense<0.000000e+00> : vector<16xf32>
    %272 = vector.multi_reduction <add>, %271, %cst_69 [1] : vector<16x16xf32> to vector<16xf32>
    %273 = vector.shape_cast %272 : vector<16xf32> to vector<16x1xf32>
    %274 = tpu.reciprocal %273 {approx = true} : vector<16x1xf32> -> vector<16x1xf32>
    %275 = vector.broadcast %274 : vector<16x1xf32> to vector<16x16xf32>
    %276 = arith.mulf %271, %275 : vector<16x16xf32>
    %277 = arith.truncf %276 : vector<16x16xf32> to vector<16x16xbf16>
    %278 = arith.truncf %261 : vector<16x16xf32> to vector<16x16xbf16>
    %cst_70 = arith.constant dense<0.000000e+00> : vector<16x16xf32>
    %279 = tpu.matmul %277, %278, %cst_70 {dimension_numbers = #tpu.dot_dimension_numbers<[1], [0], [0], [1], [0, 0, 1, 1], [], []>} : vector<16x16xbf16>, vector<16x16xbf16>, vector<16x16xf32> -> vector<16x16xf32>
    %c0_71 = arith.constant 0 : index
    %c16 = arith.constant 16 : index
    %280 = vector.load %arg31[%c0_71, %c16] : memref<16x32xf32, #tpu.memory_space<vmem>>, vector<16x16xf32>
    tpu.vector_store %arg31[%c0_71, %c16], %279 {strides = array<i32>} : memref<16x32xf32, #tpu.memory_space<vmem>>, vector<16x16xf32>,
    %c0_72 = arith.constant 0 : index
    %c0_73 = arith.constant 0 : index
    %281 = vector.load %arg31[%c0_72, %c0_73] : memref<16x32xf32, #tpu.memory_space<vmem>>, vector<16x32xf32>
    %282 = arith.truncf %281 : vector<16x32xf32> to vector<16x32xbf16>
    %c0_74 = arith.constant 0 : index
    %c0_75 = arith.constant 0 : index
    %c0_76 = arith.constant 0 : index
    %283 = vector.load %arg16[%c0_74, %c0_75, %c0_76] : memref<2x32x32xbf16, #tpu.memory_space<vmem>>, vector<1x32x32xbf16>
    %284 = vector.shape_cast %283 : vector<1x32x32xbf16> to vector<32x32xbf16>
    %cst_77 = arith.constant dense<0.000000e+00> : vector<16x32xf32>
    %285 = tpu.matmul %282, %284, %cst_77 {dimension_numbers = #tpu.dot_dimension_numbers<[1], [0], [0], [1], [0, 0, 1, 1], [], []>} : vector<16x32xbf16>, vector<32x32xbf16>, vector<16x32xf32> -> vector<16x32xf32>
    %c0_78 = arith.constant 0 : index
    %c0_79 = arith.constant 0 : index
    %c0_80 = arith.constant 0 : index
    %286 = vector.load %arg17[%c0_78, %c0_79, %c0_80] : memref<2x1x32xf32, #tpu.memory_space<vmem>>, vector<1x1x32xf32>
    %287 = vector.shape_cast %286 : vector<1x1x32xf32> to vector<1x32xf32>
    %288 = vector.broadcast %287 : vector<1x32xf32> to vector<16x32xf32>
    %289 = arith.addf %285, %288 : vector<16x32xf32>
    %290 = arith.addf %208, %289 : vector<16x32xf32>
    %c0_81 = arith.constant 0 : index
    %c0_82 = arith.constant 0 : index
    %c0_83 = arith.constant 0 : index
    %291 = vector.load %arg18[%c0_81, %c0_82, %c0_83] : memref<2x1x32xf32, #tpu.memory_space<vmem>>, vector<1x1x32xf32>
    %292 = vector.shape_cast %291 : vector<1x1x32xf32> to vector<1x32xf32>
    %c0_84 = arith.constant 0 : index
    %c0_85 = arith.constant 0 : index
    %c0_86 = arith.constant 0 : index
    %293 = vector.load %arg19[%c0_84, %c0_85, %c0_86] : memref<2x1x32xf32, #tpu.memory_space<vmem>>, vector<1x1x32xf32>
    %294 = vector.shape_cast %293 : vector<1x1x32xf32> to vector<1x32xf32>
    %cst_87 = arith.constant dense<0.000000e+00> : vector<16xf32>
    %295 = vector.multi_reduction <add>, %290, %cst_87 [1] : vector<16x32xf32> to vector<16xf32>
    %296 = vector.shape_cast %295 : vector<16xf32> to vector<16x1xf32>
    %cst_88 = arith.constant 3.200000e+01 : f32
    %297 = vector.broadcast %cst_88 : f32 to vector<16x1xf32>
    %298 = arith.divf %296, %297 : vector<16x1xf32>
    %299 = vector.broadcast %298 : vector<16x1xf32> to vector<16x32xf32>
    %300 = arith.subf %290, %299 : vector<16x32xf32>
    %301 = arith.mulf %300, %300 : vector<16x32xf32>
    %cst_89 = arith.constant dense<0.000000e+00> : vector<16xf32>
    %302 = vector.multi_reduction <add>, %301, %cst_89 [1] : vector<16x32xf32> to vector<16xf32>
    %303 = vector.shape_cast %302 : vector<16xf32> to vector<16x1xf32>
    %cst_90 = arith.constant 3.200000e+01 : f32
    %304 = vector.broadcast %cst_90 : f32 to vector<16x1xf32>
    %305 = arith.divf %303, %304 : vector<16x1xf32>
    %cst_91 = arith.constant 9.99999974E-6 : f32
    %306 = vector.broadcast %cst_91 : f32 to vector<16x1xf32>
    %307 = arith.addf %305, %306 : vector<16x1xf32>
    %308 = math.rsqrt %307 : vector<16x1xf32>
    %309 = vector.broadcast %308 : vector<16x1xf32> to vector<16x32xf32>
    %310 = arith.mulf %300, %309 : vector<16x32xf32>
    %311 = vector.broadcast %292 : vector<1x32xf32> to vector<16x32xf32>
    %312 = arith.mulf %310, %311 : vector<16x32xf32>
    %313 = vector.broadcast %294 : vector<1x32xf32> to vector<16x32xf32>
    %314 = arith.addf %312, %313 : vector<16x32xf32>
    %315 = arith.truncf %314 : vector<16x32xf32> to vector<16x32xbf16>
    %c0_92 = arith.constant 0 : index
    %c0_93 = arith.constant 0 : index
    %c0_94 = arith.constant 0 : index
    %316 = vector.load %arg20[%c0_92, %c0_93, %c0_94] : memref<2x32x64xbf16, #tpu.memory_space<vmem>>, vector<1x32x64xbf16>
    %317 = vector.shape_cast %316 : vector<1x32x64xbf16> to vector<32x64xbf16>
    %cst_95 = arith.constant dense<0.000000e+00> : vector<16x64xf32>
    %318 = tpu.matmul %315, %317, %cst_95 {dimension_numbers = #tpu.dot_dimension_numbers<[1], [0], [0], [1], [0, 0, 1, 1], [], []>} : vector<16x32xbf16>, vector<32x64xbf16>, vector<16x64xf32> -> vector<16x64xf32>
    %c0_96 = arith.constant 0 : index
    %c0_97 = arith.constant 0 : index
    %c0_98 = arith.constant 0 : index
    %319 = vector.load %arg21[%c0_96, %c0_97, %c0_98] : memref<2x1x64xf32, #tpu.memory_space<vmem>>, vector<1x1x64xf32>
    %320 = vector.shape_cast %319 : vector<1x1x64xf32> to vector<1x64xf32>
    %321 = vector.broadcast %320 : vector<1x64xf32> to vector<16x64xf32>
    %322 = arith.addf %318, %321 : vector<16x64xf32>
    %cst_99 = arith.constant 5.000000e-01 : f32
    %323 = vector.broadcast %cst_99 : f32 to vector<16x64xf32>
    %324 = arith.mulf %323, %322 : vector<16x64xf32>
    %cst_100 = arith.constant 1.41421354 : f32
    %325 = vector.broadcast %cst_100 : f32 to vector<16x64xf32>
    %326 = arith.divf %322, %325 : vector<16x64xf32>
    %327 = math.erf %326 : vector<16x64xf32>
    %cst_101 = arith.constant 1.000000e+00 : f32
    %328 = vector.broadcast %cst_101 : f32 to vector<16x64xf32>
    %329 = arith.addf %328, %327 : vector<16x64xf32>
    %330 = arith.mulf %324, %329 : vector<16x64xf32>
    %331 = arith.truncf %330 : vector<16x64xf32> to vector<16x64xbf16>
    %c0_102 = arith.constant 0 : index
    %c0_103 = arith.constant 0 : index
    %c0_104 = arith.constant 0 : index
    %332 = vector.load %arg22[%c0_102, %c0_103, %c0_104] : memref<2x64x32xbf16, #tpu.memory_space<vmem>>, vector<1x64x32xbf16>
    %333 = vector.shape_cast %332 : vector<1x64x32xbf16> to vector<64x32xbf16>
    %cst_105 = arith.constant dense<0.000000e+00> : vector<16x32xf32>
    %334 = tpu.matmul %331, %333, %cst_105 {dimension_numbers = #tpu.dot_dimension_numbers<[1], [0], [0], [1], [0, 0, 1, 1], [], []>} : vector<16x64xbf16>, vector<64x32xbf16>, vector<16x32xf32> -> vector<16x32xf32>
    %335 = arith.addf %290, %334 : vector<16x32xf32>
    %c0_106 = arith.constant 0 : index
    %c0_107 = arith.constant 0 : index
    %c0_108 = arith.constant 0 : index
    %336 = vector.load %arg23[%c0_106, %c0_107, %c0_108] : memref<2x1x32xf32, #tpu.memory_space<vmem>>, vector<1x1x32xf32>
    %337 = vector.shape_cast %336 : vector<1x1x32xf32> to vector<1x32xf32>
    %338 = vector.broadcast %337 : vector<1x32xf32> to vector<16x32xf32>
    %339 = arith.addf %335, %338 : vector<16x32xf32>
    %c1 = arith.constant 1 : index
    %c0_109 = arith.constant 0 : index
    %c0_110 = arith.constant 0 : index
    %340 = vector.load %arg13[%c1, %c0_109, %c0_110] : memref<2x1x32xf32, #tpu.memory_space<vmem>>, vector<1x1x32xf32>
    %341 = vector.shape_cast %340 : vector<1x1x32xf32> to vector<1x32xf32>
    %c1_111 = arith.constant 1 : index
    %c0_112 = arith.constant 0 : index
    %c0_113 = arith.constant 0 : index
    %342 = vector.load %arg14[%c1_111, %c0_112, %c0_113] : memref<2x1x32xf32, #tpu.memory_space<vmem>>, vector<1x1x32xf32>
    %343 = vector.shape_cast %342 : vector<1x1x32xf32> to vector<1x32xf32>
    %cst_114 = arith.constant dense<0.000000e+00> : vector<16xf32>
    %344 = vector.multi_reduction <add>, %339, %cst_114 [1] : vector<16x32xf32> to vector<16xf32>
    %345 = vector.shape_cast %344 : vector<16xf32> to vector<16x1xf32>
    %cst_115 = arith.constant 3.200000e+01 : f32
    %346 = vector.broadcast %cst_115 : f32 to vector<16x1xf32>
    %347 = arith.divf %345, %346 : vector<16x1xf32>
    %348 = vector.broadcast %347 : vector<16x1xf32> to vector<16x32xf32>
    %349 = arith.subf %339, %348 : vector<16x32xf32>
    %350 = arith.mulf %349, %349 : vector<16x32xf32>
    %cst_116 = arith.constant dense<0.000000e+00> : vector<16xf32>
    %351 = vector.multi_reduction <add>, %350, %cst_116 [1] : vector<16x32xf32> to vector<16xf32>
    %352 = vector.shape_cast %351 : vector<16xf32> to vector<16x1xf32>
    %cst_117 = arith.constant 3.200000e+01 : f32
    %353 = vector.broadcast %cst_117 : f32 to vector<16x1xf32>
    %354 = arith.divf %352, %353 : vector<16x1xf32>
    %cst_118 = arith.constant 9.99999974E-6 : f32
    %355 = vector.broadcast %cst_118 : f32 to vector<16x1xf32>
    %356 = arith.addf %354, %355 : vector<16x1xf32>
    %357 = math.rsqrt %356 : vector<16x1xf32>
    %358 = vector.broadcast %357 : vector<16x1xf32> to vector<16x32xf32>
    %359 = arith.mulf %349, %358 : vector<16x32xf32>
    %360 = vector.broadcast %341 : vector<1x32xf32> to vector<16x32xf32>
    %361 = arith.mulf %359, %360 : vector<16x32xf32>
    %362 = vector.broadcast %343 : vector<1x32xf32> to vector<16x32xf32>
    %363 = arith.addf %361, %362 : vector<16x32xf32>
    %364 = arith.truncf %363 : vector<16x32xf32> to vector<16x32xbf16>
    %c1_119 = arith.constant 1 : index
    %c0_120 = arith.constant 0 : index
    %c0_121 = arith.constant 0 : index
    %365 = vector.load %arg15[%c1_119, %c0_120, %c0_121] : memref<2x32x96xbf16, #tpu.memory_space<vmem>>, vector<1x32x96xbf16>
    %366 = vector.shape_cast %365 : vector<1x32x96xbf16> to vector<32x96xbf16>
    %cst_122 = arith.constant dense<0.000000e+00> : vector<16x96xf32>
    %367 = tpu.matmul %364, %366, %cst_122 {dimension_numbers = #tpu.dot_dimension_numbers<[1], [0], [0], [1], [0, 0, 1, 1], [], []>} : vector<16x32xbf16>, vector<32x96xbf16>, vector<16x96xf32> -> vector<16x96xf32>
    %368 = vector.extract_strided_slice %367 {offsets = [0, 0], sizes = [16, 16], strides = [1, 1]} : vector<16x96xf32> to vector<16x16xf32>
    %369 = vector.extract_strided_slice %367 {offsets = [0, 32], sizes = [16, 16], strides = [1, 1]} : vector<16x96xf32> to vector<16x16xf32>
    %370 = vector.extract_strided_slice %367 {offsets = [0, 64], sizes = [16, 16], strides = [1, 1]} : vector<16x96xf32> to vector<16x16xf32>
    %371 = arith.truncf %368 : vector<16x16xf32> to vector<16x16xbf16>
    %372 = arith.truncf %369 : vector<16x16xf32> to vector<16x16xbf16>
    %cst_123 = arith.constant dense<0.000000e+00> : vector<16x16xf32>
    %373 = tpu.matmul %371, %372, %cst_123 {dimension_numbers = #tpu.dot_dimension_numbers<[1], [1], [0], [0], [0, 0, 1, 0], [], []>} : vector<16x16xbf16>, vector<16x16xbf16>, vector<16x16xf32> -> vector<16x16xf32>
    %cst_124 = arith.constant 2.500000e-01 : f32
    %374 = vector.broadcast %cst_124 : f32 to vector<16x16xf32>
    %375 = arith.mulf %373, %374 : vector<16x16xf32>
    %cst_125 = arith.constant dense<0xFF800000> : vector<16xf32>
    %376 = vector.multi_reduction <maximumf>, %375, %cst_125 [1] : vector<16x16xf32> to vector<16xf32>
    %377 = vector.shape_cast %376 : vector<16xf32> to vector<16x1xf32>
    %378 = vector.broadcast %377 : vector<16x1xf32> to vector<16x16xf32>
    %379 = arith.subf %375, %378 : vector<16x16xf32>
    %380 = math.exp %379 : vector<16x16xf32>
    %cst_126 = arith.constant dense<0.000000e+00> : vector<16xf32>
    %381 = vector.multi_reduction <add>, %380, %cst_126 [1] : vector<16x16xf32> to vector<16xf32>
    %382 = vector.shape_cast %381 : vector<16xf32> to vector<16x1xf32>
    %383 = tpu.reciprocal %382 {approx = true} : vector<16x1xf32> -> vector<16x1xf32>
    %384 = vector.broadcast %383 : vector<16x1xf32> to vector<16x16xf32>
    %385 = arith.mulf %380, %384 : vector<16x16xf32>
    %386 = arith.truncf %385 : vector<16x16xf32> to vector<16x16xbf16>
    %387 = arith.truncf %370 : vector<16x16xf32> to vector<16x16xbf16>
    %cst_127 = arith.constant dense<0.000000e+00> : vector<16x16xf32>
    %388 = tpu.matmul %386, %387, %cst_127 {dimension_numbers = #tpu.dot_dimension_numbers<[1], [0], [0], [1], [0, 0, 1, 1], [], []>} : vector<16x16xbf16>, vector<16x16xbf16>, vector<16x16xf32> -> vector<16x16xf32>
    %c0_128 = arith.constant 0 : index
    %c0_129 = arith.constant 0 : index
    %389 = vector.load %arg31[%c0_128, %c0_129] : memref<16x32xf32, #tpu.memory_space<vmem>>, vector<16x16xf32>
    tpu.vector_store %arg31[%c0_128, %c0_129], %388 {strides = array<i32>} : memref<16x32xf32, #tpu.memory_space<vmem>>, vector<16x16xf32>,
    %390 = vector.extract_strided_slice %367 {offsets = [0, 16], sizes = [16, 16], strides = [1, 1]} : vector<16x96xf32> to vector<16x16xf32>
    %391 = vector.extract_strided_slice %367 {offsets = [0, 48], sizes = [16, 16], strides = [1, 1]} : vector<16x96xf32> to vector<16x16xf32>
    %392 = vector.extract_strided_slice %367 {offsets = [0, 80], sizes = [16, 16], strides = [1, 1]} : vector<16x96xf32> to vector<16x16xf32>
    %393 = arith.truncf %390 : vector<16x16xf32> to vector<16x16xbf16>
    %394 = arith.truncf %391 : vector<16x16xf32> to vector<16x16xbf16>
    %cst_130 = arith.constant dense<0.000000e+00> : vector<16x16xf32>
    %395 = tpu.matmul %393, %394, %cst_130 {dimension_numbers = #tpu.dot_dimension_numbers<[1], [1], [0], [0], [0, 0, 1, 0], [], []>} : vector<16x16xbf16>, vector<16x16xbf16>, vector<16x16xf32> -> vector<16x16xf32>
    %cst_131 = arith.constant 2.500000e-01 : f32
    %396 = vector.broadcast %cst_131 : f32 to vector<16x16xf32>
    %397 = arith.mulf %395, %396 : vector<16x16xf32>
    %cst_132 = arith.constant dense<0xFF800000> : vector<16xf32>
    %398 = vector.multi_reduction <maximumf>, %397, %cst_132 [1] : vector<16x16xf32> to vector<16xf32>
    %399 = vector.shape_cast %398 : vector<16xf32> to vector<16x1xf32>
    %400 = vector.broadcast %399 : vector<16x1xf32> to vector<16x16xf32>
    %401 = arith.subf %397, %400 : vector<16x16xf32>
    %402 = math.exp %401 : vector<16x16xf32>
    %cst_133 = arith.constant dense<0.000000e+00> : vector<16xf32>
    %403 = vector.multi_reduction <add>, %402, %cst_133 [1] : vector<16x16xf32> to vector<16xf32>
    %404 = vector.shape_cast %403 : vector<16xf32> to vector<16x1xf32>
    %405 = tpu.reciprocal %404 {approx = true} : vector<16x1xf32> -> vector<16x1xf32>
    %406 = vector.broadcast %405 : vector<16x1xf32> to vector<16x16xf32>
    %407 = arith.mulf %402, %406 : vector<16x16xf32>
    %408 = arith.truncf %407 : vector<16x16xf32> to vector<16x16xbf16>
    %409 = arith.truncf %392 : vector<16x16xf32> to vector<16x16xbf16>
    %cst_134 = arith.constant dense<0.000000e+00> : vector<16x16xf32>
    %410 = tpu.matmul %408, %409, %cst_134 {dimension_numbers = #tpu.dot_dimension_numbers<[1], [0], [0], [1], [0, 0, 1, 1], [], []>} : vector<16x16xbf16>, vector<16x16xbf16>, vector<16x16xf32> -> vector<16x16xf32>
    %c0_135 = arith.constant 0 : index
    %c16_136 = arith.constant 16 : index
    %411 = vector.load %arg31[%c0_135, %c16_136] : memref<16x32xf32, #tpu.memory_space<vmem>>, vector<16x16xf32>
    tpu.vector_store %arg31[%c0_135, %c16_136], %410 {strides = array<i32>} : memref<16x32xf32, #tpu.memory_space<vmem>>, vector<16x16xf32>,
    %c0_137 = arith.constant 0 : index
    %c0_138 = arith.constant 0 : index
    %412 = vector.load %arg31[%c0_137, %c0_138] : memref<16x32xf32, #tpu.memory_space<vmem>>, vector<16x32xf32>
    %413 = arith.truncf %412 : vector<16x32xf32> to vector<16x32xbf16>
    %c1_139 = arith.constant 1 : index
    %c0_140 = arith.constant 0 : index
    %c0_141 = arith.constant 0 : index
    %414 = vector.load %arg16[%c1_139, %c0_140, %c0_141] : memref<2x32x32xbf16, #tpu.memory_space<vmem>>, vector<1x32x32xbf16>
    %415 = vector.shape_cast %414 : vector<1x32x32xbf16> to vector<32x32xbf16>
    %cst_142 = arith.constant dense<0.000000e+00> : vector<16x32xf32>
    %416 = tpu.matmul %413, %415, %cst_142 {dimension_numbers = #tpu.dot_dimension_numbers<[1], [0], [0], [1], [0, 0, 1, 1], [], []>} : vector<16x32xbf16>, vector<32x32xbf16>, vector<16x32xf32> -> vector<16x32xf32>
    %c1_143 = arith.constant 1 : index
    %c0_144 = arith.constant 0 : index
    %c0_145 = arith.constant 0 : index
    %417 = vector.load %arg17[%c1_143, %c0_144, %c0_145] : memref<2x1x32xf32, #tpu.memory_space<vmem>>, vector<1x1x32xf32>
    %418 = vector.shape_cast %417 : vector<1x1x32xf32> to vector<1x32xf32>
    %419 = vector.broadcast %418 : vector<1x32xf32> to vector<16x32xf32>
    %420 = arith.addf %416, %419 : vector<16x32xf32>
    %421 = arith.addf %339, %420 : vector<16x32xf32>
    %c1_146 = arith.constant 1 : index
    %c0_147 = arith.constant 0 : index
    %c0_148 = arith.constant 0 : index
    %422 = vector.load %arg18[%c1_146, %c0_147, %c0_148] : memref<2x1x32xf32, #tpu.memory_space<vmem>>, vector<1x1x32xf32>
    %423 = vector.shape_cast %422 : vector<1x1x32xf32> to vector<1x32xf32>
    %c1_149 = arith.constant 1 : index
    %c0_150 = arith.constant 0 : index
    %c0_151 = arith.constant 0 : index
    %424 = vector.load %arg19[%c1_149, %c0_150, %c0_151] : memref<2x1x32xf32, #tpu.memory_space<vmem>>, vector<1x1x32xf32>
    %425 = vector.shape_cast %424 : vector<1x1x32xf32> to vector<1x32xf32>
    %cst_152 = arith.constant dense<0.000000e+00> : vector<16xf32>
    %426 = vector.multi_reduction <add>, %421, %cst_152 [1] : vector<16x32xf32> to vector<16xf32>
    %427 = vector.shape_cast %426 : vector<16xf32> to vector<16x1xf32>
    %cst_153 = arith.constant 3.200000e+01 : f32
    %428 = vector.broadcast %cst_153 : f32 to vector<16x1xf32>
    %429 = arith.divf %427, %428 : vector<16x1xf32>
    %430 = vector.broadcast %429 : vector<16x1xf32> to vector<16x32xf32>
    %431 = arith.subf %421, %430 : vector<16x32xf32>
    %432 = arith.mulf %431, %431 : vector<16x32xf32>
    %cst_154 = arith.constant dense<0.000000e+00> : vector<16xf32>
    %433 = vector.multi_reduction <add>, %432, %cst_154 [1] : vector<16x32xf32> to vector<16xf32>
    %434 = vector.shape_cast %433 : vector<16xf32> to vector<16x1xf32>
    %cst_155 = arith.constant 3.200000e+01 : f32
    %435 = vector.broadcast %cst_155 : f32 to vector<16x1xf32>
    %436 = arith.divf %434, %435 : vector<16x1xf32>
    %cst_156 = arith.constant 9.99999974E-6 : f32
    %437 = vector.broadcast %cst_156 : f32 to vector<16x1xf32>
    %438 = arith.addf %436, %437 : vector<16x1xf32>
    %439 = math.rsqrt %438 : vector<16x1xf32>
    %440 = vector.broadcast %439 : vector<16x1xf32> to vector<16x32xf32>
    %441 = arith.mulf %431, %440 : vector<16x32xf32>
    %442 = vector.broadcast %423 : vector<1x32xf32> to vector<16x32xf32>
    %443 = arith.mulf %441, %442 : vector<16x32xf32>
    %444 = vector.broadcast %425 : vector<1x32xf32> to vector<16x32xf32>
    %445 = arith.addf %443, %444 : vector<16x32xf32>
    %446 = arith.truncf %445 : vector<16x32xf32> to vector<16x32xbf16>
    %c1_157 = arith.constant 1 : index
    %c0_158 = arith.constant 0 : index
    %c0_159 = arith.constant 0 : index
    %447 = vector.load %arg20[%c1_157, %c0_158, %c0_159] : memref<2x32x64xbf16, #tpu.memory_space<vmem>>, vector<1x32x64xbf16>
    %448 = vector.shape_cast %447 : vector<1x32x64xbf16> to vector<32x64xbf16>
    %cst_160 = arith.constant dense<0.000000e+00> : vector<16x64xf32>
    %449 = tpu.matmul %446, %448, %cst_160 {dimension_numbers = #tpu.dot_dimension_numbers<[1], [0], [0], [1], [0, 0, 1, 1], [], []>} : vector<16x32xbf16>, vector<32x64xbf16>, vector<16x64xf32> -> vector<16x64xf32>
    %c1_161 = arith.constant 1 : index
    %c0_162 = arith.constant 0 : index
    %c0_163 = arith.constant 0 : index
    %450 = vector.load %arg21[%c1_161, %c0_162, %c0_163] : memref<2x1x64xf32, #tpu.memory_space<vmem>>, vector<1x1x64xf32>
    %451 = vector.shape_cast %450 : vector<1x1x64xf32> to vector<1x64xf32>
    %452 = vector.broadcast %451 : vector<1x64xf32> to vector<16x64xf32>
    %453 = arith.addf %449, %452 : vector<16x64xf32>
    %cst_164 = arith.constant 5.000000e-01 : f32
    %454 = vector.broadcast %cst_164 : f32 to vector<16x64xf32>
    %455 = arith.mulf %454, %453 : vector<16x64xf32>
    %cst_165 = arith.constant 1.41421354 : f32
    %456 = vector.broadcast %cst_165 : f32 to vector<16x64xf32>
    %457 = arith.divf %453, %456 : vector<16x64xf32>
    %458 = math.erf %457 : vector<16x64xf32>
    %cst_166 = arith.constant 1.000000e+00 : f32
    %459 = vector.broadcast %cst_166 : f32 to vector<16x64xf32>
    %460 = arith.addf %459, %458 : vector<16x64xf32>
    %461 = arith.mulf %455, %460 : vector<16x64xf32>
    %462 = arith.truncf %461 : vector<16x64xf32> to vector<16x64xbf16>
    %c1_167 = arith.constant 1 : index
    %c0_168 = arith.constant 0 : index
    %c0_169 = arith.constant 0 : index
    %463 = vector.load %arg22[%c1_167, %c0_168, %c0_169] : memref<2x64x32xbf16, #tpu.memory_space<vmem>>, vector<1x64x32xbf16>
    %464 = vector.shape_cast %463 : vector<1x64x32xbf16> to vector<64x32xbf16>
    %cst_170 = arith.constant dense<0.000000e+00> : vector<16x32xf32>
    %465 = tpu.matmul %462, %464, %cst_170 {dimension_numbers = #tpu.dot_dimension_numbers<[1], [0], [0], [1], [0, 0, 1, 1], [], []>} : vector<16x64xbf16>, vector<64x32xbf16>, vector<16x32xf32> -> vector<16x32xf32>
    %466 = arith.addf %421, %465 : vector<16x32xf32>
    %c1_171 = arith.constant 1 : index
    %c0_172 = arith.constant 0 : index
    %c0_173 = arith.constant 0 : index
    %467 = vector.load %arg23[%c1_171, %c0_172, %c0_173] : memref<2x1x32xf32, #tpu.memory_space<vmem>>, vector<1x1x32xf32>
    %468 = vector.shape_cast %467 : vector<1x1x32xf32> to vector<1x32xf32>
    %469 = vector.broadcast %468 : vector<1x32xf32> to vector<16x32xf32>
    %470 = arith.addf %466, %469 : vector<16x32xf32>
    %c0_174 = arith.constant 0 : index
    %c0_175 = arith.constant 0 : index
    %471 = vector.load %arg24[%c0_174, %c0_175] : memref<1x32xf32, #tpu.memory_space<vmem>>, vector<1x32xf32>
    %c0_176 = arith.constant 0 : index
    %c0_177 = arith.constant 0 : index
    %472 = vector.load %arg25[%c0_176, %c0_177] : memref<1x32xf32, #tpu.memory_space<vmem>>, vector<1x32xf32>
    %cst_178 = arith.constant dense<0.000000e+00> : vector<16xf32>
    %473 = vector.multi_reduction <add>, %470, %cst_178 [1] : vector<16x32xf32> to vector<16xf32>
    %474 = vector.shape_cast %473 : vector<16xf32> to vector<16x1xf32>
    %cst_179 = arith.constant 3.200000e+01 : f32
    %475 = vector.broadcast %cst_179 : f32 to vector<16x1xf32>
    %476 = arith.divf %474, %475 : vector<16x1xf32>
    %477 = vector.broadcast %476 : vector<16x1xf32> to vector<16x32xf32>
    %478 = arith.subf %470, %477 : vector<16x32xf32>
    %479 = arith.mulf %478, %478 : vector<16x32xf32>
    %cst_180 = arith.constant dense<0.000000e+00> : vector<16xf32>
    %480 = vector.multi_reduction <add>, %479, %cst_180 [1] : vector<16x32xf32> to vector<16xf32>
    %481 = vector.shape_cast %480 : vector<16xf32> to vector<16x1xf32>
    %cst_181 = arith.constant 3.200000e+01 : f32
    %482 = vector.broadcast %cst_181 : f32 to vector<16x1xf32>
    %483 = arith.divf %481, %482 : vector<16x1xf32>
    %cst_182 = arith.constant 9.99999974E-6 : f32
    %484 = vector.broadcast %cst_182 : f32 to vector<16x1xf32>
    %485 = arith.addf %483, %484 : vector<16x1xf32>
    %486 = math.rsqrt %485 : vector<16x1xf32>
    %487 = vector.broadcast %486 : vector<16x1xf32> to vector<16x32xf32>
    %488 = arith.mulf %478, %487 : vector<16x32xf32>
    %489 = vector.broadcast %471 : vector<1x32xf32> to vector<16x32xf32>
    %490 = arith.mulf %488, %489 : vector<16x32xf32>
    %491 = vector.broadcast %472 : vector<1x32xf32> to vector<16x32xf32>
    %492 = arith.addf %490, %491 : vector<16x32xf32>
    %c0_183 = arith.constant 0 : index
    %c0_184 = arith.constant 0 : index
    %493 = vector.load %arg26[%c0_183, %c0_184] : memref<1x32xf32, #tpu.memory_space<vmem>>, vector<1x32xf32>
    %494 = vector.broadcast %493 : vector<1x32xf32> to vector<16x32xf32>
    %495 = arith.mulf %492, %494 : vector<16x32xf32>
    %cst_185 = arith.constant dense<0.000000e+00> : vector<16xf32>
    %496 = vector.multi_reduction <add>, %495, %cst_185 [1] : vector<16x32xf32> to vector<16xf32>
    %497 = vector.shape_cast %496 : vector<16xf32> to vector<16x1xf32>
    %c0_186 = arith.constant 0 : index
    %c0_187 = arith.constant 0 : index
    %498 = vector.load %arg27[%c0_186, %c0_187] : memref<1x1xf32, #tpu.memory_space<vmem>>, vector<1x1xf32>
    %499 = vector.broadcast %498 : vector<1x1xf32> to vector<16x1xf32>
    %500 = arith.addf %497, %499 : vector<16x1xf32>
    %cst_188 = arith.constant dense<0xFF800000> : vector<1xf32>
    %501 = vector.multi_reduction <maximumf>, %500, %cst_188 [0] : vector<16x1xf32> to vector<1xf32>
    %502 = vector.shape_cast %501 : vector<1xf32> to vector<1x1xf32>
    %503 = vector.broadcast %502 : vector<1x1xf32> to vector<16x1xf32>
    %504 = arith.subf %500, %503 : vector<16x1xf32>
    %505 = math.exp %504 : vector<16x1xf32>
    %cst_189 = arith.constant dense<0.000000e+00> : vector<1xf32>
    %506 = vector.multi_reduction <add>, %505, %cst_189 [0] : vector<16x1xf32> to vector<1xf32>
    %507 = vector.shape_cast %506 : vector<1xf32> to vector<1x1xf32>
    %508 = tpu.reciprocal %507 {approx = true} : vector<1x1xf32> -> vector<1x1xf32>
    %509 = vector.broadcast %508 : vector<1x1xf32> to vector<16x1xf32>
    %510 = arith.mulf %505, %509 : vector<16x1xf32>
    %511 = vector.broadcast %510 : vector<16x1xf32> to vector<16x32xf32>
    %512 = arith.mulf %511, %492 : vector<16x32xf32>
    %cst_190 = arith.constant dense<0.000000e+00> : vector<32xf32>
    %513 = vector.multi_reduction <add>, %512, %cst_190 [0] : vector<16x32xf32> to vector<32xf32>
    %514 = vector.shape_cast %513 : vector<32xf32> to vector<1x32xf32>
    %515 = arith.truncf %514 : vector<1x32xf32> to vector<1x32xbf16>
    %c0_191 = arith.constant 0 : index
    %c0_192 = arith.constant 0 : index
    %516 = vector.load %arg28[%c0_191, %c0_192] : memref<32x4xbf16, #tpu.memory_space<vmem>>, vector<32x4xbf16>
    %cst_193 = arith.constant dense<0.000000e+00> : vector<1x4xf32>
    %517 = tpu.matmul %515, %516, %cst_193 {dimension_numbers = #tpu.dot_dimension_numbers<[1], [0], [0], [1], [0, 0, 1, 1], [], []>} : vector<1x32xbf16>, vector<32x4xbf16>, vector<1x4xf32> -> vector<1x4xf32>
    %c0_194 = arith.constant 0 : index
    %c0_195 = arith.constant 0 : index
    %518 = vector.load %arg29[%c0_194, %c0_195] : memref<1x4xf32, #tpu.memory_space<vmem>>, vector<1x4xf32>
    %519 = arith.addf %517, %518 : vector<1x4xf32>
    %c0_196 = arith.constant 0 : index
    %c0_197 = arith.constant 0 : index
    %c0_198 = arith.constant 0 : index
    %520 = vector.load %arg30[%c0_196, %c0_197, %c0_198] : memref<1x1x4xf32, #tpu.memory_space<vmem>>, vector<1x1x4xf32>
    %521 = vector.shape_cast %520 : vector<1x1x4xf32> to vector<1x4xf32>
    %522 = vector.shape_cast %519 : vector<1x4xf32> to vector<1x1x4xf32>
    tpu.vector_store %arg30[%c0_196, %c0_197, %c0_198], %522 {strides = array<i32>} : memref<1x1x4xf32, #tpu.memory_space<vmem>>, vector<1x1x4xf32>,
    return
  }
  func.func @transform_0(%arg0: i32) -> (i32, i32, i32) {
    %c0_i32 = arith.constant 0 : i32
    %c0_i32_0 = arith.constant 0 : i32
    %c0_i32_1 = arith.constant 0 : i32
    return %arg0, %c0_i32, %c0_i32_0 : i32, i32, i32
  }
  func.func @transform_1(%arg0: i32) -> (i32, i32) {
    %c0_i32 = arith.constant 0 : i32
    %c0_i32_0 = arith.constant 0 : i32
    %c0_i32_1 = arith.constant 0 : i32
    return %c0_i32, %c0_i32_0 : i32, i32
  }
  func.func @transform_2(%arg0: i32) -> (i32, i32) {
    %c0_i32 = arith.constant 0 : i32
    %c0_i32_0 = arith.constant 0 : i32
    %c0_i32_1 = arith.constant 0 : i32
    return %c0_i32, %c0_i32_0 : i32, i32
  }
  func.func @transform_3(%arg0: i32) -> (i32, i32) {
    %c0_i32 = arith.constant 0 : i32
    %c0_i32_0 = arith.constant 0 : i32
    %c0_i32_1 = arith.constant 0 : i32
    return %c0_i32, %c0_i32_0 : i32, i32
  }
  func.func @transform_4(%arg0: i32) -> (i32, i32) {
    %c0_i32 = arith.constant 0 : i32
    %c0_i32_0 = arith.constant 0 : i32
    %c0_i32_1 = arith.constant 0 : i32
    return %c0_i32, %c0_i32_0 : i32, i32
  }
  func.func @transform_5(%arg0: i32) -> (i32, i32) {
    %c0_i32 = arith.constant 0 : i32
    %c0_i32_0 = arith.constant 0 : i32
    %c0_i32_1 = arith.constant 0 : i32
    return %c0_i32, %c0_i32_0 : i32, i32
  }
  func.func @transform_6(%arg0: i32) -> (i32, i32) {
    %c0_i32 = arith.constant 0 : i32
    %c0_i32_0 = arith.constant 0 : i32
    %c0_i32_1 = arith.constant 0 : i32
    return %c0_i32, %c0_i32_0 : i32, i32
  }
  func.func @transform_7(%arg0: i32) -> (i32, i32) {
    %c0_i32 = arith.constant 0 : i32
    %c0_i32_0 = arith.constant 0 : i32
    %c0_i32_1 = arith.constant 0 : i32
    return %c0_i32, %c0_i32_0 : i32, i32
  }
  func.func @transform_8(%arg0: i32) -> (i32, i32) {
    %c0_i32 = arith.constant 0 : i32
    %c0_i32_0 = arith.constant 0 : i32
    %c0_i32_1 = arith.constant 0 : i32
    return %c0_i32, %c0_i32_0 : i32, i32
  }
  func.func @transform_9(%arg0: i32) -> (i32, i32) {
    %c0_i32 = arith.constant 0 : i32
    %c0_i32_0 = arith.constant 0 : i32
    %c0_i32_1 = arith.constant 0 : i32
    return %c0_i32, %c0_i32_0 : i32, i32
  }
  func.func @transform_10(%arg0: i32) -> (i32, i32) {
    %c0_i32 = arith.constant 0 : i32
    %c0_i32_0 = arith.constant 0 : i32
    %c0_i32_1 = arith.constant 0 : i32
    return %c0_i32, %c0_i32_0 : i32, i32
  }
  func.func @transform_11(%arg0: i32) -> (i32, i32) {
    %c0_i32 = arith.constant 0 : i32
    %c0_i32_0 = arith.constant 0 : i32
    %c0_i32_1 = arith.constant 0 : i32
    return %c0_i32, %c0_i32_0 : i32, i32
  }
  func.func @transform_12(%arg0: i32) -> (i32, i32, i32) {
    %c0_i32 = arith.constant 0 : i32
    %c0_i32_0 = arith.constant 0 : i32
    %c0_i32_1 = arith.constant 0 : i32
    %c0_i32_2 = arith.constant 0 : i32
    return %c0_i32, %c0_i32_0, %c0_i32_1 : i32, i32, i32
  }
  func.func @transform_13(%arg0: i32) -> (i32, i32, i32) {
    %c0_i32 = arith.constant 0 : i32
    %c0_i32_0 = arith.constant 0 : i32
    %c0_i32_1 = arith.constant 0 : i32
    %c0_i32_2 = arith.constant 0 : i32
    return %c0_i32, %c0_i32_0, %c0_i32_1 : i32, i32, i32
  }
  func.func @transform_14(%arg0: i32) -> (i32, i32, i32) {
    %c0_i32 = arith.constant 0 : i32
    %c0_i32_0 = arith.constant 0 : i32
    %c0_i32_1 = arith.constant 0 : i32
    %c0_i32_2 = arith.constant 0 : i32
    return %c0_i32, %c0_i32_0, %c0_i32_1 : i32, i32, i32
  }
  func.func @transform_15(%arg0: i32) -> (i32, i32, i32) {
    %c0_i32 = arith.constant 0 : i32
    %c0_i32_0 = arith.constant 0 : i32
    %c0_i32_1 = arith.constant 0 : i32
    %c0_i32_2 = arith.constant 0 : i32
    return %c0_i32, %c0_i32_0, %c0_i32_1 : i32, i32, i32
  }
  func.func @transform_16(%arg0: i32) -> (i32, i32, i32) {
    %c0_i32 = arith.constant 0 : i32
    %c0_i32_0 = arith.constant 0 : i32
    %c0_i32_1 = arith.constant 0 : i32
    %c0_i32_2 = arith.constant 0 : i32
    return %c0_i32, %c0_i32_0, %c0_i32_1 : i32, i32, i32
  }
  func.func @transform_17(%arg0: i32) -> (i32, i32, i32) {
    %c0_i32 = arith.constant 0 : i32
    %c0_i32_0 = arith.constant 0 : i32
    %c0_i32_1 = arith.constant 0 : i32
    %c0_i32_2 = arith.constant 0 : i32
    return %c0_i32, %c0_i32_0, %c0_i32_1 : i32, i32, i32
  }
  func.func @transform_18(%arg0: i32) -> (i32, i32, i32) {
    %c0_i32 = arith.constant 0 : i32
    %c0_i32_0 = arith.constant 0 : i32
    %c0_i32_1 = arith.constant 0 : i32
    %c0_i32_2 = arith.constant 0 : i32
    return %c0_i32, %c0_i32_0, %c0_i32_1 : i32, i32, i32
  }
  func.func @transform_19(%arg0: i32) -> (i32, i32, i32) {
    %c0_i32 = arith.constant 0 : i32
    %c0_i32_0 = arith.constant 0 : i32
    %c0_i32_1 = arith.constant 0 : i32
    %c0_i32_2 = arith.constant 0 : i32
    return %c0_i32, %c0_i32_0, %c0_i32_1 : i32, i32, i32
  }
  func.func @transform_20(%arg0: i32) -> (i32, i32, i32) {
    %c0_i32 = arith.constant 0 : i32
    %c0_i32_0 = arith.constant 0 : i32
    %c0_i32_1 = arith.constant 0 : i32
    %c0_i32_2 = arith.constant 0 : i32
    return %c0_i32, %c0_i32_0, %c0_i32_1 : i32, i32, i32
  }
  func.func @transform_21(%arg0: i32) -> (i32, i32, i32) {
    %c0_i32 = arith.constant 0 : i32
    %c0_i32_0 = arith.constant 0 : i32
    %c0_i32_1 = arith.constant 0 : i32
    %c0_i32_2 = arith.constant 0 : i32
    return %c0_i32, %c0_i32_0, %c0_i32_1 : i32, i32, i32
  }
  func.func @transform_22(%arg0: i32) -> (i32, i32, i32) {
    %c0_i32 = arith.constant 0 : i32
    %c0_i32_0 = arith.constant 0 : i32
    %c0_i32_1 = arith.constant 0 : i32
    %c0_i32_2 = arith.constant 0 : i32
    return %c0_i32, %c0_i32_0, %c0_i32_1 : i32, i32, i32
  }
  func.func @transform_23(%arg0: i32) -> (i32, i32) {
    %c0_i32 = arith.constant 0 : i32
    %c0_i32_0 = arith.constant 0 : i32
    %c0_i32_1 = arith.constant 0 : i32
    return %c0_i32, %c0_i32_0 : i32, i32
  }
  func.func @transform_24(%arg0: i32) -> (i32, i32) {
    %c0_i32 = arith.constant 0 : i32
    %c0_i32_0 = arith.constant 0 : i32
    %c0_i32_1 = arith.constant 0 : i32
    return %c0_i32, %c0_i32_0 : i32, i32
  }
  func.func @transform_25(%arg0: i32) -> (i32, i32) {
    %c0_i32 = arith.constant 0 : i32
    %c0_i32_0 = arith.constant 0 : i32
    %c0_i32_1 = arith.constant 0 : i32
    return %c0_i32, %c0_i32_0 : i32, i32
  }
  func.func @transform_26(%arg0: i32) -> (i32, i32) {
    %c0_i32 = arith.constant 0 : i32
    %c0_i32_0 = arith.constant 0 : i32
    %c0_i32_1 = arith.constant 0 : i32
    return %c0_i32, %c0_i32_0 : i32, i32
  }
  func.func @transform_27(%arg0: i32) -> (i32, i32) {
    %c0_i32 = arith.constant 0 : i32
    %c0_i32_0 = arith.constant 0 : i32
    %c0_i32_1 = arith.constant 0 : i32
    return %c0_i32, %c0_i32_0 : i32, i32
  }
  func.func @transform_28(%arg0: i32) -> (i32, i32) {
    %c0_i32 = arith.constant 0 : i32
    %c0_i32_0 = arith.constant 0 : i32
    %c0_i32_1 = arith.constant 0 : i32
    return %c0_i32, %c0_i32_0 : i32, i32
  }
  func.func @transform_29(%arg0: i32) -> (i32, i32, i32) {
    %c0_i32 = arith.constant 0 : i32
    %c0_i32_0 = arith.constant 0 : i32
    %c0_i32_1 = arith.constant 0 : i32
    return %arg0, %c0_i32, %c0_i32_0 : i32, i32, i32
  }
}

</mosaic_0001>

<llo_original>
// kernel: cct_forward.1
$region0: #{cct_forward.1}
  #allocation0 [shape = 'u32[]', space=smem, size = 0x4, offset = 0x4, fixed_abs, tag = 'smem constant byte address 0x4 - core index']
  #allocation1 [shape = 'u32[144,128]{1,0:T(1,128)}', space=vmem, size = 0x12000, scoped, tag = 'internal scratch']
  #allocation2 [shape = 'f32[16,32]{1,0:T(8,128)}', space=vmem, size = 0x2000, scoped, tag = 'scratch operand']
  #allocation3 [shape = 'f32[1,1]{1,0:T(1,128)S(1)}', space=vmem, size = 0x200, scoped, tag = 'scoped memory for cct_forward.1']
  %s0 = inlined_call_operand.smem [shape: u32[30], index: -1, kind: input, shape index: {}]
  %s1 = sld [smem:[%s0]]
  %s2 = scalar_lea.smem %s0, 1
  %s3 = sld [smem:[%s2]]
  %s4 = scalar_lea.smem %s0, 2
  %s5 = sld [smem:[%s4]]
  %s6 = scalar_lea.smem %s0, 3
  %s7 = sld [smem:[%s6]]
  %s8 = scalar_lea.smem %s0, 4
  %s9 = sld [smem:[%s8]]
  %s10 = scalar_lea.smem %s0, 5
  %s11 = sld [smem:[%s10]]
  %s12 = scalar_lea.smem %s0, 6
  %s13 = sld [smem:[%s12]]
  %s14 = scalar_lea.smem %s0, 7
  %s15 = sld [smem:[%s14]]
  %s16 = scalar_lea.smem %s0, 8
  %s17 = sld [smem:[%s16]]
  %s18 = scalar_lea.smem %s0, 9
  %s19 = sld [smem:[%s18]]
  %s20 = scalar_lea.smem %s0, 10
  %s21 = sld [smem:[%s20]]
  %s22 = scalar_lea.smem %s0, 11
  %s23 = sld [smem:[%s22]]
  %s24 = scalar_lea.smem %s0, 12
  %s25 = sld [smem:[%s24]]
  %s26 = scalar_lea.smem %s0, 13
  %s27 = sld [smem:[%s26]]
  %s28 = scalar_lea.smem %s0, 14
  %s29 = sld [smem:[%s28]]
  %s30 = scalar_lea.smem %s0, 15
  %s31 = sld [smem:[%s30]]
  %s32 = scalar_lea.smem %s0, 16
  %s33 = sld [smem:[%s32]]
  %s34 = scalar_lea.smem %s0, 17
  %s35 = sld [smem:[%s34]]
  %s36 = scalar_lea.smem %s0, 18
  %s37 = sld [smem:[%s36]]
  %s38 = scalar_lea.smem %s0, 19
  %s39 = sld [smem:[%s38]]
  %s40 = scalar_lea.smem %s0, 20
  %s41 = sld [smem:[%s40]]
  %s42 = scalar_lea.smem %s0, 21
  %s43 = sld [smem:[%s42]]
  %s44 = scalar_lea.smem %s0, 22
  %s45 = sld [smem:[%s44]]
  %s46 = scalar_lea.smem %s0, 23
  %s47 = sld [smem:[%s46]]
  %s48 = scalar_lea.smem %s0, 24
  %s49 = sld [smem:[%s48]]
  %s50 = scalar_lea.smem %s0, 25
  %s51 = sld [smem:[%s50]]
  %s52 = scalar_lea.smem %s0, 26
  %s53 = sld [smem:[%s52]]
  %s54 = scalar_lea.smem %s0, 27
  %s55 = sld [smem:[%s54]]
  %s56 = scalar_lea.smem %s0, 28
  %s57 = sld [smem:[%s56]]
  %s58 = scalar_lea.smem %s0, 29
  %s59 = sld [smem:[%s58]]
  %s60 = sld [smem:[#allocation0]]
  $region149: #{cct_forward.1} parent=0
    _
  %s62 = ssub.s32 1, %s60
  %s63 = scalar_select 0, %s62, %s60
  %v64 = vstv %s53
  %65 = vst [vmem:[#allocation3] sm:$0x1] %v64
  $region1: #{cct_forward.1} parent=0
    #allocation4 [shape = 'u8[1024]{0}', space=vmem, size = 0x400, scoped, tag = 'output window, operand 0']
    #allocation5 [shape = 's32[2]{0}', space=sflag, size = 0x8, scoped, tag = 'scoped memory for cct_forward.1']
    %66 = vsyncpa [#allocation5], 0
    %s67 = scalar_lea.sflag [#allocation5], 1
    %68 = vsyncpa %s67, 0
    loop: start=0, step=1, limit=4
    $region2: #{cct_forward.1} parent=1 // loop_pre_header
      _
    $region3: #{cct_forward.1} parent=1 // loop_header
      %s70 = sphi 0, %s74
      %p71 = scmp.ge.s32.totalorder %s70, 4
      %s80 = sphi 0, %s82
      %s83 = sphi 0, %s80
      %s84 = sphi 0, %s83
      %s100 = sphi 0, %s84
      %s104 = sphi 0, %s104
      %s106 = sphi 0, %s104
      %s107 = sphi 0, %s106
      %s121 = sphi 0, %s107
      %s125 = sphi 0, %s125
      %s127 = sphi 0, %s125
      %s128 = sphi 0, %s127
      %s142 = sphi 0, %s128
      %s146 = sphi 0, %s146
      %s148 = sphi 0, %s146
      %s149 = sphi 0, %s148
      %s163 = sphi 0, %s149
      %s167 = sphi 0, %s167
      %s169 = sphi 0, %s167
      %s170 = sphi 0, %s169
      %s184 = sphi 0, %s170
      %s188 = sphi 0, %s188
      %s190 = sphi 0, %s188
      %s191 = sphi 0, %s190
      %s205 = sphi 0, %s191
      %s209 = sphi 0, %s209
      %s211 = sphi 0, %s209
      %s212 = sphi 0, %s211
      %s226 = sphi 0, %s212
      %s230 = sphi 0, %s230
      %s232 = sphi 0, %s230
      %s233 = sphi 0, %s232
      %s247 = sphi 0, %s233
      %s251 = sphi 0, %s251
      %s253 = sphi 0, %s251
      %s254 = sphi 0, %s253
      %s268 = sphi 0, %s254
      %s272 = sphi 0, %s272
      %s274 = sphi 0, %s272
      %s275 = sphi 0, %s274
      %s289 = sphi 0, %s275
      %s293 = sphi 0, %s293
      %s295 = sphi 0, %s293
      %s296 = sphi 0, %s295
      %s310 = sphi 0, %s296
      %s314 = sphi 0, %s314
      %s316 = sphi 0, %s314
      %s317 = sphi 0, %s316
      %s331 = sphi 0, %s317
      %s335 = sphi 0, %s335
      %s337 = sphi 0, %s335
      %s338 = sphi 0, %s337
      %s352 = sphi 0, %s338
      %s356 = sphi 0, %s356
      %s358 = sphi 0, %s356
      %s359 = sphi 0, %s358
      %s373 = sphi 0, %s359
      %s377 = sphi 0, %s377
      %s379 = sphi 0, %s377
      %s380 = sphi 0, %s379
      %s394 = sphi 0, %s380
      %s398 = sphi 0, %s398
      %s400 = sphi 0, %s398
      %s401 = sphi 0, %s400
      %s415 = sphi 0, %s401
      %s419 = sphi 0, %s419
      %s421 = sphi 0, %s419
      %s422 = sphi 0, %s421
      %s436 = sphi 0, %s422
      %s440 = sphi 0, %s440
      %s442 = sphi 0, %s440
      %s443 = sphi 0, %s442
      %s457 = sphi 0, %s443
      %s461 = sphi 0, %s461
      %s463 = sphi 0, %s461
      %s464 = sphi 0, %s463
      %s478 = sphi 0, %s464
      %s482 = sphi 0, %s482
      %s484 = sphi 0, %s482
      %s485 = sphi 0, %s484
      %s499 = sphi 0, %s485
      %s503 = sphi 0, %s503
      %s505 = sphi 0, %s503
      %s506 = sphi 0, %s505
      %s520 = sphi 0, %s506
      %s524 = sphi 0, %s524
      %s526 = sphi 0, %s524
      %s527 = sphi 0, %s526
      %s541 = sphi 0, %s527
      %s545 = sphi 0, %s545
      %s547 = sphi 0, %s545
      %s548 = sphi 0, %s547
      %s562 = sphi 0, %s548
      %s566 = sphi 0, %s566
      %s568 = sphi 0, %s566
      %s569 = sphi 0, %s568
      %s583 = sphi 0, %s569
      %s587 = sphi 0, %s587
      %s589 = sphi 0, %s587
      %s590 = sphi 0, %s589
      %s604 = sphi 0, %s590
      %s608 = sphi 0, %s608
      %s610 = sphi 0, %s608
      %s611 = sphi 0, %s610
      %s625 = sphi 0, %s611
      %s629 = sphi 0, %s629
      %s631 = sphi 0, %s629
      %s632 = sphi 0, %s631
      %s646 = sphi 0, %s632
      %s650 = sphi 0, %s650
      %s652 = sphi 0, %s650
      %s653 = sphi 0, %s652
      %s667 = sphi 0, %s653
      %s671 = sphi 0, %s671
      %s673 = sphi 0, %s671
      %s674 = sphi 0, %s673
      %s688 = sphi 0, %s674
      %s694 = sphi 0, %s696
      %s697 = sphi 0, %s694
      %s698 = sphi 0, %s697
      %s714 = sphi 0, %s698
    $region4: #{cct_forward.1} parent=1 // loop_header_branch
      %73 = sbr.rel (%p71) target = $region8
    $region5: #{cct_forward.1} parent=1 // loop_body
      %s75 = ssub.s32 %s70, 1
      %s76 = ssub.s32 %s70, 2
      %s77 = sadd.s32 %s70, 1
      %s78 = ssub.s32 %s70, %s77
      %p79 = scmp.eq.s32.totalorder %s78, 0
      %s81 = sadd.s32 %s80, 1
      %s82 = scalar_select %p79, %s80, %s81
      %p85 = pneg %p79
      %p86 = scmp.eq.s32.totalorder %s70, 1
      %p87 = por %p85, %p86
      %p88 = scmp.ne.s32.totalorder %s80, %s83
      %p89 = scmp.eq.s32.totalorder %s70, 0
      %p90 = por %p88, %p89
      %p91 = scmp.ne.s32.totalorder %s80, %s83
      %p92 = scmp.eq.s32.totalorder %s75, 1
      %p93 = por %p91, %p92
      %p94 = scmp.ne.s32.totalorder %s83, %s84
      %p95 = scmp.eq.s32.totalorder %s75, 0
      %p96 = por %p94, %p95
      %p97 = scmp.ne.s32.totalorder %s83, %s84
      %p98 = scmp.eq.s32.totalorder %s76, 1
      %p99 = por %p97, %p98
      %p101 = scmp.ne.s32.totalorder %s84, %s100
      %p102 = scmp.eq.s32.totalorder %s76, 0
      %p103 = por %p101, %p102
      %s105 = sadd.s32 %s104, 1
      %p108 = scmp.eq.s32.totalorder %s70, 1
      %p109 = scmp.ne.s32.totalorder %s104, %s106
      %p110 = scmp.eq.s32.totalorder %s70, 0
      %p111 = por %p109, %p110
      %p112 = scmp.ne.s32.totalorder %s104, %s106
      %p113 = scmp.eq.s32.totalorder %s75, 1
      %p114 = por %p112, %p113
      %p115 = scmp.ne.s32.totalorder %s106, %s107
      %p116 = scmp.eq.s32.totalorder %s75, 0
      %p117 = por %p115, %p116
      %p118 = scmp.ne.s32.totalorder %s106, %s107
      %p119 = scmp.eq.s32.totalorder %s76, 1
      %p120 = por %p118, %p119
      %p122 = scmp.ne.s32.totalorder %s107, %s121
      %p123 = scmp.eq.s32.totalorder %s76, 0
      %p124 = por %p122, %p123
      %s126 = sadd.s32 %s125, 1
      %p129 = scmp.eq.s32.totalorder %s70, 1
      %p130 = scmp.ne.s32.totalorder %s125, %s127
      %p131 = scmp.eq.s32.totalorder %s70, 0
      %p132 = por %p130, %p131
      %p133 = scmp.ne.s32.totalorder %s125, %s127
      %p134 = scmp.eq.s32.totalorder %s75, 1
      %p135 = por %p133, %p134
      %p136 = scmp.ne.s32.totalorder %s127, %s128
      %p137 = scmp.eq.s32.totalorder %s75, 0
      %p138 = por %p136, %p137
      %p139 = scmp.ne.s32.totalorder %s127, %s128
      %p140 = scmp.eq.s32.totalorder %s76, 1
      %p141 = por %p139, %p140
      %p143 = scmp.ne.s32.totalorder %s128, %s142
      %p144 = scmp.eq.s32.totalorder %s76, 0
      %p145 = por %p143, %p144
      %s147 = sadd.s32 %s146, 1
      %p150 = scmp.eq.s32.totalorder %s70, 1
      %p151 = scmp.ne.s32.totalorder %s146, %s148
      %p152 = scmp.eq.s32.totalorder %s70, 0
      %p153 = por %p151, %p152
      %p154 = scmp.ne.s32.totalorder %s146, %s148
      %p155 = scmp.eq.s32.totalorder %s75, 1
      %p156 = por %p154, %p155
      %p157 = scmp.ne.s32.totalorder %s148, %s149
      %p158 = scmp.eq.s32.totalorder %s75, 0
      %p159 = por %p157, %p158
      %p160 = scmp.ne.s32.totalorder %s148, %s149
      %p161 = scmp.eq.s32.totalorder %s76, 1
      %p162 = por %p160, %p161
      %p164 = scmp.ne.s32.totalorder %s149, %s163
      %p165 = scmp.eq.s32.totalorder %s76, 0
      %p166 = por %p164, %p165
      %s168 = sadd.s32 %s167, 1
      %p171 = scmp.eq.s32.totalorder %s70, 1
      %p172 = scmp.ne.s32.totalorder %s167, %s169
      %p173 = scmp.eq.s32.totalorder %s70, 0
      %p174 = por %p172, %p173
      %p175 = scmp.ne.s32.totalorder %s167, %s169
      %p176 = scmp.eq.s32.totalorder %s75, 1
      %p177 = por %p175, %p176
      %p178 = scmp.ne.s32.totalorder %s169, %s170
      %p179 = scmp.eq.s32.totalorder %s75, 0
      %p180 = por %p178, %p179
      %p181 = scmp.ne.s32.totalorder %s169, %s170
      %p182 = scmp.eq.s32.totalorder %s76, 1
      %p183 = por %p181, %p182
      %p185 = scmp.ne.s32.totalorder %s170, %s184
      %p186 = scmp.eq.s32.totalorder %s76, 0
      %p187 = por %p185, %p186
      %s189 = sadd.s32 %s188, 1
      %p192 = scmp.eq.s32.totalorder %s70, 1
      %p193 = scmp.ne.s32.totalorder %s188, %s190
      %p194 = scmp.eq.s32.totalorder %s70, 0
      %p195 = por %p193, %p194
      %p196 = scmp.ne.s32.totalorder %s188, %s190
      %p197 = scmp.eq.s32.totalorder %s75, 1
      %p198 = por %p196, %p197
      %p199 = scmp.ne.s32.totalorder %s190, %s191
      %p200 = scmp.eq.s32.totalorder %s75, 0
      %p201 = por %p199, %p200
      %p202 = scmp.ne.s32.totalorder %s190, %s191
      %p203 = scmp.eq.s32.totalorder %s76, 1
      %p204 = por %p202, %p203
      %p206 = scmp.ne.s32.totalorder %s191, %s205
      %p207 = scmp.eq.s32.totalorder %s76, 0
      %p208 = por %p206, %p207
      %s210 = sadd.s32 %s209, 1
      %p213 = scmp.eq.s32.totalorder %s70, 1
      %p214 = scmp.ne.s32.totalorder %s209, %s211
      %p215 = scmp.eq.s32.totalorder %s70, 0
      %p216 = por %p214, %p215
      %p217 = scmp.ne.s32.totalorder %s209, %s211
      %p218 = scmp.eq.s32.totalorder %s75, 1
      %p219 = por %p217, %p218
      %p220 = scmp.ne.s32.totalorder %s211, %s212
      %p221 = scmp.eq.s32.totalorder %s75, 0
      %p222 = por %p220, %p221
      %p223 = scmp.ne.s32.totalorder %s211, %s212
      %p224 = scmp.eq.s32.totalorder %s76, 1
      %p225 = por %p223, %p224
      %p227 = scmp.ne.s32.totalorder %s212, %s226
      %p228 = scmp.eq.s32.totalorder %s76, 0
      %p229 = por %p227, %p228
      %s231 = sadd.s32 %s230, 1
      %p234 = scmp.eq.s32.totalorder %s70, 1
      %p235 = scmp.ne.s32.totalorder %s230, %s232
      %p236 = scmp.eq.s32.totalorder %s70, 0
      %p237 = por %p235, %p236
      %p238 = scmp.ne.s32.totalorder %s230, %s232
      %p239 = scmp.eq.s32.totalorder %s75, 1
      %p240 = por %p238, %p239
      %p241 = scmp.ne.s32.totalorder %s232, %s233
      %p242 = scmp.eq.s32.totalorder %s75, 0
      %p243 = por %p241, %p242
      %p244 = scmp.ne.s32.totalorder %s232, %s233
      %p245 = scmp.eq.s32.totalorder %s76, 1
      %p246 = por %p244, %p245
      %p248 = scmp.ne.s32.totalorder %s233, %s247
      %p249 = scmp.eq.s32.totalorder %s76, 0
      %p250 = por %p248, %p249
      %s252 = sadd.s32 %s251, 1
      %p255 = scmp.eq.s32.totalorder %s70, 1
      %p256 = scmp.ne.s32.totalorder %s251, %s253
      %p257 = scmp.eq.s32.totalorder %s70, 0
      %p258 = por %p256, %p257
      %p259 = scmp.ne.s32.totalorder %s251, %s253
      %p260 = scmp.eq.s32.totalorder %s75, 1
      %p261 = por %p259, %p260
      %p262 = scmp.ne.s32.totalorder %s253, %s254
      %p263 = scmp.eq.s32.totalorder %s75, 0
      %p264 = por %p262, %p263
      %p265 = scmp.ne.s32.totalorder %s253, %s254
      %p266 = scmp.eq.s32.totalorder %s76, 1
      %p267 = por %p265, %p266
      %p269 = scmp.ne.s32.totalorder %s254, %s268
      %p270 = scmp.eq.s32.totalorder %s76, 0
      %p271 = por %p269, %p270
      %s273 = sadd.s32 %s272, 1
      %p276 = scmp.eq.s32.totalorder %s70, 1
      %p277 = scmp.ne.s32.totalorder %s272, %s274
      %p278 = scmp.eq.s32.totalorder %s70, 0
      %p279 = por %p277, %p278
      %p280 = scmp.ne.s32.totalorder %s272, %s274
      %p281 = scmp.eq.s32.totalorder %s75, 1
      %p282 = por %p280, %p281
      %p283 = scmp.ne.s32.totalorder %s274, %s275
      %p284 = scmp.eq.s32.totalorder %s75, 0
      %p285 = por %p283, %p284
      %p286 = scmp.ne.s32.totalorder %s274, %s275
      %p287 = scmp.eq.s32.totalorder %s76, 1
      %p288 = por %p286, %p287
      %p290 = scmp.ne.s32.totalorder %s275, %s289
      %p291 = scmp.eq.s32.totalorder %s76, 0
      %p292 = por %p290, %p291
      %s294 = sadd.s32 %s293, 1
      %p297 = scmp.eq.s32.totalorder %s70, 1
      %p298 = scmp.ne.s32.totalorder %s293, %s295
      %p299 = scmp.eq.s32.totalorder %s70, 0
      %p300 = por %p298, %p299
      %p301 = scmp.ne.s32.totalorder %s293, %s295
      %p302 = scmp.eq.s32.totalorder %s75, 1
      %p303 = por %p301, %p302
      %p304 = scmp.ne.s32.totalorder %s295, %s296
      %p305 = scmp.eq.s32.totalorder %s75, 0
      %p306 = por %p304, %p305
      %p307 = scmp.ne.s32.totalorder %s295, %s296
      %p308 = scmp.eq.s32.totalorder %s76, 1
      %p309 = por %p307, %p308
      %p311 = scmp.ne.s32.totalorder %s296, %s310
      %p312 = scmp.eq.s32.totalorder %s76, 0
      %p313 = por %p311, %p312
      %s315 = sadd.s32 %s314, 1
      %p318 = scmp.eq.s32.totalorder %s70, 1
      %p319 = scmp.ne.s32.totalorder %s314, %s316
      %p320 = scmp.eq.s32.totalorder %s70, 0
      %p321 = por %p319, %p320
      %p322 = scmp.ne.s32.totalorder %s314, %s316
      %p323 = scmp.eq.s32.totalorder %s75, 1
      %p324 = por %p322, %p323
      %p325 = scmp.ne.s32.totalorder %s316, %s317
      %p326 = scmp.eq.s32.totalorder %s75, 0
      %p327 = por %p325, %p326
      %p328 = scmp.ne.s32.totalorder %s316, %s317
      %p329 = scmp.eq.s32.totalorder %s76, 1
      %p330 = por %p328, %p329
      %p332 = scmp.ne.s32.totalorder %s317, %s331
      %p333 = scmp.eq.s32.totalorder %s76, 0
      %p334 = por %p332, %p333
      %s336 = sadd.s32 %s335, 1
      %p339 = scmp.eq.s32.totalorder %s70, 1
      %p340 = scmp.ne.s32.totalorder %s335, %s337
      %p341 = scmp.eq.s32.totalorder %s70, 0
      %p342 = por %p340, %p341
      %p343 = scmp.ne.s32.totalorder %s335, %s337
      %p344 = scmp.eq.s32.totalorder %s75, 1
      %p345 = por %p343, %p344
      %p346 = scmp.ne.s32.totalorder %s337, %s338
      %p347 = scmp.eq.s32.totalorder %s75, 0
      %p348 = por %p346, %p347
      %p349 = scmp.ne.s32.totalorder %s337, %s338
      %p350 = scmp.eq.s32.totalorder %s76, 1
      %p351 = por %p349, %p350
      %p353 = scmp.ne.s32.totalorder %s338, %s352
      %p354 = scmp.eq.s32.totalorder %s76, 0
      %p355 = por %p353, %p354
      %s357 = sadd.s32 %s356, 1
      %p360 = scmp.eq.s32.totalorder %s70, 1
      %p361 = scmp.ne.s32.totalorder %s356, %s358
      %p362 = scmp.eq.s32.totalorder %s70, 0
      %p363 = por %p361, %p362
      %p364 = scmp.ne.s32.totalorder %s356, %s358
      %p365 = scmp.eq.s32.totalorder %s75, 1
      %p366 = por %p364, %p365
      %p367 = scmp.ne.s32.totalorder %s358, %s359
      %p368 = scmp.eq.s32.totalorder %s75, 0
      %p369 = por %p367, %p368
      %p370 = scmp.ne.s32.totalorder %s358, %s359
      %p371 = scmp.eq.s32.totalorder %s76, 1
      %p372 = por %p370, %p371
      %p374 = scmp.ne.s32.totalorder %s359, %s373
      %p375 = scmp.eq.s32.totalorder %s76, 0
      %p376 = por %p374, %p375
      %s378 = sadd.s32 %s377, 1
      %p381 = scmp.eq.s32.totalorder %s70, 1
      %p382 = scmp.ne.s32.totalorder %s377, %s379
      %p383 = scmp.eq.s32.totalorder %s70, 0
      %p384 = por %p382, %p383
      %p385 = scmp.ne.s32.totalorder %s377, %s379
      %p386 = scmp.eq.s32.totalorder %s75, 1
      %p387 = por %p385, %p386
      %p388 = scmp.ne.s32.totalorder %s379, %s380
      %p389 = scmp.eq.s32.totalorder %s75, 0
      %p390 = por %p388, %p389
      %p391 = scmp.ne.s32.totalorder %s379, %s380
      %p392 = scmp.eq.s32.totalorder %s76, 1
      %p393 = por %p391, %p392
      %p395 = scmp.ne.s32.totalorder %s380, %s394
      %p396 = scmp.eq.s32.totalorder %s76, 0
      %p397 = por %p395, %p396
      %s399 = sadd.s32 %s398, 1
      %p402 = scmp.eq.s32.totalorder %s70, 1
      %p403 = scmp.ne.s32.totalorder %s398, %s400
      %p404 = scmp.eq.s32.totalorder %s70, 0
      %p405 = por %p403, %p404
      %p406 = scmp.ne.s32.totalorder %s398, %s400
      %p407 = scmp.eq.s32.totalorder %s75, 1
      %p408 = por %p406, %p407
      %p409 = scmp.ne.s32.totalorder %s400, %s401
      %p410 = scmp.eq.s32.totalorder %s75, 0
      %p411 = por %p409, %p410
      %p412 = scmp.ne.s32.totalorder %s400, %s401
      %p413 = scmp.eq.s32.totalorder %s76, 1
      %p414 = por %p412, %p413
      %p416 = scmp.ne.s32.totalorder %s401, %s415
      %p417 = scmp.eq.s32.totalorder %s76, 0
      %p418 = por %p416, %p417
      %s420 = sadd.s32 %s419, 1
      %p423 = scmp.eq.s32.totalorder %s70, 1
      %p424 = scmp.ne.s32.totalorder %s419, %s421
      %p425 = scmp.eq.s32.totalorder %s70, 0
      %p426 = por %p424, %p425
      %p427 = scmp.ne.s32.totalorder %s419, %s421
      %p428 = scmp.eq.s32.totalorder %s75, 1
      %p429 = por %p427, %p428
      %p430 = scmp.ne.s32.totalorder %s421, %s422
      %p431 = scmp.eq.s32.totalorder %s75, 0
      %p432 = por %p430, %p431
      %p433 = scmp.ne.s32.totalorder %s421, %s422
      %p434 = scmp.eq.s32.totalorder %s76, 1
      %p435 = por %p433, %p434
      %p437 = scmp.ne.s32.totalorder %s422, %s436
      %p438 = scmp.eq.s32.totalorder %s76, 0
      %p439 = por %p437, %p438
      %s441 = sadd.s32 %s440, 1
      %p444 = scmp.eq.s32.totalorder %s70, 1
      %p445 = scmp.ne.s32.totalorder %s440, %s442
      %p446 = scmp.eq.s32.totalorder %s70, 0
      %p447 = por %p445, %p446
      %p448 = scmp.ne.s32.totalorder %s440, %s442
      %p449 = scmp.eq.s32.totalorder %s75, 1
      %p450 = por %p448, %p449
      %p451 = scmp.ne.s32.totalorder %s442, %s443
      %p452 = scmp.eq.s32.totalorder %s75, 0
      %p453 = por %p451, %p452
      %p454 = scmp.ne.s32.totalorder %s442, %s443
      %p455 = scmp.eq.s32.totalorder %s76, 1
      %p456 = por %p454, %p455
      %p458 = scmp.ne.s32.totalorder %s443, %s457
      %p459 = scmp.eq.s32.totalorder %s76, 0
      %p460 = por %p458, %p459
      %s462 = sadd.s32 %s461, 1
      %p465 = scmp.eq.s32.totalorder %s70, 1
      %p466 = scmp.ne.s32.totalorder %s461, %s463
      %p467 = scmp.eq.s32.totalorder %s70, 0
      %p468 = por %p466, %p467
      %p469 = scmp.ne.s32.totalorder %s461, %s463
      %p470 = scmp.eq.s32.totalorder %s75, 1
      %p471 = por %p469, %p470
      %p472 = scmp.ne.s32.totalorder %s463, %s464
      %p473 = scmp.eq.s32.totalorder %s75, 0
      %p474 = por %p472, %p473
      %p475 = scmp.ne.s32.totalorder %s463, %s464
      %p476 = scmp.eq.s32.totalorder %s76, 1
      %p477 = por %p475, %p476
      %p479 = scmp.ne.s32.totalorder %s464, %s478
      %p480 = scmp.eq.s32.totalorder %s76, 0
      %p481 = por %p479, %p480
      %s483 = sadd.s32 %s482, 1
      %p486 = scmp.eq.s32.totalorder %s70, 1
      %p487 = scmp.ne.s32.totalorder %s482, %s484
      %p488 = scmp.eq.s32.totalorder %s70, 0
      %p489 = por %p487, %p488
      %p490 = scmp.ne.s32.totalorder %s482, %s484
      %p491 = scmp.eq.s32.totalorder %s75, 1
      %p492 = por %p490, %p491
      %p493 = scmp.ne.s32.totalorder %s484, %s485
      %p494 = scmp.eq.s32.totalorder %s75, 0
      %p495 = por %p493, %p494
      %p496 = scmp.ne.s32.totalorder %s484, %s485
      %p497 = scmp.eq.s32.totalorder %s76, 1
      %p498 = por %p496, %p497
      %p500 = scmp.ne.s32.totalorder %s485, %s499
      %p501 = scmp.eq.s32.totalorder %s76, 0
      %p502 = por %p500, %p501
      %s504 = sadd.s32 %s503, 1
      %p507 = scmp.eq.s32.totalorder %s70, 1
      %p508 = scmp.ne.s32.totalorder %s503, %s505
      %p509 = scmp.eq.s32.totalorder %s70, 0
      %p510 = por %p508, %p509
      %p511 = scmp.ne.s32.totalorder %s503, %s505
      %p512 = scmp.eq.s32.totalorder %s75, 1
      %p513 = por %p511, %p512
      %p514 = scmp.ne.s32.totalorder %s505, %s506
      %p515 = scmp.eq.s32.totalorder %s75, 0
      %p516 = por %p514, %p515
      %p517 = scmp.ne.s32.totalorder %s505, %s506
      %p518 = scmp.eq.s32.totalorder %s76, 1
      %p519 = por %p517, %p518
      %p521 = scmp.ne.s32.totalorder %s506, %s520
      %p522 = scmp.eq.s32.totalorder %s76, 0
      %p523 = por %p521, %p522
      %s525 = sadd.s32 %s524, 1
      %p528 = scmp.eq.s32.totalorder %s70, 1
      %p529 = scmp.ne.s32.totalorder %s524, %s526
      %p530 = scmp.eq.s32.totalorder %s70, 0
      %p531 = por %p529, %p530
      %p532 = scmp.ne.s32.totalorder %s524, %s526
      %p533 = scmp.eq.s32.totalorder %s75, 1
      %p534 = por %p532, %p533
      %p535 = scmp.ne.s32.totalorder %s526, %s527
      %p536 = scmp.eq.s32.totalorder %s75, 0
      %p537 = por %p535, %p536
      %p538 = scmp.ne.s32.totalorder %s526, %s527
      %p539 = scmp.eq.s32.totalorder %s76, 1
      %p540 = por %p538, %p539
      %p542 = scmp.ne.s32.totalorder %s527, %s541
      %p543 = scmp.eq.s32.totalorder %s76, 0
      %p544 = por %p542, %p543
      %s546 = sadd.s32 %s545, 1
      %p549 = scmp.eq.s32.totalorder %s70, 1
      %p550 = scmp.ne.s32.totalorder %s545, %s547
      %p551 = scmp.eq.s32.totalorder %s70, 0
      %p552 = por %p550, %p551
      %p553 = scmp.ne.s32.totalorder %s545, %s547
      %p554 = scmp.eq.s32.totalorder %s75, 1
      %p555 = por %p553, %p554
      %p556 = scmp.ne.s32.totalorder %s547, %s548
      %p557 = scmp.eq.s32.totalorder %s75, 0
      %p558 = por %p556, %p557
      %p559 = scmp.ne.s32.totalorder %s547, %s548
      %p560 = scmp.eq.s32.totalorder %s76, 1
      %p561 = por %p559, %p560
      %p563 = scmp.ne.s32.totalorder %s548, %s562
      %p564 = scmp.eq.s32.totalorder %s76, 0
      %p565 = por %p563, %p564
      %s567 = sadd.s32 %s566, 1
      %p570 = scmp.eq.s32.totalorder %s70, 1
      %p571 = scmp.ne.s32.totalorder %s566, %s568
      %p572 = scmp.eq.s32.totalorder %s70, 0
      %p573 = por %p571, %p572
      %p574 = scmp.ne.s32.totalorder %s566, %s568
      %p575 = scmp.eq.s32.totalorder %s75, 1
      %p576 = por %p574, %p575
      %p577 = scmp.ne.s32.totalorder %s568, %s569
      %p578 = scmp.eq.s32.totalorder %s75, 0
      %p579 = por %p577, %p578
      %p580 = scmp.ne.s32.totalorder %s568, %s569
      %p581 = scmp.eq.s32.totalorder %s76, 1
      %p582 = por %p580, %p581
      %p584 = scmp.ne.s32.totalorder %s569, %s583
      %p585 = scmp.eq.s32.totalorder %s76, 0
      %p586 = por %p584, %p585
      %s588 = sadd.s32 %s587, 1
      %p591 = scmp.eq.s32.totalorder %s70, 1
      %p592 = scmp.ne.s32.totalorder %s587, %s589
      %p593 = scmp.eq.s32.totalorder %s70, 0
      %p594 = por %p592, %p593
      %p595 = scmp.ne.s32.totalorder %s587, %s589
      %p596 = scmp.eq.s32.totalorder %s75, 1
      %p597 = por %p595, %p596
      %p598 = scmp.ne.s32.totalorder %s589, %s590
      %p599 = scmp.eq.s32.totalorder %s75, 0
      %p600 = por %p598, %p599
      %p601 = scmp.ne.s32.totalorder %s589, %s590
      %p602 = scmp.eq.s32.totalorder %s76, 1
      %p603 = por %p601, %p602
      %p605 = scmp.ne.s32.totalorder %s590, %s604
      %p606 = scmp.eq.s32.totalorder %s76, 0
      %p607 = por %p605, %p606
      %s609 = sadd.s32 %s608, 1
      %p612 = scmp.eq.s32.totalorder %s70, 1
      %p613 = scmp.ne.s32.totalorder %s608, %s610
      %p614 = scmp.eq.s32.totalorder %s70, 0
      %p615 = por %p613, %p614
      %p616 = scmp.ne.s32.totalorder %s608, %s610
      %p617 = scmp.eq.s32.totalorder %s75, 1
      %p618 = por %p616, %p617
      %p619 = scmp.ne.s32.totalorder %s610, %s611
      %p620 = scmp.eq.s32.totalorder %s75, 0
      %p621 = por %p619, %p620
      %p622 = scmp.ne.s32.totalorder %s610, %s611
      %p623 = scmp.eq.s32.totalorder %s76, 1
      %p624 = por %p622, %p623
      %p626 = scmp.ne.s32.totalorder %s611, %s625
      %p627 = scmp.eq.s32.totalorder %s76, 0
      %p628 = por %p626, %p627
      %s630 = sadd.s32 %s629, 1
      %p633 = scmp.eq.s32.totalorder %s70, 1
      %p634 = scmp.ne.s32.totalorder %s629, %s631
      %p635 = scmp.eq.s32.totalorder %s70, 0
      %p636 = por %p634, %p635
      %p637 = scmp.ne.s32.totalorder %s629, %s631
      %p638 = scmp.eq.s32.totalorder %s75, 1
      %p639 = por %p637, %p638
      %p640 = scmp.ne.s32.totalorder %s631, %s632
      %p641 = scmp.eq.s32.totalorder %s75, 0
      %p642 = por %p640, %p641
      %p643 = scmp.ne.s32.totalorder %s631, %s632
      %p644 = scmp.eq.s32.totalorder %s76, 1
      %p645 = por %p643, %p644
      %p647 = scmp.ne.s32.totalorder %s632, %s646
      %p648 = scmp.eq.s32.totalorder %s76, 0
      %p649 = por %p647, %p648
      %s651 = sadd.s32 %s650, 1
      %p654 = scmp.eq.s32.totalorder %s70, 1
      %p655 = scmp.ne.s32.totalorder %s650, %s652
      %p656 = scmp.eq.s32.totalorder %s70, 0
      %p657 = por %p655, %p656
      %p658 = scmp.ne.s32.totalorder %s650, %s652
      %p659 = scmp.eq.s32.totalorder %s75, 1
      %p660 = por %p658, %p659
      %p661 = scmp.ne.s32.totalorder %s652, %s653
      %p662 = scmp.eq.s32.totalorder %s75, 0
      %p663 = por %p661, %p662
      %p664 = scmp.ne.s32.totalorder %s652, %s653
      %p665 = scmp.eq.s32.totalorder %s76, 1
      %p666 = por %p664, %p665
      %p668 = scmp.ne.s32.totalorder %s653, %s667
      %p669 = scmp.eq.s32.totalorder %s76, 0
      %p670 = por %p668, %p669
      %s672 = sadd.s32 %s671, 1
      %p675 = scmp.eq.s32.totalorder %s70, 1
      %p676 = scmp.ne.s32.totalorder %s671, %s673
      %p677 = scmp.eq.s32.totalorder %s70, 0
      %p678 = por %p676, %p677
      %p679 = scmp.ne.s32.totalorder %s671, %s673
      %p680 = scmp.eq.s32.totalorder %s75, 1
      %p681 = por %p679, %p680
      %p682 = scmp.ne.s32.totalorder %s673, %s674
      %p683 = scmp.eq.s32.totalorder %s75, 0
      %p684 = por %p682, %p683
      %p685 = scmp.ne.s32.totalorder %s673, %s674
      %p686 = scmp.eq.s32.totalorder %s76, 1
      %p687 = por %p685, %p686
      %p689 = scmp.ne.s32.totalorder %s674, %s688
      %p690 = scmp.eq.s32.totalorder %s76, 0
      %p691 = por %p689, %p690
      %s692 = ssub.s32 %s70, %s77
      %p693 = scmp.eq.s32.totalorder %s692, 0
      %s695 = sadd.s32 %s694, 1
      %s696 = scalar_select %p693, %s694, %s695
      %p699 = pneg %p693
      %p700 = scmp.eq.s32.totalorder %s70, 1
      %p701 = por %p699, %p700
      %p702 = scmp.ne.s32.totalorder %s694, %s697
      %p703 = scmp.eq.s32.totalorder %s70, 0
      %p704 = por %p702, %p703
      %p705 = scmp.ne.s32.totalorder %s694, %s697
      %p706 = scmp.eq.s32.totalorder %s75, 1
      %p707 = por %p705, %p706
      %p708 = scmp.ne.s32.totalorder %s697, %s698
      %p709 = scmp.eq.s32.totalorder %s75, 0
      %p710 = por %p708, %p709
      %p711 = scmp.ne.s32.totalorder %s697, %s698
      %p712 = scmp.eq.s32.totalorder %s76, 1
      %p713 = por %p711, %p712
      %p715 = scmp.ne.s32.totalorder %s698, %s714
      %p716 = scmp.eq.s32.totalorder %s76, 0
      %p717 = por %p715, %p716
      %p718 = scmp.le.s32.totalorder 1, %s70
      %p719 = scmp.lt.s32.totalorder %s70, 3
      %p720 = pnand %p718, %p719
      %p721 = pneg %p720
      // Predicated region
      $region9: #{cct_forward.1} parent=5 // pred_check
        _
      $region10: #{cct_forward.1} parent=5 // pred_check_branch
        %723 = sbr.rel (%p720) target = $region12
      $region11: #{cct_forward.1} parent=5 // pred_region
        %s724 = ssub.s32 %s70, 1
        // Predicated region
        $region13: #{cct_forward.1} parent=11 // pred_check
          %p725 = pneg %p117
        $region14: #{cct_forward.1} parent=11 // pred_check_branch
          %727 = sbr.rel (%p725) target = $region16
        $region15: #{cct_forward.1} parent=11 // pred_region
          _
        $region16: #{cct_forward.1} parent=11 // pred_fallthru
          _
        // Predicated region
        $region17: #{cct_forward.1} parent=11 // pred_check
          %p728 = pneg %p138
        $region18: #{cct_forward.1} parent=11 // pred_check_branch
          %730 = sbr.rel (%p728) target = $region20
        $region19: #{cct_forward.1} parent=11 // pred_region
          _
        $region20: #{cct_forward.1} parent=11 // pred_fallthru
          _
        // Predicated region
        $region21: #{cct_forward.1} parent=11 // pred_check
          %p731 = pneg %p159
        $region22: #{cct_forward.1} parent=11 // pred_check_branch
          %733 = sbr.rel (%p731) target = $region24
        $region23: #{cct_forward.1} parent=11 // pred_region
          _
        $region24: #{cct_forward.1} parent=11 // pred_fallthru
          _
        // Predicated region
        $region25: #{cct_forward.1} parent=11 // pred_check
          %p734 = pneg %p180
        $region26: #{cct_forward.1} parent=11 // pred_check_branch
          %736 = sbr.rel (%p734) target = $region28
        $region27: #{cct_forward.1} parent=11 // pred_region
          _
        $region28: #{cct_forward.1} parent=11 // pred_fallthru
          _
        // Predicated region
        $region29: #{cct_forward.1} parent=11 // pred_check
          %p737 = pneg %p201
        $region30: #{cct_forward.1} parent=11 // pred_check_branch
          %739 = sbr.rel (%p737) target = $region32
        $region31: #{cct_forward.1} parent=11 // pred_region
          _
        $region32: #{cct_forward.1} parent=11 // pred_fallthru
          _
        // Predicated region
        $region33: #{cct_forward.1} parent=11 // pred_check
          %p740 = pneg %p222
        $region34: #{cct_forward.1} parent=11 // pred_check_branch
          %742 = sbr.rel (%p740) target = $region36
        $region35: #{cct_forward.1} parent=11 // pred_region
          _
        $region36: #{cct_forward.1} parent=11 // pred_fallthru
          _
        // Predicated region
        $region37: #{cct_forward.1} parent=11 // pred_check
          %p743 = pneg %p243
        $region38: #{cct_forward.1} parent=11 // pred_check_branch
          %745 = sbr.rel (%p743) target = $region40
        $region39: #{cct_forward.1} parent=11 // pred_region
          _
        $region40: #{cct_forward.1} parent=11 // pred_fallthru
          _
        // Predicated region
        $region41: #{cct_forward.1} parent=11 // pred_check
          %p746 = pneg %p264
        $region42: #{cct_forward.1} parent=11 // pred_check_branch
          %748 = sbr.rel (%p746) target = $region44
        $region43: #{cct_forward.1} parent=11 // pred_region
          _
        $region44: #{cct_forward.1} parent=11 // pred_fallthru
          _
        // Predicated region
        $region45: #{cct_forward.1} parent=11 // pred_check
          %p749 = pneg %p285
        $region46: #{cct_forward.1} parent=11 // pred_check_branch
          %751 = sbr.rel (%p749) target = $region48
        $region47: #{cct_forward.1} parent=11 // pred_region
          _
        $region48: #{cct_forward.1} parent=11 // pred_fallthru
          _
        // Predicated region
        $region49: #{cct_forward.1} parent=11 // pred_check
          %p752 = pneg %p306
        $region50: #{cct_forward.1} parent=11 // pred_check_branch
          %754 = sbr.rel (%p752) target = $region52
        $region51: #{cct_forward.1} parent=11 // pred_region
          _
        $region52: #{cct_forward.1} parent=11 // pred_fallthru
          _
        // Predicated region
        $region53: #{cct_forward.1} parent=11 // pred_check
          %p755 = pneg %p327
        $region54: #{cct_forward.1} parent=11 // pred_check_branch
          %757 = sbr.rel (%p755) target = $region56
        $region55: #{cct_forward.1} parent=11 // pred_region
          _
        $region56: #{cct_forward.1} parent=11 // pred_fallthru
          _
        // Predicated region
        $region57: #{cct_forward.1} parent=11 // pred_check
          %p758 = pneg %p348
        $region58: #{cct_forward.1} parent=11 // pred_check_branch
          %760 = sbr.rel (%p758) target = $region60
        $region59: #{cct_forward.1} parent=11 // pred_region
          _
        $region60: #{cct_forward.1} parent=11 // pred_fallthru
          _
        // Predicated region
        $region61: #{cct_forward.1} parent=11 // pred_check
          %p761 = pneg %p369
        $region62: #{cct_forward.1} parent=11 // pred_check_branch
          %763 = sbr.rel (%p761) target = $region64
        $region63: #{cct_forward.1} parent=11 // pred_region
          _
        $region64: #{cct_forward.1} parent=11 // pred_fallthru
          _
        // Predicated region
        $region65: #{cct_forward.1} parent=11 // pred_check
          %p764 = pneg %p390
        $region66: #{cct_forward.1} parent=11 // pred_check_branch
          %766 = sbr.rel (%p764) target = $region68
        $region67: #{cct_forward.1} parent=11 // pred_region
          _
        $region68: #{cct_forward.1} parent=11 // pred_fallthru
          _
        // Predicated region
        $region69: #{cct_forward.1} parent=11 // pred_check
          %p767 = pneg %p411
        $region70: #{cct_forward.1} parent=11 // pred_check_branch
          %769 = sbr.rel (%p767) target = $region72
        $region71: #{cct_forward.1} parent=11 // pred_region
          _
        $region72: #{cct_forward.1} parent=11 // pred_fallthru
          _
        // Predicated region
        $region73: #{cct_forward.1} parent=11 // pred_check
          %p770 = pneg %p432
        $region74: #{cct_forward.1} parent=11 // pred_check_branch
          %772 = sbr.rel (%p770) target = $region76
        $region75: #{cct_forward.1} parent=11 // pred_region
          _
        $region76: #{cct_forward.1} parent=11 // pred_fallthru
          _
        // Predicated region
        $region77: #{cct_forward.1} parent=11 // pred_check
          %p773 = pneg %p453
        $region78: #{cct_forward.1} parent=11 // pred_check_branch
          %775 = sbr.rel (%p773) target = $region80
        $region79: #{cct_forward.1} parent=11 // pred_region
          _
        $region80: #{cct_forward.1} parent=11 // pred_fallthru
          _
        // Predicated region
        $region81: #{cct_forward.1} parent=11 // pred_check
          %p776 = pneg %p474
        $region82: #{cct_forward.1} parent=11 // pred_check_branch
          %778 = sbr.rel (%p776) target = $region84
        $region83: #{cct_forward.1} parent=11 // pred_region
          _
        $region84: #{cct_forward.1} parent=11 // pred_fallthru
          _
        // Predicated region
        $region85: #{cct_forward.1} parent=11 // pred_check
          %p779 = pneg %p495
        $region86: #{cct_forward.1} parent=11 // pred_check_branch
          %781 = sbr.rel (%p779) target = $region88
        $region87: #{cct_forward.1} parent=11 // pred_region
          _
        $region88: #{cct_forward.1} parent=11 // pred_fallthru
          _
        // Predicated region
        $region89: #{cct_forward.1} parent=11 // pred_check
          %p782 = pneg %p516
        $region90: #{cct_forward.1} parent=11 // pred_check_branch
          %784 = sbr.rel (%p782) target = $region92
        $region91: #{cct_forward.1} parent=11 // pred_region
          _
        $region92: #{cct_forward.1} parent=11 // pred_fallthru
          _
        // Predicated region
        $region93: #{cct_forward.1} parent=11 // pred_check
          %p785 = pneg %p537
        $region94: #{cct_forward.1} parent=11 // pred_check_branch
          %787 = sbr.rel (%p785) target = $region96
        $region95: #{cct_forward.1} parent=11 // pred_region
          _
        $region96: #{cct_forward.1} parent=11 // pred_fallthru
          _
        // Predicated region
        $region97: #{cct_forward.1} parent=11 // pred_check
          %p788 = pneg %p558
        $region98: #{cct_forward.1} parent=11 // pred_check_branch
          %790 = sbr.rel (%p788) target = $region100
        $region99: #{cct_forward.1} parent=11 // pred_region
          _
        $region100: #{cct_forward.1} parent=11 // pred_fallthru
          _
        // Predicated region
        $region101: #{cct_forward.1} parent=11 // pred_check
          %p791 = pneg %p579
        $region102: #{cct_forward.1} parent=11 // pred_check_branch
          %793 = sbr.rel (%p791) target = $region104
        $region103: #{cct_forward.1} parent=11 // pred_region
          _
        $region104: #{cct_forward.1} parent=11 // pred_fallthru
          _
        // Predicated region
        $region105: #{cct_forward.1} parent=11 // pred_check
          %p794 = pneg %p600
        $region106: #{cct_forward.1} parent=11 // pred_check_branch
          %796 = sbr.rel (%p794) target = $region108
        $region107: #{cct_forward.1} parent=11 // pred_region
          _
        $region108: #{cct_forward.1} parent=11 // pred_fallthru
          _
        // Predicated region
        $region109: #{cct_forward.1} parent=11 // pred_check
          %p797 = pneg %p621
        $region110: #{cct_forward.1} parent=11 // pred_check_branch
          %799 = sbr.rel (%p797) target = $region112
        $region111: #{cct_forward.1} parent=11 // pred_region
          _
        $region112: #{cct_forward.1} parent=11 // pred_fallthru
          _
        // Predicated region
        $region113: #{cct_forward.1} parent=11 // pred_check
          %p800 = pneg %p642
        $region114: #{cct_forward.1} parent=11 // pred_check_branch
          %802 = sbr.rel (%p800) target = $region116
        $region115: #{cct_forward.1} parent=11 // pred_region
          _
        $region116: #{cct_forward.1} parent=11 // pred_fallthru
          _
        // Predicated region
        $region117: #{cct_forward.1} parent=11 // pred_check
          %p803 = pneg %p663
        $region118: #{cct_forward.1} parent=11 // pred_check_branch
          %805 = sbr.rel (%p803) target = $region120
        $region119: #{cct_forward.1} parent=11 // pred_region
          _
        $region120: #{cct_forward.1} parent=11 // pred_fallthru
          _
        // Predicated region
        $region121: #{cct_forward.1} parent=11 // pred_check
          %p806 = pneg %p684
        $region122: #{cct_forward.1} parent=11 // pred_check_branch
          %808 = sbr.rel (%p806) target = $region124
        $region123: #{cct_forward.1} parent=11 // pred_region
          _
        $region124: #{cct_forward.1} parent=11 // pred_fallthru
          _
      $region12: #{cct_forward.1} parent=5 // pred_fallthru
        _
      %p809 = scmp.lt.s32.totalorder %s70, 2
      // Predicated region
      $region125: #{cct_forward.1} parent=5 // pred_check
        %p810 = pneg %p809
      $region126: #{cct_forward.1} parent=5 // pred_check_branch
        %812 = sbr.rel (%p810) target = $region128
      $region127: #{cct_forward.1} parent=5 // pred_region
        // Predicated region
        $region129: #{cct_forward.1} parent=127 // pred_check
          %p813 = pneg %p90
        $region130: #{cct_forward.1} parent=127 // pred_check_branch
          %815 = sbr.rel (%p813) target = $region132
        $region131: #{cct_forward.1} parent=127 // pred_region
          %p816 = scmp.lt.s32.totalorder %s70, 1
          %s817 = scalar_select %p816, %s70, 1
          %s818 = smul.addr %s817, 32
          %s819 = smul.addr %s818, 8
          %s820 = scalar_lea.vmem %s1, %s819
        $region132: #{cct_forward.1} parent=127 // pred_fallthru
          _
      $region128: #{cct_forward.1} parent=5 // pred_fallthru
        _
      %p821 = scmp.le.s32.totalorder 1, %s70
      %p822 = scmp.lt.s32.totalorder %s70, 3
      %p823 = pnand %p821, %p822
      %p824 = pneg %p823
      // Predicated region
      $region133: #{cct_forward.1} parent=5 // pred_check
        _
      $region134: #{cct_forward.1} parent=5 // pred_check_branch
        %826 = sbr.rel (%p823) target = $region136
      $region135: #{cct_forward.1} parent=5 // pred_region
        %s827 = ssub.s32 %s70, 1
        %p828 = scmp.lt.s32.totalorder %s75, 1
        %s829 = scalar_select %p828, %s75, 1
        %s830 = smul.addr %s829, 32
        %s831 = smul.addr %s830, 8
        %s832 = scalar_lea.vmem %s1, %s831
        %p833 = pneg %p96
        %p834 = pneg %p93
        %p835 = pneg %p117
        %p836 = pneg %p114
        %p837 = pneg %p138
        %p838 = pneg %p135
        %p839 = pneg %p159
        %p840 = pneg %p156
        %p841 = pneg %p180
        %p842 = pneg %p177
        %p843 = pneg %p201
        %p844 = pneg %p198
        %p845 = pneg %p222
        %p846 = pneg %p219
        %p847 = pneg %p243
        %p848 = pneg %p240
        %p849 = pneg %p264
        %p850 = pneg %p261
        %p851 = pneg %p285
        %p852 = pneg %p282
        %p853 = pneg %p306
        %p854 = pneg %p303
        %p855 = pneg %p327
        %p856 = pneg %p324
        %p857 = pneg %p348
        %p858 = pneg %p345
        %p859 = pneg %p369
        %p860 = pneg %p366
        %p861 = pneg %p390
        %p862 = pneg %p387
        %p863 = pneg %p411
        %p864 = pneg %p408
        %p865 = pneg %p432
        %p866 = pneg %p429
        %p867 = pneg %p453
        %p868 = pneg %p450
        %p869 = pneg %p474
        %p870 = pneg %p471
        %p871 = pneg %p495
        %p872 = pneg %p492
        %p873 = pneg %p516
        %p874 = pneg %p513
        %p875 = pneg %p537
        %p876 = pneg %p534
        %p877 = pneg %p558
        %p878 = pneg %p555
        %p879 = pneg %p579
        %p880 = pneg %p576
        %p881 = pneg %p600
        %p882 = pneg %p597
        %p883 = pneg %p621
        %p884 = pneg %p618
        %p885 = pneg %p642
        %p886 = pneg %p639
        %p887 = pneg %p663
        %p888 = pneg %p660
        %p889 = pneg %p684
        %p890 = pneg %p681
        %p891 = pneg %p710
        %p892 = pneg %p707
        %s893 = sand.u32 %s697, 1
        %s894 = scalar_lea.sflag [#allocation5], %s893
        %s895 = sand.u32 %s697, 1
        %s896 = scalar_lea.vmem [#allocation4], %s895
        %p897 = scmp.lt.s32.totalorder %s75, 1
        %s898 = scalar_select %p897, %s75, 1
        %s899 = smul.addr %s898, 32
        %s900 = smul.addr %s899, 8
        %s901 = scalar_lea.vmem %s1, %s900
        %v903 = vld [vmem:[%s901] sm:$0xff]
        %v904 = vld [vmem:[%s901 + $0x8] sm:$0xff]
        %v905 = vld [vmem:[%s901 + $0x10] sm:$0xff]
        %v906 = vld [vmem:[%s901 + $0x18] sm:$0xff]
        %v907 = vld [vmem:[%s901 + $0x20] sm:$0xff]
        %v908 = vld [vmem:[%s901 + $0x28] sm:$0xff]
        %v909 = vld [vmem:[%s901 + $0x30] sm:$0xff]
        %v910 = vld [vmem:[%s901 + $0x38] sm:$0xff]
        %v911 = vld [vmem:[%s901 + $0x40] sm:$0xff]
        %v912 = vld [vmem:[%s901 + $0x48] sm:$0xff]
        %v913 = vld [vmem:[%s901 + $0x50] sm:$0xff]
        %v914 = vld [vmem:[%s901 + $0x58] sm:$0xff]
        %v915 = vld [vmem:[%s901 + $0x60] sm:$0xff]
        %v916 = vld [vmem:[%s901 + $0x68] sm:$0xff]
        %v917 = vld [vmem:[%s901 + $0x70] sm:$0xff]
        %v918 = vld [vmem:[%s901 + $0x78] sm:$0xff]
        %v919 = vld [vmem:[%s901 + $0x80] sm:$0xff]
        %v920 = vld [vmem:[%s901 + $0x88] sm:$0xff]
        %v921 = vld [vmem:[%s901 + $0x90] sm:$0xff]
        %v922 = vld [vmem:[%s901 + $0x98] sm:$0xff]
        %v923 = vld [vmem:[%s901 + $0xa0] sm:$0xff]
        %v924 = vld [vmem:[%s901 + $0xa8] sm:$0xff]
        %v925 = vld [vmem:[%s901 + $0xb0] sm:$0xff]
        %v926 = vld [vmem:[%s901 + $0xb8] sm:$0xff]
        %v927 = vld [vmem:[%s901 + $0xc0] sm:$0xff]
        %v928 = vld [vmem:[%s901 + $0xc8] sm:$0xff]
        %v929 = vld [vmem:[%s901 + $0xd0] sm:$0xff]
        %v930 = vld [vmem:[%s901 + $0xd8] sm:$0xff]
        %v931 = vld [vmem:[%s901 + $0xe0] sm:$0xff]
        %v932 = vld [vmem:[%s901 + $0xe8] sm:$0xff]
        %v933 = vld [vmem:[%s901 + $0xf0] sm:$0xff]
        %v934 = vld [vmem:[%s901 + $0xf8] sm:$0xff]
        %v935 = vld [vmem:[%s3] sm:$0xff]
        %v936 = vld [vmem:[%s3 + $0x8] sm:$0x1]
        %v937 = vld [vmem:[%s5] sm:$0x1]
        %v938 = vld [vmem:[%s11] sm:$0xff]
        %v939 = vld [vmem:[%s11 + $0x8] sm:$0xff]
        %v940 = vld [vmem:[%s11 + $0x10] sm:$0xff]
        %v941 = vld [vmem:[%s11 + $0x18] sm:$0xff]
        %v942 = vld [vmem:[%s11 + $0x20] sm:$0xff]
        %v943 = vld [vmem:[%s11 + $0x28] sm:$0xff]
        %v944 = vld [vmem:[%s11 + $0x30] sm:$0xff]
        %v945 = vld [vmem:[%s11 + $0x38] sm:$0xff]
        %v946 = vld [vmem:[%s11 + $0x40] sm:$0xff]
        %v947 = vld [vmem:[%s11 + $0x48] sm:$0xff]
        %v948 = vld [vmem:[%s11 + $0x50] sm:$0xff]
        %v949 = vld [vmem:[%s11 + $0x58] sm:$0xff]
        %v950 = vld [vmem:[%s11 + $0x60] sm:$0xff]
        %v951 = vld [vmem:[%s11 + $0x68] sm:$0xff]
        %v952 = vld [vmem:[%s11 + $0x70] sm:$0xff]
        %v953 = vld [vmem:[%s11 + $0x78] sm:$0xff]
        %v954 = vld [vmem:[%s11 + $0x80] sm:$0xff]
        %v955 = vld [vmem:[%s11 + $0x88] sm:$0xff]
        %v956 = vld [vmem:[%s11 + $0x90] sm:$0xff]
        %v957 = vld [vmem:[%s11 + $0x98] sm:$0xff]
        %v958 = vld [vmem:[%s11 + $0xa0] sm:$0xff]
        %v959 = vld [vmem:[%s11 + $0xa8] sm:$0xff]
        %v960 = vld [vmem:[%s11 + $0xb0] sm:$0xff]
        %v961 = vld [vmem:[%s11 + $0xb8] sm:$0xff]
        %v962 = vld [vmem:[%s11 + $0xc0] sm:$0xff]
        %v963 = vld [vmem:[%s11 + $0xc8] sm:$0xff]
        %v964 = vld [vmem:[%s11 + $0xd0] sm:$0xff]
        %v965 = vld [vmem:[%s11 + $0xd8] sm:$0xff]
        %v966 = vld [vmem:[%s11 + $0xe0] sm:$0xff]
        %v967 = vld [vmem:[%s11 + $0xe8] sm:$0xff]
        %v968 = vld [vmem:[%s11 + $0xf0] sm:$0xff]
        %v969 = vld [vmem:[%s11 + $0xf8] sm:$0xff]
        %v970 = vld [vmem:[%s13] sm:$0xff]
        %v971 = vld [vmem:[%s13 + $0x8] sm:$0xff]
        %v972 = vld [vmem:[%s13 + $0x10] sm:$0xff]
        %v973 = vld [vmem:[%s13 + $0x18] sm:$0xff]
        %v974 = vld [vmem:[%s13 + $0x20] sm:$0xff]
        %v975 = vld [vmem:[%s13 + $0x28] sm:$0xff]
        %v976 = vld [vmem:[%s13 + $0x30] sm:$0xff]
        %v977 = vld [vmem:[%s13 + $0x38] sm:$0xff]
        %v978 = vld [vmem:[%s13 + $0x40] sm:$0xff]
        %v979 = vld [vmem:[%s13 + $0x48] sm:$0xff]
        %v980 = vld [vmem:[%s13 + $0x50] sm:$0xff]
        %v981 = vld [vmem:[%s13 + $0x58] sm:$0xff]
        %v982 = vld [vmem:[%s13 + $0x60] sm:$0xff]
        %v983 = vld [vmem:[%s13 + $0x68] sm:$0xff]
        %v984 = vld [vmem:[%s13 + $0x70] sm:$0xff]
        %v985 = vld [vmem:[%s13 + $0x78] sm:$0xff]
        %v986 = vld [vmem:[%s13 + $0x80] sm:$0xff]
        %v987 = vld [vmem:[%s13 + $0x88] sm:$0xff]
        %v988 = vld [vmem:[%s13 + $0x90] sm:$0xff]
        %v989 = vld [vmem:[%s13 + $0x98] sm:$0xff]
        %v990 = vld [vmem:[%s13 + $0xa0] sm:$0xff]
        %v991 = vld [vmem:[%s13 + $0xa8] sm:$0xff]
        %v992 = vld [vmem:[%s13 + $0xb0] sm:$0xff]
        %v993 = vld [vmem:[%s13 + $0xb8] sm:$0xff]
        %v994 = vld [vmem:[%s13 + $0xc0] sm:$0xff]
        %v995 = vld [vmem:[%s13 + $0xc8] sm:$0xff]
        %v996 = vld [vmem:[%s13 + $0xd0] sm:$0xff]
        %v997 = vld [vmem:[%s13 + $0xd8] sm:$0xff]
        %v998 = vld [vmem:[%s13 + $0xe0] sm:$0xff]
        %v999 = vld [vmem:[%s13 + $0xe8] sm:$0xff]
        %v1000 = vld [vmem:[%s13 + $0xf0] sm:$0xff]
        %v1001 = vld [vmem:[%s13 + $0xf8] sm:$0xff]
        %v1002 = vld [vmem:[%s15] sm:$0xff]
        %v1003 = vld [vmem:[%s15 + $0x8] sm:$0xff]
        %v1004 = vld [vmem:[%s15 + $0x10] sm:$0xff]
        %v1005 = vld [vmem:[%s15 + $0x18] sm:$0xff]
        %v1006 = vld [vmem:[%s15 + $0x20] sm:$0xff]
        %v1007 = vld [vmem:[%s15 + $0x28] sm:$0xff]
        %v1008 = vld [vmem:[%s15 + $0x30] sm:$0xff]
        %v1009 = vld [vmem:[%s15 + $0x38] sm:$0xff]
        %v1010 = vld [vmem:[%s15 + $0x40] sm:$0xff]
        %v1011 = vld [vmem:[%s15 + $0x48] sm:$0xff]
        %v1012 = vld [vmem:[%s15 + $0x50] sm:$0xff]
        %v1013 = vld [vmem:[%s15 + $0x58] sm:$0xff]
        %v1014 = vld [vmem:[%s15 + $0x60] sm:$0xff]
        %v1015 = vld [vmem:[%s15 + $0x68] sm:$0xff]
        %v1016 = vld [vmem:[%s15 + $0x70] sm:$0xff]
        %v1017 = vld [vmem:[%s15 + $0x78] sm:$0xff]
        %vm1050 = vcmask 1046528
        %v1051 = vrot.slane %v938, 1
        %v1052 = vrot.slane %v939, 1
        %v1053 = vsel %vm1050, %v1051, %v1052
        %v1054 = vrot.slane %v940, 1
        %v1055 = vsel %vm1050, %v1052, %v1054
        %v1056 = vrot.slane %v941, 1
        %v1057 = vsel %vm1050, %v1054, %v1056
        %v1058 = vrot.slane %v942, 1
        %v1059 = vsel %vm1050, %v1056, %v1058
        %v1060 = vrot.slane %v943, 1
        %v1061 = vsel %vm1050, %v1058, %v1060
        %v1062 = vrot.slane %v944, 1
        %v1063 = vsel %vm1050, %v1060, %v1062
        %v1064 = vrot.slane %v945, 1
        %v1065 = vsel %vm1050, %v1062, %v1064
        %v1066 = vrot.slane %v946, 1
        %v1067 = vsel %vm1050, %v1064, %v1066
        %v1068 = vrot.slane %v947, 1
        %v1069 = vsel %vm1050, %v1066, %v1068
        %v1070 = vrot.slane %v948, 1
        %v1071 = vsel %vm1050, %v1068, %v1070
        %v1072 = vrot.slane %v949, 1
        %v1073 = vsel %vm1050, %v1070, %v1072
        %v1074 = vrot.slane %v950, 1
        %v1075 = vsel %vm1050, %v1072, %v1074
        %v1076 = vrot.slane %v951, 1
        %v1077 = vsel %vm1050, %v1074, %v1076
        %v1078 = vrot.slane %v952, 1
        %v1079 = vsel %vm1050, %v1076, %v1078
        %v1080 = vrot.slane %v953, 1
        %v1081 = vsel %vm1050, %v1078, %v1080
        %v1082 = vrot.slane %v954, 1
        %v1083 = vsel %vm1050, %v1080, %v1082
        %v1084 = vrot.slane %v955, 1
        %v1085 = vsel %vm1050, %v1082, %v1084
        %v1086 = vrot.slane %v956, 1
        %v1087 = vsel %vm1050, %v1084, %v1086
        %v1088 = vrot.slane %v957, 1
        %v1089 = vsel %vm1050, %v1086, %v1088
        %v1090 = vrot.slane %v958, 1
        %v1091 = vsel %vm1050, %v1088, %v1090
        %v1092 = vrot.slane %v959, 1
        %v1093 = vsel %vm1050, %v1090, %v1092
        %v1094 = vrot.slane %v960, 1
        %v1095 = vsel %vm1050, %v1092, %v1094
        %v1096 = vrot.slane %v961, 1
        %v1097 = vsel %vm1050, %v1094, %v1096
        %v1098 = vrot.slane %v962, 1
        %v1099 = vsel %vm1050, %v1096, %v1098
        %v1100 = vrot.slane %v963, 1
        %v1101 = vsel %vm1050, %v1098, %v1100
        %v1102 = vrot.slane %v964, 1
        %v1103 = vsel %vm1050, %v1100, %v1102
        %v1104 = vrot.slane %v965, 1
        %v1105 = vsel %vm1050, %v1102, %v1104
        %v1106 = vrot.slane %v966, 1
        %v1107 = vsel %vm1050, %v1104, %v1106
        %v1108 = vrot.slane %v967, 1
        %v1109 = vsel %vm1050, %v1106, %v1108
        %v1110 = vrot.slane %v968, 1
        %v1111 = vsel %vm1050, %v1108, %v1110
        %v1112 = vrot.slane %v969, 1
        %v1113 = vsel %vm1050, %v1110, %v1112
        %v1147 = vmul.f32 %v1051, 0.0
        %v1148 = vmul.f32 %v1053, 0.0
        %v1149 = vmul.f32 %v1055, 0.0
        %v1150 = vmul.f32 %v903, %v1057
        %v1151 = vmul.f32 %v904, %v1059
        %v1152 = vmul.f32 %v905, %v1061
        %v1153 = vmul.f32 %v906, %v1063
        %v1154 = vmul.f32 %v907, %v1065
        %v1155 = vmul.f32 %v908, %v1067
        %v1156 = vmul.f32 %v909, %v1069
        %v1157 = vmul.f32 %v910, %v1071
        %v1158 = vmul.f32 %v911, %v1073
        %v1159 = vmul.f32 %v912, %v1075
        %v1160 = vmul.f32 %v913, %v1077
        %v1161 = vmul.f32 %v914, %v1079
        %v1162 = vmul.f32 %v915, %v1081
        %v1163 = vmul.f32 %v916, %v1083
        %v1164 = vmul.f32 %v917, %v1085
        %v1165 = vmul.f32 %v918, %v1087
        %v1166 = vmul.f32 %v919, %v1089
        %v1167 = vmul.f32 %v920, %v1091
        %v1168 = vmul.f32 %v921, %v1093
        %v1169 = vmul.f32 %v922, %v1095
        %v1170 = vmul.f32 %v923, %v1097
        %v1171 = vmul.f32 %v924, %v1099
        %v1172 = vmul.f32 %v925, %v1101
        %v1173 = vmul.f32 %v926, %v1103
        %v1174 = vmul.f32 %v927, %v1105
        %v1175 = vmul.f32 %v928, %v1107
        %v1176 = vmul.f32 %v929, %v1109
        %v1177 = vmul.f32 %v930, %v1111
        %v1178 = vmul.f32 %v931, %v1113
        %v1179 = vmul.f32 %v932, %v1112
        %1181 = vset.pattern.permute.xlu0 0
        %1182 = vperm.xlu0 %1181, %v1147
        %v1183 = vpop.permute.xlu0 %1182
        %1186 = vset.pattern.permute.xlu0 0
        %1187 = vperm.xlu0 %1186, %v1148
        %v1188 = vpop.permute.xlu0 %1187
        %1191 = vset.pattern.permute.xlu0 0
        %1192 = vperm.xlu0 %1191, %v1149
        %v1193 = vpop.permute.xlu0 %1192
        %1196 = vset.pattern.permute.xlu0 0
        %1197 = vperm.xlu0 %1196, %v1150
        %v1198 = vpop.permute.xlu0 %1197
        %1201 = vset.pattern.permute.xlu0 0
        %1202 = vperm.xlu0 %1201, %v1151
        %v1203 = vpop.permute.xlu0 %1202
        %1206 = vset.pattern.permute.xlu0 0
        %1207 = vperm.xlu0 %1206, %v1152
        %v1208 = vpop.permute.xlu0 %1207
        %1211 = vset.pattern.permute.xlu0 0
        %1212 = vperm.xlu0 %1211, %v1153
        %v1213 = vpop.permute.xlu0 %1212
        %1216 = vset.pattern.permute.xlu0 0
        %1217 = vperm.xlu0 %1216, %v1154
        %v1218 = vpop.permute.xlu0 %1217
        %1221 = vset.pattern.permute.xlu0 0
        %1222 = vperm.xlu0 %1221, %v1155
        %v1223 = vpop.permute.xlu0 %1222
        %1226 = vset.pattern.permute.xlu0 0
        %1227 = vperm.xlu0 %1226, %v1156
        %v1228 = vpop.permute.xlu0 %1227
        %1231 = vset.pattern.permute.xlu0 0
        %1232 = vperm.xlu0 %1231, %v1157
        %v1233 = vpop.permute.xlu0 %1232
        %1236 = vset.pattern.permute.xlu0 0
        %1237 = vperm.xlu0 %1236, %v1158
        %v1238 = vpop.permute.xlu0 %1237
        %1241 = vset.pattern.permute.xlu0 0
        %1242 = vperm.xlu0 %1241, %v1159
        %v1243 = vpop.permute.xlu0 %1242
        %1246 = vset.pattern.permute.xlu0 0
        %1247 = vperm.xlu0 %1246, %v1160
        %v1248 = vpop.permute.xlu0 %1247
        %1251 = vset.pattern.permute.xlu0 0
        %1252 = vperm.xlu0 %1251, %v1161
        %v1253 = vpop.permute.xlu0 %1252
        %1256 = vset.pattern.permute.xlu0 0
        %1257 = vperm.xlu0 %1256, %v1162
        %v1258 = vpop.permute.xlu0 %1257
        %1261 = vset.pattern.permute.xlu0 0
        %1262 = vperm.xlu0 %1261, %v1163
        %v1263 = vpop.permute.xlu0 %1262
        %1266 = vset.pattern.permute.xlu0 0
        %1267 = vperm.xlu0 %1266, %v1164
        %v1268 = vpop.permute.xlu0 %1267
        %1271 = vset.pattern.permute.xlu0 0
        %1272 = vperm.xlu0 %1271, %v1165
        %v1273 = vpop.permute.xlu0 %1272
        %1276 = vset.pattern.permute.xlu0 0
        %1277 = vperm.xlu0 %1276, %v1166
        %v1278 = vpop.permute.xlu0 %1277
        %1281 = vset.pattern.permute.xlu0 0
        %1282 = vperm.xlu0 %1281, %v1167
        %v1283 = vpop.permute.xlu0 %1282
        %1286 = vset.pattern.permute.xlu0 0
        %1287 = vperm.xlu0 %1286, %v1168
        %v1288 = vpop.permute.xlu0 %1287
        %1291 = vset.pattern.permute.xlu0 0
        %1292 = vperm.xlu0 %1291, %v1169
        %v1293 = vpop.permute.xlu0 %1292
        %1296 = vset.pattern.permute.xlu0 0
        %1297 = vperm.xlu0 %1296, %v1170
        %v1298 = vpop.permute.xlu0 %1297
        %1301 = vset.pattern.permute.xlu0 0
        %1302 = vperm.xlu0 %1301, %v1171
        %v1303 = vpop.permute.xlu0 %1302
        %1306 = vset.pattern.permute.xlu0 0
        %1307 = vperm.xlu0 %1306, %v1172
        %v1308 = vpop.permute.xlu0 %1307
        %1311 = vset.pattern.permute.xlu0 0
        %1312 = vperm.xlu0 %1311, %v1173
        %v1313 = vpop.permute.xlu0 %1312
        %1316 = vset.pattern.permute.xlu0 0
        %1317 = vperm.xlu0 %1316, %v1174
        %v1318 = vpop.permute.xlu0 %1317
        %1321 = vset.pattern.permute.xlu0 0
        %1322 = vperm.xlu0 %1321, %v1175
        %v1323 = vpop.permute.xlu0 %1322
        %1326 = vset.pattern.permute.xlu0 0
        %1327 = vperm.xlu0 %1326, %v1176
        %v1328 = vpop.permute.xlu0 %1327
        %1331 = vset.pattern.permute.xlu0 0
        %1332 = vperm.xlu0 %1331, %v1177
        %v1333 = vpop.permute.xlu0 %1332
        %1336 = vset.pattern.permute.xlu0 0
        %1337 = vperm.xlu0 %1336, %v1178
        %v1338 = vpop.permute.xlu0 %1337
        %1341 = vset.pattern.permute.xlu0 0
        %1342 = vperm.xlu0 %1341, %v1179
        %v1343 = vpop.permute.xlu0 %1342
        %v1345 = vlaneseq
        %v1346 = vshrl.u32 %v1345, 7
        %v1347 = vsub.s32 0, %v1346
        %v1348 = vrot.slane %v935, %v1347
        %v1349 = vmul.f32 %v1183, %v1348
        %v1350 = vmul.f32 %v1188, %v1348
        %v1351 = vmul.f32 %v1193, %v1348
        %v1352 = vmul.f32 %v1198, %v1348
        %v1353 = vmul.f32 %v1203, %v1348
        %v1354 = vmul.f32 %v1208, %v1348
        %v1355 = vmul.f32 %v1213, %v1348
        %v1356 = vmul.f32 %v1218, %v1348
        %v1357 = vmul.f32 %v1223, %v1348
        %v1358 = vmul.f32 %v1228, %v1348
        %v1359 = vmul.f32 %v1233, %v1348
        %v1360 = vmul.f32 %v1238, %v1348
        %v1361 = vmul.f32 %v1243, %v1348
        %v1362 = vmul.f32 %v1248, %v1348
        %v1363 = vmul.f32 %v1253, %v1348
        %v1364 = vmul.f32 %v1258, %v1348
        %v1365 = vmul.f32 %v1263, %v1348
        %v1366 = vmul.f32 %v1268, %v1348
        %v1367 = vmul.f32 %v1273, %v1348
        %v1368 = vmul.f32 %v1278, %v1348
        %v1369 = vmul.f32 %v1283, %v1348
        %v1370 = vmul.f32 %v1288, %v1348
        %v1371 = vmul.f32 %v1293, %v1348
        %v1372 = vmul.f32 %v1298, %v1348
        %v1373 = vmul.f32 %v1303, %v1348
        %v1374 = vmul.f32 %v1308, %v1348
        %v1375 = vmul.f32 %v1313, %v1348
        %v1376 = vmul.f32 %v1318, %v1348
        %v1377 = vmul.f32 %v1323, %v1348
        %v1378 = vmul.f32 %v1328, %v1348
        %v1379 = vmul.f32 %v1333, %v1348
        %v1380 = vmul.f32 %v1338, %v1348
        %v1381 = vmul.f32 %v1343, %v1348
        %1383 = vset.pattern.permute.xlu0 0
        %1384 = vperm.xlu0 %1383, 0.0
        %v1385 = vpop.permute.xlu0 %1384
        %1388 = vset.pattern.permute.xlu0 0
        %1389 = vperm.xlu0 %1388, %v903
        %v1390 = vpop.permute.xlu0 %1389
        %1393 = vset.pattern.permute.xlu0 0
        %1394 = vperm.xlu0 %1393, %v904
        %v1395 = vpop.permute.xlu0 %1394
        %1398 = vset.pattern.permute.xlu0 0
        %1399 = vperm.xlu0 %1398, %v905
        %v1400 = vpop.permute.xlu0 %1399
        %1403 = vset.pattern.permute.xlu0 0
        %1404 = vperm.xlu0 %1403, %v906
        %v1405 = vpop.permute.xlu0 %1404
        %1408 = vset.pattern.permute.xlu0 0
        %1409 = vperm.xlu0 %1408, %v907
        %v1410 = vpop.permute.xlu0 %1409
        %1413 = vset.pattern.permute.xlu0 0
        %1414 = vperm.xlu0 %1413, %v908
        %v1415 = vpop.permute.xlu0 %1414
        %1418 = vset.pattern.permute.xlu0 0
        %1419 = vperm.xlu0 %1418, %v909
        %v1420 = vpop.permute.xlu0 %1419
        %1423 = vset.pattern.permute.xlu0 0
        %1424 = vperm.xlu0 %1423, %v910
        %v1425 = vpop.permute.xlu0 %1424
        %1428 = vset.pattern.permute.xlu0 0
        %1429 = vperm.xlu0 %1428, %v911
        %v1430 = vpop.permute.xlu0 %1429
        %1433 = vset.pattern.permute.xlu0 0
        %1434 = vperm.xlu0 %1433, %v912
        %v1435 = vpop.permute.xlu0 %1434
        %1438 = vset.pattern.permute.xlu0 0
        %1439 = vperm.xlu0 %1438, %v913
        %v1440 = vpop.permute.xlu0 %1439
        %1443 = vset.pattern.permute.xlu0 0
        %1444 = vperm.xlu0 %1443, %v914
        %v1445 = vpop.permute.xlu0 %1444
        %1448 = vset.pattern.permute.xlu0 0
        %1449 = vperm.xlu0 %1448, %v915
        %v1450 = vpop.permute.xlu0 %1449
        %1453 = vset.pattern.permute.xlu0 0
        %1454 = vperm.xlu0 %1453, %v916
        %v1455 = vpop.permute.xlu0 %1454
        %1458 = vset.pattern.permute.xlu0 0
        %1459 = vperm.xlu0 %1458, %v917
        %v1460 = vpop.permute.xlu0 %1459
        %1463 = vset.pattern.permute.xlu0 0
        %1464 = vperm.xlu0 %1463, %v918
        %v1465 = vpop.permute.xlu0 %1464
        %1468 = vset.pattern.permute.xlu0 0
        %1469 = vperm.xlu0 %1468, %v919
        %v1470 = vpop.permute.xlu0 %1469
        %1473 = vset.pattern.permute.xlu0 0
        %1474 = vperm.xlu0 %1473, %v920
        %v1475 = vpop.permute.xlu0 %1474
        %1478 = vset.pattern.permute.xlu0 0
        %1479 = vperm.xlu0 %1478, %v921
        %v1480 = vpop.permute.xlu0 %1479
        %1483 = vset.pattern.permute.xlu0 0
        %1484 = vperm.xlu0 %1483, %v922
        %v1485 = vpop.permute.xlu0 %1484
        %1488 = vset.pattern.permute.xlu0 0
        %1489 = vperm.xlu0 %1488, %v923
        %v1490 = vpop.permute.xlu0 %1489
        %1493 = vset.pattern.permute.xlu0 0
        %1494 = vperm.xlu0 %1493, %v924
        %v1495 = vpop.permute.xlu0 %1494
        %1498 = vset.pattern.permute.xlu0 0
        %1499 = vperm.xlu0 %1498, %v925
        %v1500 = vpop.permute.xlu0 %1499
        %1503 = vset.pattern.permute.xlu0 0
        %1504 = vperm.xlu0 %1503, %v926
        %v1505 = vpop.permute.xlu0 %1504
        %1508 = vset.pattern.permute.xlu0 0
        %1509 = vperm.xlu0 %1508, %v927
        %v1510 = vpop.permute.xlu0 %1509
        %1513 = vset.pattern.permute.xlu0 0
        %1514 = vperm.xlu0 %1513, %v928
        %v1515 = vpop.permute.xlu0 %1514
        %1518 = vset.pattern.permute.xlu0 0
        %1519 = vperm.xlu0 %1518, %v929
        %v1520 = vpop.permute.xlu0 %1519
        %1523 = vset.pattern.permute.xlu0 0
        %1524 = vperm.xlu0 %1523, %v930
        %v1525 = vpop.permute.xlu0 %1524
        %1528 = vset.pattern.permute.xlu0 0
        %1529 = vperm.xlu0 %1528, %v931
        %v1530 = vpop.permute.xlu0 %1529
        %1533 = vset.pattern.permute.xlu0 0
        %1534 = vperm.xlu0 %1533, %v932
        %v1535 = vpop.permute.xlu0 %1534
        %v1537 = vlaneseq
        %v1538 = vshrl.u32 %v1537, 7
        %v1539 = vsub.s32 1, %v1538
        %v1540 = vrot.slane %v935, %v1539
        %v1541 = vmul.f32 %v1385, %v1540
        %v1542 = vmul.f32 %v1390, %v1540
        %v1543 = vmul.f32 %v1395, %v1540
        %v1544 = vmul.f32 %v1400, %v1540
        %v1545 = vmul.f32 %v1405, %v1540
        %v1546 = vmul.f32 %v1410, %v1540
        %v1547 = vmul.f32 %v1415, %v1540
        %v1548 = vmul.f32 %v1420, %v1540
        %v1549 = vmul.f32 %v1425, %v1540
        %v1550 = vmul.f32 %v1430, %v1540
        %v1551 = vmul.f32 %v1435, %v1540
        %v1552 = vmul.f32 %v1440, %v1540
        %v1553 = vmul.f32 %v1445, %v1540
        %v1554 = vmul.f32 %v1450, %v1540
        %v1555 = vmul.f32 %v1455, %v1540
        %v1556 = vmul.f32 %v1460, %v1540
        %v1557 = vmul.f32 %v1465, %v1540
        %v1558 = vmul.f32 %v1470, %v1540
        %v1559 = vmul.f32 %v1475, %v1540
        %v1560 = vmul.f32 %v1480, %v1540
        %v1561 = vmul.f32 %v1485, %v1540
        %v1562 = vmul.f32 %v1490, %v1540
        %v1563 = vmul.f32 %v1495, %v1540
        %v1564 = vmul.f32 %v1500, %v1540
        %v1565 = vmul.f32 %v1505, %v1540
        %v1566 = vmul.f32 %v1510, %v1540
        %v1567 = vmul.f32 %v1515, %v1540
        %v1568 = vmul.f32 %v1520, %v1540
        %v1569 = vmul.f32 %v1525, %v1540
        %v1570 = vmul.f32 %v1530, %v1540
        %v1571 = vmul.f32 %v1535, %v1540
        %vm1604 = vcmask 1040384
        %v1605 = vrot.slane %v970, 7
        %v1606 = vrot.slane %v971, 7
        %v1607 = vsel %vm1604, %v1605, %v1606
        %v1608 = vrot.slane %v972, 7
        %v1609 = vsel %vm1604, %v1606, %v1608
        %v1610 = vrot.slane %v973, 7
        %v1611 = vsel %vm1604, %v1608, %v1610
        %v1612 = vrot.slane %v974, 7
        %v1613 = vsel %vm1604, %v1610, %v1612
        %v1614 = vrot.slane %v975, 7
        %v1615 = vsel %vm1604, %v1612, %v1614
        %v1616 = vrot.slane %v976, 7
        %v1617 = vsel %vm1604, %v1614, %v1616
        %v1618 = vrot.slane %v977, 7
        %v1619 = vsel %vm1604, %v1616, %v1618
        %v1620 = vrot.slane %v978, 7
        %v1621 = vsel %vm1604, %v1618, %v1620
        %v1622 = vrot.slane %v979, 7
        %v1623 = vsel %vm1604, %v1620, %v1622
        %v1624 = vrot.slane %v980, 7
        %v1625 = vsel %vm1604, %v1622, %v1624
        %v1626 = vrot.slane %v981, 7
        %v1627 = vsel %vm1604, %v1624, %v1626
        %v1628 = vrot.slane %v982, 7
        %v1629 = vsel %vm1604, %v1626, %v1628
        %v1630 = vrot.slane %v983, 7
        %v1631 = vsel %vm1604, %v1628, %v1630
        %v1632 = vrot.slane %v984, 7
        %v1633 = vsel %vm1604, %v1630, %v1632
        %v1634 = vrot.slane %v985, 7
        %v1635 = vsel %vm1604, %v1632, %v1634
        %v1636 = vrot.slane %v986, 7
        %v1637 = vsel %vm1604, %v1634, %v1636
        %v1638 = vrot.slane %v987, 7
        %v1639 = vsel %vm1604, %v1636, %v1638
        %v1640 = vrot.slane %v988, 7
        %v1641 = vsel %vm1604, %v1638, %v1640
        %v1642 = vrot.slane %v989, 7
        %v1643 = vsel %vm1604, %v1640, %v1642
        %v1644 = vrot.slane %v990, 7
        %v1645 = vsel %vm1604, %v1642, %v1644
        %v1646 = vrot.slane %v991, 7
        %v1647 = vsel %vm1604, %v1644, %v1646
        %v1648 = vrot.slane %v992, 7
        %v1649 = vsel %vm1604, %v1646, %v1648
        %v1650 = vrot.slane %v993, 7
        %v1651 = vsel %vm1604, %v1648, %v1650
        %v1652 = vrot.slane %v994, 7
        %v1653 = vsel %vm1604, %v1650, %v1652
        %v1654 = vrot.slane %v995, 7
        %v1655 = vsel %vm1604, %v1652, %v1654
        %v1656 = vrot.slane %v996, 7
        %v1657 = vsel %vm1604, %v1654, %v1656
        %v1658 = vrot.slane %v997, 7
        %v1659 = vsel %vm1604, %v1656, %v1658
        %v1660 = vrot.slane %v998, 7
        %v1661 = vsel %vm1604, %v1658, %v1660
        %v1662 = vrot.slane %v999, 7
        %v1663 = vsel %vm1604, %v1660, %v1662
        %v1664 = vrot.slane %v1000, 7
        %v1665 = vsel %vm1604, %v1662, %v1664
        %v1666 = vrot.slane %v1001, 7
        %v1667 = vsel %vm1604, %v1664, %v1666
        %v1701 = vmul.f32 %v1605, 0.0
        %v1702 = vmul.f32 %v1607, 0.0
        %v1703 = vmul.f32 %v903, %v1609
        %v1704 = vmul.f32 %v904, %v1611
        %v1705 = vmul.f32 %v905, %v1613
        %v1706 = vmul.f32 %v906, %v1615
        %v1707 = vmul.f32 %v907, %v1617
        %v1708 = vmul.f32 %v908, %v1619
        %v1709 = vmul.f32 %v909, %v1621
        %v1710 = vmul.f32 %v910, %v1623
        %v1711 = vmul.f32 %v911, %v1625
        %v1712 = vmul.f32 %v912, %v1627
        %v1713 = vmul.f32 %v913, %v1629
        %v1714 = vmul.f32 %v914, %v1631
        %v1715 = vmul.f32 %v915, %v1633
        %v1716 = vmul.f32 %v916, %v1635
        %v1717 = vmul.f32 %v917, %v1637
        %v1718 = vmul.f32 %v918, %v1639
        %v1719 = vmul.f32 %v919, %v1641
        %v1720 = vmul.f32 %v920, %v1643
        %v1721 = vmul.f32 %v921, %v1645
        %v1722 = vmul.f32 %v922, %v1647
        %v1723 = vmul.f32 %v923, %v1649
        %v1724 = vmul.f32 %v924, %v1651
        %v1725 = vmul.f32 %v925, %v1653
        %v1726 = vmul.f32 %v926, %v1655
        %v1727 = vmul.f32 %v927, %v1657
        %v1728 = vmul.f32 %v928, %v1659
        %v1729 = vmul.f32 %v929, %v1661
        %v1730 = vmul.f32 %v930, %v1663
        %v1731 = vmul.f32 %v931, %v1665
        %v1732 = vmul.f32 %v932, %v1667
        %v1733 = vmul.f32 %v933, %v1666
        %1735 = vset.pattern.permute.xlu0 0
        %1736 = vperm.xlu0 %1735, %v1701
        %v1737 = vpop.permute.xlu0 %1736
        %1740 = vset.pattern.permute.xlu0 0
        %1741 = vperm.xlu0 %1740, %v1702
        %v1742 = vpop.permute.xlu0 %1741
        %1745 = vset.pattern.permute.xlu0 0
        %1746 = vperm.xlu0 %1745, %v1703
        %v1747 = vpop.permute.xlu0 %1746
        %1750 = vset.pattern.permute.xlu0 0
        %1751 = vperm.xlu0 %1750, %v1704
        %v1752 = vpop.permute.xlu0 %1751
        %1755 = vset.pattern.permute.xlu0 0
        %1756 = vperm.xlu0 %1755, %v1705
        %v1757 = vpop.permute.xlu0 %1756
        %1760 = vset.pattern.permute.xlu0 0
        %1761 = vperm.xlu0 %1760, %v1706
        %v1762 = vpop.permute.xlu0 %1761
        %1765 = vset.pattern.permute.xlu0 0
        %1766 = vperm.xlu0 %1765, %v1707
        %v1767 = vpop.permute.xlu0 %1766
        %1770 = vset.pattern.permute.xlu0 0
        %1771 = vperm.xlu0 %1770, %v1708
        %v1772 = vpop.permute.xlu0 %1771
        %1775 = vset.pattern.permute.xlu0 0
        %1776 = vperm.xlu0 %1775, %v1709
        %v1777 = vpop.permute.xlu0 %1776
        %1780 = vset.pattern.permute.xlu0 0
        %1781 = vperm.xlu0 %1780, %v1710
        %v1782 = vpop.permute.xlu0 %1781
        %1785 = vset.pattern.permute.xlu0 0
        %1786 = vperm.xlu0 %1785, %v1711
        %v1787 = vpop.permute.xlu0 %1786
        %1790 = vset.pattern.permute.xlu0 0
        %1791 = vperm.xlu0 %1790, %v1712
        %v1792 = vpop.permute.xlu0 %1791
        %1795 = vset.pattern.permute.xlu0 0
        %1796 = vperm.xlu0 %1795, %v1713
        %v1797 = vpop.permute.xlu0 %1796
        %1800 = vset.pattern.permute.xlu0 0
        %1801 = vperm.xlu0 %1800, %v1714
        %v1802 = vpop.permute.xlu0 %1801
        %1805 = vset.pattern.permute.xlu0 0
        %1806 = vperm.xlu0 %1805, %v1715
        %v1807 = vpop.permute.xlu0 %1806
        %1810 = vset.pattern.permute.xlu0 0
        %1811 = vperm.xlu0 %1810, %v1716
        %v1812 = vpop.permute.xlu0 %1811
        %1815 = vset.pattern.permute.xlu0 0
        %1816 = vperm.xlu0 %1815, %v1717
        %v1817 = vpop.permute.xlu0 %1816
        %1820 = vset.pattern.permute.xlu0 0
        %1821 = vperm.xlu0 %1820, %v1718
        %v1822 = vpop.permute.xlu0 %1821
        %1825 = vset.pattern.permute.xlu0 0
        %1826 = vperm.xlu0 %1825, %v1719
        %v1827 = vpop.permute.xlu0 %1826
        %1830 = vset.pattern.permute.xlu0 0
        %1831 = vperm.xlu0 %1830, %v1720
        %v1832 = vpop.permute.xlu0 %1831
        %1835 = vset.pattern.permute.xlu0 0
        %1836 = vperm.xlu0 %1835, %v1721
        %v1837 = vpop.permute.xlu0 %1836
        %1840 = vset.pattern.permute.xlu0 0
        %1841 = vperm.xlu0 %1840, %v1722
        %v1842 = vpop.permute.xlu0 %1841
        %1845 = vset.pattern.permute.xlu0 0
        %1846 = vperm.xlu0 %1845, %v1723
        %v1847 = vpop.permute.xlu0 %1846
        %1850 = vset.pattern.permute.xlu0 0
        %1851 = vperm.xlu0 %1850, %v1724
        %v1852 = vpop.permute.xlu0 %1851
        %1855 = vset.pattern.permute.xlu0 0
        %1856 = vperm.xlu0 %1855, %v1725
        %v1857 = vpop.permute.xlu0 %1856
        %1860 = vset.pattern.permute.xlu0 0
        %1861 = vperm.xlu0 %1860, %v1726
        %v1862 = vpop.permute.xlu0 %1861
        %1865 = vset.pattern.permute.xlu0 0
        %1866 = vperm.xlu0 %1865, %v1727
        %v1867 = vpop.permute.xlu0 %1866
        %1870 = vset.pattern.permute.xlu0 0
        %1871 = vperm.xlu0 %1870, %v1728
        %v1872 = vpop.permute.xlu0 %1871
        %1875 = vset.pattern.permute.xlu0 0
        %1876 = vperm.xlu0 %1875, %v1729
        %v1877 = vpop.permute.xlu0 %1876
        %1880 = vset.pattern.permute.xlu0 0
        %1881 = vperm.xlu0 %1880, %v1730
        %v1882 = vpop.permute.xlu0 %1881
        %1885 = vset.pattern.permute.xlu0 0
        %1886 = vperm.xlu0 %1885, %v1731
        %v1887 = vpop.permute.xlu0 %1886
        %1890 = vset.pattern.permute.xlu0 0
        %1891 = vperm.xlu0 %1890, %v1732
        %v1892 = vpop.permute.xlu0 %1891
        %1895 = vset.pattern.permute.xlu0 0
        %1896 = vperm.xlu0 %1895, %v1733
        %v1897 = vpop.permute.xlu0 %1896
        %v1899 = vlaneseq
        %v1900 = vshrl.u32 %v1899, 7
        %v1901 = vsub.s32 2, %v1900
        %v1902 = vrot.slane %v935, %v1901
        %v1903 = vmul.f32 %v1737, %v1902
        %v1904 = vmul.f32 %v1742, %v1902
        %v1905 = vmul.f32 %v1747, %v1902
        %v1906 = vmul.f32 %v1752, %v1902
        %v1907 = vmul.f32 %v1757, %v1902
        %v1908 = vmul.f32 %v1762, %v1902
        %v1909 = vmul.f32 %v1767, %v1902
        %v1910 = vmul.f32 %v1772, %v1902
        %v1911 = vmul.f32 %v1777, %v1902
        %v1912 = vmul.f32 %v1782, %v1902
        %v1913 = vmul.f32 %v1787, %v1902
        %v1914 = vmul.f32 %v1792, %v1902
        %v1915 = vmul.f32 %v1797, %v1902
        %v1916 = vmul.f32 %v1802, %v1902
        %v1917 = vmul.f32 %v1807, %v1902
        %v1918 = vmul.f32 %v1812, %v1902
        %v1919 = vmul.f32 %v1817, %v1902
        %v1920 = vmul.f32 %v1822, %v1902
        %v1921 = vmul.f32 %v1827, %v1902
        %v1922 = vmul.f32 %v1832, %v1902
        %v1923 = vmul.f32 %v1837, %v1902
        %v1924 = vmul.f32 %v1842, %v1902
        %v1925 = vmul.f32 %v1847, %v1902
        %v1926 = vmul.f32 %v1852, %v1902
        %v1927 = vmul.f32 %v1857, %v1902
        %v1928 = vmul.f32 %v1862, %v1902
        %v1929 = vmul.f32 %v1867, %v1902
        %v1930 = vmul.f32 %v1872, %v1902
        %v1931 = vmul.f32 %v1877, %v1902
        %v1932 = vmul.f32 %v1882, %v1902
        %v1933 = vmul.f32 %v1887, %v1902
        %v1934 = vmul.f32 %v1892, %v1902
        %v1935 = vmul.f32 %v1897, %v1902
        %v1936 = vmul.f32 %v903, %v1053
        %v1937 = vmul.f32 %v904, %v1055
        %v1938 = vmul.f32 %v905, %v1057
        %v1939 = vmul.f32 %v906, %v1059
        %v1940 = vmul.f32 %v907, %v1061
        %v1941 = vmul.f32 %v908, %v1063
        %v1942 = vmul.f32 %v909, %v1065
        %v1943 = vmul.f32 %v910, %v1067
        %v1944 = vmul.f32 %v911, %v1069
        %v1945 = vmul.f32 %v912, %v1071
        %v1946 = vmul.f32 %v913, %v1073
        %v1947 = vmul.f32 %v914, %v1075
        %v1948 = vmul.f32 %v915, %v1077
        %v1949 = vmul.f32 %v916, %v1079
        %v1950 = vmul.f32 %v917, %v1081
        %v1951 = vmul.f32 %v918, %v1083
        %v1952 = vmul.f32 %v919, %v1085
        %v1953 = vmul.f32 %v920, %v1087
        %v1954 = vmul.f32 %v921, %v1089
        %v1955 = vmul.f32 %v922, %v1091
        %v1956 = vmul.f32 %v923, %v1093
        %v1957 = vmul.f32 %v924, %v1095
        %v1958 = vmul.f32 %v925, %v1097
        %v1959 = vmul.f32 %v926, %v1099
        %v1960 = vmul.f32 %v927, %v1101
        %v1961 = vmul.f32 %v928, %v1103
        %v1962 = vmul.f32 %v929, %v1105
        %v1963 = vmul.f32 %v930, %v1107
        %v1964 = vmul.f32 %v931, %v1109
        %v1965 = vmul.f32 %v932, %v1111
        %v1966 = vmul.f32 %v933, %v1113
        %v1967 = vmul.f32 %v934, %v1112
        %1969 = vset.pattern.permute.xlu0 0
        %1970 = vperm.xlu0 %1969, %v1936
        %v1971 = vpop.permute.xlu0 %1970
        %1974 = vset.pattern.permute.xlu0 0
        %1975 = vperm.xlu0 %1974, %v1937
        %v1976 = vpop.permute.xlu0 %1975
        %1979 = vset.pattern.permute.xlu0 0
        %1980 = vperm.xlu0 %1979, %v1938
        %v1981 = vpop.permute.xlu0 %1980
        %1984 = vset.pattern.permute.xlu0 0
        %1985 = vperm.xlu0 %1984, %v1939
        %v1986 = vpop.permute.xlu0 %1985
        %1989 = vset.pattern.permute.xlu0 0
        %1990 = vperm.xlu0 %1989, %v1940
        %v1991 = vpop.permute.xlu0 %1990
        %1994 = vset.pattern.permute.xlu0 0
        %1995 = vperm.xlu0 %1994, %v1941
        %v1996 = vpop.permute.xlu0 %1995
        %1999 = vset.pattern.permute.xlu0 0
        %2000 = vperm.xlu0 %1999, %v1942
        %v2001 = vpop.permute.xlu0 %2000
        %2004 = vset.pattern.permute.xlu0 0
        %2005 = vperm.xlu0 %2004, %v1943
        %v2006 = vpop.permute.xlu0 %2005
        %2009 = vset.pattern.permute.xlu0 0
        %2010 = vperm.xlu0 %2009, %v1944
        %v2011 = vpop.permute.xlu0 %2010
        %2014 = vset.pattern.permute.xlu0 0
        %2015 = vperm.xlu0 %2014, %v1945
        %v2016 = vpop.permute.xlu0 %2015
        %2019 = vset.pattern.permute.xlu0 0
        %2020 = vperm.xlu0 %2019, %v1946
        %v2021 = vpop.permute.xlu0 %2020
        %2024 = vset.pattern.permute.xlu0 0
        %2025 = vperm.xlu0 %2024, %v1947
        %v2026 = vpop.permute.xlu0 %2025
        %2029 = vset.pattern.permute.xlu0 0
        %2030 = vperm.xlu0 %2029, %v1948
        %v2031 = vpop.permute.xlu0 %2030
        %2034 = vset.pattern.permute.xlu0 0
        %2035 = vperm.xlu0 %2034, %v1949
        %v2036 = vpop.permute.xlu0 %2035
        %2039 = vset.pattern.permute.xlu0 0
        %2040 = vperm.xlu0 %2039, %v1950
        %v2041 = vpop.permute.xlu0 %2040
        %2044 = vset.pattern.permute.xlu0 0
        %2045 = vperm.xlu0 %2044, %v1951
        %v2046 = vpop.permute.xlu0 %2045
        %2049 = vset.pattern.permute.xlu0 0
        %2050 = vperm.xlu0 %2049, %v1952
        %v2051 = vpop.permute.xlu0 %2050
        %2054 = vset.pattern.permute.xlu0 0
        %2055 = vperm.xlu0 %2054, %v1953
        %v2056 = vpop.permute.xlu0 %2055
        %2059 = vset.pattern.permute.xlu0 0
        %2060 = vperm.xlu0 %2059, %v1954
        %v2061 = vpop.permute.xlu0 %2060
        %2064 = vset.pattern.permute.xlu0 0
        %2065 = vperm.xlu0 %2064, %v1955
        %v2066 = vpop.permute.xlu0 %2065
        %2069 = vset.pattern.permute.xlu0 0
        %2070 = vperm.xlu0 %2069, %v1956
        %v2071 = vpop.permute.xlu0 %2070
        %2074 = vset.pattern.permute.xlu0 0
        %2075 = vperm.xlu0 %2074, %v1957
        %v2076 = vpop.permute.xlu0 %2075
        %2079 = vset.pattern.permute.xlu0 0
        %2080 = vperm.xlu0 %2079, %v1958
        %v2081 = vpop.permute.xlu0 %2080
        %2084 = vset.pattern.permute.xlu0 0
        %2085 = vperm.xlu0 %2084, %v1959
        %v2086 = vpop.permute.xlu0 %2085
        %2089 = vset.pattern.permute.xlu0 0
        %2090 = vperm.xlu0 %2089, %v1960
        %v2091 = vpop.permute.xlu0 %2090
        %2094 = vset.pattern.permute.xlu0 0
        %2095 = vperm.xlu0 %2094, %v1961
        %v2096 = vpop.permute.xlu0 %2095
        %2099 = vset.pattern.permute.xlu0 0
        %2100 = vperm.xlu0 %2099, %v1962
        %v2101 = vpop.permute.xlu0 %2100
        %2104 = vset.pattern.permute.xlu0 0
        %2105 = vperm.xlu0 %2104, %v1963
        %v2106 = vpop.permute.xlu0 %2105
        %2109 = vset.pattern.permute.xlu0 0
        %2110 = vperm.xlu0 %2109, %v1964
        %v2111 = vpop.permute.xlu0 %2110
        %2114 = vset.pattern.permute.xlu0 0
        %2115 = vperm.xlu0 %2114, %v1965
        %v2116 = vpop.permute.xlu0 %2115
        %2119 = vset.pattern.permute.xlu0 0
        %2120 = vperm.xlu0 %2119, %v1966
        %v2121 = vpop.permute.xlu0 %2120
        %2124 = vset.pattern.permute.xlu0 0
        %2125 = vperm.xlu0 %2124, %v1967
        %v2126 = vpop.permute.xlu0 %2125
        %v2128 = vlaneseq
        %v2129 = vshrl.u32 %v2128, 7
        %v2130 = vsub.s32 3, %v2129
        %v2131 = vrot.slane %v935, %v2130
        %v2132 = vmul.f32 %v1183, %v2131
        %v2133 = vmul.f32 %v1971, %v2131
        %v2134 = vmul.f32 %v1976, %v2131
        %v2135 = vmul.f32 %v1981, %v2131
        %v2136 = vmul.f32 %v1986, %v2131
        %v2137 = vmul.f32 %v1991, %v2131
        %v2138 = vmul.f32 %v1996, %v2131
        %v2139 = vmul.f32 %v2001, %v2131
        %v2140 = vmul.f32 %v2006, %v2131
        %v2141 = vmul.f32 %v2011, %v2131
        %v2142 = vmul.f32 %v2016, %v2131
        %v2143 = vmul.f32 %v2021, %v2131
        %v2144 = vmul.f32 %v2026, %v2131
        %v2145 = vmul.f32 %v2031, %v2131
        %v2146 = vmul.f32 %v2036, %v2131
        %v2147 = vmul.f32 %v2041, %v2131
        %v2148 = vmul.f32 %v2046, %v2131
        %v2149 = vmul.f32 %v2051, %v2131
        %v2150 = vmul.f32 %v2056, %v2131
        %v2151 = vmul.f32 %v2061, %v2131
        %v2152 = vmul.f32 %v2066, %v2131
        %v2153 = vmul.f32 %v2071, %v2131
        %v2154 = vmul.f32 %v2076, %v2131
        %v2155 = vmul.f32 %v2081, %v2131
        %v2156 = vmul.f32 %v2086, %v2131
        %v2157 = vmul.f32 %v2091, %v2131
        %v2158 = vmul.f32 %v2096, %v2131
        %v2159 = vmul.f32 %v2101, %v2131
        %v2160 = vmul.f32 %v2106, %v2131
        %v2161 = vmul.f32 %v2111, %v2131
        %v2162 = vmul.f32 %v2116, %v2131
        %v2163 = vmul.f32 %v2121, %v2131
        %v2164 = vmul.f32 %v2126, %v2131
        %2166 = vset.pattern.permute.xlu0 0
        %2167 = vperm.xlu0 %2166, %v933
        %v2168 = vpop.permute.xlu0 %2167
        %2171 = vset.pattern.permute.xlu0 0
        %2172 = vperm.xlu0 %2171, %v934
        %v2173 = vpop.permute.xlu0 %2172
        %v2175 = vlaneseq
        %v2176 = vshrl.u32 %v2175, 7
        %v2177 = vsub.s32 4, %v2176
        %v2178 = vrot.slane %v935, %v2177
        %v2179 = vmul.f32 %v1390, %v2178
        %v2180 = vmul.f32 %v1395, %v2178
        %v2181 = vmul.f32 %v1400, %v2178
        %v2182 = vmul.f32 %v1405, %v2178
        %v2183 = vmul.f32 %v1410, %v2178
        %v2184 = vmul.f32 %v1415, %v2178
        %v2185 = vmul.f32 %v1420, %v2178
        %v2186 = vmul.f32 %v1425, %v2178
        %v2187 = vmul.f32 %v1430, %v2178
        %v2188 = vmul.f32 %v1435, %v2178
        %v2189 = vmul.f32 %v1440, %v2178
        %v2190 = vmul.f32 %v1445, %v2178
        %v2191 = vmul.f32 %v1450, %v2178
        %v2192 = vmul.f32 %v1455, %v2178
        %v2193 = vmul.f32 %v1460, %v2178
        %v2194 = vmul.f32 %v1465, %v2178
        %v2195 = vmul.f32 %v1470, %v2178
        %v2196 = vmul.f32 %v1475, %v2178
        %v2197 = vmul.f32 %v1480, %v2178
        %v2198 = vmul.f32 %v1485, %v2178
        %v2199 = vmul.f32 %v1490, %v2178
        %v2200 = vmul.f32 %v1495, %v2178
        %v2201 = vmul.f32 %v1500, %v2178
        %v2202 = vmul.f32 %v1505, %v2178
        %v2203 = vmul.f32 %v1510, %v2178
        %v2204 = vmul.f32 %v1515, %v2178
        %v2205 = vmul.f32 %v1520, %v2178
        %v2206 = vmul.f32 %v1525, %v2178
        %v2207 = vmul.f32 %v1530, %v2178
        %v2208 = vmul.f32 %v1535, %v2178
        %v2209 = vmul.f32 %v2168, %v2178
        %v2210 = vmul.f32 %v2173, %v2178
        %v2211 = vmul.f32 %v903, %v1605
        %v2212 = vmul.f32 %v904, %v1607
        %v2213 = vmul.f32 %v905, %v1609
        %v2214 = vmul.f32 %v906, %v1611
        %v2215 = vmul.f32 %v907, %v1613
        %v2216 = vmul.f32 %v908, %v1615
        %v2217 = vmul.f32 %v909, %v1617
        %v2218 = vmul.f32 %v910, %v1619
        %v2219 = vmul.f32 %v911, %v1621
        %v2220 = vmul.f32 %v912, %v1623
        %v2221 = vmul.f32 %v913, %v1625
        %v2222 = vmul.f32 %v914, %v1627
        %v2223 = vmul.f32 %v915, %v1629
        %v2224 = vmul.f32 %v916, %v1631
        %v2225 = vmul.f32 %v917, %v1633
        %v2226 = vmul.f32 %v918, %v1635
        %v2227 = vmul.f32 %v919, %v1637
        %v2228 = vmul.f32 %v920, %v1639
        %v2229 = vmul.f32 %v921, %v1641
        %v2230 = vmul.f32 %v922, %v1643
        %v2231 = vmul.f32 %v923, %v1645
        %v2232 = vmul.f32 %v924, %v1647
        %v2233 = vmul.f32 %v925, %v1649
        %v2234 = vmul.f32 %v926, %v1651
        %v2235 = vmul.f32 %v927, %v1653
        %v2236 = vmul.f32 %v928, %v1655
        %v2237 = vmul.f32 %v929, %v1657
        %v2238 = vmul.f32 %v930, %v1659
        %v2239 = vmul.f32 %v931, %v1661
        %v2240 = vmul.f32 %v932, %v1663
        %v2241 = vmul.f32 %v933, %v1665
        %v2242 = vmul.f32 %v934, %v1667
        %v2243 = vmul.f32 %v1666, 0.0
        %2245 = vset.pattern.permute.xlu0 0
        %2246 = vperm.xlu0 %2245, %v2211
        %v2247 = vpop.permute.xlu0 %2246
        %2250 = vset.pattern.permute.xlu0 0
        %2251 = vperm.xlu0 %2250, %v2212
        %v2252 = vpop.permute.xlu0 %2251
        %2255 = vset.pattern.permute.xlu0 0
        %2256 = vperm.xlu0 %2255, %v2213
        %v2257 = vpop.permute.xlu0 %2256
        %2260 = vset.pattern.permute.xlu0 0
        %2261 = vperm.xlu0 %2260, %v2214
        %v2262 = vpop.permute.xlu0 %2261
        %2265 = vset.pattern.permute.xlu0 0
        %2266 = vperm.xlu0 %2265, %v2215
        %v2267 = vpop.permute.xlu0 %2266
        %2270 = vset.pattern.permute.xlu0 0
        %2271 = vperm.xlu0 %2270, %v2216
        %v2272 = vpop.permute.xlu0 %2271
        %2275 = vset.pattern.permute.xlu0 0
        %2276 = vperm.xlu0 %2275, %v2217
        %v2277 = vpop.permute.xlu0 %2276
        %2280 = vset.pattern.permute.xlu0 0
        %2281 = vperm.xlu0 %2280, %v2218
        %v2282 = vpop.permute.xlu0 %2281
        %2285 = vset.pattern.permute.xlu0 0
        %2286 = vperm.xlu0 %2285, %v2219
        %v2287 = vpop.permute.xlu0 %2286
        %2290 = vset.pattern.permute.xlu0 0
        %2291 = vperm.xlu0 %2290, %v2220
        %v2292 = vpop.permute.xlu0 %2291
        %2295 = vset.pattern.permute.xlu0 0
        %2296 = vperm.xlu0 %2295, %v2221
        %v2297 = vpop.permute.xlu0 %2296
        %2300 = vset.pattern.permute.xlu0 0
        %2301 = vperm.xlu0 %2300, %v2222
        %v2302 = vpop.permute.xlu0 %2301
        %2305 = vset.pattern.permute.xlu0 0
        %2306 = vperm.xlu0 %2305, %v2223
        %v2307 = vpop.permute.xlu0 %2306
        %2310 = vset.pattern.permute.xlu0 0
        %2311 = vperm.xlu0 %2310, %v2224
        %v2312 = vpop.permute.xlu0 %2311
        %2315 = vset.pattern.permute.xlu0 0
        %2316 = vperm.xlu0 %2315, %v2225
        %v2317 = vpop.permute.xlu0 %2316
        %2320 = vset.pattern.permute.xlu0 0
        %2321 = vperm.xlu0 %2320, %v2226
        %v2322 = vpop.permute.xlu0 %2321
        %2325 = vset.pattern.permute.xlu0 0
        %2326 = vperm.xlu0 %2325, %v2227
        %v2327 = vpop.permute.xlu0 %2326
        %2330 = vset.pattern.permute.xlu0 0
        %2331 = vperm.xlu0 %2330, %v2228
        %v2332 = vpop.permute.xlu0 %2331
        %2335 = vset.pattern.permute.xlu0 0
        %2336 = vperm.xlu0 %2335, %v2229
        %v2337 = vpop.permute.xlu0 %2336
        %2340 = vset.pattern.permute.xlu0 0
        %2341 = vperm.xlu0 %2340, %v2230
        %v2342 = vpop.permute.xlu0 %2341
        %2345 = vset.pattern.permute.xlu0 0
        %2346 = vperm.xlu0 %2345, %v2231
        %v2347 = vpop.permute.xlu0 %2346
        %2350 = vset.pattern.permute.xlu0 0
        %2351 = vperm.xlu0 %2350, %v2232
        %v2352 = vpop.permute.xlu0 %2351
        %2355 = vset.pattern.permute.xlu0 0
        %2356 = vperm.xlu0 %2355, %v2233
        %v2357 = vpop.permute.xlu0 %2356
        %2360 = vset.pattern.permute.xlu0 0
        %2361 = vperm.xlu0 %2360, %v2234
        %v2362 = vpop.permute.xlu0 %2361
        %2365 = vset.pattern.permute.xlu0 0
        %2366 = vperm.xlu0 %2365, %v2235
        %v2367 = vpop.permute.xlu0 %2366
        %2370 = vset.pattern.permute.xlu0 0
        %2371 = vperm.xlu0 %2370, %v2236
        %v2372 = vpop.permute.xlu0 %2371
        %2375 = vset.pattern.permute.xlu0 0
        %2376 = vperm.xlu0 %2375, %v2237
        %v2377 = vpop.permute.xlu0 %2376
        %2380 = vset.pattern.permute.xlu0 0
        %2381 = vperm.xlu0 %2380, %v2238
        %v2382 = vpop.permute.xlu0 %2381
        %2385 = vset.pattern.permute.xlu0 0
        %2386 = vperm.xlu0 %2385, %v2239
        %v2387 = vpop.permute.xlu0 %2386
        %2390 = vset.pattern.permute.xlu0 0
        %2391 = vperm.xlu0 %2390, %v2240
        %v2392 = vpop.permute.xlu0 %2391
        %2395 = vset.pattern.permute.xlu0 0
        %2396 = vperm.xlu0 %2395, %v2241
        %v2397 = vpop.permute.xlu0 %2396
        %2400 = vset.pattern.permute.xlu0 0
        %2401 = vperm.xlu0 %2400, %v2242
        %v2402 = vpop.permute.xlu0 %2401
        %2405 = vset.pattern.permute.xlu0 0
        %2406 = vperm.xlu0 %2405, %v2243
        %v2407 = vpop.permute.xlu0 %2406
        %v2409 = vlaneseq
        %v2410 = vshrl.u32 %v2409, 7
        %v2411 = vsub.s32 5, %v2410
        %v2412 = vrot.slane %v935, %v2411
        %v2413 = vmul.f32 %v2247, %v2412
        %v2414 = vmul.f32 %v2252, %v2412
        %v2415 = vmul.f32 %v2257, %v2412
        %v2416 = vmul.f32 %v2262, %v2412
        %v2417 = vmul.f32 %v2267, %v2412
        %v2418 = vmul.f32 %v2272, %v2412
        %v2419 = vmul.f32 %v2277, %v2412
        %v2420 = vmul.f32 %v2282, %v2412
        %v2421 = vmul.f32 %v2287, %v2412
        %v2422 = vmul.f32 %v2292, %v2412
        %v2423 = vmul.f32 %v2297, %v2412
        %v2424 = vmul.f32 %v2302, %v2412
        %v2425 = vmul.f32 %v2307, %v2412
        %v2426 = vmul.f32 %v2312, %v2412
        %v2427 = vmul.f32 %v2317, %v2412
        %v2428 = vmul.f32 %v2322, %v2412
        %v2429 = vmul.f32 %v2327, %v2412
        %v2430 = vmul.f32 %v2332, %v2412
        %v2431 = vmul.f32 %v2337, %v2412
        %v2432 = vmul.f32 %v2342, %v2412
        %v2433 = vmul.f32 %v2347, %v2412
        %v2434 = vmul.f32 %v2352, %v2412
        %v2435 = vmul.f32 %v2357, %v2412
        %v2436 = vmul.f32 %v2362, %v2412
        %v2437 = vmul.f32 %v2367, %v2412
        %v2438 = vmul.f32 %v2372, %v2412
        %v2439 = vmul.f32 %v2377, %v2412
        %v2440 = vmul.f32 %v2382, %v2412
        %v2441 = vmul.f32 %v2387, %v2412
        %v2442 = vmul.f32 %v2392, %v2412
        %v2443 = vmul.f32 %v2397, %v2412
        %v2444 = vmul.f32 %v2402, %v2412
        %v2445 = vmul.f32 %v2407, %v2412
        %v2446 = vmul.f32 %v904, %v1051
        %v2447 = vmul.f32 %v905, %v1053
        %v2448 = vmul.f32 %v906, %v1055
        %v2449 = vmul.f32 %v907, %v1057
        %v2450 = vmul.f32 %v908, %v1059
        %v2451 = vmul.f32 %v909, %v1061
        %v2452 = vmul.f32 %v910, %v1063
        %v2453 = vmul.f32 %v911, %v1065
        %v2454 = vmul.f32 %v912, %v1067
        %v2455 = vmul.f32 %v913, %v1069
        %v2456 = vmul.f32 %v914, %v1071
        %v2457 = vmul.f32 %v915, %v1073
        %v2458 = vmul.f32 %v916, %v1075
        %v2459 = vmul.f32 %v917, %v1077
        %v2460 = vmul.f32 %v918, %v1079
        %v2461 = vmul.f32 %v919, %v1081
        %v2462 = vmul.f32 %v920, %v1083
        %v2463 = vmul.f32 %v921, %v1085
        %v2464 = vmul.f32 %v922, %v1087
        %v2465 = vmul.f32 %v923, %v1089
        %v2466 = vmul.f32 %v924, %v1091
        %v2467 = vmul.f32 %v925, %v1093
        %v2468 = vmul.f32 %v926, %v1095
        %v2469 = vmul.f32 %v927, %v1097
        %v2470 = vmul.f32 %v928, %v1099
        %v2471 = vmul.f32 %v929, %v1101
        %v2472 = vmul.f32 %v930, %v1103
        %v2473 = vmul.f32 %v931, %v1105
        %v2474 = vmul.f32 %v932, %v1107
        %v2475 = vmul.f32 %v933, %v1109
        %v2476 = vmul.f32 %v934, %v1111
        %v2477 = vmul.f32 %v1113, 0.0
        %v2478 = vmul.f32 %v1112, 0.0
        %2480 = vset.pattern.permute.xlu0 0
        %2481 = vperm.xlu0 %2480, %v2446
        %v2482 = vpop.permute.xlu0 %2481
        %2485 = vset.pattern.permute.xlu0 0
        %2486 = vperm.xlu0 %2485, %v2447
        %v2487 = vpop.permute.xlu0 %2486
        %2490 = vset.pattern.permute.xlu0 0
        %2491 = vperm.xlu0 %2490, %v2448
        %v2492 = vpop.permute.xlu0 %2491
        %2495 = vset.pattern.permute.xlu0 0
        %2496 = vperm.xlu0 %2495, %v2449
        %v2497 = vpop.permute.xlu0 %2496
        %2500 = vset.pattern.permute.xlu0 0
        %2501 = vperm.xlu0 %2500, %v2450
        %v2502 = vpop.permute.xlu0 %2501
        %2505 = vset.pattern.permute.xlu0 0
        %2506 = vperm.xlu0 %2505, %v2451
        %v2507 = vpop.permute.xlu0 %2506
        %2510 = vset.pattern.permute.xlu0 0
        %2511 = vperm.xlu0 %2510, %v2452
        %v2512 = vpop.permute.xlu0 %2511
        %2515 = vset.pattern.permute.xlu0 0
        %2516 = vperm.xlu0 %2515, %v2453
        %v2517 = vpop.permute.xlu0 %2516
        %2520 = vset.pattern.permute.xlu0 0
        %2521 = vperm.xlu0 %2520, %v2454
        %v2522 = vpop.permute.xlu0 %2521
        %2525 = vset.pattern.permute.xlu0 0
        %2526 = vperm.xlu0 %2525, %v2455
        %v2527 = vpop.permute.xlu0 %2526
        %2530 = vset.pattern.permute.xlu0 0
        %2531 = vperm.xlu0 %2530, %v2456
        %v2532 = vpop.permute.xlu0 %2531
        %2535 = vset.pattern.permute.xlu0 0
        %2536 = vperm.xlu0 %2535, %v2457
        %v2537 = vpop.permute.xlu0 %2536
        %2540 = vset.pattern.permute.xlu0 0
        %2541 = vperm.xlu0 %2540, %v2458
        %v2542 = vpop.permute.xlu0 %2541
        %2545 = vset.pattern.permute.xlu0 0
        %2546 = vperm.xlu0 %2545, %v2459
        %v2547 = vpop.permute.xlu0 %2546
        %2550 = vset.pattern.permute.xlu0 0
        %2551 = vperm.xlu0 %2550, %v2460
        %v2552 = vpop.permute.xlu0 %2551
        %2555 = vset.pattern.permute.xlu0 0
        %2556 = vperm.xlu0 %2555, %v2461
        %v2557 = vpop.permute.xlu0 %2556
        %2560 = vset.pattern.permute.xlu0 0
        %2561 = vperm.xlu0 %2560, %v2462
        %v2562 = vpop.permute.xlu0 %2561
        %2565 = vset.pattern.permute.xlu0 0
        %2566 = vperm.xlu0 %2565, %v2463
        %v2567 = vpop.permute.xlu0 %2566
        %2570 = vset.pattern.permute.xlu0 0
        %2571 = vperm.xlu0 %2570, %v2464
        %v2572 = vpop.permute.xlu0 %2571
        %2575 = vset.pattern.permute.xlu0 0
        %2576 = vperm.xlu0 %2575, %v2465
        %v2577 = vpop.permute.xlu0 %2576
        %2580 = vset.pattern.permute.xlu0 0
        %2581 = vperm.xlu0 %2580, %v2466
        %v2582 = vpop.permute.xlu0 %2581
        %2585 = vset.pattern.permute.xlu0 0
        %2586 = vperm.xlu0 %2585, %v2467
        %v2587 = vpop.permute.xlu0 %2586
        %2590 = vset.pattern.permute.xlu0 0
        %2591 = vperm.xlu0 %2590, %v2468
        %v2592 = vpop.permute.xlu0 %2591
        %2595 = vset.pattern.permute.xlu0 0
        %2596 = vperm.xlu0 %2595, %v2469
        %v2597 = vpop.permute.xlu0 %2596
        %2600 = vset.pattern.permute.xlu0 0
        %2601 = vperm.xlu0 %2600, %v2470
        %v2602 = vpop.permute.xlu0 %2601
        %2605 = vset.pattern.permute.xlu0 0
        %2606 = vperm.xlu0 %2605, %v2471
        %v2607 = vpop.permute.xlu0 %2606
        %2610 = vset.pattern.permute.xlu0 0
        %2611 = vperm.xlu0 %2610, %v2472
        %v2612 = vpop.permute.xlu0 %2611
        %2615 = vset.pattern.permute.xlu0 0
        %2616 = vperm.xlu0 %2615, %v2473
        %v2617 = vpop.permute.xlu0 %2616
        %2620 = vset.pattern.permute.xlu0 0
        %2621 = vperm.xlu0 %2620, %v2474
        %v2622 = vpop.permute.xlu0 %2621
        %2625 = vset.pattern.permute.xlu0 0
        %2626 = vperm.xlu0 %2625, %v2475
        %v2627 = vpop.permute.xlu0 %2626
        %2630 = vset.pattern.permute.xlu0 0
        %2631 = vperm.xlu0 %2630, %v2476
        %v2632 = vpop.permute.xlu0 %2631
        %2635 = vset.pattern.permute.xlu0 0
        %2636 = vperm.xlu0 %2635, %v2477
        %v2637 = vpop.permute.xlu0 %2636
        %2640 = vset.pattern.permute.xlu0 0
        %2641 = vperm.xlu0 %2640, %v2478
        %v2642 = vpop.permute.xlu0 %2641
        %v2644 = vlaneseq
        %v2645 = vshrl.u32 %v2644, 7
        %v2646 = vsub.s32 6, %v2645
        %v2647 = vrot.slane %v935, %v2646
        %v2648 = vmul.f32 %v2482, %v2647
        %v2649 = vmul.f32 %v2487, %v2647
        %v2650 = vmul.f32 %v2492, %v2647
        %v2651 = vmul.f32 %v2497, %v2647
        %v2652 = vmul.f32 %v2502, %v2647
        %v2653 = vmul.f32 %v2507, %v2647
        %v2654 = vmul.f32 %v2512, %v2647
        %v2655 = vmul.f32 %v2517, %v2647
        %v2656 = vmul.f32 %v2522, %v2647
        %v2657 = vmul.f32 %v2527, %v2647
        %v2658 = vmul.f32 %v2532, %v2647
        %v2659 = vmul.f32 %v2537, %v2647
        %v2660 = vmul.f32 %v2542, %v2647
        %v2661 = vmul.f32 %v2547, %v2647
        %v2662 = vmul.f32 %v2552, %v2647
        %v2663 = vmul.f32 %v2557, %v2647
        %v2664 = vmul.f32 %v2562, %v2647
        %v2665 = vmul.f32 %v2567, %v2647
        %v2666 = vmul.f32 %v2572, %v2647
        %v2667 = vmul.f32 %v2577, %v2647
        %v2668 = vmul.f32 %v2582, %v2647
        %v2669 = vmul.f32 %v2587, %v2647
        %v2670 = vmul.f32 %v2592, %v2647
        %v2671 = vmul.f32 %v2597, %v2647
        %v2672 = vmul.f32 %v2602, %v2647
        %v2673 = vmul.f32 %v2607, %v2647
        %v2674 = vmul.f32 %v2612, %v2647
        %v2675 = vmul.f32 %v2617, %v2647
        %v2676 = vmul.f32 %v2622, %v2647
        %v2677 = vmul.f32 %v2627, %v2647
        %v2678 = vmul.f32 %v2632, %v2647
        %v2679 = vmul.f32 %v2637, %v2647
        %v2680 = vmul.f32 %v2642, %v2647
        %v2681 = vlaneseq
        %v2682 = vshrl.u32 %v2681, 7
        %v2683 = vsub.s32 7, %v2682
        %v2684 = vrot.slane %v935, %v2683
        %v2685 = vmul.f32 %v1400, %v2684
        %v2686 = vmul.f32 %v1405, %v2684
        %v2687 = vmul.f32 %v1410, %v2684
        %v2688 = vmul.f32 %v1415, %v2684
        %v2689 = vmul.f32 %v1420, %v2684
        %v2690 = vmul.f32 %v1425, %v2684
        %v2691 = vmul.f32 %v1430, %v2684
        %v2692 = vmul.f32 %v1435, %v2684
        %v2693 = vmul.f32 %v1440, %v2684
        %v2694 = vmul.f32 %v1445, %v2684
        %v2695 = vmul.f32 %v1450, %v2684
        %v2696 = vmul.f32 %v1455, %v2684
        %v2697 = vmul.f32 %v1460, %v2684
        %v2698 = vmul.f32 %v1465, %v2684
        %v2699 = vmul.f32 %v1470, %v2684
        %v2700 = vmul.f32 %v1475, %v2684
        %v2701 = vmul.f32 %v1480, %v2684
        %v2702 = vmul.f32 %v1485, %v2684
        %v2703 = vmul.f32 %v1490, %v2684
        %v2704 = vmul.f32 %v1495, %v2684
        %v2705 = vmul.f32 %v1500, %v2684
        %v2706 = vmul.f32 %v1505, %v2684
        %v2707 = vmul.f32 %v1510, %v2684
        %v2708 = vmul.f32 %v1515, %v2684
        %v2709 = vmul.f32 %v1520, %v2684
        %v2710 = vmul.f32 %v1525, %v2684
        %v2711 = vmul.f32 %v1530, %v2684
        %v2712 = vmul.f32 %v1535, %v2684
        %v2713 = vmul.f32 %v2168, %v2684
        %v2714 = vmul.f32 %v2173, %v2684
        %v2715 = vmul.f32 %v1385, %v2684
        %v2716 = vmul.f32 %v905, %v1605
        %v2717 = vmul.f32 %v906, %v1607
        %v2718 = vmul.f32 %v907, %v1609
        %v2719 = vmul.f32 %v908, %v1611
        %v2720 = vmul.f32 %v909, %v1613
        %v2721 = vmul.f32 %v910, %v1615
        %v2722 = vmul.f32 %v911, %v1617
        %v2723 = vmul.f32 %v912, %v1619
        %v2724 = vmul.f32 %v913, %v1621
        %v2725 = vmul.f32 %v914, %v1623
        %v2726 = vmul.f32 %v915, %v1625
        %v2727 = vmul.f32 %v916, %v1627
        %v2728 = vmul.f32 %v917, %v1629
        %v2729 = vmul.f32 %v918, %v1631
        %v2730 = vmul.f32 %v919, %v1633
        %v2731 = vmul.f32 %v920, %v1635
        %v2732 = vmul.f32 %v921, %v1637
        %v2733 = vmul.f32 %v922, %v1639
        %v2734 = vmul.f32 %v923, %v1641
        %v2735 = vmul.f32 %v924, %v1643
        %v2736 = vmul.f32 %v925, %v1645
        %v2737 = vmul.f32 %v926, %v1647
        %v2738 = vmul.f32 %v927, %v1649
        %v2739 = vmul.f32 %v928, %v1651
        %v2740 = vmul.f32 %v929, %v1653
        %v2741 = vmul.f32 %v930, %v1655
        %v2742 = vmul.f32 %v931, %v1657
        %v2743 = vmul.f32 %v932, %v1659
        %v2744 = vmul.f32 %v933, %v1661
        %v2745 = vmul.f32 %v934, %v1663
        %v2746 = vmul.f32 %v1665, 0.0
        %v2747 = vmul.f32 %v1667, 0.0
        %2749 = vset.pattern.permute.xlu0 0
        %2750 = vperm.xlu0 %2749, %v2716
        %v2751 = vpop.permute.xlu0 %2750
        %2754 = vset.pattern.permute.xlu0 0
        %2755 = vperm.xlu0 %2754, %v2717
        %v2756 = vpop.permute.xlu0 %2755
        %2759 = vset.pattern.permute.xlu0 0
        %2760 = vperm.xlu0 %2759, %v2718
        %v2761 = vpop.permute.xlu0 %2760
        %2764 = vset.pattern.permute.xlu0 0
        %2765 = vperm.xlu0 %2764, %v2719
        %v2766 = vpop.permute.xlu0 %2765
        %2769 = vset.pattern.permute.xlu0 0
        %2770 = vperm.xlu0 %2769, %v2720
        %v2771 = vpop.permute.xlu0 %2770
        %2774 = vset.pattern.permute.xlu0 0
        %2775 = vperm.xlu0 %2774, %v2721
        %v2776 = vpop.permute.xlu0 %2775
        %2779 = vset.pattern.permute.xlu0 0
        %2780 = vperm.xlu0 %2779, %v2722
        %v2781 = vpop.permute.xlu0 %2780
        %2784 = vset.pattern.permute.xlu0 0
        %2785 = vperm.xlu0 %2784, %v2723
        %v2786 = vpop.permute.xlu0 %2785
        %2789 = vset.pattern.permute.xlu0 0
        %2790 = vperm.xlu0 %2789, %v2724
        %v2791 = vpop.permute.xlu0 %2790
        %2794 = vset.pattern.permute.xlu0 0
        %2795 = vperm.xlu0 %2794, %v2725
        %v2796 = vpop.permute.xlu0 %2795
        %2799 = vset.pattern.permute.xlu0 0
        %2800 = vperm.xlu0 %2799, %v2726
        %v2801 = vpop.permute.xlu0 %2800
        %2804 = vset.pattern.permute.xlu0 0
        %2805 = vperm.xlu0 %2804, %v2727
        %v2806 = vpop.permute.xlu0 %2805
        %2809 = vset.pattern.permute.xlu0 0
        %2810 = vperm.xlu0 %2809, %v2728
        %v2811 = vpop.permute.xlu0 %2810
        %2814 = vset.pattern.permute.xlu0 0
        %2815 = vperm.xlu0 %2814, %v2729
        %v2816 = vpop.permute.xlu0 %2815
        %2819 = vset.pattern.permute.xlu0 0
        %2820 = vperm.xlu0 %2819, %v2730
        %v2821 = vpop.permute.xlu0 %2820
        %2824 = vset.pattern.permute.xlu0 0
        %2825 = vperm.xlu0 %2824, %v2731
        %v2826 = vpop.permute.xlu0 %2825
        %2829 = vset.pattern.permute.xlu0 0
        %2830 = vperm.xlu0 %2829, %v2732
        %v2831 = vpop.permute.xlu0 %2830
        %2834 = vset.pattern.permute.xlu0 0
        %2835 = vperm.xlu0 %2834, %v2733
        %v2836 = vpop.permute.xlu0 %2835
        %2839 = vset.pattern.permute.xlu0 0
        %2840 = vperm.xlu0 %2839, %v2734
        %v2841 = vpop.permute.xlu0 %2840
        %2844 = vset.pattern.permute.xlu0 0
        %2845 = vperm.xlu0 %2844, %v2735
        %v2846 = vpop.permute.xlu0 %2845
        %2849 = vset.pattern.permute.xlu0 0
        %2850 = vperm.xlu0 %2849, %v2736
        %v2851 = vpop.permute.xlu0 %2850
        %2854 = vset.pattern.permute.xlu0 0
        %2855 = vperm.xlu0 %2854, %v2737
        %v2856 = vpop.permute.xlu0 %2855
        %2859 = vset.pattern.permute.xlu0 0
        %2860 = vperm.xlu0 %2859, %v2738
        %v2861 = vpop.permute.xlu0 %2860
        %2864 = vset.pattern.permute.xlu0 0
        %2865 = vperm.xlu0 %2864, %v2739
        %v2866 = vpop.permute.xlu0 %2865
        %2869 = vset.pattern.permute.xlu0 0
        %2870 = vperm.xlu0 %2869, %v2740
        %v2871 = vpop.permute.xlu0 %2870
        %2874 = vset.pattern.permute.xlu0 0
        %2875 = vperm.xlu0 %2874, %v2741
        %v2876 = vpop.permute.xlu0 %2875
        %2879 = vset.pattern.permute.xlu0 0
        %2880 = vperm.xlu0 %2879, %v2742
        %v2881 = vpop.permute.xlu0 %2880
        %2884 = vset.pattern.permute.xlu0 0
        %2885 = vperm.xlu0 %2884, %v2743
        %v2886 = vpop.permute.xlu0 %2885
        %2889 = vset.pattern.permute.xlu0 0
        %2890 = vperm.xlu0 %2889, %v2744
        %v2891 = vpop.permute.xlu0 %2890
        %2894 = vset.pattern.permute.xlu0 0
        %2895 = vperm.xlu0 %2894, %v2745
        %v2896 = vpop.permute.xlu0 %2895
        %2899 = vset.pattern.permute.xlu0 0
        %2900 = vperm.xlu0 %2899, %v2746
        %v2901 = vpop.permute.xlu0 %2900
        %2904 = vset.pattern.permute.xlu0 0
        %2905 = vperm.xlu0 %2904, %v2747
        %v2906 = vpop.permute.xlu0 %2905
        %v2908 = vlaneseq
        %v2909 = vshrl.u32 %v2908, 7
        %v2910 = vsub.s32 0, %v2909
        %v2911 = vrot.slane %v936, %v2910
        %v2912 = vmul.f32 %v2751, %v2911
        %v2913 = vmul.f32 %v2756, %v2911
        %v2914 = vmul.f32 %v2761, %v2911
        %v2915 = vmul.f32 %v2766, %v2911
        %v2916 = vmul.f32 %v2771, %v2911
        %v2917 = vmul.f32 %v2776, %v2911
        %v2918 = vmul.f32 %v2781, %v2911
        %v2919 = vmul.f32 %v2786, %v2911
        %v2920 = vmul.f32 %v2791, %v2911
        %v2921 = vmul.f32 %v2796, %v2911
        %v2922 = vmul.f32 %v2801, %v2911
        %v2923 = vmul.f32 %v2806, %v2911
        %v2924 = vmul.f32 %v2811, %v2911
        %v2925 = vmul.f32 %v2816, %v2911
        %v2926 = vmul.f32 %v2821, %v2911
        %v2927 = vmul.f32 %v2826, %v2911
        %v2928 = vmul.f32 %v2831, %v2911
        %v2929 = vmul.f32 %v2836, %v2911
        %v2930 = vmul.f32 %v2841, %v2911
        %v2931 = vmul.f32 %v2846, %v2911
        %v2932 = vmul.f32 %v2851, %v2911
        %v2933 = vmul.f32 %v2856, %v2911
        %v2934 = vmul.f32 %v2861, %v2911
        %v2935 = vmul.f32 %v2866, %v2911
        %v2936 = vmul.f32 %v2871, %v2911
        %v2937 = vmul.f32 %v2876, %v2911
        %v2938 = vmul.f32 %v2881, %v2911
        %v2939 = vmul.f32 %v2886, %v2911
        %v2940 = vmul.f32 %v2891, %v2911
        %v2941 = vmul.f32 %v2896, %v2911
        %v2942 = vmul.f32 %v2901, %v2911
        %v2943 = vmul.f32 %v2906, %v2911
        %v2944 = vmul.f32 %v2407, %v2911
        %v2976 = vrot.slane %v1541, 1
        %v2977 = vsel %vm1050, %v2976, %v2976
        %v2978 = vrot.slane %v1542, 1
        %v2979 = vsel %vm1050, %v2976, %v2978
        %v2980 = vrot.slane %v1543, 1
        %v2981 = vsel %vm1050, %v2978, %v2980
        %v2982 = vrot.slane %v1544, 1
        %v2983 = vsel %vm1050, %v2980, %v2982
        %v2984 = vrot.slane %v1545, 1
        %v2985 = vsel %vm1050, %v2982, %v2984
        %v2986 = vrot.slane %v1546, 1
        %v2987 = vsel %vm1050, %v2984, %v2986
        %v2988 = vrot.slane %v1547, 1
        %v2989 = vsel %vm1050, %v2986, %v2988
        %v2990 = vrot.slane %v1548, 1
        %v2991 = vsel %vm1050, %v2988, %v2990
        %v2992 = vrot.slane %v1549, 1
        %v2993 = vsel %vm1050, %v2990, %v2992
        %v2994 = vrot.slane %v1550, 1
        %v2995 = vsel %vm1050, %v2992, %v2994
        %v2996 = vrot.slane %v1551, 1
        %v2997 = vsel %vm1050, %v2994, %v2996
        %v2998 = vrot.slane %v1552, 1
        %v2999 = vsel %vm1050, %v2996, %v2998
        %v3000 = vrot.slane %v1553, 1
        %v3001 = vsel %vm1050, %v2998, %v3000
        %v3002 = vrot.slane %v1554, 1
        %v3003 = vsel %vm1050, %v3000, %v3002
        %v3004 = vrot.slane %v1555, 1
        %v3005 = vsel %vm1050, %v3002, %v3004
        %v3006 = vrot.slane %v1556, 1
        %v3007 = vsel %vm1050, %v3004, %v3006
        %v3008 = vrot.slane %v1557, 1
        %v3009 = vsel %vm1050, %v3006, %v3008
        %v3010 = vrot.slane %v1558, 1
        %v3011 = vsel %vm1050, %v3008, %v3010
        %v3012 = vrot.slane %v1559, 1
        %v3013 = vsel %vm1050, %v3010, %v3012
        %v3014 = vrot.slane %v1560, 1
        %v3015 = vsel %vm1050, %v3012, %v3014
        %v3016 = vrot.slane %v1561, 1
        %v3017 = vsel %vm1050, %v3014, %v3016
        %v3018 = vrot.slane %v1562, 1
        %v3019 = vsel %vm1050, %v3016, %v3018
        %v3020 = vrot.slane %v1563, 1
        %v3021 = vsel %vm1050, %v3018, %v3020
        %v3022 = vrot.slane %v1564, 1
        %v3023 = vsel %vm1050, %v3020, %v3022
        %v3024 = vrot.slane %v1565, 1
        %v3025 = vsel %vm1050, %v3022, %v3024
        %v3026 = vrot.slane %v1566, 1
        %v3027 = vsel %vm1050, %v3024, %v3026
        %v3028 = vrot.slane %v1567, 1
        %v3029 = vsel %vm1050, %v3026, %v3028
        %v3030 = vrot.slane %v1568, 1
        %v3031 = vsel %vm1050, %v3028, %v3030
        %v3032 = vrot.slane %v1569, 1
        %v3033 = vsel %vm1050, %v3030, %v3032
        %v3034 = vrot.slane %v1570, 1
        %v3035 = vsel %vm1050, %v3032, %v3034
        %v3036 = vrot.slane %v1571, 1
        %v3037 = vsel %vm1050, %v3034, %v3036
        %v3071 = vadd.f32 %v1349, %v2976
        %v3072 = vadd.f32 %v1350, %v2977
        %v3073 = vadd.f32 %v1351, %v2979
        %v3074 = vadd.f32 %v1352, %v2981
        %v3075 = vadd.f32 %v1353, %v2983
        %v3076 = vadd.f32 %v1354, %v2985
        %v3077 = vadd.f32 %v1355, %v2987
        %v3078 = vadd.f32 %v1356, %v2989
        %v3079 = vadd.f32 %v1357, %v2991
        %v3080 = vadd.f32 %v1358, %v2993
        %v3081 = vadd.f32 %v1359, %v2995
        %v3082 = vadd.f32 %v1360, %v2997
        %v3083 = vadd.f32 %v1361, %v2999
        %v3084 = vadd.f32 %v1362, %v3001
        %v3085 = vadd.f32 %v1363, %v3003
        %v3086 = vadd.f32 %v1364, %v3005
        %v3087 = vadd.f32 %v1365, %v3007
        %v3088 = vadd.f32 %v1366, %v3009
        %v3089 = vadd.f32 %v1367, %v3011
        %v3090 = vadd.f32 %v1368, %v3013
        %v3091 = vadd.f32 %v1369, %v3015
        %v3092 = vadd.f32 %v1370, %v3017
        %v3093 = vadd.f32 %v1371, %v3019
        %v3094 = vadd.f32 %v1372, %v3021
        %v3095 = vadd.f32 %v1373, %v3023
        %v3096 = vadd.f32 %v1374, %v3025
        %v3097 = vadd.f32 %v1375, %v3027
        %v3098 = vadd.f32 %v1376, %v3029
        %v3099 = vadd.f32 %v1377, %v3031
        %v3100 = vadd.f32 %v1378, %v3033
        %v3101 = vadd.f32 %v1379, %v3035
        %v3102 = vadd.f32 %v1380, %v3037
        %v3103 = vadd.f32 %v1381, %v3036
        %vm3137 = vcmask 1041408
        %v3138 = vrot.slane %v2132, 6
        %v3139 = vrot.slane %v2133, 6
        %v3140 = vsel %vm3137, %v3138, %v3139
        %v3141 = vrot.slane %v2134, 6
        %v3142 = vsel %vm3137, %v3139, %v3141
        %v3143 = vrot.slane %v2135, 6
        %v3144 = vsel %vm3137, %v3141, %v3143
        %v3145 = vrot.slane %v2136, 6
        %v3146 = vsel %vm3137, %v3143, %v3145
        %v3147 = vrot.slane %v2137, 6
        %v3148 = vsel %vm3137, %v3145, %v3147
        %v3149 = vrot.slane %v2138, 6
        %v3150 = vsel %vm3137, %v3147, %v3149
        %v3151 = vrot.slane %v2139, 6
        %v3152 = vsel %vm3137, %v3149, %v3151
        %v3153 = vrot.slane %v2140, 6
        %v3154 = vsel %vm3137, %v3151, %v3153
        %v3155 = vrot.slane %v2141, 6
        %v3156 = vsel %vm3137, %v3153, %v3155
        %v3157 = vrot.slane %v2142, 6
        %v3158 = vsel %vm3137, %v3155, %v3157
        %v3159 = vrot.slane %v2143, 6
        %v3160 = vsel %vm3137, %v3157, %v3159
        %v3161 = vrot.slane %v2144, 6
        %v3162 = vsel %vm3137, %v3159, %v3161
        %v3163 = vrot.slane %v2145, 6
        %v3164 = vsel %vm3137, %v3161, %v3163
        %v3165 = vrot.slane %v2146, 6
        %v3166 = vsel %vm3137, %v3163, %v3165
        %v3167 = vrot.slane %v2147, 6
        %v3168 = vsel %vm3137, %v3165, %v3167
        %v3169 = vrot.slane %v2148, 6
        %v3170 = vsel %vm3137, %v3167, %v3169
        %v3171 = vrot.slane %v2149, 6
        %v3172 = vsel %vm3137, %v3169, %v3171
        %v3173 = vrot.slane %v2150, 6
        %v3174 = vsel %vm3137, %v3171, %v3173
        %v3175 = vrot.slane %v2151, 6
        %v3176 = vsel %vm3137, %v3173, %v3175
        %v3177 = vrot.slane %v2152, 6
        %v3178 = vsel %vm3137, %v3175, %v3177
        %v3179 = vrot.slane %v2153, 6
        %v3180 = vsel %vm3137, %v3177, %v3179
        %v3181 = vrot.slane %v2154, 6
        %v3182 = vsel %vm3137, %v3179, %v3181
        %v3183 = vrot.slane %v2155, 6
        %v3184 = vsel %vm3137, %v3181, %v3183
        %v3185 = vrot.slane %v2156, 6
        %v3186 = vsel %vm3137, %v3183, %v3185
        %v3187 = vrot.slane %v2157, 6
        %v3188 = vsel %vm3137, %v3185, %v3187
        %v3189 = vrot.slane %v2158, 6
        %v3190 = vsel %vm3137, %v3187, %v3189
        %v3191 = vrot.slane %v2159, 6
        %v3192 = vsel %vm3137, %v3189, %v3191
        %v3193 = vrot.slane %v2160, 6
        %v3194 = vsel %vm3137, %v3191, %v3193
        %v3195 = vrot.slane %v2161, 6
        %v3196 = vsel %vm3137, %v3193, %v3195
        %v3197 = vrot.slane %v2162, 6
        %v3198 = vsel %vm3137, %v3195, %v3197
        %v3199 = vrot.slane %v2163, 6
        %v3200 = vsel %vm3137, %v3197, %v3199
        %v3201 = vrot.slane %v2164, 6
        %v3202 = vsel %vm3137, %v3199, %v3201
        %v3236 = vadd.f32 %v1903, %v3140
        %v3237 = vadd.f32 %v1904, %v3142
        %v3238 = vadd.f32 %v1905, %v3144
        %v3239 = vadd.f32 %v1906, %v3146
        %v3240 = vadd.f32 %v1907, %v3148
        %v3241 = vadd.f32 %v1908, %v3150
        %v3242 = vadd.f32 %v1909, %v3152
        %v3243 = vadd.f32 %v1910, %v3154
        %v3244 = vadd.f32 %v1911, %v3156
        %v3245 = vadd.f32 %v1912, %v3158
        %v3246 = vadd.f32 %v1913, %v3160
        %v3247 = vadd.f32 %v1914, %v3162
        %v3248 = vadd.f32 %v1915, %v3164
        %v3249 = vadd.f32 %v1916, %v3166
        %v3250 = vadd.f32 %v1917, %v3168
        %v3251 = vadd.f32 %v1918, %v3170
        %v3252 = vadd.f32 %v1919, %v3172
        %v3253 = vadd.f32 %v1920, %v3174
        %v3254 = vadd.f32 %v1921, %v3176
        %v3255 = vadd.f32 %v1922, %v3178
        %v3256 = vadd.f32 %v1923, %v3180
        %v3257 = vadd.f32 %v1924, %v3182
        %v3258 = vadd.f32 %v1925, %v3184
        %v3259 = vadd.f32 %v1926, %v3186
        %v3260 = vadd.f32 %v1927, %v3188
        %v3261 = vadd.f32 %v1928, %v3190
        %v3262 = vadd.f32 %v1929, %v3192
        %v3263 = vadd.f32 %v1930, %v3194
        %v3264 = vadd.f32 %v1931, %v3196
        %v3265 = vadd.f32 %v1932, %v3198
        %v3266 = vadd.f32 %v1933, %v3200
        %v3267 = vadd.f32 %v1934, %v3202
        %v3268 = vadd.f32 %v1935, %v3201
        %v3302 = vrot.slane %v2413, 1
        %v3303 = vrot.slane %v2414, 1
        %v3304 = vsel %vm1050, %v3302, %v3303
        %v3305 = vrot.slane %v2415, 1
        %v3306 = vsel %vm1050, %v3303, %v3305
        %v3307 = vrot.slane %v2416, 1
        %v3308 = vsel %vm1050, %v3305, %v3307
        %v3309 = vrot.slane %v2417, 1
        %v3310 = vsel %vm1050, %v3307, %v3309
        %v3311 = vrot.slane %v2418, 1
        %v3312 = vsel %vm1050, %v3309, %v3311
        %v3313 = vrot.slane %v2419, 1
        %v3314 = vsel %vm1050, %v3311, %v3313
        %v3315 = vrot.slane %v2420, 1
        %v3316 = vsel %vm1050, %v3313, %v3315
        %v3317 = vrot.slane %v2421, 1
        %v3318 = vsel %vm1050, %v3315, %v3317
        %v3319 = vrot.slane %v2422, 1
        %v3320 = vsel %vm1050, %v3317, %v3319
        %v3321 = vrot.slane %v2423, 1
        %v3322 = vsel %vm1050, %v3319, %v3321
        %v3323 = vrot.slane %v2424, 1
        %v3324 = vsel %vm1050, %v3321, %v3323
        %v3325 = vrot.slane %v2425, 1
        %v3326 = vsel %vm1050, %v3323, %v3325
        %v3327 = vrot.slane %v2426, 1
        %v3328 = vsel %vm1050, %v3325, %v3327
        %v3329 = vrot.slane %v2427, 1
        %v3330 = vsel %vm1050, %v3327, %v3329
        %v3331 = vrot.slane %v2428, 1
        %v3332 = vsel %vm1050, %v3329, %v3331
        %v3333 = vrot.slane %v2429, 1
        %v3334 = vsel %vm1050, %v3331, %v3333
        %v3335 = vrot.slane %v2430, 1
        %v3336 = vsel %vm1050, %v3333, %v3335
        %v3337 = vrot.slane %v2431, 1
        %v3338 = vsel %vm1050, %v3335, %v3337
        %v3339 = vrot.slane %v2432, 1
        %v3340 = vsel %vm1050, %v3337, %v3339
        %v3341 = vrot.slane %v2433, 1
        %v3342 = vsel %vm1050, %v3339, %v3341
        %v3343 = vrot.slane %v2434, 1
        %v3344 = vsel %vm1050, %v3341, %v3343
        %v3345 = vrot.slane %v2435, 1
        %v3346 = vsel %vm1050, %v3343, %v3345
        %v3347 = vrot.slane %v2436, 1
        %v3348 = vsel %vm1050, %v3345, %v3347
        %v3349 = vrot.slane %v2437, 1
        %v3350 = vsel %vm1050, %v3347, %v3349
        %v3351 = vrot.slane %v2438, 1
        %v3352 = vsel %vm1050, %v3349, %v3351
        %v3353 = vrot.slane %v2439, 1
        %v3354 = vsel %vm1050, %v3351, %v3353
        %v3355 = vrot.slane %v2440, 1
        %v3356 = vsel %vm1050, %v3353, %v3355
        %v3357 = vrot.slane %v2441, 1
        %v3358 = vsel %vm1050, %v3355, %v3357
        %v3359 = vrot.slane %v2442, 1
        %v3360 = vsel %vm1050, %v3357, %v3359
        %v3361 = vrot.slane %v2443, 1
        %v3362 = vsel %vm1050, %v3359, %v3361
        %v3363 = vrot.slane %v2444, 1
        %v3364 = vsel %vm1050, %v3361, %v3363
        %v3365 = vrot.slane %v2445, 1
        %v3366 = vsel %vm1050, %v3363, %v3365
        %v3399 = vadd.f32 %v2179, %v3304
        %v3400 = vadd.f32 %v2180, %v3306
        %v3401 = vadd.f32 %v2181, %v3308
        %v3402 = vadd.f32 %v2182, %v3310
        %v3403 = vadd.f32 %v2183, %v3312
        %v3404 = vadd.f32 %v2184, %v3314
        %v3405 = vadd.f32 %v2185, %v3316
        %v3406 = vadd.f32 %v2186, %v3318
        %v3407 = vadd.f32 %v2187, %v3320
        %v3408 = vadd.f32 %v2188, %v3322
        %v3409 = vadd.f32 %v2189, %v3324
        %v3410 = vadd.f32 %v2190, %v3326
        %v3411 = vadd.f32 %v2191, %v3328
        %v3412 = vadd.f32 %v2192, %v3330
        %v3413 = vadd.f32 %v2193, %v3332
        %v3414 = vadd.f32 %v2194, %v3334
        %v3415 = vadd.f32 %v2195, %v3336
        %v3416 = vadd.f32 %v2196, %v3338
        %v3417 = vadd.f32 %v2197, %v3340
        %v3418 = vadd.f32 %v2198, %v3342
        %v3419 = vadd.f32 %v2199, %v3344
        %v3420 = vadd.f32 %v2200, %v3346
        %v3421 = vadd.f32 %v2201, %v3348
        %v3422 = vadd.f32 %v2202, %v3350
        %v3423 = vadd.f32 %v2203, %v3352
        %v3424 = vadd.f32 %v2204, %v3354
        %v3425 = vadd.f32 %v2205, %v3356
        %v3426 = vadd.f32 %v2206, %v3358
        %v3427 = vadd.f32 %v2207, %v3360
        %v3428 = vadd.f32 %v2208, %v3362
        %v3429 = vadd.f32 %v2209, %v3364
        %v3430 = vadd.f32 %v2210, %v3366
        %v3462 = vrot.slane %v2685, 1
        %v3463 = vrot.slane %v2686, 1
        %v3464 = vsel %vm1050, %v3462, %v3463
        %v3465 = vrot.slane %v2687, 1
        %v3466 = vsel %vm1050, %v3463, %v3465
        %v3467 = vrot.slane %v2688, 1
        %v3468 = vsel %vm1050, %v3465, %v3467
        %v3469 = vrot.slane %v2689, 1
        %v3470 = vsel %vm1050, %v3467, %v3469
        %v3471 = vrot.slane %v2690, 1
        %v3472 = vsel %vm1050, %v3469, %v3471
        %v3473 = vrot.slane %v2691, 1
        %v3474 = vsel %vm1050, %v3471, %v3473
        %v3475 = vrot.slane %v2692, 1
        %v3476 = vsel %vm1050, %v3473, %v3475
        %v3477 = vrot.slane %v2693, 1
        %v3478 = vsel %vm1050, %v3475, %v3477
        %v3479 = vrot.slane %v2694, 1
        %v3480 = vsel %vm1050, %v3477, %v3479
        %v3481 = vrot.slane %v2695, 1
        %v3482 = vsel %vm1050, %v3479, %v3481
        %v3483 = vrot.slane %v2696, 1
        %v3484 = vsel %vm1050, %v3481, %v3483
        %v3485 = vrot.slane %v2697, 1
        %v3486 = vsel %vm1050, %v3483, %v3485
        %v3487 = vrot.slane %v2698, 1
        %v3488 = vsel %vm1050, %v3485, %v3487
        %v3489 = vrot.slane %v2699, 1
        %v3490 = vsel %vm1050, %v3487, %v3489
        %v3491 = vrot.slane %v2700, 1
        %v3492 = vsel %vm1050, %v3489, %v3491
        %v3493 = vrot.slane %v2701, 1
        %v3494 = vsel %vm1050, %v3491, %v3493
        %v3495 = vrot.slane %v2702, 1
        %v3496 = vsel %vm1050, %v3493, %v3495
        %v3497 = vrot.slane %v2703, 1
        %v3498 = vsel %vm1050, %v3495, %v3497
        %v3499 = vrot.slane %v2704, 1
        %v3500 = vsel %vm1050, %v3497, %v3499
        %v3501 = vrot.slane %v2705, 1
        %v3502 = vsel %vm1050, %v3499, %v3501
        %v3503 = vrot.slane %v2706, 1
        %v3504 = vsel %vm1050, %v3501, %v3503
        %v3505 = vrot.slane %v2707, 1
        %v3506 = vsel %vm1050, %v3503, %v3505
        %v3507 = vrot.slane %v2708, 1
        %v3508 = vsel %vm1050, %v3505, %v3507
        %v3509 = vrot.slane %v2709, 1
        %v3510 = vsel %vm1050, %v3507, %v3509
        %v3511 = vrot.slane %v2710, 1
        %v3512 = vsel %vm1050, %v3509, %v3511
        %v3513 = vrot.slane %v2711, 1
        %v3514 = vsel %vm1050, %v3511, %v3513
        %v3515 = vrot.slane %v2712, 1
        %v3516 = vsel %vm1050, %v3513, %v3515
        %v3517 = vrot.slane %v2713, 1
        %v3518 = vsel %vm1050, %v3515, %v3517
        %v3519 = vrot.slane %v2714, 1
        %v3520 = vsel %vm1050, %v3517, %v3519
        %v3521 = vrot.slane %v2715, 1
        %v3522 = vsel %vm1050, %v3519, %v3521
        %v3523 = vsel %vm1050, %v3521, %v3521
        %v3557 = vadd.f32 %v2648, %v3462
        %v3558 = vadd.f32 %v2649, %v3464
        %v3559 = vadd.f32 %v2650, %v3466
        %v3560 = vadd.f32 %v2651, %v3468
        %v3561 = vadd.f32 %v2652, %v3470
        %v3562 = vadd.f32 %v2653, %v3472
        %v3563 = vadd.f32 %v2654, %v3474
        %v3564 = vadd.f32 %v2655, %v3476
        %v3565 = vadd.f32 %v2656, %v3478
        %v3566 = vadd.f32 %v2657, %v3480
        %v3567 = vadd.f32 %v2658, %v3482
        %v3568 = vadd.f32 %v2659, %v3484
        %v3569 = vadd.f32 %v2660, %v3486
        %v3570 = vadd.f32 %v2661, %v3488
        %v3571 = vadd.f32 %v2662, %v3490
        %v3572 = vadd.f32 %v2663, %v3492
        %v3573 = vadd.f32 %v2664, %v3494
        %v3574 = vadd.f32 %v2665, %v3496
        %v3575 = vadd.f32 %v2666, %v3498
        %v3576 = vadd.f32 %v2667, %v3500
        %v3577 = vadd.f32 %v2668, %v3502
        %v3578 = vadd.f32 %v2669, %v3504
        %v3579 = vadd.f32 %v2670, %v3506
        %v3580 = vadd.f32 %v2671, %v3508
        %v3581 = vadd.f32 %v2672, %v3510
        %v3582 = vadd.f32 %v2673, %v3512
        %v3583 = vadd.f32 %v2674, %v3514
        %v3584 = vadd.f32 %v2675, %v3516
        %v3585 = vadd.f32 %v2676, %v3518
        %v3586 = vadd.f32 %v2677, %v3520
        %v3587 = vadd.f32 %v2678, %v3522
        %v3588 = vadd.f32 %v2679, %v3523
        %v3589 = vadd.f32 %v2680, %v3521
        %vm3623 = vcmask 1045504
        %v3624 = vrot.slane %v3236, 2
        %v3625 = vrot.slane %v3237, 2
        %v3626 = vsel %vm3623, %v3624, %v3625
        %v3627 = vrot.slane %v3238, 2
        %v3628 = vsel %vm3623, %v3625, %v3627
        %v3629 = vrot.slane %v3239, 2
        %v3630 = vsel %vm3623, %v3627, %v3629
        %v3631 = vrot.slane %v3240, 2
        %v3632 = vsel %vm3623, %v3629, %v3631
        %v3633 = vrot.slane %v3241, 2
        %v3634 = vsel %vm3623, %v3631, %v3633
        %v3635 = vrot.slane %v3242, 2
        %v3636 = vsel %vm3623, %v3633, %v3635
        %v3637 = vrot.slane %v3243, 2
        %v3638 = vsel %vm3623, %v3635, %v3637
        %v3639 = vrot.slane %v3244, 2
        %v3640 = vsel %vm3623, %v3637, %v3639
        %v3641 = vrot.slane %v3245, 2
        %v3642 = vsel %vm3623, %v3639, %v3641
        %v3643 = vrot.slane %v3246, 2
        %v3644 = vsel %vm3623, %v3641, %v3643
        %v3645 = vrot.slane %v3247, 2
        %v3646 = vsel %vm3623, %v3643, %v3645
        %v3647 = vrot.slane %v3248, 2
        %v3648 = vsel %vm3623, %v3645, %v3647
        %v3649 = vrot.slane %v3249, 2
        %v3650 = vsel %vm3623, %v3647, %v3649
        %v3651 = vrot.slane %v3250, 2
        %v3652 = vsel %vm3623, %v3649, %v3651
        %v3653 = vrot.slane %v3251, 2
        %v3654 = vsel %vm3623, %v3651, %v3653
        %v3655 = vrot.slane %v3252, 2
        %v3656 = vsel %vm3623, %v3653, %v3655
        %v3657 = vrot.slane %v3253, 2
        %v3658 = vsel %vm3623, %v3655, %v3657
        %v3659 = vrot.slane %v3254, 2
        %v3660 = vsel %vm3623, %v3657, %v3659
        %v3661 = vrot.slane %v3255, 2
        %v3662 = vsel %vm3623, %v3659, %v3661
        %v3663 = vrot.slane %v3256, 2
        %v3664 = vsel %vm3623, %v3661, %v3663
        %v3665 = vrot.slane %v3257, 2
        %v3666 = vsel %vm3623, %v3663, %v3665
        %v3667 = vrot.slane %v3258, 2
        %v3668 = vsel %vm3623, %v3665, %v3667
        %v3669 = vrot.slane %v3259, 2
        %v3670 = vsel %vm3623, %v3667, %v3669
        %v3671 = vrot.slane %v3260, 2
        %v3672 = vsel %vm3623, %v3669, %v3671
        %v3673 = vrot.slane %v3261, 2
        %v3674 = vsel %vm3623, %v3671, %v3673
        %v3675 = vrot.slane %v3262, 2
        %v3676 = vsel %vm3623, %v3673, %v3675
        %v3677 = vrot.slane %v3263, 2
        %v3678 = vsel %vm3623, %v3675, %v3677
        %v3679 = vrot.slane %v3264, 2
        %v3680 = vsel %vm3623, %v3677, %v3679
        %v3681 = vrot.slane %v3265, 2
        %v3682 = vsel %vm3623, %v3679, %v3681
        %v3683 = vrot.slane %v3266, 2
        %v3684 = vsel %vm3623, %v3681, %v3683
        %v3685 = vrot.slane %v3267, 2
        %v3686 = vsel %vm3623, %v3683, %v3685
        %v3687 = vrot.slane %v3268, 2
        %v3688 = vsel %vm3623, %v3685, %v3687
        %v3722 = vadd.f32 %v3071, %v3624
        %v3723 = vadd.f32 %v3072, %v3626
        %v3724 = vadd.f32 %v3073, %v3628
        %v3725 = vadd.f32 %v3074, %v3630
        %v3726 = vadd.f32 %v3075, %v3632
        %v3727 = vadd.f32 %v3076, %v3634
        %v3728 = vadd.f32 %v3077, %v3636
        %v3729 = vadd.f32 %v3078, %v3638
        %v3730 = vadd.f32 %v3079, %v3640
        %v3731 = vadd.f32 %v3080, %v3642
        %v3732 = vadd.f32 %v3081, %v3644
        %v3733 = vadd.f32 %v3082, %v3646
        %v3734 = vadd.f32 %v3083, %v3648
        %v3735 = vadd.f32 %v3084, %v3650
        %v3736 = vadd.f32 %v3085, %v3652
        %v3737 = vadd.f32 %v3086, %v3654
        %v3738 = vadd.f32 %v3087, %v3656
        %v3739 = vadd.f32 %v3088, %v3658
        %v3740 = vadd.f32 %v3089, %v3660
        %v3741 = vadd.f32 %v3090, %v3662
        %v3742 = vadd.f32 %v3091, %v3664
        %v3743 = vadd.f32 %v3092, %v3666
        %v3744 = vadd.f32 %v3093, %v3668
        %v3745 = vadd.f32 %v3094, %v3670
        %v3746 = vadd.f32 %v3095, %v3672
        %v3747 = vadd.f32 %v3096, %v3674
        %v3748 = vadd.f32 %v3097, %v3676
        %v3749 = vadd.f32 %v3098, %v3678
        %v3750 = vadd.f32 %v3099, %v3680
        %v3751 = vadd.f32 %v3100, %v3682
        %v3752 = vadd.f32 %v3101, %v3684
        %v3753 = vadd.f32 %v3102, %v3686
        %v3754 = vadd.f32 %v3103, %v3688
        %v3788 = vrot.slane %v3557, 7
        %v3789 = vrot.slane %v3558, 7
        %v3790 = vsel %vm1604, %v3788, %v3789
        %v3791 = vrot.slane %v3559, 7
        %v3792 = vsel %vm1604, %v3789, %v3791
        %v3793 = vrot.slane %v3560, 7
        %v3794 = vsel %vm1604, %v3791, %v3793
        %v3795 = vrot.slane %v3561, 7
        %v3796 = vsel %vm1604, %v3793, %v3795
        %v3797 = vrot.slane %v3562, 7
        %v3798 = vsel %vm1604, %v3795, %v3797
        %v3799 = vrot.slane %v3563, 7
        %v3800 = vsel %vm1604, %v3797, %v3799
        %v3801 = vrot.slane %v3564, 7
        %v3802 = vsel %vm1604, %v3799, %v3801
        %v3803 = vrot.slane %v3565, 7
        %v3804 = vsel %vm1604, %v3801, %v3803
        %v3805 = vrot.slane %v3566, 7
        %v3806 = vsel %vm1604, %v3803, %v3805
        %v3807 = vrot.slane %v3567, 7
        %v3808 = vsel %vm1604, %v3805, %v3807
        %v3809 = vrot.slane %v3568, 7
        %v3810 = vsel %vm1604, %v3807, %v3809
        %v3811 = vrot.slane %v3569, 7
        %v3812 = vsel %vm1604, %v3809, %v3811
        %v3813 = vrot.slane %v3570, 7
        %v3814 = vsel %vm1604, %v3811, %v3813
        %v3815 = vrot.slane %v3571, 7
        %v3816 = vsel %vm1604, %v3813, %v3815
        %v3817 = vrot.slane %v3572, 7
        %v3818 = vsel %vm1604, %v3815, %v3817
        %v3819 = vrot.slane %v3573, 7
        %v3820 = vsel %vm1604, %v3817, %v3819
        %v3821 = vrot.slane %v3574, 7
        %v3822 = vsel %vm1604, %v3819, %v3821
        %v3823 = vrot.slane %v3575, 7
        %v3824 = vsel %vm1604, %v3821, %v3823
        %v3825 = vrot.slane %v3576, 7
        %v3826 = vsel %vm1604, %v3823, %v3825
        %v3827 = vrot.slane %v3577, 7
        %v3828 = vsel %vm1604, %v3825, %v3827
        %v3829 = vrot.slane %v3578, 7
        %v3830 = vsel %vm1604, %v3827, %v3829
        %v3831 = vrot.slane %v3579, 7
        %v3832 = vsel %vm1604, %v3829, %v3831
        %v3833 = vrot.slane %v3580, 7
        %v3834 = vsel %vm1604, %v3831, %v3833
        %v3835 = vrot.slane %v3581, 7
        %v3836 = vsel %vm1604, %v3833, %v3835
        %v3837 = vrot.slane %v3582, 7
        %v3838 = vsel %vm1604, %v3835, %v3837
        %v3839 = vrot.slane %v3583, 7
        %v3840 = vsel %vm1604, %v3837, %v3839
        %v3841 = vrot.slane %v3584, 7
        %v3842 = vsel %vm1604, %v3839, %v3841
        %v3843 = vrot.slane %v3585, 7
        %v3844 = vsel %vm1604, %v3841, %v3843
        %v3845 = vrot.slane %v3586, 7
        %v3846 = vsel %vm1604, %v3843, %v3845
        %v3847 = vrot.slane %v3587, 7
        %v3848 = vsel %vm1604, %v3845, %v3847
        %v3849 = vrot.slane %v3588, 7
        %v3850 = vsel %vm1604, %v3847, %v3849
        %v3851 = vrot.slane %v3589, 7
        %v3852 = vsel %vm1604, %v3849, %v3851
        %v3885 = vadd.f32 %v3399, %v3790
        %v3886 = vadd.f32 %v3400, %v3792
        %v3887 = vadd.f32 %v3401, %v3794
        %v3888 = vadd.f32 %v3402, %v3796
        %v3889 = vadd.f32 %v3403, %v3798
        %v3890 = vadd.f32 %v3404, %v3800
        %v3891 = vadd.f32 %v3405, %v3802
        %v3892 = vadd.f32 %v3406, %v3804
        %v3893 = vadd.f32 %v3407, %v3806
        %v3894 = vadd.f32 %v3408, %v3808
        %v3895 = vadd.f32 %v3409, %v3810
        %v3896 = vadd.f32 %v3410, %v3812
        %v3897 = vadd.f32 %v3411, %v3814
        %v3898 = vadd.f32 %v3412, %v3816
        %v3899 = vadd.f32 %v3413, %v3818
        %v3900 = vadd.f32 %v3414, %v3820
        %v3901 = vadd.f32 %v3415, %v3822
        %v3902 = vadd.f32 %v3416, %v3824
        %v3903 = vadd.f32 %v3417, %v3826
        %v3904 = vadd.f32 %v3418, %v3828
        %v3905 = vadd.f32 %v3419, %v3830
        %v3906 = vadd.f32 %v3420, %v3832
        %v3907 = vadd.f32 %v3421, %v3834
        %v3908 = vadd.f32 %v3422, %v3836
        %v3909 = vadd.f32 %v3423, %v3838
        %v3910 = vadd.f32 %v3424, %v3840
        %v3911 = vadd.f32 %v3425, %v3842
        %v3912 = vadd.f32 %v3426, %v3844
        %v3913 = vadd.f32 %v3427, %v3846
        %v3914 = vadd.f32 %v3428, %v3848
        %v3915 = vadd.f32 %v3429, %v3850
        %v3916 = vadd.f32 %v3430, %v3852
        %v3949 = vrot.slane %v3885, 1
        %v3950 = vrot.slane %v3886, 1
        %v3951 = vsel %vm1050, %v3949, %v3950
        %v3952 = vrot.slane %v3887, 1
        %v3953 = vsel %vm1050, %v3950, %v3952
        %v3954 = vrot.slane %v3888, 1
        %v3955 = vsel %vm1050, %v3952, %v3954
        %v3956 = vrot.slane %v3889, 1
        %v3957 = vsel %vm1050, %v3954, %v3956
        %v3958 = vrot.slane %v3890, 1
        %v3959 = vsel %vm1050, %v3956, %v3958
        %v3960 = vrot.slane %v3891, 1
        %v3961 = vsel %vm1050, %v3958, %v3960
        %v3962 = vrot.slane %v3892, 1
        %v3963 = vsel %vm1050, %v3960, %v3962
        %v3964 = vrot.slane %v3893, 1
        %v3965 = vsel %vm1050, %v3962, %v3964
        %v3966 = vrot.slane %v3894, 1
        %v3967 = vsel %vm1050, %v3964, %v3966
        %v3968 = vrot.slane %v3895, 1
        %v3969 = vsel %vm1050, %v3966, %v3968
        %v3970 = vrot.slane %v3896, 1
        %v3971 = vsel %vm1050, %v3968, %v3970
        %v3972 = vrot.slane %v3897, 1
        %v3973 = vsel %vm1050, %v3970, %v3972
        %v3974 = vrot.slane %v3898, 1
        %v3975 = vsel %vm1050, %v3972, %v3974
        %v3976 = vrot.slane %v3899, 1
        %v3977 = vsel %vm1050, %v3974, %v3976
        %v3978 = vrot.slane %v3900, 1
        %v3979 = vsel %vm1050, %v3976, %v3978
        %v3980 = vrot.slane %v3901, 1
        %v3981 = vsel %vm1050, %v3978, %v3980
        %v3982 = vrot.slane %v3902, 1
        %v3983 = vsel %vm1050, %v3980, %v3982
        %v3984 = vrot.slane %v3903, 1
        %v3985 = vsel %vm1050, %v3982, %v3984
        %v3986 = vrot.slane %v3904, 1
        %v3987 = vsel %vm1050, %v3984, %v3986
        %v3988 = vrot.slane %v3905, 1
        %v3989 = vsel %vm1050, %v3986, %v3988
        %v3990 = vrot.slane %v3906, 1
        %v3991 = vsel %vm1050, %v3988, %v3990
        %v3992 = vrot.slane %v3907, 1
        %v3993 = vsel %vm1050, %v3990, %v3992
        %v3994 = vrot.slane %v3908, 1
        %v3995 = vsel %vm1050, %v3992, %v3994
        %v3996 = vrot.slane %v3909, 1
        %v3997 = vsel %vm1050, %v3994, %v3996
        %v3998 = vrot.slane %v3910, 1
        %v3999 = vsel %vm1050, %v3996, %v3998
        %v4000 = vrot.slane %v3911, 1
        %v4001 = vsel %vm1050, %v3998, %v4000
        %v4002 = vrot.slane %v3912, 1
        %v4003 = vsel %vm1050, %v4000, %v4002
        %v4004 = vrot.slane %v3913, 1
        %v4005 = vsel %vm1050, %v4002, %v4004
        %v4006 = vrot.slane %v3914, 1
        %v4007 = vsel %vm1050, %v4004, %v4006
        %v4008 = vrot.slane %v3915, 1
        %v4009 = vsel %vm1050, %v4006, %v4008
        %v4010 = vrot.slane %v3916, 1
        %v4011 = vsel %vm1050, %v4008, %v4010
        %v4045 = vadd.f32 %v3722, %v3949
        %v4046 = vadd.f32 %v3723, %v3951
        %v4047 = vadd.f32 %v3724, %v3953
        %v4048 = vadd.f32 %v3725, %v3955
        %v4049 = vadd.f32 %v3726, %v3957
        %v4050 = vadd.f32 %v3727, %v3959
        %v4051 = vadd.f32 %v3728, %v3961
        %v4052 = vadd.f32 %v3729, %v3963
        %v4053 = vadd.f32 %v3730, %v3965
        %v4054 = vadd.f32 %v3731, %v3967
        %v4055 = vadd.f32 %v3732, %v3969
        %v4056 = vadd.f32 %v3733, %v3971
        %v4057 = vadd.f32 %v3734, %v3973
        %v4058 = vadd.f32 %v3735, %v3975
        %v4059 = vadd.f32 %v3736, %v3977
        %v4060 = vadd.f32 %v3737, %v3979
        %v4061 = vadd.f32 %v3738, %v3981
        %v4062 = vadd.f32 %v3739, %v3983
        %v4063 = vadd.f32 %v3740, %v3985
        %v4064 = vadd.f32 %v3741, %v3987
        %v4065 = vadd.f32 %v3742, %v3989
        %v4066 = vadd.f32 %v3743, %v3991
        %v4067 = vadd.f32 %v3744, %v3993
        %v4068 = vadd.f32 %v3745, %v3995
        %v4069 = vadd.f32 %v3746, %v3997
        %v4070 = vadd.f32 %v3747, %v3999
        %v4071 = vadd.f32 %v3748, %v4001
        %v4072 = vadd.f32 %v3749, %v4003
        %v4073 = vadd.f32 %v3750, %v4005
        %v4074 = vadd.f32 %v3751, %v4007
        %v4075 = vadd.f32 %v3752, %v4009
        %v4076 = vadd.f32 %v3753, %v4011
        %v4077 = vadd.f32 %v3754, %v4010
        %v4111 = vrot.slane %v2912, 2
        %v4112 = vrot.slane %v2913, 2
        %v4113 = vsel %vm3623, %v4111, %v4112
        %v4114 = vrot.slane %v2914, 2
        %v4115 = vsel %vm3623, %v4112, %v4114
        %v4116 = vrot.slane %v2915, 2
        %v4117 = vsel %vm3623, %v4114, %v4116
        %v4118 = vrot.slane %v2916, 2
        %v4119 = vsel %vm3623, %v4116, %v4118
        %v4120 = vrot.slane %v2917, 2
        %v4121 = vsel %vm3623, %v4118, %v4120
        %v4122 = vrot.slane %v2918, 2
        %v4123 = vsel %vm3623, %v4120, %v4122
        %v4124 = vrot.slane %v2919, 2
        %v4125 = vsel %vm3623, %v4122, %v4124
        %v4126 = vrot.slane %v2920, 2
        %v4127 = vsel %vm3623, %v4124, %v4126
        %v4128 = vrot.slane %v2921, 2
        %v4129 = vsel %vm3623, %v4126, %v4128
        %v4130 = vrot.slane %v2922, 2
        %v4131 = vsel %vm3623, %v4128, %v4130
        %v4132 = vrot.slane %v2923, 2
        %v4133 = vsel %vm3623, %v4130, %v4132
        %v4134 = vrot.slane %v2924, 2
        %v4135 = vsel %vm3623, %v4132, %v4134
        %v4136 = vrot.slane %v2925, 2
        %v4137 = vsel %vm3623, %v4134, %v4136
        %v4138 = vrot.slane %v2926, 2
        %v4139 = vsel %vm3623, %v4136, %v4138
        %v4140 = vrot.slane %v2927, 2
        %v4141 = vsel %vm3623, %v4138, %v4140
        %v4142 = vrot.slane %v2928, 2
        %v4143 = vsel %vm3623, %v4140, %v4142
        %v4144 = vrot.slane %v2929, 2
        %v4145 = vsel %vm3623, %v4142, %v4144
        %v4146 = vrot.slane %v2930, 2
        %v4147 = vsel %vm3623, %v4144, %v4146
        %v4148 = vrot.slane %v2931, 2
        %v4149 = vsel %vm3623, %v4146, %v4148
        %v4150 = vrot.slane %v2932, 2
        %v4151 = vsel %vm3623, %v4148, %v4150
        %v4152 = vrot.slane %v2933, 2
        %v4153 = vsel %vm3623, %v4150, %v4152
        %v4154 = vrot.slane %v2934, 2
        %v4155 = vsel %vm3623, %v4152, %v4154
        %v4156 = vrot.slane %v2935, 2
        %v4157 = vsel %vm3623, %v4154, %v4156
        %v4158 = vrot.slane %v2936, 2
        %v4159 = vsel %vm3623, %v4156, %v4158
        %v4160 = vrot.slane %v2937, 2
        %v4161 = vsel %vm3623, %v4158, %v4160
        %v4162 = vrot.slane %v2938, 2
        %v4163 = vsel %vm3623, %v4160, %v4162
        %v4164 = vrot.slane %v2939, 2
        %v4165 = vsel %vm3623, %v4162, %v4164
        %v4166 = vrot.slane %v2940, 2
        %v4167 = vsel %vm3623, %v4164, %v4166
        %v4168 = vrot.slane %v2941, 2
        %v4169 = vsel %vm3623, %v4166, %v4168
        %v4170 = vrot.slane %v2942, 2
        %v4171 = vsel %vm3623, %v4168, %v4170
        %v4172 = vrot.slane %v2943, 2
        %v4173 = vsel %vm3623, %v4170, %v4172
        %v4174 = vrot.slane %v2944, 2
        %v4175 = vsel %vm3623, %v4172, %v4174
        %v4209 = vadd.f32 %v4045, %v4111
        %v4210 = vadd.f32 %v4046, %v4113
        %v4211 = vadd.f32 %v4047, %v4115
        %v4212 = vadd.f32 %v4048, %v4117
        %v4213 = vadd.f32 %v4049, %v4119
        %v4214 = vadd.f32 %v4050, %v4121
        %v4215 = vadd.f32 %v4051, %v4123
        %v4216 = vadd.f32 %v4052, %v4125
        %v4217 = vadd.f32 %v4053, %v4127
        %v4218 = vadd.f32 %v4054, %v4129
        %v4219 = vadd.f32 %v4055, %v4131
        %v4220 = vadd.f32 %v4056, %v4133
        %v4221 = vadd.f32 %v4057, %v4135
        %v4222 = vadd.f32 %v4058, %v4137
        %v4223 = vadd.f32 %v4059, %v4139
        %v4224 = vadd.f32 %v4060, %v4141
        %v4225 = vadd.f32 %v4061, %v4143
        %v4226 = vadd.f32 %v4062, %v4145
        %v4227 = vadd.f32 %v4063, %v4147
        %v4228 = vadd.f32 %v4064, %v4149
        %v4229 = vadd.f32 %v4065, %v4151
        %v4230 = vadd.f32 %v4066, %v4153
        %v4231 = vadd.f32 %v4067, %v4155
        %v4232 = vadd.f32 %v4068, %v4157
        %v4233 = vadd.f32 %v4069, %v4159
        %v4234 = vadd.f32 %v4070, %v4161
        %v4235 = vadd.f32 %v4071, %v4163
        %v4236 = vadd.f32 %v4072, %v4165
        %v4237 = vadd.f32 %v4073, %v4167
        %v4238 = vadd.f32 %v4074, %v4169
        %v4239 = vadd.f32 %v4075, %v4171
        %v4240 = vadd.f32 %v4076, %v4173
        %v4241 = vadd.f32 %v4077, %v4175
        %v4243 = vlaneseq
        %v4244 = vshrl.u32 %v4243, 7
        %v4245 = vsub.s32 0, %v4244
        %v4246 = vrot.slane %v937, %v4245
        %v4248 = vadd.f32 %v4209, %v4246
        %v4249 = vadd.f32 %v4210, %v4246
        %v4250 = vadd.f32 %v4211, %v4246
        %v4251 = vadd.f32 %v4212, %v4246
        %v4252 = vadd.f32 %v4213, %v4246
        %v4253 = vadd.f32 %v4214, %v4246
        %v4254 = vadd.f32 %v4215, %v4246
        %v4255 = vadd.f32 %v4216, %v4246
        %v4256 = vadd.f32 %v4217, %v4246
        %v4257 = vadd.f32 %v4218, %v4246
        %v4258 = vadd.f32 %v4219, %v4246
        %v4259 = vadd.f32 %v4220, %v4246
        %v4260 = vadd.f32 %v4221, %v4246
        %v4261 = vadd.f32 %v4222, %v4246
        %v4262 = vadd.f32 %v4223, %v4246
        %v4263 = vadd.f32 %v4224, %v4246
        %v4264 = vadd.f32 %v4225, %v4246
        %v4265 = vadd.f32 %v4226, %v4246
        %v4266 = vadd.f32 %v4227, %v4246
        %v4267 = vadd.f32 %v4228, %v4246
        %v4268 = vadd.f32 %v4229, %v4246
        %v4269 = vadd.f32 %v4230, %v4246
        %v4270 = vadd.f32 %v4231, %v4246
        %v4271 = vadd.f32 %v4232, %v4246
        %v4272 = vadd.f32 %v4233, %v4246
        %v4273 = vadd.f32 %v4234, %v4246
        %v4274 = vadd.f32 %v4235, %v4246
        %v4275 = vadd.f32 %v4236, %v4246
        %v4276 = vadd.f32 %v4237, %v4246
        %v4277 = vadd.f32 %v4238, %v4246
        %v4278 = vadd.f32 %v4239, %v4246
        %v4279 = vadd.f32 %v4240, %v4246
        %v4280 = vadd.f32 %v4241, %v4246
        %v4281 = vmax.f32 %v4248, 0.0
        %v4282 = vmax.f32 %v4249, 0.0
        %v4283 = vmax.f32 %v4250, 0.0
        %v4284 = vmax.f32 %v4251, 0.0
        %v4285 = vmax.f32 %v4252, 0.0
        %v4286 = vmax.f32 %v4253, 0.0
        %v4287 = vmax.f32 %v4254, 0.0
        %v4288 = vmax.f32 %v4255, 0.0
        %v4289 = vmax.f32 %v4256, 0.0
        %v4290 = vmax.f32 %v4257, 0.0
        %v4291 = vmax.f32 %v4258, 0.0
        %v4292 = vmax.f32 %v4259, 0.0
        %v4293 = vmax.f32 %v4260, 0.0
        %v4294 = vmax.f32 %v4261, 0.0
        %v4295 = vmax.f32 %v4262, 0.0
        %v4296 = vmax.f32 %v4263, 0.0
        %v4297 = vmax.f32 %v4264, 0.0
        %v4298 = vmax.f32 %v4265, 0.0
        %v4299 = vmax.f32 %v4266, 0.0
        %v4300 = vmax.f32 %v4267, 0.0
        %v4301 = vmax.f32 %v4268, 0.0
        %v4302 = vmax.f32 %v4269, 0.0
        %v4303 = vmax.f32 %v4270, 0.0
        %v4304 = vmax.f32 %v4271, 0.0
        %v4305 = vmax.f32 %v4272, 0.0
        %v4306 = vmax.f32 %v4273, 0.0
        %v4307 = vmax.f32 %v4274, 0.0
        %v4308 = vmax.f32 %v4275, 0.0
        %v4309 = vmax.f32 %v4276, 0.0
        %v4310 = vmax.f32 %v4277, 0.0
        %v4311 = vmax.f32 %v4278, 0.0
        %v4312 = vmax.f32 %v4279, 0.0
        %v4313 = vmax.f32 %v4280, 0.0
        %v4347 = vrot.slane %v4281, 7
        %v4348 = vrot.slane %v4282, 7
        %v4349 = vsel %vm1604, %v4347, %v4348
        %v4350 = vrot.slane %v4283, 7
        %v4351 = vsel %vm1604, %v4348, %v4350
        %v4352 = vrot.slane %v4284, 7
        %v4353 = vsel %vm1604, %v4350, %v4352
        %v4354 = vrot.slane %v4285, 7
        %v4355 = vsel %vm1604, %v4352, %v4354
        %v4356 = vrot.slane %v4286, 7
        %v4357 = vsel %vm1604, %v4354, %v4356
        %v4358 = vrot.slane %v4287, 7
        %v4359 = vsel %vm1604, %v4356, %v4358
        %v4360 = vrot.slane %v4288, 7
        %v4361 = vsel %vm1604, %v4358, %v4360
        %v4362 = vrot.slane %v4289, 7
        %v4363 = vsel %vm1604, %v4360, %v4362
        %v4364 = vrot.slane %v4290, 7
        %v4365 = vsel %vm1604, %v4362, %v4364
        %v4366 = vrot.slane %v4291, 7
        %v4367 = vsel %vm1604, %v4364, %v4366
        %v4368 = vrot.slane %v4292, 7
        %v4369 = vsel %vm1604, %v4366, %v4368
        %v4370 = vrot.slane %v4293, 7
        %v4371 = vsel %vm1604, %v4368, %v4370
        %v4372 = vrot.slane %v4294, 7
        %v4373 = vsel %vm1604, %v4370, %v4372
        %v4374 = vrot.slane %v4295, 7
        %v4375 = vsel %vm1604, %v4372, %v4374
        %v4376 = vrot.slane %v4296, 7
        %v4377 = vsel %vm1604, %v4374, %v4376
        %v4378 = vrot.slane %v4297, 7
        %v4379 = vsel %vm1604, %v4376, %v4378
        %v4380 = vrot.slane %v4298, 7
        %v4381 = vsel %vm1604, %v4378, %v4380
        %v4382 = vrot.slane %v4299, 7
        %v4383 = vsel %vm1604, %v4380, %v4382
        %v4384 = vrot.slane %v4300, 7
        %v4385 = vsel %vm1604, %v4382, %v4384
        %v4386 = vrot.slane %v4301, 7
        %v4387 = vsel %vm1604, %v4384, %v4386
        %v4388 = vrot.slane %v4302, 7
        %v4389 = vsel %vm1604, %v4386, %v4388
        %v4390 = vrot.slane %v4303, 7
        %v4391 = vsel %vm1604, %v4388, %v4390
        %v4392 = vrot.slane %v4304, 7
        %v4393 = vsel %vm1604, %v4390, %v4392
        %v4394 = vrot.slane %v4305, 7
        %v4395 = vsel %vm1604, %v4392, %v4394
        %v4396 = vrot.slane %v4306, 7
        %v4397 = vsel %vm1604, %v4394, %v4396
        %v4398 = vrot.slane %v4307, 7
        %v4399 = vsel %vm1604, %v4396, %v4398
        %v4400 = vrot.slane %v4308, 7
        %v4401 = vsel %vm1604, %v4398, %v4400
        %v4402 = vrot.slane %v4309, 7
        %v4403 = vsel %vm1604, %v4400, %v4402
        %v4404 = vrot.slane %v4310, 7
        %v4405 = vsel %vm1604, %v4402, %v4404
        %v4406 = vrot.slane %v4311, 7
        %v4407 = vsel %vm1604, %v4404, %v4406
        %v4408 = vrot.slane %v4312, 7
        %v4409 = vsel %vm1604, %v4406, %v4408
        %v4410 = vrot.slane %v4313, 7
        %v4411 = vsel %vm1604, %v4408, %v4410
        %4444 = vset.pattern.permute.xlu0 0
        %4445 = vperm.xlu0 %4444, %v938
        %v4446 = vpop.permute.xlu0 %4445
        %4447 = vset.pattern.permute.xlu0 0
        %4448 = vperm.xlu0 %4447, %v939
        %v4449 = vpop.permute.xlu0 %4448
        %4450 = vset.pattern.permute.xlu0 0
        %4451 = vperm.xlu0 %4450, %v940
        %v4452 = vpop.permute.xlu0 %4451
        %4453 = vset.pattern.permute.xlu0 0
        %4454 = vperm.xlu0 %4453, %v941
        %v4455 = vpop.permute.xlu0 %4454
        %4456 = vset.pattern.permute.xlu0 0
        %4457 = vperm.xlu0 %4456, %v942
        %v4458 = vpop.permute.xlu0 %4457
        %4459 = vset.pattern.permute.xlu0 0
        %4460 = vperm.xlu0 %4459, %v943
        %v4461 = vpop.permute.xlu0 %4460
        %4462 = vset.pattern.permute.xlu0 0
        %4463 = vperm.xlu0 %4462, %v944
        %v4464 = vpop.permute.xlu0 %4463
        %4465 = vset.pattern.permute.xlu0 0
        %4466 = vperm.xlu0 %4465, %v945
        %v4467 = vpop.permute.xlu0 %4466
        %4468 = vset.pattern.permute.xlu0 0
        %4469 = vperm.xlu0 %4468, %v946
        %v4470 = vpop.permute.xlu0 %4469
        %4471 = vset.pattern.permute.xlu0 0
        %4472 = vperm.xlu0 %4471, %v947
        %v4473 = vpop.permute.xlu0 %4472
        %4474 = vset.pattern.permute.xlu0 0
        %4475 = vperm.xlu0 %4474, %v948
        %v4476 = vpop.permute.xlu0 %4475
        %4477 = vset.pattern.permute.xlu0 0
        %4478 = vperm.xlu0 %4477, %v949
        %v4479 = vpop.permute.xlu0 %4478
        %4480 = vset.pattern.permute.xlu0 0
        %4481 = vperm.xlu0 %4480, %v950
        %v4482 = vpop.permute.xlu0 %4481
        %4483 = vset.pattern.permute.xlu0 0
        %4484 = vperm.xlu0 %4483, %v951
        %v4485 = vpop.permute.xlu0 %4484
        %4486 = vset.pattern.permute.xlu0 0
        %4487 = vperm.xlu0 %4486, %v952
        %v4488 = vpop.permute.xlu0 %4487
        %4489 = vset.pattern.permute.xlu0 0
        %4490 = vperm.xlu0 %4489, %v953
        %v4491 = vpop.permute.xlu0 %4490
        %4492 = vset.pattern.permute.xlu0 0
        %4493 = vperm.xlu0 %4492, %v954
        %v4494 = vpop.permute.xlu0 %4493
        %4495 = vset.pattern.permute.xlu0 0
        %4496 = vperm.xlu0 %4495, %v955
        %v4497 = vpop.permute.xlu0 %4496
        %4498 = vset.pattern.permute.xlu0 0
        %4499 = vperm.xlu0 %4498, %v956
        %v4500 = vpop.permute.xlu0 %4499
        %4501 = vset.pattern.permute.xlu0 0
        %4502 = vperm.xlu0 %4501, %v957
        %v4503 = vpop.permute.xlu0 %4502
        %4504 = vset.pattern.permute.xlu0 0
        %4505 = vperm.xlu0 %4504, %v958
        %v4506 = vpop.permute.xlu0 %4505
        %4507 = vset.pattern.permute.xlu0 0
        %4508 = vperm.xlu0 %4507, %v959
        %v4509 = vpop.permute.xlu0 %4508
        %4510 = vset.pattern.permute.xlu0 0
        %4511 = vperm.xlu0 %4510, %v960
        %v4512 = vpop.permute.xlu0 %4511
        %4513 = vset.pattern.permute.xlu0 0
        %4514 = vperm.xlu0 %4513, %v961
        %v4515 = vpop.permute.xlu0 %4514
        %4516 = vset.pattern.permute.xlu0 0
        %4517 = vperm.xlu0 %4516, %v962
        %v4518 = vpop.permute.xlu0 %4517
        %4519 = vset.pattern.permute.xlu0 0
        %4520 = vperm.xlu0 %4519, %v963
        %v4521 = vpop.permute.xlu0 %4520
        %4522 = vset.pattern.permute.xlu0 0
        %4523 = vperm.xlu0 %4522, %v964
        %v4524 = vpop.permute.xlu0 %4523
        %4525 = vset.pattern.permute.xlu0 0
        %4526 = vperm.xlu0 %4525, %v965
        %v4527 = vpop.permute.xlu0 %4526
        %4528 = vset.pattern.permute.xlu0 0
        %4529 = vperm.xlu0 %4528, %v966
        %v4530 = vpop.permute.xlu0 %4529
        %4531 = vset.pattern.permute.xlu0 0
        %4532 = vperm.xlu0 %4531, %v967
        %v4533 = vpop.permute.xlu0 %4532
        %4534 = vset.pattern.permute.xlu0 0
        %4535 = vperm.xlu0 %4534, %v968
        %v4536 = vpop.permute.xlu0 %4535
        %4537 = vset.pattern.permute.xlu0 0
        %4538 = vperm.xlu0 %4537, %v969
        %v4539 = vpop.permute.xlu0 %4538
        %v4540 = vrot.slane %v4446, 1
        %v4541 = vrot.slane %v4449, 1
        %v4542 = vsel %vm1050, %v4540, %v4541
        %v4543 = vrot.slane %v4452, 1
        %v4544 = vsel %vm1050, %v4541, %v4543
        %v4545 = vrot.slane %v4455, 1
        %v4546 = vsel %vm1050, %v4543, %v4545
        %v4547 = vrot.slane %v4458, 1
        %v4548 = vsel %vm1050, %v4545, %v4547
        %v4549 = vrot.slane %v4461, 1
        %v4550 = vsel %vm1050, %v4547, %v4549
        %v4551 = vrot.slane %v4464, 1
        %v4552 = vsel %vm1050, %v4549, %v4551
        %v4553 = vrot.slane %v4467, 1
        %v4554 = vsel %vm1050, %v4551, %v4553
        %v4555 = vrot.slane %v4470, 1
        %v4556 = vsel %vm1050, %v4553, %v4555
        %v4557 = vrot.slane %v4473, 1
        %v4558 = vsel %vm1050, %v4555, %v4557
        %v4559 = vrot.slane %v4476, 1
        %v4560 = vsel %vm1050, %v4557, %v4559
        %v4561 = vrot.slane %v4479, 1
        %v4562 = vsel %vm1050, %v4559, %v4561
        %v4563 = vrot.slane %v4482, 1
        %v4564 = vsel %vm1050, %v4561, %v4563
        %v4565 = vrot.slane %v4485, 1
        %v4566 = vsel %vm1050, %v4563, %v4565
        %v4567 = vrot.slane %v4488, 1
        %v4568 = vsel %vm1050, %v4565, %v4567
        %v4569 = vrot.slane %v4491, 1
        %v4570 = vsel %vm1050, %v4567, %v4569
        %v4571 = vrot.slane %v4494, 1
        %v4572 = vsel %vm1050, %v4569, %v4571
        %v4573 = vrot.slane %v4497, 1
        %v4574 = vsel %vm1050, %v4571, %v4573
        %v4575 = vrot.slane %v4500, 1
        %v4576 = vsel %vm1050, %v4573, %v4575
        %v4577 = vrot.slane %v4503, 1
        %v4578 = vsel %vm1050, %v4575, %v4577
        %v4579 = vrot.slane %v4506, 1
        %v4580 = vsel %vm1050, %v4577, %v4579
        %v4581 = vrot.slane %v4509, 1
        %v4582 = vsel %vm1050, %v4579, %v4581
        %v4583 = vrot.slane %v4512, 1
        %v4584 = vsel %vm1050, %v4581, %v4583
        %v4585 = vrot.slane %v4515, 1
        %v4586 = vsel %vm1050, %v4583, %v4585
        %v4587 = vrot.slane %v4518, 1
        %v4588 = vsel %vm1050, %v4585, %v4587
        %v4589 = vrot.slane %v4521, 1
        %v4590 = vsel %vm1050, %v4587, %v4589
        %v4591 = vrot.slane %v4524, 1
        %v4592 = vsel %vm1050, %v4589, %v4591
        %v4593 = vrot.slane %v4527, 1
        %v4594 = vsel %vm1050, %v4591, %v4593
        %v4595 = vrot.slane %v4530, 1
        %v4596 = vsel %vm1050, %v4593, %v4595
        %v4597 = vrot.slane %v4533, 1
        %v4598 = vsel %vm1050, %v4595, %v4597
        %v4599 = vrot.slane %v4536, 1
        %v4600 = vsel %vm1050, %v4597, %v4599
        %v4601 = vrot.slane %v4539, 1
        %v4602 = vsel %vm1050, %v4599, %v4601
        %v4636 = vmul.f32 %v4540, 0.0
        %v4637 = vmul.f32 %v4542, 0.0
        %v4638 = vmul.f32 %v4544, 0.0
        %v4639 = vmul.f32 %v4349, %v4546
        %v4640 = vmul.f32 %v4351, %v4548
        %v4641 = vmul.f32 %v4353, %v4550
        %v4642 = vmul.f32 %v4355, %v4552
        %v4643 = vmul.f32 %v4357, %v4554
        %v4644 = vmul.f32 %v4359, %v4556
        %v4645 = vmul.f32 %v4361, %v4558
        %v4646 = vmul.f32 %v4363, %v4560
        %v4647 = vmul.f32 %v4365, %v4562
        %v4648 = vmul.f32 %v4367, %v4564
        %v4649 = vmul.f32 %v4369, %v4566
        %v4650 = vmul.f32 %v4371, %v4568
        %v4651 = vmul.f32 %v4373, %v4570
        %v4652 = vmul.f32 %v4375, %v4572
        %v4653 = vmul.f32 %v4377, %v4574
        %v4654 = vmul.f32 %v4379, %v4576
        %v4655 = vmul.f32 %v4381, %v4578
        %v4656 = vmul.f32 %v4383, %v4580
        %v4657 = vmul.f32 %v4385, %v4582
        %v4658 = vmul.f32 %v4387, %v4584
        %v4659 = vmul.f32 %v4389, %v4586
        %v4660 = vmul.f32 %v4391, %v4588
        %v4661 = vmul.f32 %v4393, %v4590
        %v4662 = vmul.f32 %v4395, %v4592
        %v4663 = vmul.f32 %v4397, %v4594
        %v4664 = vmul.f32 %v4399, %v4596
        %v4665 = vmul.f32 %v4401, %v4598
        %v4666 = vmul.f32 %v4403, %v4600
        %v4667 = vmul.f32 %v4405, %v4602
        %v4668 = vmul.f32 %v4407, %v4601
        %4669 = vset.pattern.permute.xlu0 0
        %4670 = vperm.xlu0 %4669, %v970
        %v4671 = vpop.permute.xlu0 %4670
        %4672 = vset.pattern.permute.xlu0 0
        %4673 = vperm.xlu0 %4672, %v971
        %v4674 = vpop.permute.xlu0 %4673
        %4675 = vset.pattern.permute.xlu0 0
        %4676 = vperm.xlu0 %4675, %v972
        %v4677 = vpop.permute.xlu0 %4676
        %4678 = vset.pattern.permute.xlu0 0
        %4679 = vperm.xlu0 %4678, %v973
        %v4680 = vpop.permute.xlu0 %4679
        %4681 = vset.pattern.permute.xlu0 0
        %4682 = vperm.xlu0 %4681, %v974
        %v4683 = vpop.permute.xlu0 %4682
        %4684 = vset.pattern.permute.xlu0 0
        %4685 = vperm.xlu0 %4684, %v975
        %v4686 = vpop.permute.xlu0 %4685
        %4687 = vset.pattern.permute.xlu0 0
        %4688 = vperm.xlu0 %4687, %v976
        %v4689 = vpop.permute.xlu0 %4688
        %4690 = vset.pattern.permute.xlu0 0
        %4691 = vperm.xlu0 %4690, %v977
        %v4692 = vpop.permute.xlu0 %4691
        %4693 = vset.pattern.permute.xlu0 0
        %4694 = vperm.xlu0 %4693, %v978
        %v4695 = vpop.permute.xlu0 %4694
        %4696 = vset.pattern.permute.xlu0 0
        %4697 = vperm.xlu0 %4696, %v979
        %v4698 = vpop.permute.xlu0 %4697
        %4699 = vset.pattern.permute.xlu0 0
        %4700 = vperm.xlu0 %4699, %v980
        %v4701 = vpop.permute.xlu0 %4700
        %4702 = vset.pattern.permute.xlu0 0
        %4703 = vperm.xlu0 %4702, %v981
        %v4704 = vpop.permute.xlu0 %4703
        %4705 = vset.pattern.permute.xlu0 0
        %4706 = vperm.xlu0 %4705, %v982
        %v4707 = vpop.permute.xlu0 %4706
        %4708 = vset.pattern.permute.xlu0 0
        %4709 = vperm.xlu0 %4708, %v983
        %v4710 = vpop.permute.xlu0 %4709
        %4711 = vset.pattern.permute.xlu0 0
        %4712 = vperm.xlu0 %4711, %v984
        %v4713 = vpop.permute.xlu0 %4712
        %4714 = vset.pattern.permute.xlu0 0
        %4715 = vperm.xlu0 %4714, %v985
        %v4716 = vpop.permute.xlu0 %4715
        %4717 = vset.pattern.permute.xlu0 0
        %4718 = vperm.xlu0 %4717, %v986
        %v4719 = vpop.permute.xlu0 %4718
        %4720 = vset.pattern.permute.xlu0 0
        %4721 = vperm.xlu0 %4720, %v987
        %v4722 = vpop.permute.xlu0 %4721
        %4723 = vset.pattern.permute.xlu0 0
        %4724 = vperm.xlu0 %4723, %v988
        %v4725 = vpop.permute.xlu0 %4724
        %4726 = vset.pattern.permute.xlu0 0
        %4727 = vperm.xlu0 %4726, %v989
        %v4728 = vpop.permute.xlu0 %4727
        %4729 = vset.pattern.permute.xlu0 0
        %4730 = vperm.xlu0 %4729, %v990
        %v4731 = vpop.permute.xlu0 %4730
        %4732 = vset.pattern.permute.xlu0 0
        %4733 = vperm.xlu0 %4732, %v991
        %v4734 = vpop.permute.xlu0 %4733
        %4735 = vset.pattern.permute.xlu0 0
        %4736 = vperm.xlu0 %4735, %v992
        %v4737 = vpop.permute.xlu0 %4736
        %4738 = vset.pattern.permute.xlu0 0
        %4739 = vperm.xlu0 %4738, %v993
        %v4740 = vpop.permute.xlu0 %4739
        %4741 = vset.pattern.permute.xlu0 0
        %4742 = vperm.xlu0 %4741, %v994
        %v4743 = vpop.permute.xlu0 %4742
        %4744 = vset.pattern.permute.xlu0 0
        %4745 = vperm.xlu0 %4744, %v995
        %v4746 = vpop.permute.xlu0 %4745
        %4747 = vset.pattern.permute.xlu0 0
        %4748 = vperm.xlu0 %4747, %v996
        %v4749 = vpop.permute.xlu0 %4748
        %4750 = vset.pattern.permute.xlu0 0
        %4751 = vperm.xlu0 %4750, %v997
        %v4752 = vpop.permute.xlu0 %4751
        %4753 = vset.pattern.permute.xlu0 0
        %4754 = vperm.xlu0 %4753, %v998
        %v4755 = vpop.permute.xlu0 %4754
        %4756 = vset.pattern.permute.xlu0 0
        %4757 = vperm.xlu0 %4756, %v999
        %v4758 = vpop.permute.xlu0 %4757
        %4759 = vset.pattern.permute.xlu0 0
        %4760 = vperm.xlu0 %4759, %v1000
        %v4761 = vpop.permute.xlu0 %4760
        %4762 = vset.pattern.permute.xlu0 0
        %4763 = vperm.xlu0 %4762, %v1001
        %v4764 = vpop.permute.xlu0 %4763
        %v4765 = vrot.slane %v4671, 7
        %v4766 = vrot.slane %v4674, 7
        %v4767 = vsel %vm1604, %v4765, %v4766
        %v4768 = vrot.slane %v4677, 7
        %v4769 = vsel %vm1604, %v4766, %v4768
        %v4770 = vrot.slane %v4680, 7
        %v4771 = vsel %vm1604, %v4768, %v4770
        %v4772 = vrot.slane %v4683, 7
        %v4773 = vsel %vm1604, %v4770, %v4772
        %v4774 = vrot.slane %v4686, 7
        %v4775 = vsel %vm1604, %v4772, %v4774
        %v4776 = vrot.slane %v4689, 7
        %v4777 = vsel %vm1604, %v4774, %v4776
        %v4778 = vrot.slane %v4692, 7
        %v4779 = vsel %vm1604, %v4776, %v4778
        %v4780 = vrot.slane %v4695, 7
        %v4781 = vsel %vm1604, %v4778, %v4780
        %v4782 = vrot.slane %v4698, 7
        %v4783 = vsel %vm1604, %v4780, %v4782
        %v4784 = vrot.slane %v4701, 7
        %v4785 = vsel %vm1604, %v4782, %v4784
        %v4786 = vrot.slane %v4704, 7
        %v4787 = vsel %vm1604, %v4784, %v4786
        %v4788 = vrot.slane %v4707, 7
        %v4789 = vsel %vm1604, %v4786, %v4788
        %v4790 = vrot.slane %v4710, 7
        %v4791 = vsel %vm1604, %v4788, %v4790
        %v4792 = vrot.slane %v4713, 7
        %v4793 = vsel %vm1604, %v4790, %v4792
        %v4794 = vrot.slane %v4716, 7
        %v4795 = vsel %vm1604, %v4792, %v4794
        %v4796 = vrot.slane %v4719, 7
        %v4797 = vsel %vm1604, %v4794, %v4796
        %v4798 = vrot.slane %v4722, 7
        %v4799 = vsel %vm1604, %v4796, %v4798
        %v4800 = vrot.slane %v4725, 7
        %v4801 = vsel %vm1604, %v4798, %v4800
        %v4802 = vrot.slane %v4728, 7
        %v4803 = vsel %vm1604, %v4800, %v4802
        %v4804 = vrot.slane %v4731, 7
        %v4805 = vsel %vm1604, %v4802, %v4804
        %v4806 = vrot.slane %v4734, 7
        %v4807 = vsel %vm1604, %v4804, %v4806
        %v4808 = vrot.slane %v4737, 7
        %v4809 = vsel %vm1604, %v4806, %v4808
        %v4810 = vrot.slane %v4740, 7
        %v4811 = vsel %vm1604, %v4808, %v4810
        %v4812 = vrot.slane %v4743, 7
        %v4813 = vsel %vm1604, %v4810, %v4812
        %v4814 = vrot.slane %v4746, 7
        %v4815 = vsel %vm1604, %v4812, %v4814
        %v4816 = vrot.slane %v4749, 7
        %v4817 = vsel %vm1604, %v4814, %v4816
        %v4818 = vrot.slane %v4752, 7
        %v4819 = vsel %vm1604, %v4816, %v4818
        %v4820 = vrot.slane %v4755, 7
        %v4821 = vsel %vm1604, %v4818, %v4820
        %v4822 = vrot.slane %v4758, 7
        %v4823 = vsel %vm1604, %v4820, %v4822
        %v4824 = vrot.slane %v4761, 7
        %v4825 = vsel %vm1604, %v4822, %v4824
        %v4826 = vrot.slane %v4764, 7
        %v4827 = vsel %vm1604, %v4824, %v4826
        %v4861 = vmul.f32 %v4765, 0.0
        %v4862 = vmul.f32 %v4767, 0.0
        %v4863 = vmul.f32 %v4349, %v4769
        %v4864 = vmul.f32 %v4351, %v4771
        %v4865 = vmul.f32 %v4353, %v4773
        %v4866 = vmul.f32 %v4355, %v4775
        %v4867 = vmul.f32 %v4357, %v4777
        %v4868 = vmul.f32 %v4359, %v4779
        %v4869 = vmul.f32 %v4361, %v4781
        %v4870 = vmul.f32 %v4363, %v4783
        %v4871 = vmul.f32 %v4365, %v4785
        %v4872 = vmul.f32 %v4367, %v4787
        %v4873 = vmul.f32 %v4369, %v4789
        %v4874 = vmul.f32 %v4371, %v4791
        %v4875 = vmul.f32 %v4373, %v4793
        %v4876 = vmul.f32 %v4375, %v4795
        %v4877 = vmul.f32 %v4377, %v4797
        %v4878 = vmul.f32 %v4379, %v4799
        %v4879 = vmul.f32 %v4381, %v4801
        %v4880 = vmul.f32 %v4383, %v4803
        %v4881 = vmul.f32 %v4385, %v4805
        %v4882 = vmul.f32 %v4387, %v4807
        %v4883 = vmul.f32 %v4389, %v4809
        %v4884 = vmul.f32 %v4391, %v4811
        %v4885 = vmul.f32 %v4393, %v4813
        %v4886 = vmul.f32 %v4395, %v4815
        %v4887 = vmul.f32 %v4397, %v4817
        %v4888 = vmul.f32 %v4399, %v4819
        %v4889 = vmul.f32 %v4401, %v4821
        %v4890 = vmul.f32 %v4403, %v4823
        %v4891 = vmul.f32 %v4405, %v4825
        %v4892 = vmul.f32 %v4407, %v4827
        %v4893 = vmul.f32 %v4409, %v4826
        %v4894 = vmul.f32 %v4349, %v4542
        %v4895 = vmul.f32 %v4351, %v4544
        %v4896 = vmul.f32 %v4353, %v4546
        %v4897 = vmul.f32 %v4355, %v4548
        %v4898 = vmul.f32 %v4357, %v4550
        %v4899 = vmul.f32 %v4359, %v4552
        %v4900 = vmul.f32 %v4361, %v4554
        %v4901 = vmul.f32 %v4363, %v4556
        %v4902 = vmul.f32 %v4365, %v4558
        %v4903 = vmul.f32 %v4367, %v4560
        %v4904 = vmul.f32 %v4369, %v4562
        %v4905 = vmul.f32 %v4371, %v4564
        %v4906 = vmul.f32 %v4373, %v4566
        %v4907 = vmul.f32 %v4375, %v4568
        %v4908 = vmul.f32 %v4377, %v4570
        %v4909 = vmul.f32 %v4379, %v4572
        %v4910 = vmul.f32 %v4381, %v4574
        %v4911 = vmul.f32 %v4383, %v4576
        %v4912 = vmul.f32 %v4385, %v4578
        %v4913 = vmul.f32 %v4387, %v4580
        %v4914 = vmul.f32 %v4389, %v4582
        %v4915 = vmul.f32 %v4391, %v4584
        %v4916 = vmul.f32 %v4393, %v4586
        %v4917 = vmul.f32 %v4395, %v4588
        %v4918 = vmul.f32 %v4397, %v4590
        %v4919 = vmul.f32 %v4399, %v4592
        %v4920 = vmul.f32 %v4401, %v4594
        %v4921 = vmul.f32 %v4403, %v4596
        %v4922 = vmul.f32 %v4405, %v4598
        %v4923 = vmul.f32 %v4407, %v4600
        %v4924 = vmul.f32 %v4409, %v4602
        %v4925 = vmul.f32 %v4411, %v4601
        %v4926 = vmul.f32 %v4349, %v4765
        %v4927 = vmul.f32 %v4351, %v4767
        %v4928 = vmul.f32 %v4353, %v4769
        %v4929 = vmul.f32 %v4355, %v4771
        %v4930 = vmul.f32 %v4357, %v4773
        %v4931 = vmul.f32 %v4359, %v4775
        %v4932 = vmul.f32 %v4361, %v4777
        %v4933 = vmul.f32 %v4363, %v4779
        %v4934 = vmul.f32 %v4365, %v4781
        %v4935 = vmul.f32 %v4367, %v4783
        %v4936 = vmul.f32 %v4369, %v4785
        %v4937 = vmul.f32 %v4371, %v4787
        %v4938 = vmul.f32 %v4373, %v4789
        %v4939 = vmul.f32 %v4375, %v4791
        %v4940 = vmul.f32 %v4377, %v4793
        %v4941 = vmul.f32 %v4379, %v4795
        %v4942 = vmul.f32 %v4381, %v4797
        %v4943 = vmul.f32 %v4383, %v4799
        %v4944 = vmul.f32 %v4385, %v4801
        %v4945 = vmul.f32 %v4387, %v4803
        %v4946 = vmul.f32 %v4389, %v4805
        %v4947 = vmul.f32 %v4391, %v4807
        %v4948 = vmul.f32 %v4393, %v4809
        %v4949 = vmul.f32 %v4395, %v4811
        %v4950 = vmul.f32 %v4397, %v4813
        %v4951 = vmul.f32 %v4399, %v4815
        %v4952 = vmul.f32 %v4401, %v4817
        %v4953 = vmul.f32 %v4403, %v4819
        %v4954 = vmul.f32 %v4405, %v4821
        %v4955 = vmul.f32 %v4407, %v4823
        %v4956 = vmul.f32 %v4409, %v4825
        %v4957 = vmul.f32 %v4411, %v4827
        %v4958 = vmul.f32 %v4826, 0.0
        %v4959 = vmul.f32 %v4351, %v4540
        %v4960 = vmul.f32 %v4353, %v4542
        %v4961 = vmul.f32 %v4355, %v4544
        %v4962 = vmul.f32 %v4357, %v4546
        %v4963 = vmul.f32 %v4359, %v4548
        %v4964 = vmul.f32 %v4361, %v4550
        %v4965 = vmul.f32 %v4363, %v4552
        %v4966 = vmul.f32 %v4365, %v4554
        %v4967 = vmul.f32 %v4367, %v4556
        %v4968 = vmul.f32 %v4369, %v4558
        %v4969 = vmul.f32 %v4371, %v4560
        %v4970 = vmul.f32 %v4373, %v4562
        %v4971 = vmul.f32 %v4375, %v4564
        %v4972 = vmul.f32 %v4377, %v4566
        %v4973 = vmul.f32 %v4379, %v4568
        %v4974 = vmul.f32 %v4381, %v4570
        %v4975 = vmul.f32 %v4383, %v4572
        %v4976 = vmul.f32 %v4385, %v4574
        %v4977 = vmul.f32 %v4387, %v4576
        %v4978 = vmul.f32 %v4389, %v4578
        %v4979 = vmul.f32 %v4391, %v4580
        %v4980 = vmul.f32 %v4393, %v4582
        %v4981 = vmul.f32 %v4395, %v4584
        %v4982 = vmul.f32 %v4397, %v4586
        %v4983 = vmul.f32 %v4399, %v4588
        %v4984 = vmul.f32 %v4401, %v4590
        %v4985 = vmul.f32 %v4403, %v4592
        %v4986 = vmul.f32 %v4405, %v4594
        %v4987 = vmul.f32 %v4407, %v4596
        %v4988 = vmul.f32 %v4409, %v4598
        %v4989 = vmul.f32 %v4411, %v4600
        %v4990 = vmul.f32 %v4602, 0.0
        %v4991 = vmul.f32 %v4601, 0.0
        %v4992 = vmul.f32 %v4353, %v4765
        %v4993 = vmul.f32 %v4355, %v4767
        %v4994 = vmul.f32 %v4357, %v4769
        %v4995 = vmul.f32 %v4359, %v4771
        %v4996 = vmul.f32 %v4361, %v4773
        %v4997 = vmul.f32 %v4363, %v4775
        %v4998 = vmul.f32 %v4365, %v4777
        %v4999 = vmul.f32 %v4367, %v4779
        %v5000 = vmul.f32 %v4369, %v4781
        %v5001 = vmul.f32 %v4371, %v4783
        %v5002 = vmul.f32 %v4373, %v4785
        %v5003 = vmul.f32 %v4375, %v4787
        %v5004 = vmul.f32 %v4377, %v4789
        %v5005 = vmul.f32 %v4379, %v4791
        %v5006 = vmul.f32 %v4381, %v4793
        %v5007 = vmul.f32 %v4383, %v4795
        %v5008 = vmul.f32 %v4385, %v4797
        %v5009 = vmul.f32 %v4387, %v4799
        %v5010 = vmul.f32 %v4389, %v4801
        %v5011 = vmul.f32 %v4391, %v4803
        %v5012 = vmul.f32 %v4393, %v4805
        %v5013 = vmul.f32 %v4395, %v4807
        %v5014 = vmul.f32 %v4397, %v4809
        %v5015 = vmul.f32 %v4399, %v4811
        %v5016 = vmul.f32 %v4401, %v4813
        %v5017 = vmul.f32 %v4403, %v4815
        %v5018 = vmul.f32 %v4405, %v4817
        %v5019 = vmul.f32 %v4407, %v4819
        %v5020 = vmul.f32 %v4409, %v4821
        %v5021 = vmul.f32 %v4411, %v4823
        %v5022 = vmul.f32 %v4825, 0.0
        %v5023 = vmul.f32 %v4827, 0.0
        %v5024 = vrot.slane 0.0, 1
        %v5025 = vsel %vm1050, %v5024, %v5024
        %v5026 = vrot.slane %v4349, 1
        %v5027 = vsel %vm1050, %v5024, %v5026
        %v5028 = vrot.slane %v4351, 1
        %v5029 = vsel %vm1050, %v5026, %v5028
        %v5030 = vrot.slane %v4353, 1
        %v5031 = vsel %vm1050, %v5028, %v5030
        %v5032 = vrot.slane %v4355, 1
        %v5033 = vsel %vm1050, %v5030, %v5032
        %v5034 = vrot.slane %v4357, 1
        %v5035 = vsel %vm1050, %v5032, %v5034
        %v5036 = vrot.slane %v4359, 1
        %v5037 = vsel %vm1050, %v5034, %v5036
        %v5038 = vrot.slane %v4361, 1
        %v5039 = vsel %vm1050, %v5036, %v5038
        %v5040 = vrot.slane %v4363, 1
        %v5041 = vsel %vm1050, %v5038, %v5040
        %v5042 = vrot.slane %v4365, 1
        %v5043 = vsel %vm1050, %v5040, %v5042
        %v5044 = vrot.slane %v4367, 1
        %v5045 = vsel %vm1050, %v5042, %v5044
        %v5046 = vrot.slane %v4369, 1
        %v5047 = vsel %vm1050, %v5044, %v5046
        %v5048 = vrot.slane %v4371, 1
        %v5049 = vsel %vm1050, %v5046, %v5048
        %v5050 = vrot.slane %v4373, 1
        %v5051 = vsel %vm1050, %v5048, %v5050
        %v5052 = vrot.slane %v4375, 1
        %v5053 = vsel %vm1050, %v5050, %v5052
        %v5054 = vrot.slane %v4377, 1
        %v5055 = vsel %vm1050, %v5052, %v5054
        %v5056 = vrot.slane %v4379, 1
        %v5057 = vsel %vm1050, %v5054, %v5056
        %v5058 = vrot.slane %v4381, 1
        %v5059 = vsel %vm1050, %v5056, %v5058
        %v5060 = vrot.slane %v4383, 1
        %v5061 = vsel %vm1050, %v5058, %v5060
        %v5062 = vrot.slane %v4385, 1
        %v5063 = vsel %vm1050, %v5060, %v5062
        %v5064 = vrot.slane %v4387, 1
        %v5065 = vsel %vm1050, %v5062, %v5064
        %v5066 = vrot.slane %v4389, 1
        %v5067 = vsel %vm1050, %v5064, %v5066
        %v5068 = vrot.slane %v4391, 1
        %v5069 = vsel %vm1050, %v5066, %v5068
        %v5070 = vrot.slane %v4393, 1
        %v5071 = vsel %vm1050, %v5068, %v5070
        %v5072 = vrot.slane %v4395, 1
        %v5073 = vsel %vm1050, %v5070, %v5072
        %v5074 = vrot.slane %v4397, 1
        %v5075 = vsel %vm1050, %v5072, %v5074
        %v5076 = vrot.slane %v4399, 1
        %v5077 = vsel %vm1050, %v5074, %v5076
        %v5078 = vrot.slane %v4401, 1
        %v5079 = vsel %vm1050, %v5076, %v5078
        %v5080 = vrot.slane %v4403, 1
        %v5081 = vsel %vm1050, %v5078, %v5080
        %v5082 = vrot.slane %v4405, 1
        %v5083 = vsel %vm1050, %v5080, %v5082
        %v5084 = vrot.slane %v4407, 1
        %v5085 = vsel %vm1050, %v5082, %v5084
        %v5119 = vmax.f32 %v4636, %v5024
        %v5120 = vmax.f32 %v4637, %v5025
        %v5121 = vmax.f32 %v4638, %v5027
        %v5122 = vmax.f32 %v4639, %v5029
        %v5123 = vmax.f32 %v4640, %v5031
        %v5124 = vmax.f32 %v4641, %v5033
        %v5125 = vmax.f32 %v4642, %v5035
        %v5126 = vmax.f32 %v4643, %v5037
        %v5127 = vmax.f32 %v4644, %v5039
        %v5128 = vmax.f32 %v4645, %v5041
        %v5129 = vmax.f32 %v4646, %v5043
        %v5130 = vmax.f32 %v4647, %v5045
        %v5131 = vmax.f32 %v4648, %v5047
        %v5132 = vmax.f32 %v4649, %v5049
        %v5133 = vmax.f32 %v4650, %v5051
        %v5134 = vmax.f32 %v4651, %v5053
        %v5135 = vmax.f32 %v4652, %v5055
        %v5136 = vmax.f32 %v4653, %v5057
        %v5137 = vmax.f32 %v4654, %v5059
        %v5138 = vmax.f32 %v4655, %v5061
        %v5139 = vmax.f32 %v4656, %v5063
        %v5140 = vmax.f32 %v4657, %v5065
        %v5141 = vmax.f32 %v4658, %v5067
        %v5142 = vmax.f32 %v4659, %v5069
        %v5143 = vmax.f32 %v4660, %v5071
        %v5144 = vmax.f32 %v4661, %v5073
        %v5145 = vmax.f32 %v4662, %v5075
        %v5146 = vmax.f32 %v4663, %v5077
        %v5147 = vmax.f32 %v4664, %v5079
        %v5148 = vmax.f32 %v4665, %v5081
        %v5149 = vmax.f32 %v4666, %v5083
        %v5150 = vmax.f32 %v4667, %v5085
        %v5151 = vmax.f32 %v4668, %v5084
        %v5185 = vrot.slane %v4636, 6
        %v5186 = vrot.slane %v4894, 6
        %v5187 = vsel %vm3137, %v5185, %v5186
        %v5188 = vrot.slane %v4895, 6
        %v5189 = vsel %vm3137, %v5186, %v5188
        %v5190 = vrot.slane %v4896, 6
        %v5191 = vsel %vm3137, %v5188, %v5190
        %v5192 = vrot.slane %v4897, 6
        %v5193 = vsel %vm3137, %v5190, %v5192
        %v5194 = vrot.slane %v4898, 6
        %v5195 = vsel %vm3137, %v5192, %v5194
        %v5196 = vrot.slane %v4899, 6
        %v5197 = vsel %vm3137, %v5194, %v5196
        %v5198 = vrot.slane %v4900, 6
        %v5199 = vsel %vm3137, %v5196, %v5198
        %v5200 = vrot.slane %v4901, 6
        %v5201 = vsel %vm3137, %v5198, %v5200
        %v5202 = vrot.slane %v4902, 6
        %v5203 = vsel %vm3137, %v5200, %v5202
        %v5204 = vrot.slane %v4903, 6
        %v5205 = vsel %vm3137, %v5202, %v5204
        %v5206 = vrot.slane %v4904, 6
        %v5207 = vsel %vm3137, %v5204, %v5206
        %v5208 = vrot.slane %v4905, 6
        %v5209 = vsel %vm3137, %v5206, %v5208
        %v5210 = vrot.slane %v4906, 6
        %v5211 = vsel %vm3137, %v5208, %v5210
        %v5212 = vrot.slane %v4907, 6
        %v5213 = vsel %vm3137, %v5210, %v5212
        %v5214 = vrot.slane %v4908, 6
        %v5215 = vsel %vm3137, %v5212, %v5214
        %v5216 = vrot.slane %v4909, 6
        %v5217 = vsel %vm3137, %v5214, %v5216
        %v5218 = vrot.slane %v4910, 6
        %v5219 = vsel %vm3137, %v5216, %v5218
        %v5220 = vrot.slane %v4911, 6
        %v5221 = vsel %vm3137, %v5218, %v5220
        %v5222 = vrot.slane %v4912, 6
        %v5223 = vsel %vm3137, %v5220, %v5222
        %v5224 = vrot.slane %v4913, 6
        %v5225 = vsel %vm3137, %v5222, %v5224
        %v5226 = vrot.slane %v4914, 6
        %v5227 = vsel %vm3137, %v5224, %v5226
        %v5228 = vrot.slane %v4915, 6
        %v5229 = vsel %vm3137, %v5226, %v5228
        %v5230 = vrot.slane %v4916, 6
        %v5231 = vsel %vm3137, %v5228, %v5230
        %v5232 = vrot.slane %v4917, 6
        %v5233 = vsel %vm3137, %v5230, %v5232
        %v5234 = vrot.slane %v4918, 6
        %v5235 = vsel %vm3137, %v5232, %v5234
        %v5236 = vrot.slane %v4919, 6
        %v5237 = vsel %vm3137, %v5234, %v5236
        %v5238 = vrot.slane %v4920, 6
        %v5239 = vsel %vm3137, %v5236, %v5238
        %v5240 = vrot.slane %v4921, 6
        %v5241 = vsel %vm3137, %v5238, %v5240
        %v5242 = vrot.slane %v4922, 6
        %v5243 = vsel %vm3137, %v5240, %v5242
        %v5244 = vrot.slane %v4923, 6
        %v5245 = vsel %vm3137, %v5242, %v5244
        %v5246 = vrot.slane %v4924, 6
        %v5247 = vsel %vm3137, %v5244, %v5246
        %v5248 = vrot.slane %v4925, 6
        %v5249 = vsel %vm3137, %v5246, %v5248
        %v5283 = vmax.f32 %v4861, %v5187
        %v5284 = vmax.f32 %v4862, %v5189
        %v5285 = vmax.f32 %v4863, %v5191
        %v5286 = vmax.f32 %v4864, %v5193
        %v5287 = vmax.f32 %v4865, %v5195
        %v5288 = vmax.f32 %v4866, %v5197
        %v5289 = vmax.f32 %v4867, %v5199
        %v5290 = vmax.f32 %v4868, %v5201
        %v5291 = vmax.f32 %v4869, %v5203
        %v5292 = vmax.f32 %v4870, %v5205
        %v5293 = vmax.f32 %v4871, %v5207
        %v5294 = vmax.f32 %v4872, %v5209
        %v5295 = vmax.f32 %v4873, %v5211
        %v5296 = vmax.f32 %v4874, %v5213
        %v5297 = vmax.f32 %v4875, %v5215
        %v5298 = vmax.f32 %v4876, %v5217
        %v5299 = vmax.f32 %v4877, %v5219
        %v5300 = vmax.f32 %v4878, %v5221
        %v5301 = vmax.f32 %v4879, %v5223
        %v5302 = vmax.f32 %v4880, %v5225
        %v5303 = vmax.f32 %v4881, %v5227
        %v5304 = vmax.f32 %v4882, %v5229
        %v5305 = vmax.f32 %v4883, %v5231
        %v5306 = vmax.f32 %v4884, %v5233
        %v5307 = vmax.f32 %v4885, %v5235
        %v5308 = vmax.f32 %v4886, %v5237
        %v5309 = vmax.f32 %v4887, %v5239
        %v5310 = vmax.f32 %v4888, %v5241
        %v5311 = vmax.f32 %v4889, %v5243
        %v5312 = vmax.f32 %v4890, %v5245
        %v5313 = vmax.f32 %v4891, %v5247
        %v5314 = vmax.f32 %v4892, %v5249
        %v5315 = vmax.f32 %v4893, %v5248
        %v5349 = vrot.slane %v4926, 1
        %v5350 = vrot.slane %v4927, 1
        %v5351 = vsel %vm1050, %v5349, %v5350
        %v5352 = vrot.slane %v4928, 1
        %v5353 = vsel %vm1050, %v5350, %v5352
        %v5354 = vrot.slane %v4929, 1
        %v5355 = vsel %vm1050, %v5352, %v5354
        %v5356 = vrot.slane %v4930, 1
        %v5357 = vsel %vm1050, %v5354, %v5356
        %v5358 = vrot.slane %v4931, 1
        %v5359 = vsel %vm1050, %v5356, %v5358
        %v5360 = vrot.slane %v4932, 1
        %v5361 = vsel %vm1050, %v5358, %v5360
        %v5362 = vrot.slane %v4933, 1
        %v5363 = vsel %vm1050, %v5360, %v5362
        %v5364 = vrot.slane %v4934, 1
        %v5365 = vsel %vm1050, %v5362, %v5364
        %v5366 = vrot.slane %v4935, 1
        %v5367 = vsel %vm1050, %v5364, %v5366
        %v5368 = vrot.slane %v4936, 1
        %v5369 = vsel %vm1050, %v5366, %v5368
        %v5370 = vrot.slane %v4937, 1
        %v5371 = vsel %vm1050, %v5368, %v5370
        %v5372 = vrot.slane %v4938, 1
        %v5373 = vsel %vm1050, %v5370, %v5372
        %v5374 = vrot.slane %v4939, 1
        %v5375 = vsel %vm1050, %v5372, %v5374
        %v5376 = vrot.slane %v4940, 1
        %v5377 = vsel %vm1050, %v5374, %v5376
        %v5378 = vrot.slane %v4941, 1
        %v5379 = vsel %vm1050, %v5376, %v5378
        %v5380 = vrot.slane %v4942, 1
        %v5381 = vsel %vm1050, %v5378, %v5380
        %v5382 = vrot.slane %v4943, 1
        %v5383 = vsel %vm1050, %v5380, %v5382
        %v5384 = vrot.slane %v4944, 1
        %v5385 = vsel %vm1050, %v5382, %v5384
        %v5386 = vrot.slane %v4945, 1
        %v5387 = vsel %vm1050, %v5384, %v5386
        %v5388 = vrot.slane %v4946, 1
        %v5389 = vsel %vm1050, %v5386, %v5388
        %v5390 = vrot.slane %v4947, 1
        %v5391 = vsel %vm1050, %v5388, %v5390
        %v5392 = vrot.slane %v4948, 1
        %v5393 = vsel %vm1050, %v5390, %v5392
        %v5394 = vrot.slane %v4949, 1
        %v5395 = vsel %vm1050, %v5392, %v5394
        %v5396 = vrot.slane %v4950, 1
        %v5397 = vsel %vm1050, %v5394, %v5396
        %v5398 = vrot.slane %v4951, 1
        %v5399 = vsel %vm1050, %v5396, %v5398
        %v5400 = vrot.slane %v4952, 1
        %v5401 = vsel %vm1050, %v5398, %v5400
        %v5402 = vrot.slane %v4953, 1
        %v5403 = vsel %vm1050, %v5400, %v5402
        %v5404 = vrot.slane %v4954, 1
        %v5405 = vsel %vm1050, %v5402, %v5404
        %v5406 = vrot.slane %v4955, 1
        %v5407 = vsel %vm1050, %v5404, %v5406
        %v5408 = vrot.slane %v4956, 1
        %v5409 = vsel %vm1050, %v5406, %v5408
        %v5410 = vrot.slane %v4957, 1
        %v5411 = vsel %vm1050, %v5408, %v5410
        %v5412 = vrot.slane %v4958, 1
        %v5413 = vsel %vm1050, %v5410, %v5412
        %v5446 = vmax.f32 %v4349, %v5351
        %v5447 = vmax.f32 %v4351, %v5353
        %v5448 = vmax.f32 %v4353, %v5355
        %v5449 = vmax.f32 %v4355, %v5357
        %v5450 = vmax.f32 %v4357, %v5359
        %v5451 = vmax.f32 %v4359, %v5361
        %v5452 = vmax.f32 %v4361, %v5363
        %v5453 = vmax.f32 %v4363, %v5365
        %v5454 = vmax.f32 %v4365, %v5367
        %v5455 = vmax.f32 %v4367, %v5369
        %v5456 = vmax.f32 %v4369, %v5371
        %v5457 = vmax.f32 %v4371, %v5373
        %v5458 = vmax.f32 %v4373, %v5375
        %v5459 = vmax.f32 %v4375, %v5377
        %v5460 = vmax.f32 %v4377, %v5379
        %v5461 = vmax.f32 %v4379, %v5381
        %v5462 = vmax.f32 %v4381, %v5383
        %v5463 = vmax.f32 %v4383, %v5385
        %v5464 = vmax.f32 %v4385, %v5387
        %v5465 = vmax.f32 %v4387, %v5389
        %v5466 = vmax.f32 %v4389, %v5391
        %v5467 = vmax.f32 %v4391, %v5393
        %v5468 = vmax.f32 %v4393, %v5395
        %v5469 = vmax.f32 %v4395, %v5397
        %v5470 = vmax.f32 %v4397, %v5399
        %v5471 = vmax.f32 %v4399, %v5401
        %v5472 = vmax.f32 %v4401, %v5403
        %v5473 = vmax.f32 %v4403, %v5405
        %v5474 = vmax.f32 %v4405, %v5407
        %v5475 = vmax.f32 %v4407, %v5409
        %v5476 = vmax.f32 %v4409, %v5411
        %v5477 = vmax.f32 %v4411, %v5413
        %v5478 = vrot.slane %v4409, 1
        %v5479 = vsel %vm1050, %v5084, %v5478
        %v5480 = vrot.slane %v4411, 1
        %v5481 = vsel %vm1050, %v5478, %v5480
        %v5482 = vsel %vm1050, %v5480, %v5024
        %v5487 = vmax.f32 %v4959, %v5030
        %v5488 = vmax.f32 %v4960, %v5033
        %v5489 = vmax.f32 %v4961, %v5035
        %v5490 = vmax.f32 %v4962, %v5037
        %v5491 = vmax.f32 %v4963, %v5039
        %v5492 = vmax.f32 %v4964, %v5041
        %v5493 = vmax.f32 %v4965, %v5043
        %v5494 = vmax.f32 %v4966, %v5045
        %v5495 = vmax.f32 %v4967, %v5047
        %v5496 = vmax.f32 %v4968, %v5049
        %v5497 = vmax.f32 %v4969, %v5051
        %v5498 = vmax.f32 %v4970, %v5053
        %v5499 = vmax.f32 %v4971, %v5055
        %v5500 = vmax.f32 %v4972, %v5057
        %v5501 = vmax.f32 %v4973, %v5059
        %v5502 = vmax.f32 %v4974, %v5061
        %v5503 = vmax.f32 %v4975, %v5063
        %v5504 = vmax.f32 %v4976, %v5065
        %v5505 = vmax.f32 %v4977, %v5067
        %v5506 = vmax.f32 %v4978, %v5069
        %v5507 = vmax.f32 %v4979, %v5071
        %v5508 = vmax.f32 %v4980, %v5073
        %v5509 = vmax.f32 %v4981, %v5075
        %v5510 = vmax.f32 %v4982, %v5077
        %v5511 = vmax.f32 %v4983, %v5079
        %v5512 = vmax.f32 %v4984, %v5081
        %v5513 = vmax.f32 %v4985, %v5083
        %v5514 = vmax.f32 %v4986, %v5085
        %v5515 = vmax.f32 %v4987, %v5479
        %v5516 = vmax.f32 %v4988, %v5481
        %v5517 = vmax.f32 %v4989, %v5482
        %v5518 = vmax.f32 %v4990, %v5025
        %v5519 = vmax.f32 %v4991, %v5024
        %v5553 = vrot.slane %v5283, 2
        %v5554 = vrot.slane %v5284, 2
        %v5555 = vsel %vm3623, %v5553, %v5554
        %v5556 = vrot.slane %v5285, 2
        %v5557 = vsel %vm3623, %v5554, %v5556
        %v5558 = vrot.slane %v5286, 2
        %v5559 = vsel %vm3623, %v5556, %v5558
        %v5560 = vrot.slane %v5287, 2
        %v5561 = vsel %vm3623, %v5558, %v5560
        %v5562 = vrot.slane %v5288, 2
        %v5563 = vsel %vm3623, %v5560, %v5562
        %v5564 = vrot.slane %v5289, 2
        %v5565 = vsel %vm3623, %v5562, %v5564
        %v5566 = vrot.slane %v5290, 2
        %v5567 = vsel %vm3623, %v5564, %v5566
        %v5568 = vrot.slane %v5291, 2
        %v5569 = vsel %vm3623, %v5566, %v5568
        %v5570 = vrot.slane %v5292, 2
        %v5571 = vsel %vm3623, %v5568, %v5570
        %v5572 = vrot.slane %v5293, 2
        %v5573 = vsel %vm3623, %v5570, %v5572
        %v5574 = vrot.slane %v5294, 2
        %v5575 = vsel %vm3623, %v5572, %v5574
        %v5576 = vrot.slane %v5295, 2
        %v5577 = vsel %vm3623, %v5574, %v5576
        %v5578 = vrot.slane %v5296, 2
        %v5579 = vsel %vm3623, %v5576, %v5578
        %v5580 = vrot.slane %v5297, 2
        %v5581 = vsel %vm3623, %v5578, %v5580
        %v5582 = vrot.slane %v5298, 2
        %v5583 = vsel %vm3623, %v5580, %v5582
        %v5584 = vrot.slane %v5299, 2
        %v5585 = vsel %vm3623, %v5582, %v5584
        %v5586 = vrot.slane %v5300, 2
        %v5587 = vsel %vm3623, %v5584, %v5586
        %v5588 = vrot.slane %v5301, 2
        %v5589 = vsel %vm3623, %v5586, %v5588
        %v5590 = vrot.slane %v5302, 2
        %v5591 = vsel %vm3623, %v5588, %v5590
        %v5592 = vrot.slane %v5303, 2
        %v5593 = vsel %vm3623, %v5590, %v5592
        %v5594 = vrot.slane %v5304, 2
        %v5595 = vsel %vm3623, %v5592, %v5594
        %v5596 = vrot.slane %v5305, 2
        %v5597 = vsel %vm3623, %v5594, %v5596
        %v5598 = vrot.slane %v5306, 2
        %v5599 = vsel %vm3623, %v5596, %v5598
        %v5600 = vrot.slane %v5307, 2
        %v5601 = vsel %vm3623, %v5598, %v5600
        %v5602 = vrot.slane %v5308, 2
        %v5603 = vsel %vm3623, %v5600, %v5602
        %v5604 = vrot.slane %v5309, 2
        %v5605 = vsel %vm3623, %v5602, %v5604
        %v5606 = vrot.slane %v5310, 2
        %v5607 = vsel %vm3623, %v5604, %v5606
        %v5608 = vrot.slane %v5311, 2
        %v5609 = vsel %vm3623, %v5606, %v5608
        %v5610 = vrot.slane %v5312, 2
        %v5611 = vsel %vm3623, %v5608, %v5610
        %v5612 = vrot.slane %v5313, 2
        %v5613 = vsel %vm3623, %v5610, %v5612
        %v5614 = vrot.slane %v5314, 2
        %v5615 = vsel %vm3623, %v5612, %v5614
        %v5616 = vrot.slane %v5315, 2
        %v5617 = vsel %vm3623, %v5614, %v5616
        %v5651 = vmax.f32 %v5119, %v5553
        %v5652 = vmax.f32 %v5120, %v5555
        %v5653 = vmax.f32 %v5121, %v5557
        %v5654 = vmax.f32 %v5122, %v5559
        %v5655 = vmax.f32 %v5123, %v5561
        %v5656 = vmax.f32 %v5124, %v5563
        %v5657 = vmax.f32 %v5125, %v5565
        %v5658 = vmax.f32 %v5126, %v5567
        %v5659 = vmax.f32 %v5127, %v5569
        %v5660 = vmax.f32 %v5128, %v5571
        %v5661 = vmax.f32 %v5129, %v5573
        %v5662 = vmax.f32 %v5130, %v5575
        %v5663 = vmax.f32 %v5131, %v5577
        %v5664 = vmax.f32 %v5132, %v5579
        %v5665 = vmax.f32 %v5133, %v5581
        %v5666 = vmax.f32 %v5134, %v5583
        %v5667 = vmax.f32 %v5135, %v5585
        %v5668 = vmax.f32 %v5136, %v5587
        %v5669 = vmax.f32 %v5137, %v5589
        %v5670 = vmax.f32 %v5138, %v5591
        %v5671 = vmax.f32 %v5139, %v5593
        %v5672 = vmax.f32 %v5140, %v5595
        %v5673 = vmax.f32 %v5141, %v5597
        %v5674 = vmax.f32 %v5142, %v5599
        %v5675 = vmax.f32 %v5143, %v5601
        %v5676 = vmax.f32 %v5144, %v5603
        %v5677 = vmax.f32 %v5145, %v5605
        %v5678 = vmax.f32 %v5146, %v5607
        %v5679 = vmax.f32 %v5147, %v5609
        %v5680 = vmax.f32 %v5148, %v5611
        %v5681 = vmax.f32 %v5149, %v5613
        %v5682 = vmax.f32 %v5150, %v5615
        %v5683 = vmax.f32 %v5151, %v5617
        %v5717 = vrot.slane %v5487, 7
        %v5718 = vrot.slane %v5488, 7
        %v5719 = vsel %vm1604, %v5717, %v5718
        %v5720 = vrot.slane %v5489, 7
        %v5721 = vsel %vm1604, %v5718, %v5720
        %v5722 = vrot.slane %v5490, 7
        %v5723 = vsel %vm1604, %v5720, %v5722
        %v5724 = vrot.slane %v5491, 7
        %v5725 = vsel %vm1604, %v5722, %v5724
        %v5726 = vrot.slane %v5492, 7
        %v5727 = vsel %vm1604, %v5724, %v5726
        %v5728 = vrot.slane %v5493, 7
        %v5729 = vsel %vm1604, %v5726, %v5728
        %v5730 = vrot.slane %v5494, 7
        %v5731 = vsel %vm1604, %v5728, %v5730
        %v5732 = vrot.slane %v5495, 7
        %v5733 = vsel %vm1604, %v5730, %v5732
        %v5734 = vrot.slane %v5496, 7
        %v5735 = vsel %vm1604, %v5732, %v5734
        %v5736 = vrot.slane %v5497, 7
        %v5737 = vsel %vm1604, %v5734, %v5736
        %v5738 = vrot.slane %v5498, 7
        %v5739 = vsel %vm1604, %v5736, %v5738
        %v5740 = vrot.slane %v5499, 7
        %v5741 = vsel %vm1604, %v5738, %v5740
        %v5742 = vrot.slane %v5500, 7
        %v5743 = vsel %vm1604, %v5740, %v5742
        %v5744 = vrot.slane %v5501, 7
        %v5745 = vsel %vm1604, %v5742, %v5744
        %v5746 = vrot.slane %v5502, 7
        %v5747 = vsel %vm1604, %v5744, %v5746
        %v5748 = vrot.slane %v5503, 7
        %v5749 = vsel %vm1604, %v5746, %v5748
        %v5750 = vrot.slane %v5504, 7
        %v5751 = vsel %vm1604, %v5748, %v5750
        %v5752 = vrot.slane %v5505, 7
        %v5753 = vsel %vm1604, %v5750, %v5752
        %v5754 = vrot.slane %v5506, 7
        %v5755 = vsel %vm1604, %v5752, %v5754
        %v5756 = vrot.slane %v5507, 7
        %v5757 = vsel %vm1604, %v5754, %v5756
        %v5758 = vrot.slane %v5508, 7
        %v5759 = vsel %vm1604, %v5756, %v5758
        %v5760 = vrot.slane %v5509, 7
        %v5761 = vsel %vm1604, %v5758, %v5760
        %v5762 = vrot.slane %v5510, 7
        %v5763 = vsel %vm1604, %v5760, %v5762
        %v5764 = vrot.slane %v5511, 7
        %v5765 = vsel %vm1604, %v5762, %v5764
        %v5766 = vrot.slane %v5512, 7
        %v5767 = vsel %vm1604, %v5764, %v5766
        %v5768 = vrot.slane %v5513, 7
        %v5769 = vsel %vm1604, %v5766, %v5768
        %v5770 = vrot.slane %v5514, 7
        %v5771 = vsel %vm1604, %v5768, %v5770
        %v5772 = vrot.slane %v5515, 7
        %v5773 = vsel %vm1604, %v5770, %v5772
        %v5774 = vrot.slane %v5516, 7
        %v5775 = vsel %vm1604, %v5772, %v5774
        %v5776 = vrot.slane %v5517, 7
        %v5777 = vsel %vm1604, %v5774, %v5776
        %v5778 = vrot.slane %v5518, 7
        %v5779 = vsel %vm1604, %v5776, %v5778
        %v5780 = vrot.slane %v5519, 7
        %v5781 = vsel %vm1604, %v5778, %v5780
        %v5814 = vmax.f32 %v5446, %v5719
        %v5815 = vmax.f32 %v5447, %v5721
        %v5816 = vmax.f32 %v5448, %v5723
        %v5817 = vmax.f32 %v5449, %v5725
        %v5818 = vmax.f32 %v5450, %v5727
        %v5819 = vmax.f32 %v5451, %v5729
        %v5820 = vmax.f32 %v5452, %v5731
        %v5821 = vmax.f32 %v5453, %v5733
        %v5822 = vmax.f32 %v5454, %v5735
        %v5823 = vmax.f32 %v5455, %v5737
        %v5824 = vmax.f32 %v5456, %v5739
        %v5825 = vmax.f32 %v5457, %v5741
        %v5826 = vmax.f32 %v5458, %v5743
        %v5827 = vmax.f32 %v5459, %v5745
        %v5828 = vmax.f32 %v5460, %v5747
        %v5829 = vmax.f32 %v5461, %v5749
        %v5830 = vmax.f32 %v5462, %v5751
        %v5831 = vmax.f32 %v5463, %v5753
        %v5832 = vmax.f32 %v5464, %v5755
        %v5833 = vmax.f32 %v5465, %v5757
        %v5834 = vmax.f32 %v5466, %v5759
        %v5835 = vmax.f32 %v5467, %v5761
        %v5836 = vmax.f32 %v5468, %v5763
        %v5837 = vmax.f32 %v5469, %v5765
        %v5838 = vmax.f32 %v5470, %v5767
        %v5839 = vmax.f32 %v5471, %v5769
        %v5840 = vmax.f32 %v5472, %v5771
        %v5841 = vmax.f32 %v5473, %v5773
        %v5842 = vmax.f32 %v5474, %v5775
        %v5843 = vmax.f32 %v5475, %v5777
        %v5844 = vmax.f32 %v5476, %v5779
        %v5845 = vmax.f32 %v5477, %v5781
        %v5878 = vrot.slane %v5814, 1
        %v5879 = vrot.slane %v5815, 1
        %v5880 = vsel %vm1050, %v5878, %v5879
        %v5881 = vrot.slane %v5816, 1
        %v5882 = vsel %vm1050, %v5879, %v5881
        %v5883 = vrot.slane %v5817, 1
        %v5884 = vsel %vm1050, %v5881, %v5883
        %v5885 = vrot.slane %v5818, 1
        %v5886 = vsel %vm1050, %v5883, %v5885
        %v5887 = vrot.slane %v5819, 1
        %v5888 = vsel %vm1050, %v5885, %v5887
        %v5889 = vrot.slane %v5820, 1
        %v5890 = vsel %vm1050, %v5887, %v5889
        %v5891 = vrot.slane %v5821, 1
        %v5892 = vsel %vm1050, %v5889, %v5891
        %v5893 = vrot.slane %v5822, 1
        %v5894 = vsel %vm1050, %v5891, %v5893
        %v5895 = vrot.slane %v5823, 1
        %v5896 = vsel %vm1050, %v5893, %v5895
        %v5897 = vrot.slane %v5824, 1
        %v5898 = vsel %vm1050, %v5895, %v5897
        %v5899 = vrot.slane %v5825, 1
        %v5900 = vsel %vm1050, %v5897, %v5899
        %v5901 = vrot.slane %v5826, 1
        %v5902 = vsel %vm1050, %v5899, %v5901
        %v5903 = vrot.slane %v5827, 1
        %v5904 = vsel %vm1050, %v5901, %v5903
        %v5905 = vrot.slane %v5828, 1
        %v5906 = vsel %vm1050, %v5903, %v5905
        %v5907 = vrot.slane %v5829, 1
        %v5908 = vsel %vm1050, %v5905, %v5907
        %v5909 = vrot.slane %v5830, 1
        %v5910 = vsel %vm1050, %v5907, %v5909
        %v5911 = vrot.slane %v5831, 1
        %v5912 = vsel %vm1050, %v5909, %v5911
        %v5913 = vrot.slane %v5832, 1
        %v5914 = vsel %vm1050, %v5911, %v5913
        %v5915 = vrot.slane %v5833, 1
        %v5916 = vsel %vm1050, %v5913, %v5915
        %v5917 = vrot.slane %v5834, 1
        %v5918 = vsel %vm1050, %v5915, %v5917
        %v5919 = vrot.slane %v5835, 1
        %v5920 = vsel %vm1050, %v5917, %v5919
        %v5921 = vrot.slane %v5836, 1
        %v5922 = vsel %vm1050, %v5919, %v5921
        %v5923 = vrot.slane %v5837, 1
        %v5924 = vsel %vm1050, %v5921, %v5923
        %v5925 = vrot.slane %v5838, 1
        %v5926 = vsel %vm1050, %v5923, %v5925
        %v5927 = vrot.slane %v5839, 1
        %v5928 = vsel %vm1050, %v5925, %v5927
        %v5929 = vrot.slane %v5840, 1
        %v5930 = vsel %vm1050, %v5927, %v5929
        %v5931 = vrot.slane %v5841, 1
        %v5932 = vsel %vm1050, %v5929, %v5931
        %v5933 = vrot.slane %v5842, 1
        %v5934 = vsel %vm1050, %v5931, %v5933
        %v5935 = vrot.slane %v5843, 1
        %v5936 = vsel %vm1050, %v5933, %v5935
        %v5937 = vrot.slane %v5844, 1
        %v5938 = vsel %vm1050, %v5935, %v5937
        %v5939 = vrot.slane %v5845, 1
        %v5940 = vsel %vm1050, %v5937, %v5939
        %v5974 = vmax.f32 %v5651, %v5878
        %v5975 = vmax.f32 %v5652, %v5880
        %v5976 = vmax.f32 %v5653, %v5882
        %v5977 = vmax.f32 %v5654, %v5884
        %v5978 = vmax.f32 %v5655, %v5886
        %v5979 = vmax.f32 %v5656, %v5888
        %v5980 = vmax.f32 %v5657, %v5890
        %v5981 = vmax.f32 %v5658, %v5892
        %v5982 = vmax.f32 %v5659, %v5894
        %v5983 = vmax.f32 %v5660, %v5896
        %v5984 = vmax.f32 %v5661, %v5898
        %v5985 = vmax.f32 %v5662, %v5900
        %v5986 = vmax.f32 %v5663, %v5902
        %v5987 = vmax.f32 %v5664, %v5904
        %v5988 = vmax.f32 %v5665, %v5906
        %v5989 = vmax.f32 %v5666, %v5908
        %v5990 = vmax.f32 %v5667, %v5910
        %v5991 = vmax.f32 %v5668, %v5912
        %v5992 = vmax.f32 %v5669, %v5914
        %v5993 = vmax.f32 %v5670, %v5916
        %v5994 = vmax.f32 %v5671, %v5918
        %v5995 = vmax.f32 %v5672, %v5920
        %v5996 = vmax.f32 %v5673, %v5922
        %v5997 = vmax.f32 %v5674, %v5924
        %v5998 = vmax.f32 %v5675, %v5926
        %v5999 = vmax.f32 %v5676, %v5928
        %v6000 = vmax.f32 %v5677, %v5930
        %v6001 = vmax.f32 %v5678, %v5932
        %v6002 = vmax.f32 %v5679, %v5934
        %v6003 = vmax.f32 %v5680, %v5936
        %v6004 = vmax.f32 %v5681, %v5938
        %v6005 = vmax.f32 %v5682, %v5940
        %v6006 = vmax.f32 %v5683, %v5939
        %v6039 = vrot.slane %v4992, 2
        %v6040 = vrot.slane %v4993, 2
        %v6041 = vsel %vm3623, %v6039, %v6040
        %v6042 = vrot.slane %v4994, 2
        %v6043 = vsel %vm3623, %v6040, %v6042
        %v6044 = vrot.slane %v4995, 2
        %v6045 = vsel %vm3623, %v6042, %v6044
        %v6046 = vrot.slane %v4996, 2
        %v6047 = vsel %vm3623, %v6044, %v6046
        %v6048 = vrot.slane %v4997, 2
        %v6049 = vsel %vm3623, %v6046, %v6048
        %v6050 = vrot.slane %v4998, 2
        %v6051 = vsel %vm3623, %v6048, %v6050
        %v6052 = vrot.slane %v4999, 2
        %v6053 = vsel %vm3623, %v6050, %v6052
        %v6054 = vrot.slane %v5000, 2
        %v6055 = vsel %vm3623, %v6052, %v6054
        %v6056 = vrot.slane %v5001, 2
        %v6057 = vsel %vm3623, %v6054, %v6056
        %v6058 = vrot.slane %v5002, 2
        %v6059 = vsel %vm3623, %v6056, %v6058
        %v6060 = vrot.slane %v5003, 2
        %v6061 = vsel %vm3623, %v6058, %v6060
        %v6062 = vrot.slane %v5004, 2
        %v6063 = vsel %vm3623, %v6060, %v6062
        %v6064 = vrot.slane %v5005, 2
        %v6065 = vsel %vm3623, %v6062, %v6064
        %v6066 = vrot.slane %v5006, 2
        %v6067 = vsel %vm3623, %v6064, %v6066
        %v6068 = vrot.slane %v5007, 2
        %v6069 = vsel %vm3623, %v6066, %v6068
        %v6070 = vrot.slane %v5008, 2
        %v6071 = vsel %vm3623, %v6068, %v6070
        %v6072 = vrot.slane %v5009, 2
        %v6073 = vsel %vm3623, %v6070, %v6072
        %v6074 = vrot.slane %v5010, 2
        %v6075 = vsel %vm3623, %v6072, %v6074
        %v6076 = vrot.slane %v5011, 2
        %v6077 = vsel %vm3623, %v6074, %v6076
        %v6078 = vrot.slane %v5012, 2
        %v6079 = vsel %vm3623, %v6076, %v6078
        %v6080 = vrot.slane %v5013, 2
        %v6081 = vsel %vm3623, %v6078, %v6080
        %v6082 = vrot.slane %v5014, 2
        %v6083 = vsel %vm3623, %v6080, %v6082
        %v6084 = vrot.slane %v5015, 2
        %v6085 = vsel %vm3623, %v6082, %v6084
        %v6086 = vrot.slane %v5016, 2
        %v6087 = vsel %vm3623, %v6084, %v6086
        %v6088 = vrot.slane %v5017, 2
        %v6089 = vsel %vm3623, %v6086, %v6088
        %v6090 = vrot.slane %v5018, 2
        %v6091 = vsel %vm3623, %v6088, %v6090
        %v6092 = vrot.slane %v5019, 2
        %v6093 = vsel %vm3623, %v6090, %v6092
        %v6094 = vrot.slane %v5020, 2
        %v6095 = vsel %vm3623, %v6092, %v6094
        %v6096 = vrot.slane %v5021, 2
        %v6097 = vsel %vm3623, %v6094, %v6096
        %v6098 = vrot.slane %v5022, 2
        %v6099 = vsel %vm3623, %v6096, %v6098
        %v6100 = vrot.slane %v5023, 2
        %v6101 = vsel %vm3623, %v6098, %v6100
        %v6102 = vrot.slane %v4958, 2
        %v6103 = vsel %vm3623, %v6100, %v6102
        %v6137 = vmax.f32 %v5974, %v6039
        %v6138 = vmax.f32 %v5975, %v6041
        %v6139 = vmax.f32 %v5976, %v6043
        %v6140 = vmax.f32 %v5977, %v6045
        %v6141 = vmax.f32 %v5978, %v6047
        %v6142 = vmax.f32 %v5979, %v6049
        %v6143 = vmax.f32 %v5980, %v6051
        %v6144 = vmax.f32 %v5981, %v6053
        %v6145 = vmax.f32 %v5982, %v6055
        %v6146 = vmax.f32 %v5983, %v6057
        %v6147 = vmax.f32 %v5984, %v6059
        %v6148 = vmax.f32 %v5985, %v6061
        %v6149 = vmax.f32 %v5986, %v6063
        %v6150 = vmax.f32 %v5987, %v6065
        %v6151 = vmax.f32 %v5988, %v6067
        %v6152 = vmax.f32 %v5989, %v6069
        %v6153 = vmax.f32 %v5990, %v6071
        %v6154 = vmax.f32 %v5991, %v6073
        %v6155 = vmax.f32 %v5992, %v6075
        %v6156 = vmax.f32 %v5993, %v6077
        %v6157 = vmax.f32 %v5994, %v6079
        %v6158 = vmax.f32 %v5995, %v6081
        %v6159 = vmax.f32 %v5996, %v6083
        %v6160 = vmax.f32 %v5997, %v6085
        %v6161 = vmax.f32 %v5998, %v6087
        %v6162 = vmax.f32 %v5999, %v6089
        %v6163 = vmax.f32 %v6000, %v6091
        %v6164 = vmax.f32 %v6001, %v6093
        %v6165 = vmax.f32 %v6002, %v6095
        %v6166 = vmax.f32 %v6003, %v6097
        %v6167 = vmax.f32 %v6004, %v6099
        %v6168 = vmax.f32 %v6005, %v6101
        %v6169 = vmax.f32 %v6006, %v6103
        %v6203 = vrot.slane %v6137, 7
        %v6204 = vrot.slane %v6138, 7
        %v6205 = vsel %vm1604, %v6203, %v6204
        %v6206 = vrot.slane %v6139, 7
        %v6207 = vsel %vm1604, %v6204, %v6206
        %v6208 = vrot.slane %v6140, 7
        %v6209 = vsel %vm1604, %v6206, %v6208
        %v6210 = vrot.slane %v6141, 7
        %v6211 = vsel %vm1604, %v6208, %v6210
        %v6212 = vrot.slane %v6142, 7
        %v6213 = vsel %vm1604, %v6210, %v6212
        %v6214 = vrot.slane %v6143, 7
        %v6215 = vsel %vm1604, %v6212, %v6214
        %v6216 = vrot.slane %v6144, 7
        %v6217 = vsel %vm1604, %v6214, %v6216
        %v6218 = vrot.slane %v6145, 7
        %v6219 = vsel %vm1604, %v6216, %v6218
        %v6220 = vrot.slane %v6146, 7
        %v6221 = vsel %vm1604, %v6218, %v6220
        %v6222 = vrot.slane %v6147, 7
        %v6223 = vsel %vm1604, %v6220, %v6222
        %v6224 = vrot.slane %v6148, 7
        %v6225 = vsel %vm1604, %v6222, %v6224
        %v6226 = vrot.slane %v6149, 7
        %v6227 = vsel %vm1604, %v6224, %v6226
        %v6228 = vrot.slane %v6150, 7
        %v6229 = vsel %vm1604, %v6226, %v6228
        %v6230 = vrot.slane %v6151, 7
        %v6231 = vsel %vm1604, %v6228, %v6230
        %v6232 = vrot.slane %v6152, 7
        %v6233 = vsel %vm1604, %v6230, %v6232
        %v6234 = vrot.slane %v6153, 7
        %v6235 = vsel %vm1604, %v6232, %v6234
        %v6236 = vrot.slane %v6154, 7
        %v6237 = vsel %vm1604, %v6234, %v6236
        %v6238 = vrot.slane %v6155, 7
        %v6239 = vsel %vm1604, %v6236, %v6238
        %v6240 = vrot.slane %v6156, 7
        %v6241 = vsel %vm1604, %v6238, %v6240
        %v6242 = vrot.slane %v6157, 7
        %v6243 = vsel %vm1604, %v6240, %v6242
        %v6244 = vrot.slane %v6158, 7
        %v6245 = vsel %vm1604, %v6242, %v6244
        %v6246 = vrot.slane %v6159, 7
        %v6247 = vsel %vm1604, %v6244, %v6246
        %v6248 = vrot.slane %v6160, 7
        %v6249 = vsel %vm1604, %v6246, %v6248
        %v6250 = vrot.slane %v6161, 7
        %v6251 = vsel %vm1604, %v6248, %v6250
        %v6252 = vrot.slane %v6162, 7
        %v6253 = vsel %vm1604, %v6250, %v6252
        %v6254 = vrot.slane %v6163, 7
        %v6255 = vsel %vm1604, %v6252, %v6254
        %v6256 = vrot.slane %v6164, 7
        %v6257 = vsel %vm1604, %v6254, %v6256
        %v6258 = vrot.slane %v6165, 7
        %v6259 = vsel %vm1604, %v6256, %v6258
        %v6260 = vrot.slane %v6166, 7
        %v6261 = vsel %vm1604, %v6258, %v6260
        %v6262 = vrot.slane %v6167, 7
        %v6263 = vsel %vm1604, %v6260, %v6262
        %v6264 = vrot.slane %v6168, 7
        %v6265 = vsel %vm1604, %v6262, %v6264
        %v6266 = vrot.slane %v6169, 7
        %v6267 = vsel %vm1604, %v6264, %v6266
        %6300 = vmatprep.subr.mxu0 0.0
        %6301 = vmatpush1.msra.mxu0 %v6205
        %6302 = vmatprep.subr.mxu0 0.0
        %6303 = vmatpush1.msra.mxu0 %v6207
        %6304 = vmatprep.subr.mxu0 0.0
        %6305 = vmatpush1.msra.mxu0 %v6209
        %6306 = vmatprep.subr.mxu0 0.0
        %6307 = vmatpush1.msra.mxu0 %v6211
        %6308 = vmatprep.subr.mxu0 0.0
        %6309 = vmatpush1.msra.mxu0 %v6213
        %6310 = vmatprep.subr.mxu0 0.0
        %6311 = vmatpush1.msra.mxu0 %v6215
        %6312 = vmatprep.subr.mxu0 0.0
        %6313 = vmatpush1.msra.mxu0 %v6217
        %6314 = vmatprep.subr.mxu0 0.0
        %6315 = vmatpush1.msra.mxu0 %v6219
        %6316 = vmatprep.subr.mxu0 0.0
        %6317 = vmatpush1.msra.mxu0 %v6221
        %6318 = vmatprep.subr.mxu0 0.0
        %6319 = vmatpush1.msra.mxu0 %v6223
        %6320 = vmatprep.subr.mxu0 0.0
        %6321 = vmatpush1.msra.mxu0 %v6225
        %6322 = vmatprep.subr.mxu0 0.0
        %6323 = vmatpush1.msra.mxu0 %v6227
        %6324 = vmatprep.subr.mxu0 0.0
        %6325 = vmatpush1.msra.mxu0 %v6229
        %6326 = vmatprep.subr.mxu0 0.0
        %6327 = vmatpush1.msra.mxu0 %v6231
        %6328 = vmatprep.subr.mxu0 0.0
        %6329 = vmatpush1.msra.mxu0 %v6233
        %6330 = vmatprep.subr.mxu0 0.0
        %6331 = vmatpush1.msra.mxu0 %v6235
        %6332 = vmatprep.subr.mxu0 0.0
        %6333 = vmatpush1.msra.mxu0 %v6237
        %6334 = vmatprep.subr.mxu0 0.0
        %6335 = vmatpush1.msra.mxu0 %v6239
        %6336 = vmatprep.subr.mxu0 0.0
        %6337 = vmatpush1.msra.mxu0 %v6241
        %6338 = vmatprep.subr.mxu0 0.0
        %6339 = vmatpush1.msra.mxu0 %v6243
        %6340 = vmatprep.subr.mxu0 0.0
        %6341 = vmatpush1.msra.mxu0 %v6245
        %6342 = vmatprep.subr.mxu0 0.0
        %6343 = vmatpush1.msra.mxu0 %v6247
        %6344 = vmatprep.subr.mxu0 0.0
        %6345 = vmatpush1.msra.mxu0 %v6249
        %6346 = vmatprep.subr.mxu0 0.0
        %6347 = vmatpush1.msra.mxu0 %v6251
        %6348 = vmatprep.subr.mxu0 0.0
        %6349 = vmatpush1.msra.mxu0 %v6253
        %6350 = vmatprep.subr.mxu0 0.0
        %6351 = vmatpush1.msra.mxu0 %v6255
        %6352 = vmatprep.subr.mxu0 0.0
        %6353 = vmatpush1.msra.mxu0 %v6257
        %6354 = vmatprep.subr.mxu0 0.0
        %6355 = vmatpush1.msra.mxu0 %v6259
        %6356 = vmatprep.subr.mxu0 0.0
        %6357 = vmatpush1.msra.mxu0 %v6261
        %6358 = vmatprep.subr.mxu0 0.0
        %6359 = vmatpush1.msra.mxu0 %v6263
        %6360 = vmatprep.subr.mxu0 0.0
        %6361 = vmatpush1.msra.mxu0 %v6265
        %6362 = vmatprep.subr.mxu0 0.0
        %6363 = vmatpush1.msra.mxu0 %v6267
        %6364 = vmatprep.mubr.f32.mxu0 %v1003
        %6365 = vmatmul.mubr.f32.gmra.mrb[0].mxu0 %v1002
        %v6366 = vpop.f32.mrb[0].mxu0
        %v6367 = vadd.f32 0.0, %v6366
        %v6368 = vpop.f32.mrb[0].mxu0
        %6369 = vmatprep.mubr.f32.mxu0 %v1005
        %6370 = vmatmul.mubr.f32.gmra.mrb[0].mxu0 %v1004
        %v6371 = vpop.f32.mrb[0].mxu0
        %v6372 = vadd.f32 0.0, %v6371
        %v6373 = vpop.f32.mrb[0].mxu0
        %6374 = vmatprep.mubr.f32.mxu0 %v1007
        %6375 = vmatmul.mubr.f32.gmra.mrb[0].mxu0 %v1006
        %v6376 = vpop.f32.mrb[0].mxu0
        %v6377 = vadd.f32 0.0, %v6376
        %v6378 = vpop.f32.mrb[0].mxu0
        %6379 = vmatprep.mubr.f32.mxu0 %v1009
        %6380 = vmatmul.mubr.f32.gmra.mrb[0].mxu0 %v1008
        %v6381 = vpop.f32.mrb[0].mxu0
        %v6382 = vadd.f32 0.0, %v6381
        %v6383 = vpop.f32.mrb[0].mxu0
        %6384 = vmatprep.mubr.f32.mxu0 %v1011
        %6385 = vmatmul.mubr.f32.gmra.mrb[0].mxu0 %v1010
        %v6386 = vpop.f32.mrb[0].mxu0
        %v6387 = vadd.f32 0.0, %v6386
        %v6388 = vpop.f32.mrb[0].mxu0
        %6389 = vmatprep.mubr.f32.mxu0 %v1013
        %6390 = vmatmul.mubr.f32.gmra.mrb[0].mxu0 %v1012
        %v6391 = vpop.f32.mrb[0].mxu0
        %v6392 = vadd.f32 0.0, %v6391
        %v6393 = vpop.f32.mrb[0].mxu0
        %6394 = vmatprep.mubr.f32.mxu0 %v1015
        %6395 = vmatmul.mubr.f32.gmra.mrb[0].mxu0 %v1014
        %v6396 = vpop.f32.mrb[0].mxu0
        %v6397 = vadd.f32 0.0, %v6396
        %v6398 = vpop.f32.mrb[0].mxu0
        %6399 = vmatprep.mubr.f32.mxu0 %v1017
        %6400 = vmatmul.mubr.f32.gmra.mrb[0].mxu0 %v1016
        %v6401 = vpop.f32.mrb[0].mxu0
        %v6402 = vadd.f32 0.0, %v6401
        %v6403 = vpop.f32.mrb[0].mxu0
        %6404 = vdwg.mxu0
        %v6405 = vld [vmem:[%s7] sm:$0xf]
        %v6406 = vld [vmem:[%s7 + $0x4] sm:$0xf]
        %v6407 = vld [vmem:[%s7 + $0x8] sm:$0xf]
        %v6408 = vld [vmem:[%s7 + $0xc] sm:$0xf]
        %v6409 = vld [vmem:[%s7 + $0x10] sm:$0xf]
        %v6410 = vld [vmem:[%s7 + $0x14] sm:$0xf]
        %v6411 = vld [vmem:[%s7 + $0x18] sm:$0xf]
        %v6412 = vld [vmem:[%s7 + $0x1c] sm:$0xf]
        %v6413 = vld [vmem:[%s7 + $0x20] sm:$0xf]
        %v6414 = vld [vmem:[%s9] sm:$0x1]
        %v6415 = vld [vmem:[%s17] sm:$0xff]
        %v6416 = vld [vmem:[%s17 + $0x8] sm:$0xff]
        %v6417 = vld [vmem:[%s17 + $0x10] sm:$0xff]
        %v6418 = vld [vmem:[%s17 + $0x18] sm:$0xff]
        %v6419 = vld [vmem:[%s17 + $0x20] sm:$0xff]
        %v6420 = vld [vmem:[%s17 + $0x28] sm:$0xff]
        %v6421 = vld [vmem:[%s17 + $0x30] sm:$0xff]
        %v6422 = vld [vmem:[%s17 + $0x38] sm:$0xff]
        %v6423 = vld [vmem:[%s19] sm:$0xff]
        %v6424 = vld [vmem:[%s19 + $0x8] sm:$0xff]
        %v6425 = vld [vmem:[%s19 + $0x10] sm:$0xff]
        %v6426 = vld [vmem:[%s19 + $0x18] sm:$0xff]
        %v6427 = vld [vmem:[%s19 + $0x20] sm:$0xff]
        %v6428 = vld [vmem:[%s19 + $0x28] sm:$0xff]
        %v6429 = vld [vmem:[%s19 + $0x30] sm:$0xff]
        %v6430 = vld [vmem:[%s19 + $0x38] sm:$0xff]
        %v6431 = vld [vmem:[%s21] sm:$0xff]
        %v6432 = vld [vmem:[%s21 + $0x8] sm:$0xff]
        %6434 = vset.pattern.permute.xlu0 0
        %6435 = vperm.xlu0 %6434, %v6415
        %v6436 = vpop.permute.xlu0 %6435
        %6438 = vset.pattern.permute.xlu0 0
        %6439 = vperm.xlu0 %6438, %v6416
        %v6440 = vpop.permute.xlu0 %6439
        %6442 = vset.pattern.permute.xlu0 0
        %6443 = vperm.xlu0 %6442, %v6417
        %v6444 = vpop.permute.xlu0 %6443
        %6446 = vset.pattern.permute.xlu0 0
        %6447 = vperm.xlu0 %6446, %v6418
        %v6448 = vpop.permute.xlu0 %6447
        %6450 = vset.pattern.permute.xlu0 0
        %6451 = vperm.xlu0 %6450, %v6419
        %v6452 = vpop.permute.xlu0 %6451
        %6454 = vset.pattern.permute.xlu0 0
        %6455 = vperm.xlu0 %6454, %v6420
        %v6456 = vpop.permute.xlu0 %6455
        %6458 = vset.pattern.permute.xlu0 0
        %6459 = vperm.xlu0 %6458, %v6421
        %v6460 = vpop.permute.xlu0 %6459
        %6462 = vset.pattern.permute.xlu0 0
        %6463 = vperm.xlu0 %6462, %v6422
        %v6464 = vpop.permute.xlu0 %6463
        %v6465 = vrot.slane %v6436, 1
        %v6466 = vrot.slane %v6440, 1
        %v6467 = vsel %vm1050, %v6465, %v6466
        %v6468 = vrot.slane %v6444, 1
        %v6469 = vsel %vm1050, %v6466, %v6468
        %v6470 = vrot.slane %v6448, 1
        %v6471 = vsel %vm1050, %v6468, %v6470
        %v6472 = vrot.slane %v6452, 1
        %v6473 = vsel %vm1050, %v6470, %v6472
        %v6474 = vrot.slane %v6456, 1
        %v6475 = vsel %vm1050, %v6472, %v6474
        %v6476 = vrot.slane %v6460, 1
        %v6477 = vsel %vm1050, %v6474, %v6476
        %v6478 = vrot.slane %v6464, 1
        %v6479 = vsel %vm1050, %v6476, %v6478
        %v6489 = vmul.f32 %v6465, 0.0
        %v6490 = vmul.f32 %v6467, 0.0
        %v6491 = vmul.f32 %v6367, %v6469
        %v6492 = vmul.f32 %v6372, %v6471
        %v6493 = vmul.f32 %v6377, %v6473
        %v6494 = vmul.f32 %v6382, %v6475
        %v6495 = vmul.f32 %v6387, %v6477
        %v6496 = vmul.f32 %v6392, %v6479
        %v6497 = vmul.f32 %v6397, %v6478
        %v6498 = vpack.c.bf16 %v6490, %v6489
        %v6499 = vpack.c.bf16 %v6492, %v6491
        %v6500 = vpack.c.bf16 %v6494, %v6493
        %v6501 = vpack.c.bf16 %v6496, %v6495
        %v6502 = vpack.c.bf16 %v6497, %v6497
        %v6503 = vpack.c.bf16 %v6367, 0.0
        %v6504 = vpack.c.bf16 %v6377, %v6372
        %v6505 = vpack.c.bf16 %v6387, %v6382
        %v6506 = vpack.c.bf16 %v6397, %v6392
        %vm6507 = vcmask 64512
        %v6509 = vsel %vm6507, %v6503, 0
        %v6512 = vsel %vm6507, %v6504, 0
        %v6515 = vsel %vm6507, %v6505, 0
        %v6518 = vsel %vm6507, %v6506, 0
        %vm6520 = vcmask 1043456
        %v6522 = vsel %vm6520, %v6406, 0
        %6524 = vmatprep.subr.bf16.mxu0 0
        %6525 = vmatpush1.bf16.msra.mxu0 %v6522
        %6526 = vmatprep.subr.bf16.mxu0 0
        %6527 = vmatpush1.bf16.msra.mxu0 0
        %6528 = vmatprep.subr.bf16.mxu0 0
        %6529 = vmatpush1.bf16.msra.mxu0 0
        %6530 = vmatprep.subr.bf16.mxu0 0
        %6531 = vmatpush1.bf16.msra.mxu0 0
        %6532 = vmatprep.subr.bf16.mxu0 0
        %6533 = vmatpush1.bf16.msra.mxu0 0
        %6534 = vmatprep.subr.bf16.mxu0 0
        %6535 = vmatpush1.bf16.msra.mxu0 0
        %6536 = vmatprep.subr.bf16.mxu0 0
        %6537 = vmatpush1.bf16.msra.mxu0 0
        %6538 = vmatprep.subr.bf16.mxu0 0
        %6539 = vmatpush1.bf16.msra.mxu0 0
        %6540 = vmatprep.subr.bf16.mxu0 0
        %6541 = vmatpush1.bf16.msra.mxu0 0
        %6542 = vmatprep.subr.bf16.mxu0 0
        %6543 = vmatpush1.bf16.msra.mxu0 0
        %6544 = vmatprep.subr.bf16.mxu0 0
        %6545 = vmatpush1.bf16.msra.mxu0 0
        %6546 = vmatprep.subr.bf16.mxu0 0
        %6547 = vmatpush1.bf16.msra.mxu0 0
        %6548 = vmatprep.subr.bf16.mxu0 0
        %6549 = vmatpush1.bf16.msra.mxu0 0
        %6550 = vmatprep.subr.bf16.mxu0 0
        %6551 = vmatpush1.bf16.msra.mxu0 0
        %6552 = vmatprep.subr.bf16.mxu0 0
        %6553 = vmatpush1.bf16.msra.mxu0 0
        %6554 = vmatprep.subr.bf16.mxu0 0
        %6555 = vmatpush1.bf16.msra.mxu0 0
        %6556 = vmatprep.mubr.bf16.mxu0 0
        %6557 = vmatmul.mubr.bf16.gmra.mrb[0].mxu0 %v6509
        %v6558 = vpop.f32.mrb[0].mxu0
        %v6559 = vadd.f32 0.0, %v6558
        %v6560 = vpop.f32.mrb[0].mxu0
        %v6561 = vpop.f32.mrb[0].mxu0
        %v6562 = vadd.f32 0.0, %v6561
        %v6563 = vpop.f32.mrb[0].mxu0
        %6564 = vmatprep.mubr.bf16.mxu0 0
        %6565 = vmatmul.mubr.bf16.gmra.mrb[0].mxu0 %v6512
        %v6566 = vpop.f32.mrb[0].mxu0
        %v6567 = vadd.f32 0.0, %v6566
        %v6568 = vpop.f32.mrb[0].mxu0
        %v6569 = vpop.f32.mrb[0].mxu0
        %v6570 = vadd.f32 0.0, %v6569
        %v6571 = vpop.f32.mrb[0].mxu0
        %6572 = vmatprep.mubr.bf16.mxu0 0
        %6573 = vmatmul.mubr.bf16.gmra.mrb[0].mxu0 %v6515
        %v6574 = vpop.f32.mrb[0].mxu0
        %v6575 = vadd.f32 0.0, %v6574
        %v6576 = vpop.f32.mrb[0].mxu0
        %v6577 = vpop.f32.mrb[0].mxu0
        %v6578 = vadd.f32 0.0, %v6577
        %v6579 = vpop.f32.mrb[0].mxu0
        %6580 = vmatprep.mubr.bf16.mxu0 0
        %6581 = vmatmul.mubr.bf16.gmra.mrb[0].mxu0 %v6518
        %v6582 = vpop.f32.mrb[0].mxu0
        %v6583 = vadd.f32 0.0, %v6582
        %v6584 = vpop.f32.mrb[0].mxu0
        %v6585 = vpop.f32.mrb[0].mxu0
        %v6586 = vadd.f32 0.0, %v6585
        %v6587 = vpop.f32.mrb[0].mxu0
        %6588 = vdwg.mxu0
        %6590 = vset.pattern.permute.xlu0 0
        %6591 = vperm.xlu0 %6590, %v6423
        %v6592 = vpop.permute.xlu0 %6591
        %6594 = vset.pattern.permute.xlu0 0
        %6595 = vperm.xlu0 %6594, %v6424
        %v6596 = vpop.permute.xlu0 %6595
        %6598 = vset.pattern.permute.xlu0 0
        %6599 = vperm.xlu0 %6598, %v6425
        %v6600 = vpop.permute.xlu0 %6599
        %6602 = vset.pattern.permute.xlu0 0
        %6603 = vperm.xlu0 %6602, %v6426
        %v6604 = vpop.permute.xlu0 %6603
        %6606 = vset.pattern.permute.xlu0 0
        %6607 = vperm.xlu0 %6606, %v6427
        %v6608 = vpop.permute.xlu0 %6607
        %6610 = vset.pattern.permute.xlu0 0
        %6611 = vperm.xlu0 %6610, %v6428
        %v6612 = vpop.permute.xlu0 %6611
        %6614 = vset.pattern.permute.xlu0 0
        %6615 = vperm.xlu0 %6614, %v6429
        %v6616 = vpop.permute.xlu0 %6615
        %6618 = vset.pattern.permute.xlu0 0
        %6619 = vperm.xlu0 %6618, %v6430
        %v6620 = vpop.permute.xlu0 %6619
        %v6621 = vrot.slane %v6592, 7
        %v6622 = vrot.slane %v6596, 7
        %v6623 = vsel %vm1604, %v6621, %v6622
        %v6624 = vrot.slane %v6600, 7
        %v6625 = vsel %vm1604, %v6622, %v6624
        %v6626 = vrot.slane %v6604, 7
        %v6627 = vsel %vm1604, %v6624, %v6626
        %v6628 = vrot.slane %v6608, 7
        %v6629 = vsel %vm1604, %v6626, %v6628
        %v6630 = vrot.slane %v6612, 7
        %v6631 = vsel %vm1604, %v6628, %v6630
        %v6632 = vrot.slane %v6616, 7
        %v6633 = vsel %vm1604, %v6630, %v6632
        %v6634 = vrot.slane %v6620, 7
        %v6635 = vsel %vm1604, %v6632, %v6634
        %v6645 = vmul.f32 %v6621, 0.0
        %v6646 = vmul.f32 %v6367, %v6623
        %v6647 = vmul.f32 %v6372, %v6625
        %v6648 = vmul.f32 %v6377, %v6627
        %v6649 = vmul.f32 %v6382, %v6629
        %v6650 = vmul.f32 %v6387, %v6631
        %v6651 = vmul.f32 %v6392, %v6633
        %v6652 = vmul.f32 %v6397, %v6635
        %v6653 = vmul.f32 %v6402, %v6634
        %v6654 = vpack.c.bf16 %v6646, %v6645
        %v6655 = vpack.c.bf16 %v6648, %v6647
        %v6656 = vpack.c.bf16 %v6650, %v6649
        %v6657 = vpack.c.bf16 %v6652, %v6651
        %v6658 = vpack.c.bf16 %v6653, %v6653
        %v6659 = vmul.f32 %v6367, %v6467
        %v6660 = vmul.f32 %v6372, %v6469
        %v6661 = vmul.f32 %v6377, %v6471
        %v6662 = vmul.f32 %v6382, %v6473
        %v6663 = vmul.f32 %v6387, %v6475
        %v6664 = vmul.f32 %v6392, %v6477
        %v6665 = vmul.f32 %v6397, %v6479
        %v6666 = vmul.f32 %v6402, %v6478
        %v6667 = vpack.c.bf16 %v6659, %v6489
        %v6668 = vpack.c.bf16 %v6661, %v6660
        %v6669 = vpack.c.bf16 %v6663, %v6662
        %v6670 = vpack.c.bf16 %v6665, %v6664
        %v6671 = vpack.c.bf16 %v6666, %v6666
        %vm6672 = vsmask.f32 4352
        %v6674 = vshrl.u32 %v6667, 16
        %v6676 = vrot.slane %v6674, 3
        %v6677 = vshll.u32 %v6667, 16
        %v6679 = vrot.slane %v6677, 4
        %v6680 = vor.u32 %v6676, %v6679
        %v6682 = vshrl.u32 %v6668, 16
        %v6684 = vrot.slane %v6682, 3
        %v6685 = vshll.u32 %v6668, 16
        %v6687 = vrot.slane %v6685, 4
        %v6688 = vor.u32 %v6684, %v6687
        %v6689 = vsel %vm6672, %v6680, %v6688
        %v6691 = vshrl.u32 %v6669, 16
        %v6693 = vrot.slane %v6691, 3
        %v6694 = vshll.u32 %v6669, 16
        %v6696 = vrot.slane %v6694, 4
        %v6697 = vor.u32 %v6693, %v6696
        %v6698 = vsel %vm6672, %v6688, %v6697
        %v6700 = vshrl.u32 %v6670, 16
        %v6702 = vrot.slane %v6700, 3
        %v6703 = vshll.u32 %v6670, 16
        %v6705 = vrot.slane %v6703, 4
        %v6706 = vor.u32 %v6702, %v6705
        %v6707 = vsel %vm6672, %v6697, %v6706
        %v6709 = vshrl.u32 %v6671, 16
        %v6711 = vrot.slane %v6709, 3
        %v6712 = vshll.u32 %v6671, 16
        %v6714 = vrot.slane %v6712, 4
        %v6715 = vor.u32 %v6711, %v6714
        %v6716 = vsel %vm6672, %v6706, %v6715
        %v6718 = vsel %vm6507, %v6689, 0
        %v6721 = vsel %vm6507, %v6698, 0
        %v6724 = vsel %vm6507, %v6707, 0
        %v6727 = vsel %vm6507, %v6716, 0
        %v6730 = vsel %vm6520, %v6408, 0
        %6732 = vmatprep.subr.bf16.mxu0 0
        %6733 = vmatpush1.bf16.msra.mxu0 %v6730
        %6734 = vmatprep.subr.bf16.mxu0 0
        %6735 = vmatpush1.bf16.msra.mxu0 0
        %6736 = vmatprep.subr.bf16.mxu0 0
        %6737 = vmatpush1.bf16.msra.mxu0 0
        %6738 = vmatprep.subr.bf16.mxu0 0
        %6739 = vmatpush1.bf16.msra.mxu0 0
        %6740 = vmatprep.subr.bf16.mxu0 0
        %6741 = vmatpush1.bf16.msra.mxu0 0
        %6742 = vmatprep.subr.bf16.mxu0 0
        %6743 = vmatpush1.bf16.msra.mxu0 0
        %6744 = vmatprep.subr.bf16.mxu0 0
        %6745 = vmatpush1.bf16.msra.mxu0 0
        %6746 = vmatprep.subr.bf16.mxu0 0
        %6747 = vmatpush1.bf16.msra.mxu0 0
        %6748 = vmatprep.subr.bf16.mxu0 0
        %6749 = vmatpush1.bf16.msra.mxu0 0
        %6750 = vmatprep.subr.bf16.mxu0 0
        %6751 = vmatpush1.bf16.msra.mxu0 0
        %6752 = vmatprep.subr.bf16.mxu0 0
        %6753 = vmatpush1.bf16.msra.mxu0 0
        %6754 = vmatprep.subr.bf16.mxu0 0
        %6755 = vmatpush1.bf16.msra.mxu0 0
        %6756 = vmatprep.subr.bf16.mxu0 0
        %6757 = vmatpush1.bf16.msra.mxu0 0
        %6758 = vmatprep.subr.bf16.mxu0 0
        %6759 = vmatpush1.bf16.msra.mxu0 0
        %6760 = vmatprep.subr.bf16.mxu0 0
        %6761 = vmatpush1.bf16.msra.mxu0 0
        %6762 = vmatprep.subr.bf16.mxu0 0
        %6763 = vmatpush1.bf16.msra.mxu0 0
        %6764 = vmatprep.mubr.bf16.mxu0 0
        %6765 = vmatmul.mubr.bf16.gmra.mrb[0].mxu0 %v6718
        %v6766 = vpop.f32.mrb[0].mxu0
        %v6767 = vadd.f32 0.0, %v6766
        %v6768 = vpop.f32.mrb[0].mxu0
        %v6769 = vpop.f32.mrb[0].mxu0
        %v6770 = vadd.f32 0.0, %v6769
        %v6771 = vpop.f32.mrb[0].mxu0
        %6772 = vmatprep.mubr.bf16.mxu0 0
        %6773 = vmatmul.mubr.bf16.gmra.mrb[0].mxu0 %v6721
        %v6774 = vpop.f32.mrb[0].mxu0
        %v6775 = vadd.f32 0.0, %v6774
        %v6776 = vpop.f32.mrb[0].mxu0
        %v6777 = vpop.f32.mrb[0].mxu0
        %v6778 = vadd.f32 0.0, %v6777
        %v6779 = vpop.f32.mrb[0].mxu0
        %6780 = vmatprep.mubr.bf16.mxu0 0
        %6781 = vmatmul.mubr.bf16.gmra.mrb[0].mxu0 %v6724
        %v6782 = vpop.f32.mrb[0].mxu0
        %v6783 = vadd.f32 0.0, %v6782
        %v6784 = vpop.f32.mrb[0].mxu0
        %v6785 = vpop.f32.mrb[0].mxu0
        %v6786 = vadd.f32 0.0, %v6785
        %v6787 = vpop.f32.mrb[0].mxu0
        %6788 = vmatprep.mubr.bf16.mxu0 0
        %6789 = vmatmul.mubr.bf16.gmra.mrb[0].mxu0 %v6727
        %v6790 = vpop.f32.mrb[0].mxu0
        %v6791 = vadd.f32 0.0, %v6790
        %v6792 = vpop.f32.mrb[0].mxu0
        %v6793 = vpop.f32.mrb[0].mxu0
        %v6794 = vadd.f32 0.0, %v6793
        %v6795 = vpop.f32.mrb[0].mxu0
        %6796 = vdwg.mxu0
        %v6797 = vpack.c.bf16 %v6372, %v6367
        %v6798 = vpack.c.bf16 %v6382, %v6377
        %v6799 = vpack.c.bf16 %v6392, %v6387
        %v6800 = vpack.c.bf16 %v6402, %v6397
        %v6801 = vmul.f32 %v6367, %v6621
        %v6802 = vmul.f32 %v6372, %v6623
        %v6803 = vmul.f32 %v6377, %v6625
        %v6804 = vmul.f32 %v6382, %v6627
        %v6805 = vmul.f32 %v6387, %v6629
        %v6806 = vmul.f32 %v6392, %v6631
        %v6807 = vmul.f32 %v6397, %v6633
        %v6808 = vmul.f32 %v6402, %v6635
        %v6809 = vmul.f32 %v6634, 0.0
        %v6810 = vpack.c.bf16 %v6802, %v6801
        %v6811 = vpack.c.bf16 %v6804, %v6803
        %v6812 = vpack.c.bf16 %v6806, %v6805
        %v6813 = vpack.c.bf16 %v6808, %v6807
        %v6814 = vpack.c.bf16 %v6809, %v6809
        %vm6815 = vsmask.f32 7424
        %v6817 = vshrl.u32 %v6810, 16
        %v6819 = vshll.u32 %v6810, 16
        %v6821 = vrot.slane %v6819, 1
        %v6822 = vor.u32 %v6817, %v6821
        %v6824 = vshll.u32 %v6811, 16
        %v6826 = vrot.slane %v6824, 1
        %v6827 = vsel %vm6815, %v6822, %v6826
        %v6828 = vshrl.u32 %v6811, 16
        %v6830 = vor.u32 %v6828, %v6826
        %v6832 = vshll.u32 %v6812, 16
        %v6834 = vrot.slane %v6832, 1
        %v6835 = vsel %vm6815, %v6830, %v6834
        %v6836 = vshrl.u32 %v6812, 16
        %v6838 = vor.u32 %v6836, %v6834
        %v6840 = vshll.u32 %v6813, 16
        %v6842 = vrot.slane %v6840, 1
        %v6843 = vsel %vm6815, %v6838, %v6842
        %v6844 = vshrl.u32 %v6813, 16
        %v6846 = vor.u32 %v6844, %v6842
        %v6848 = vshll.u32 %v6814, 16
        %v6850 = vrot.slane %v6848, 1
        %v6851 = vsel %vm6815, %v6846, %v6850
        %v6853 = vsel %vm6507, %v6827, 0
        %v6856 = vsel %vm6507, %v6835, 0
        %v6859 = vsel %vm6507, %v6843, 0
        %v6862 = vsel %vm6507, %v6851, 0
        %v6865 = vsel %vm6520, %v6410, 0
        %6867 = vmatprep.subr.bf16.mxu0 0
        %6868 = vmatpush1.bf16.msra.mxu0 %v6865
        %6869 = vmatprep.subr.bf16.mxu0 0
        %6870 = vmatpush1.bf16.msra.mxu0 0
        %6871 = vmatprep.subr.bf16.mxu0 0
        %6872 = vmatpush1.bf16.msra.mxu0 0
        %6873 = vmatprep.subr.bf16.mxu0 0
        %6874 = vmatpush1.bf16.msra.mxu0 0
        %6875 = vmatprep.subr.bf16.mxu0 0
        %6876 = vmatpush1.bf16.msra.mxu0 0
        %6877 = vmatprep.subr.bf16.mxu0 0
        %6878 = vmatpush1.bf16.msra.mxu0 0
        %6879 = vmatprep.subr.bf16.mxu0 0
        %6880 = vmatpush1.bf16.msra.mxu0 0
        %6881 = vmatprep.subr.bf16.mxu0 0
        %6882 = vmatpush1.bf16.msra.mxu0 0
        %6883 = vmatprep.subr.bf16.mxu0 0
        %6884 = vmatpush1.bf16.msra.mxu0 0
        %6885 = vmatprep.subr.bf16.mxu0 0
        %6886 = vmatpush1.bf16.msra.mxu0 0
        %6887 = vmatprep.subr.bf16.mxu0 0
        %6888 = vmatpush1.bf16.msra.mxu0 0
        %6889 = vmatprep.subr.bf16.mxu0 0
        %6890 = vmatpush1.bf16.msra.mxu0 0
        %6891 = vmatprep.subr.bf16.mxu0 0
        %6892 = vmatpush1.bf16.msra.mxu0 0
        %6893 = vmatprep.subr.bf16.mxu0 0
        %6894 = vmatpush1.bf16.msra.mxu0 0
        %6895 = vmatprep.subr.bf16.mxu0 0
        %6896 = vmatpush1.bf16.msra.mxu0 0
        %6897 = vmatprep.subr.bf16.mxu0 0
        %6898 = vmatpush1.bf16.msra.mxu0 0
        %6899 = vmatprep.mubr.bf16.mxu0 0
        %6900 = vmatmul.mubr.bf16.gmra.mrb[0].mxu0 %v6853
        %v6901 = vpop.f32.mrb[0].mxu0
        %v6902 = vadd.f32 0.0, %v6901
        %v6903 = vpop.f32.mrb[0].mxu0
        %v6904 = vpop.f32.mrb[0].mxu0
        %v6905 = vadd.f32 0.0, %v6904
        %v6906 = vpop.f32.mrb[0].mxu0
        %6907 = vmatprep.mubr.bf16.mxu0 0
        %6908 = vmatmul.mubr.bf16.gmra.mrb[0].mxu0 %v6856
        %v6909 = vpop.f32.mrb[0].mxu0
        %v6910 = vadd.f32 0.0, %v6909
        %v6911 = vpop.f32.mrb[0].mxu0
        %v6912 = vpop.f32.mrb[0].mxu0
        %v6913 = vadd.f32 0.0, %v6912
        %v6914 = vpop.f32.mrb[0].mxu0
        %6915 = vmatprep.mubr.bf16.mxu0 0
        %6916 = vmatmul.mubr.bf16.gmra.mrb[0].mxu0 %v6859
        %v6917 = vpop.f32.mrb[0].mxu0
        %v6918 = vadd.f32 0.0, %v6917
        %v6919 = vpop.f32.mrb[0].mxu0
        %v6920 = vpop.f32.mrb[0].mxu0
        %v6921 = vadd.f32 0.0, %v6920
        %v6922 = vpop.f32.mrb[0].mxu0
        %6923 = vmatprep.mubr.bf16.mxu0 0
        %6924 = vmatmul.mubr.bf16.gmra.mrb[0].mxu0 %v6862
        %v6925 = vpop.f32.mrb[0].mxu0
        %v6926 = vadd.f32 0.0, %v6925
        %v6927 = vpop.f32.mrb[0].mxu0
        %v6928 = vpop.f32.mrb[0].mxu0
        %v6929 = vadd.f32 0.0, %v6928
        %v6930 = vpop.f32.mrb[0].mxu0
        %6931 = vdwg.mxu0
        %v6932 = vmul.f32 %v6367, %v6465
        %v6933 = vmul.f32 %v6372, %v6467
        %v6934 = vmul.f32 %v6377, %v6469
        %v6935 = vmul.f32 %v6382, %v6471
        %v6936 = vmul.f32 %v6387, %v6473
        %v6937 = vmul.f32 %v6392, %v6475
        %v6938 = vmul.f32 %v6397, %v6477
        %v6939 = vmul.f32 %v6402, %v6479
        %v6940 = vmul.f32 %v6478, 0.0
        %v6941 = vpack.c.bf16 %v6933, %v6932
        %v6942 = vpack.c.bf16 %v6935, %v6934
        %v6943 = vpack.c.bf16 %v6937, %v6936
        %v6944 = vpack.c.bf16 %v6939, %v6938
        %v6945 = vpack.c.bf16 %v6940, %v6940
        %v6946 = vpack.c.bf16 0.0, %v6402
        %v6948 = vsel %vm6507, %v6946, 0
        %v6951 = vsel %vm6520, %v6412, 0
        %6953 = vmatprep.subr.bf16.mxu0 0
        %6954 = vmatpush1.bf16.msra.mxu0 %v6951
        %6955 = vmatprep.subr.bf16.mxu0 0
        %6956 = vmatpush1.bf16.msra.mxu0 0
        %6957 = vmatprep.subr.bf16.mxu0 0
        %6958 = vmatpush1.bf16.msra.mxu0 0
        %6959 = vmatprep.subr.bf16.mxu0 0
        %6960 = vmatpush1.bf16.msra.mxu0 0
        %6961 = vmatprep.subr.bf16.mxu0 0
        %6962 = vmatpush1.bf16.msra.mxu0 0
        %6963 = vmatprep.subr.bf16.mxu0 0
        %6964 = vmatpush1.bf16.msra.mxu0 0
        %6965 = vmatprep.subr.bf16.mxu0 0
        %6966 = vmatpush1.bf16.msra.mxu0 0
        %6967 = vmatprep.subr.bf16.mxu0 0
        %6968 = vmatpush1.bf16.msra.mxu0 0
        %6969 = vmatprep.subr.bf16.mxu0 0
        %6970 = vmatpush1.bf16.msra.mxu0 0
        %6971 = vmatprep.subr.bf16.mxu0 0
        %6972 = vmatpush1.bf16.msra.mxu0 0
        %6973 = vmatprep.subr.bf16.mxu0 0
        %6974 = vmatpush1.bf16.msra.mxu0 0
        %6975 = vmatprep.subr.bf16.mxu0 0
        %6976 = vmatpush1.bf16.msra.mxu0 0
        %6977 = vmatprep.subr.bf16.mxu0 0
        %6978 = vmatpush1.bf16.msra.mxu0 0
        %6979 = vmatprep.subr.bf16.mxu0 0
        %6980 = vmatpush1.bf16.msra.mxu0 0
        %6981 = vmatprep.subr.bf16.mxu0 0
        %6982 = vmatpush1.bf16.msra.mxu0 0
        %6983 = vmatprep.subr.bf16.mxu0 0
        %6984 = vmatpush1.bf16.msra.mxu0 0
        %6985 = vmatprep.mubr.bf16.mxu0 0
        %6986 = vmatmul.mubr.bf16.gmra.mrb[0].mxu0 %v6512
        %v6987 = vpop.f32.mrb[0].mxu0
        %v6988 = vadd.f32 0.0, %v6987
        %v6989 = vpop.f32.mrb[0].mxu0
        %v6990 = vpop.f32.mrb[0].mxu0
        %v6991 = vadd.f32 0.0, %v6990
        %v6992 = vpop.f32.mrb[0].mxu0
        %6993 = vmatprep.mubr.bf16.mxu0 0
        %6994 = vmatmul.mubr.bf16.gmra.mrb[0].mxu0 %v6515
        %v6995 = vpop.f32.mrb[0].mxu0
        %v6996 = vadd.f32 0.0, %v6995
        %v6997 = vpop.f32.mrb[0].mxu0
        %v6998 = vpop.f32.mrb[0].mxu0
        %v6999 = vadd.f32 0.0, %v6998
        %v7000 = vpop.f32.mrb[0].mxu0
        %7001 = vmatprep.mubr.bf16.mxu0 0
        %7002 = vmatmul.mubr.bf16.gmra.mrb[0].mxu0 %v6518
        %v7003 = vpop.f32.mrb[0].mxu0
        %v7004 = vadd.f32 0.0, %v7003
        %v7005 = vpop.f32.mrb[0].mxu0
        %v7006 = vpop.f32.mrb[0].mxu0
        %v7007 = vadd.f32 0.0, %v7006
        %v7008 = vpop.f32.mrb[0].mxu0
        %7009 = vmatprep.mubr.bf16.mxu0 0
        %7010 = vmatmul.mubr.bf16.gmra.mrb[0].mxu0 %v6948
        %v7011 = vpop.f32.mrb[0].mxu0
        %v7012 = vadd.f32 0.0, %v7011
        %v7013 = vpop.f32.mrb[0].mxu0
        %v7014 = vpop.f32.mrb[0].mxu0
        %v7015 = vadd.f32 0.0, %v7014
        %v7016 = vpop.f32.mrb[0].mxu0
        %7017 = vdwg.mxu0
        %v7018 = vmul.f32 %v6372, %v6621
        %v7019 = vmul.f32 %v6377, %v6623
        %v7020 = vmul.f32 %v6382, %v6625
        %v7021 = vmul.f32 %v6387, %v6627
        %v7022 = vmul.f32 %v6392, %v6629
        %v7023 = vmul.f32 %v6397, %v6631
        %v7024 = vmul.f32 %v6402, %v6633
        %v7025 = vmul.f32 %v6635, 0.0
        %v7026 = vpack.c.bf16 %v7019, %v7018
        %v7027 = vpack.c.bf16 %v7021, %v7020
        %v7028 = vpack.c.bf16 %v7023, %v7022
        %v7029 = vpack.c.bf16 %v7025, %v7024
        %v7031 = vshrl.u32 %v7026, 16
        %v7033 = vshll.u32 %v7026, 16
        %v7035 = vrot.slane %v7033, 1
        %v7036 = vor.u32 %v7031, %v7035
        %v7038 = vshll.u32 %v7027, 16
        %v7040 = vrot.slane %v7038, 1
        %v7041 = vsel %vm6815, %v7036, %v7040
        %v7042 = vshrl.u32 %v7027, 16
        %v7044 = vor.u32 %v7042, %v7040
        %v7046 = vshll.u32 %v7028, 16
        %v7048 = vrot.slane %v7046, 1
        %v7049 = vsel %vm6815, %v7044, %v7048
        %v7050 = vshrl.u32 %v7028, 16
        %v7052 = vor.u32 %v7050, %v7048
        %v7054 = vshll.u32 %v7029, 16
        %v7056 = vrot.slane %v7054, 1
        %v7057 = vsel %vm6815, %v7052, %v7056
        %v7058 = vshrl.u32 %v7029, 16
        %v7060 = vor.u32 %v7058, %v7056
        %v7061 = vsel %vm6815, %v7060, %v6850
        %v7063 = vsel %vm6507, %v7041, 0
        %v7066 = vsel %vm6507, %v7049, 0
        %v7069 = vsel %vm6507, %v7057, 0
        %v7072 = vsel %vm6507, %v7061, 0
        %v7075 = vsel %vm6520, %v6413, 0
        %7077 = vmatprep.subr.bf16.mxu0 0
        %7078 = vmatpush1.bf16.msra.mxu0 %v7075
        %7079 = vmatprep.subr.bf16.mxu0 0
        %7080 = vmatpush1.bf16.msra.mxu0 0
        %7081 = vmatprep.subr.bf16.mxu0 0
        %7082 = vmatpush1.bf16.msra.mxu0 0
        %7083 = vmatprep.subr.bf16.mxu0 0
        %7084 = vmatpush1.bf16.msra.mxu0 0
        %7085 = vmatprep.subr.bf16.mxu0 0
        %7086 = vmatpush1.bf16.msra.mxu0 0
        %7087 = vmatprep.subr.bf16.mxu0 0
        %7088 = vmatpush1.bf16.msra.mxu0 0
        %7089 = vmatprep.subr.bf16.mxu0 0
        %7090 = vmatpush1.bf16.msra.mxu0 0
        %7091 = vmatprep.subr.bf16.mxu0 0
        %7092 = vmatpush1.bf16.msra.mxu0 0
        %7093 = vmatprep.subr.bf16.mxu0 0
        %7094 = vmatpush1.bf16.msra.mxu0 0
        %7095 = vmatprep.subr.bf16.mxu0 0
        %7096 = vmatpush1.bf16.msra.mxu0 0
        %7097 = vmatprep.subr.bf16.mxu0 0
        %7098 = vmatpush1.bf16.msra.mxu0 0
        %7099 = vmatprep.subr.bf16.mxu0 0
        %7100 = vmatpush1.bf16.msra.mxu0 0
        %7101 = vmatprep.subr.bf16.mxu0 0
        %7102 = vmatpush1.bf16.msra.mxu0 0
        %7103 = vmatprep.subr.bf16.mxu0 0
        %7104 = vmatpush1.bf16.msra.mxu0 0
        %7105 = vmatprep.subr.bf16.mxu0 0
        %7106 = vmatpush1.bf16.msra.mxu0 0
        %7107 = vmatprep.subr.bf16.mxu0 0
        %7108 = vmatpush1.bf16.msra.mxu0 0
        %7109 = vmatprep.mubr.bf16.mxu0 0
        %7110 = vmatmul.mubr.bf16.gmra.mrb[0].mxu0 %v7063
        %v7111 = vpop.f32.mrb[0].mxu0
        %v7112 = vadd.f32 0.0, %v7111
        %v7113 = vpop.f32.mrb[0].mxu0
        %v7114 = vpop.f32.mrb[0].mxu0
        %v7115 = vadd.f32 0.0, %v7114
        %v7116 = vpop.f32.mrb[0].mxu0
        %7117 = vmatprep.mubr.bf16.mxu0 0
        %7118 = vmatmul.mubr.bf16.gmra.mrb[0].mxu0 %v7066
        %v7119 = vpop.f32.mrb[0].mxu0
        %v7120 = vadd.f32 0.0, %v7119
        %v7121 = vpop.f32.mrb[0].mxu0
        %v7122 = vpop.f32.mrb[0].mxu0
        %v7123 = vadd.f32 0.0, %v7122
        %v7124 = vpop.f32.mrb[0].mxu0
        %7125 = vmatprep.mubr.bf16.mxu0 0
        %7126 = vmatmul.mubr.bf16.gmra.mrb[0].mxu0 %v7069
        %v7127 = vpop.f32.mrb[0].mxu0
        %v7128 = vadd.f32 0.0, %v7127
        %v7129 = vpop.f32.mrb[0].mxu0
        %v7130 = vpop.f32.mrb[0].mxu0
        %v7131 = vadd.f32 0.0, %v7130
        %v7132 = vpop.f32.mrb[0].mxu0
        %7133 = vmatprep.mubr.bf16.mxu0 0
        %7134 = vmatmul.mubr.bf16.gmra.mrb[0].mxu0 %v7072
        %v7135 = vpop.f32.mrb[0].mxu0
        %v7136 = vadd.f32 0.0, %v7135
        %v7137 = vpop.f32.mrb[0].mxu0
        %v7138 = vpop.f32.mrb[0].mxu0
        %v7139 = vadd.f32 0.0, %v7138
        %v7140 = vpop.f32.mrb[0].mxu0
        %7141 = vdwg.mxu0
        %v7143 = vshrl.u32 %v6498, 16
        %v7145 = vrot.slane %v7143, 3
        %v7146 = vshll.u32 %v6498, 16
        %v7148 = vrot.slane %v7146, 4
        %v7149 = vor.u32 %v7145, %v7148
        %v7151 = vshrl.u32 %v6499, 16
        %v7153 = vrot.slane %v7151, 3
        %v7154 = vshll.u32 %v6499, 16
        %v7156 = vrot.slane %v7154, 4
        %v7157 = vor.u32 %v7153, %v7156
        %v7158 = vsel %vm6672, %v7149, %v7157
        %v7160 = vshrl.u32 %v6500, 16
        %v7162 = vrot.slane %v7160, 3
        %v7163 = vshll.u32 %v6500, 16
        %v7165 = vrot.slane %v7163, 4
        %v7166 = vor.u32 %v7162, %v7165
        %v7167 = vsel %vm6672, %v7157, %v7166
        %v7169 = vshrl.u32 %v6501, 16
        %v7171 = vrot.slane %v7169, 3
        %v7172 = vshll.u32 %v6501, 16
        %v7174 = vrot.slane %v7172, 4
        %v7175 = vor.u32 %v7171, %v7174
        %v7176 = vsel %vm6672, %v7166, %v7175
        %v7178 = vshrl.u32 %v6502, 16
        %v7180 = vrot.slane %v7178, 3
        %v7181 = vshll.u32 %v6502, 16
        %v7183 = vrot.slane %v7181, 4
        %v7184 = vor.u32 %v7180, %v7183
        %v7185 = vsel %vm6672, %v7175, %v7184
        %v7187 = vsel %vm6507, %v7158, 0
        %v7190 = vsel %vm6507, %v7167, 0
        %v7193 = vsel %vm6507, %v7176, 0
        %v7196 = vsel %vm6507, %v7185, 0
        %v7199 = vsel %vm6520, %v6405, 0
        %7201 = vmatprep.subr.bf16.mxu0 0
        %7202 = vmatpush1.bf16.msra.mxu0 %v7199
        %7203 = vmatprep.subr.bf16.mxu0 0
        %7204 = vmatpush1.bf16.msra.mxu0 0
        %7205 = vmatprep.subr.bf16.mxu0 0
        %7206 = vmatpush1.bf16.msra.mxu0 0
        %7207 = vmatprep.subr.bf16.mxu0 0
        %7208 = vmatpush1.bf16.msra.mxu0 0
        %7209 = vmatprep.subr.bf16.mxu0 0
        %7210 = vmatpush1.bf16.msra.mxu0 0
        %7211 = vmatprep.subr.bf16.mxu0 0
        %7212 = vmatpush1.bf16.msra.mxu0 0
        %7213 = vmatprep.subr.bf16.mxu0 0
        %7214 = vmatpush1.bf16.msra.mxu0 0
        %7215 = vmatprep.subr.bf16.mxu0 0
        %7216 = vmatpush1.bf16.msra.mxu0 0
        %7217 = vmatprep.subr.bf16.mxu0 0
        %7218 = vmatpush1.bf16.msra.mxu0 0
        %7219 = vmatprep.subr.bf16.mxu0 0
        %7220 = vmatpush1.bf16.msra.mxu0 0
        %7221 = vmatprep.subr.bf16.mxu0 0
        %7222 = vmatpush1.bf16.msra.mxu0 0
        %7223 = vmatprep.subr.bf16.mxu0 0
        %7224 = vmatpush1.bf16.msra.mxu0 0
        %7225 = vmatprep.subr.bf16.mxu0 0
        %7226 = vmatpush1.bf16.msra.mxu0 0
        %7227 = vmatprep.subr.bf16.mxu0 0
        %7228 = vmatpush1.bf16.msra.mxu0 0
        %7229 = vmatprep.subr.bf16.mxu0 0
        %7230 = vmatpush1.bf16.msra.mxu0 0
        %7231 = vmatprep.subr.bf16.mxu0 0
        %7232 = vmatpush1.bf16.msra.mxu0 0
        %7233 = vmatprep.mubr.bf16.mxu0 0
        %7234 = vmatmul.mubr.bf16.gmra.mrb[0].mxu0 %v7187
        %v7235 = vpop.f32.mrb[0].mxu0
        %v7236 = vadd.f32 %v6559, %v7235
        %v7237 = vpop.f32.mrb[0].mxu0
        %v7238 = vpop.f32.mrb[0].mxu0
        %v7239 = vadd.f32 %v6562, %v7238
        %v7240 = vpop.f32.mrb[0].mxu0
        %7241 = vmatprep.mubr.bf16.mxu0 0
        %7242 = vmatmul.mubr.bf16.gmra.mrb[0].mxu0 %v7190
        %v7243 = vpop.f32.mrb[0].mxu0
        %v7244 = vadd.f32 %v6567, %v7243
        %v7245 = vpop.f32.mrb[0].mxu0
        %v7246 = vpop.f32.mrb[0].mxu0
        %v7247 = vadd.f32 %v6570, %v7246
        %v7248 = vpop.f32.mrb[0].mxu0
        %7249 = vmatprep.mubr.bf16.mxu0 0
        %7250 = vmatmul.mubr.bf16.gmra.mrb[0].mxu0 %v7193
        %v7251 = vpop.f32.mrb[0].mxu0
        %v7252 = vadd.f32 %v6575, %v7251
        %v7253 = vpop.f32.mrb[0].mxu0
        %v7254 = vpop.f32.mrb[0].mxu0
        %v7255 = vadd.f32 %v6578, %v7254
        %v7256 = vpop.f32.mrb[0].mxu0
        %7257 = vmatprep.mubr.bf16.mxu0 0
        %7258 = vmatmul.mubr.bf16.gmra.mrb[0].mxu0 %v7196
        %v7259 = vpop.f32.mrb[0].mxu0
        %v7260 = vadd.f32 %v6583, %v7259
        %v7261 = vpop.f32.mrb[0].mxu0
        %v7262 = vpop.f32.mrb[0].mxu0
        %v7263 = vadd.f32 %v6586, %v7262
        %v7264 = vpop.f32.mrb[0].mxu0
        %7265 = vdwg.mxu0
        %v7267 = vshrl.u32 %v6654, 16
        %v7269 = vshll.u32 %v6654, 16
        %v7271 = vrot.slane %v7269, 1
        %v7272 = vor.u32 %v7267, %v7271
        %v7274 = vshll.u32 %v6655, 16
        %v7276 = vrot.slane %v7274, 1
        %v7277 = vsel %vm6815, %v7272, %v7276
        %v7278 = vshrl.u32 %v6655, 16
        %v7280 = vor.u32 %v7278, %v7276
        %v7282 = vshll.u32 %v6656, 16
        %v7284 = vrot.slane %v7282, 1
        %v7285 = vsel %vm6815, %v7280, %v7284
        %v7286 = vshrl.u32 %v6656, 16
        %v7288 = vor.u32 %v7286, %v7284
        %v7290 = vshll.u32 %v6657, 16
        %v7292 = vrot.slane %v7290, 1
        %v7293 = vsel %vm6815, %v7288, %v7292
        %v7294 = vshrl.u32 %v6657, 16
        %v7296 = vor.u32 %v7294, %v7292
        %v7298 = vshll.u32 %v6658, 16
        %v7300 = vrot.slane %v7298, 1
        %v7301 = vsel %vm6815, %v7296, %v7300
        %v7303 = vsel %vm6507, %v7277, 0
        %v7306 = vsel %vm6507, %v7285, 0
        %v7309 = vsel %vm6507, %v7293, 0
        %v7312 = vsel %vm6507, %v7301, 0
        %v7315 = vsel %vm6520, %v6407, 0
        %7317 = vmatprep.subr.bf16.mxu0 0
        %7318 = vmatpush1.bf16.msra.mxu0 %v7315
        %7319 = vmatprep.subr.bf16.mxu0 0
        %7320 = vmatpush1.bf16.msra.mxu0 0
        %7321 = vmatprep.subr.bf16.mxu0 0
        %7322 = vmatpush1.bf16.msra.mxu0 0
        %7323 = vmatprep.subr.bf16.mxu0 0
        %7324 = vmatpush1.bf16.msra.mxu0 0
        %7325 = vmatprep.subr.bf16.mxu0 0
        %7326 = vmatpush1.bf16.msra.mxu0 0
        %7327 = vmatprep.subr.bf16.mxu0 0
        %7328 = vmatpush1.bf16.msra.mxu0 0
        %7329 = vmatprep.subr.bf16.mxu0 0
        %7330 = vmatpush1.bf16.msra.mxu0 0
        %7331 = vmatprep.subr.bf16.mxu0 0
        %7332 = vmatpush1.bf16.msra.mxu0 0
        %7333 = vmatprep.subr.bf16.mxu0 0
        %7334 = vmatpush1.bf16.msra.mxu0 0
        %7335 = vmatprep.subr.bf16.mxu0 0
        %7336 = vmatpush1.bf16.msra.mxu0 0
        %7337 = vmatprep.subr.bf16.mxu0 0
        %7338 = vmatpush1.bf16.msra.mxu0 0
        %7339 = vmatprep.subr.bf16.mxu0 0
        %7340 = vmatpush1.bf16.msra.mxu0 0
        %7341 = vmatprep.subr.bf16.mxu0 0
        %7342 = vmatpush1.bf16.msra.mxu0 0
        %7343 = vmatprep.subr.bf16.mxu0 0
        %7344 = vmatpush1.bf16.msra.mxu0 0
        %7345 = vmatprep.subr.bf16.mxu0 0
        %7346 = vmatpush1.bf16.msra.mxu0 0
        %7347 = vmatprep.subr.bf16.mxu0 0
        %7348 = vmatpush1.bf16.msra.mxu0 0
        %7349 = vmatprep.mubr.bf16.mxu0 0
        %7350 = vmatmul.mubr.bf16.gmra.mrb[0].mxu0 %v7303
        %v7351 = vpop.f32.mrb[0].mxu0
        %v7352 = vadd.f32 %v6767, %v7351
        %v7353 = vpop.f32.mrb[0].mxu0
        %v7354 = vpop.f32.mrb[0].mxu0
        %v7355 = vadd.f32 %v6770, %v7354
        %v7356 = vpop.f32.mrb[0].mxu0
        %7357 = vmatprep.mubr.bf16.mxu0 0
        %7358 = vmatmul.mubr.bf16.gmra.mrb[0].mxu0 %v7306
        %v7359 = vpop.f32.mrb[0].mxu0
        %v7360 = vadd.f32 %v6775, %v7359
        %v7361 = vpop.f32.mrb[0].mxu0
        %v7362 = vpop.f32.mrb[0].mxu0
        %v7363 = vadd.f32 %v6778, %v7362
        %v7364 = vpop.f32.mrb[0].mxu0
        %7365 = vmatprep.mubr.bf16.mxu0 0
        %7366 = vmatmul.mubr.bf16.gmra.mrb[0].mxu0 %v7309
        %v7367 = vpop.f32.mrb[0].mxu0
        %v7368 = vadd.f32 %v6783, %v7367
        %v7369 = vpop.f32.mrb[0].mxu0
        %v7370 = vpop.f32.mrb[0].mxu0
        %v7371 = vadd.f32 %v6786, %v7370
        %v7372 = vpop.f32.mrb[0].mxu0
        %7373 = vmatprep.mubr.bf16.mxu0 0
        %7374 = vmatmul.mubr.bf16.gmra.mrb[0].mxu0 %v7312
        %v7375 = vpop.f32.mrb[0].mxu0
        %v7376 = vadd.f32 %v6791, %v7375
        %v7377 = vpop.f32.mrb[0].mxu0
        %v7378 = vpop.f32.mrb[0].mxu0
        %v7379 = vadd.f32 %v6794, %v7378
        %v7380 = vpop.f32.mrb[0].mxu0
        %7381 = vdwg.mxu0
        %v7383 = vsel %vm6507, %v6797, 0
        %v7386 = vsel %vm6507, %v6798, 0
        %v7389 = vsel %vm6507, %v6799, 0
        %v7392 = vsel %vm6507, %v6800, 0
        %v7395 = vsel %vm6520, %v6409, 0
        %7397 = vmatprep.subr.bf16.mxu0 0
        %7398 = vmatpush1.bf16.msra.mxu0 %v7395
        %7399 = vmatprep.subr.bf16.mxu0 0
        %7400 = vmatpush1.bf16.msra.mxu0 0
        %7401 = vmatprep.subr.bf16.mxu0 0
        %7402 = vmatpush1.bf16.msra.mxu0 0
        %7403 = vmatprep.subr.bf16.mxu0 0
        %7404 = vmatpush1.bf16.msra.mxu0 0
        %7405 = vmatprep.subr.bf16.mxu0 0
        %7406 = vmatpush1.bf16.msra.mxu0 0
        %7407 = vmatprep.subr.bf16.mxu0 0
        %7408 = vmatpush1.bf16.msra.mxu0 0
        %7409 = vmatprep.subr.bf16.mxu0 0
        %7410 = vmatpush1.bf16.msra.mxu0 0
        %7411 = vmatprep.subr.bf16.mxu0 0
        %7412 = vmatpush1.bf16.msra.mxu0 0
        %7413 = vmatprep.subr.bf16.mxu0 0
        %7414 = vmatpush1.bf16.msra.mxu0 0
        %7415 = vmatprep.subr.bf16.mxu0 0
        %7416 = vmatpush1.bf16.msra.mxu0 0
        %7417 = vmatprep.subr.bf16.mxu0 0
        %7418 = vmatpush1.bf16.msra.mxu0 0
        %7419 = vmatprep.subr.bf16.mxu0 0
        %7420 = vmatpush1.bf16.msra.mxu0 0
        %7421 = vmatprep.subr.bf16.mxu0 0
        %7422 = vmatpush1.bf16.msra.mxu0 0
        %7423 = vmatprep.subr.bf16.mxu0 0
        %7424 = vmatpush1.bf16.msra.mxu0 0
        %7425 = vmatprep.subr.bf16.mxu0 0
        %7426 = vmatpush1.bf16.msra.mxu0 0
        %7427 = vmatprep.subr.bf16.mxu0 0
        %7428 = vmatpush1.bf16.msra.mxu0 0
        %7429 = vmatprep.mubr.bf16.mxu0 0
        %7430 = vmatmul.mubr.bf16.gmra.mrb[0].mxu0 %v7383
        %v7431 = vpop.f32.mrb[0].mxu0
        %v7432 = vadd.f32 %v6902, %v7431
        %v7433 = vpop.f32.mrb[0].mxu0
        %v7434 = vpop.f32.mrb[0].mxu0
        %v7435 = vadd.f32 %v6905, %v7434
        %v7436 = vpop.f32.mrb[0].mxu0
        %7437 = vmatprep.mubr.bf16.mxu0 0
        %7438 = vmatmul.mubr.bf16.gmra.mrb[0].mxu0 %v7386
        %v7439 = vpop.f32.mrb[0].mxu0
        %v7440 = vadd.f32 %v6910, %v7439
        %v7441 = vpop.f32.mrb[0].mxu0
        %v7442 = vpop.f32.mrb[0].mxu0
        %v7443 = vadd.f32 %v6913, %v7442
        %v7444 = vpop.f32.mrb[0].mxu0
        %7445 = vmatprep.mubr.bf16.mxu0 0
        %7446 = vmatmul.mubr.bf16.gmra.mrb[0].mxu0 %v7389
        %v7447 = vpop.f32.mrb[0].mxu0
        %v7448 = vadd.f32 %v6918, %v7447
        %v7449 = vpop.f32.mrb[0].mxu0
        %v7450 = vpop.f32.mrb[0].mxu0
        %v7451 = vadd.f32 %v6921, %v7450
        %v7452 = vpop.f32.mrb[0].mxu0
        %7453 = vmatprep.mubr.bf16.mxu0 0
        %7454 = vmatmul.mubr.bf16.gmra.mrb[0].mxu0 %v7392
        %v7455 = vpop.f32.mrb[0].mxu0
        %v7456 = vadd.f32 %v6926, %v7455
        %v7457 = vpop.f32.mrb[0].mxu0
        %v7458 = vpop.f32.mrb[0].mxu0
        %v7459 = vadd.f32 %v6929, %v7458
        %v7460 = vpop.f32.mrb[0].mxu0
        %7461 = vdwg.mxu0
        %v7463 = vshrl.u32 %v6941, 16
        %v7465 = vrot.slane %v7463, 3
        %v7466 = vshll.u32 %v6941, 16
        %v7468 = vrot.slane %v7466, 4
        %v7469 = vor.u32 %v7465, %v7468
        %v7471 = vshrl.u32 %v6942, 16
        %v7473 = vrot.slane %v7471, 3
        %v7474 = vshll.u32 %v6942, 16
        %v7476 = vrot.slane %v7474, 4
        %v7477 = vor.u32 %v7473, %v7476
        %v7478 = vsel %vm6672, %v7469, %v7477
        %v7480 = vshrl.u32 %v6943, 16
        %v7482 = vrot.slane %v7480, 3
        %v7483 = vshll.u32 %v6943, 16
        %v7485 = vrot.slane %v7483, 4
        %v7486 = vor.u32 %v7482, %v7485
        %v7487 = vsel %vm6672, %v7477, %v7486
        %v7489 = vshrl.u32 %v6944, 16
        %v7491 = vrot.slane %v7489, 3
        %v7492 = vshll.u32 %v6944, 16
        %v7494 = vrot.slane %v7492, 4
        %v7495 = vor.u32 %v7491, %v7494
        %v7496 = vsel %vm6672, %v7486, %v7495
        %v7498 = vshrl.u32 %v6945, 16
        %v7500 = vrot.slane %v7498, 3
        %v7501 = vshll.u32 %v6945, 16
        %v7503 = vrot.slane %v7501, 4
        %v7504 = vor.u32 %v7500, %v7503
        %v7505 = vsel %vm6672, %v7495, %v7504
        %v7507 = vsel %vm6507, %v7478, 0
        %v7510 = vsel %vm6507, %v7487, 0
        %v7513 = vsel %vm6507, %v7496, 0
        %v7516 = vsel %vm6507, %v7505, 0
        %v7519 = vsel %vm6520, %v6411, 0
        %7521 = vmatprep.subr.bf16.mxu0 0
        %7522 = vmatpush1.bf16.msra.mxu0 %v7519
        %7523 = vmatprep.subr.bf16.mxu0 0
        %7524 = vmatpush1.bf16.msra.mxu0 0
        %7525 = vmatprep.subr.bf16.mxu0 0
        %7526 = vmatpush1.bf16.msra.mxu0 0
        %7527 = vmatprep.subr.bf16.mxu0 0
        %7528 = vmatpush1.bf16.msra.mxu0 0
        %7529 = vmatprep.subr.bf16.mxu0 0
        %7530 = vmatpush1.bf16.msra.mxu0 0
        %7531 = vmatprep.subr.bf16.mxu0 0
        %7532 = vmatpush1.bf16.msra.mxu0 0
        %7533 = vmatprep.subr.bf16.mxu0 0
        %7534 = vmatpush1.bf16.msra.mxu0 0
        %7535 = vmatprep.subr.bf16.mxu0 0
        %7536 = vmatpush1.bf16.msra.mxu0 0
        %7537 = vmatprep.subr.bf16.mxu0 0
        %7538 = vmatpush1.bf16.msra.mxu0 0
        %7539 = vmatprep.subr.bf16.mxu0 0
        %7540 = vmatpush1.bf16.msra.mxu0 0
        %7541 = vmatprep.subr.bf16.mxu0 0
        %7542 = vmatpush1.bf16.msra.mxu0 0
        %7543 = vmatprep.subr.bf16.mxu0 0
        %7544 = vmatpush1.bf16.msra.mxu0 0
        %7545 = vmatprep.subr.bf16.mxu0 0
        %7546 = vmatpush1.bf16.msra.mxu0 0
        %7547 = vmatprep.subr.bf16.mxu0 0
        %7548 = vmatpush1.bf16.msra.mxu0 0
        %7549 = vmatprep.subr.bf16.mxu0 0
        %7550 = vmatpush1.bf16.msra.mxu0 0
        %7551 = vmatprep.subr.bf16.mxu0 0
        %7552 = vmatpush1.bf16.msra.mxu0 0
        %7553 = vmatprep.mubr.bf16.mxu0 0
        %7554 = vmatmul.mubr.bf16.gmra.mrb[0].mxu0 %v7507
        %v7555 = vpop.f32.mrb[0].mxu0
        %v7556 = vadd.f32 %v6988, %v7555
        %v7557 = vpop.f32.mrb[0].mxu0
        %v7558 = vpop.f32.mrb[0].mxu0
        %v7559 = vadd.f32 %v6991, %v7558
        %v7560 = vpop.f32.mrb[0].mxu0
        %7561 = vmatprep.mubr.bf16.mxu0 0
        %7562 = vmatmul.mubr.bf16.gmra.mrb[0].mxu0 %v7510
        %v7563 = vpop.f32.mrb[0].mxu0
        %v7564 = vadd.f32 %v6996, %v7563
        %v7565 = vpop.f32.mrb[0].mxu0
        %v7566 = vpop.f32.mrb[0].mxu0
        %v7567 = vadd.f32 %v6999, %v7566
        %v7568 = vpop.f32.mrb[0].mxu0
        %7569 = vmatprep.mubr.bf16.mxu0 0
        %7570 = vmatmul.mubr.bf16.gmra.mrb[0].mxu0 %v7513
        %v7571 = vpop.f32.mrb[0].mxu0
        %v7572 = vadd.f32 %v7004, %v7571
        %v7573 = vpop.f32.mrb[0].mxu0
        %v7574 = vpop.f32.mrb[0].mxu0
        %v7575 = vadd.f32 %v7007, %v7574
        %v7576 = vpop.f32.mrb[0].mxu0
        %7577 = vmatprep.mubr.bf16.mxu0 0
        %7578 = vmatmul.mubr.bf16.gmra.mrb[0].mxu0 %v7516
        %v7579 = vpop.f32.mrb[0].mxu0
        %v7580 = vadd.f32 %v7012, %v7579
        %v7581 = vpop.f32.mrb[0].mxu0
        %v7582 = vpop.f32.mrb[0].mxu0
        %v7583 = vadd.f32 %v7015, %v7582
        %v7584 = vpop.f32.mrb[0].mxu0
        %7585 = vdwg.mxu0
        %v7586 = vadd.f32 %v7236, %v7352
        %v7587 = vadd.f32 %v7239, %v7355
        %v7588 = vadd.f32 %v7244, %v7360
        %v7589 = vadd.f32 %v7247, %v7363
        %v7590 = vadd.f32 %v7252, %v7368
        %v7591 = vadd.f32 %v7255, %v7371
        %v7592 = vadd.f32 %v7260, %v7376
        %v7593 = vadd.f32 %v7263, %v7379
        %v7594 = vadd.f32 %v7432, %v7556
        %v7595 = vadd.f32 %v7435, %v7559
        %v7596 = vadd.f32 %v7440, %v7564
        %v7597 = vadd.f32 %v7443, %v7567
        %v7598 = vadd.f32 %v7448, %v7572
        %v7599 = vadd.f32 %v7451, %v7575
        %v7600 = vadd.f32 %v7456, %v7580
        %v7601 = vadd.f32 %v7459, %v7583
        %v7602 = vadd.f32 %v7586, %v7594
        %v7603 = vadd.f32 %v7587, %v7595
        %v7604 = vadd.f32 %v7588, %v7596
        %v7605 = vadd.f32 %v7589, %v7597
        %v7606 = vadd.f32 %v7590, %v7598
        %v7607 = vadd.f32 %v7591, %v7599
        %v7608 = vadd.f32 %v7592, %v7600
        %v7609 = vadd.f32 %v7593, %v7601
        %v7610 = vadd.f32 %v7602, %v7112
        %v7611 = vadd.f32 %v7603, %v7115
        %v7612 = vadd.f32 %v7604, %v7120
        %v7613 = vadd.f32 %v7605, %v7123
        %v7614 = vadd.f32 %v7606, %v7128
        %v7615 = vadd.f32 %v7607, %v7131
        %v7616 = vadd.f32 %v7608, %v7136
        %v7617 = vadd.f32 %v7609, %v7139
        %v7619 = vlaneseq
        %v7620 = vshrl.u32 %v7619, 7
        %v7621 = vsub.s32 0, %v7620
        %v7622 = vrot.slane %v6414, %v7621
        %v7624 = vadd.f32 %v7610, %v7622
        %v7625 = vadd.f32 %v7611, %v7622
        %v7626 = vadd.f32 %v7612, %v7622
        %v7627 = vadd.f32 %v7613, %v7622
        %v7628 = vadd.f32 %v7614, %v7622
        %v7629 = vadd.f32 %v7615, %v7622
        %v7630 = vadd.f32 %v7616, %v7622
        %v7631 = vadd.f32 %v7617, %v7622
        %v7632 = vmax.f32 %v7624, 0.0
        %v7633 = vmax.f32 %v7625, 0.0
        %v7634 = vmax.f32 %v7626, 0.0
        %v7635 = vmax.f32 %v7627, 0.0
        %v7636 = vmax.f32 %v7628, 0.0
        %v7637 = vmax.f32 %v7629, 0.0
        %v7638 = vmax.f32 %v7630, 0.0
        %v7639 = vmax.f32 %v7631, 0.0
        %v7640 = vmul.f32 %v7632, %v6469
        %v7641 = vmul.f32 %v7633, %v6471
        %v7642 = vmul.f32 %v7634, %v6473
        %v7643 = vmul.f32 %v7635, %v6475
        %v7644 = vmul.f32 %v7636, %v6477
        %v7645 = vmul.f32 %v7637, %v6479
        %v7646 = vmul.f32 %v7638, %v6478
        %v7647 = vmul.f32 %v7632, %v6623
        %v7648 = vmul.f32 %v7633, %v6625
        %v7649 = vmul.f32 %v7634, %v6627
        %v7650 = vmul.f32 %v7635, %v6629
        %v7651 = vmul.f32 %v7636, %v6631
        %v7652 = vmul.f32 %v7637, %v6633
        %v7653 = vmul.f32 %v7638, %v6635
        %v7654 = vmul.f32 %v7639, %v6634
        %v7655 = vmul.f32 %v7632, %v6467
        %v7656 = vmul.f32 %v7633, %v6469
        %v7657 = vmul.f32 %v7634, %v6471
        %v7658 = vmul.f32 %v7635, %v6473
        %v7659 = vmul.f32 %v7636, %v6475
        %v7660 = vmul.f32 %v7637, %v6477
        %v7661 = vmul.f32 %v7638, %v6479
        %v7662 = vmul.f32 %v7639, %v6478
        %v7663 = vmul.f32 %v7632, %v6621
        %v7664 = vmul.f32 %v7633, %v6623
        %v7665 = vmul.f32 %v7634, %v6625
        %v7666 = vmul.f32 %v7635, %v6627
        %v7667 = vmul.f32 %v7636, %v6629
        %v7668 = vmul.f32 %v7637, %v6631
        %v7669 = vmul.f32 %v7638, %v6633
        %v7670 = vmul.f32 %v7639, %v6635
        %v7671 = vmul.f32 %v7632, %v6465
        %v7672 = vmul.f32 %v7633, %v6467
        %v7673 = vmul.f32 %v7634, %v6469
        %v7674 = vmul.f32 %v7635, %v6471
        %v7675 = vmul.f32 %v7636, %v6473
        %v7676 = vmul.f32 %v7637, %v6475
        %v7677 = vmul.f32 %v7638, %v6477
        %v7678 = vmul.f32 %v7639, %v6479
        %v7679 = vmul.f32 %v7633, %v6621
        %v7680 = vmul.f32 %v7634, %v6623
        %v7681 = vmul.f32 %v7635, %v6625
        %v7682 = vmul.f32 %v7636, %v6627
        %v7683 = vmul.f32 %v7637, %v6629
        %v7684 = vmul.f32 %v7638, %v6631
        %v7685 = vmul.f32 %v7639, %v6633
        %v7693 = vrot.slane %v7632, 1
        %v7694 = vsel %vm1050, %v5024, %v7693
        %v7695 = vrot.slane %v7633, 1
        %v7696 = vsel %vm1050, %v7693, %v7695
        %v7697 = vrot.slane %v7634, 1
        %v7698 = vsel %vm1050, %v7695, %v7697
        %v7699 = vrot.slane %v7635, 1
        %v7700 = vsel %vm1050, %v7697, %v7699
        %v7701 = vrot.slane %v7636, 1
        %v7702 = vsel %vm1050, %v7699, %v7701
        %v7703 = vrot.slane %v7637, 1
        %v7704 = vsel %vm1050, %v7701, %v7703
        %v7705 = vrot.slane %v7638, 1
        %v7706 = vsel %vm1050, %v7703, %v7705
        %v7715 = vmax.f32 %v6489, %v5024
        %v7716 = vmax.f32 %v6490, %v7694
        %v7717 = vmax.f32 %v7640, %v7696
        %v7718 = vmax.f32 %v7641, %v7698
        %v7719 = vmax.f32 %v7642, %v7700
        %v7720 = vmax.f32 %v7643, %v7702
        %v7721 = vmax.f32 %v7644, %v7704
        %v7722 = vmax.f32 %v7645, %v7706
        %v7723 = vmax.f32 %v7646, %v7705
        %v7733 = vrot.slane %v6489, 6
        %v7734 = vrot.slane %v7655, 6
        %v7735 = vsel %vm3137, %v7733, %v7734
        %v7736 = vrot.slane %v7656, 6
        %v7737 = vsel %vm3137, %v7734, %v7736
        %v7738 = vrot.slane %v7657, 6
        %v7739 = vsel %vm3137, %v7736, %v7738
        %v7740 = vrot.slane %v7658, 6
        %v7741 = vsel %vm3137, %v7738, %v7740
        %v7742 = vrot.slane %v7659, 6
        %v7743 = vsel %vm3137, %v7740, %v7742
        %v7744 = vrot.slane %v7660, 6
        %v7745 = vsel %vm3137, %v7742, %v7744
        %v7746 = vrot.slane %v7661, 6
        %v7747 = vsel %vm3137, %v7744, %v7746
        %v7748 = vrot.slane %v7662, 6
        %v7749 = vsel %vm3137, %v7746, %v7748
        %v7759 = vmax.f32 %v6645, %v7735
        %v7760 = vmax.f32 %v7647, %v7737
        %v7761 = vmax.f32 %v7648, %v7739
        %v7762 = vmax.f32 %v7649, %v7741
        %v7763 = vmax.f32 %v7650, %v7743
        %v7764 = vmax.f32 %v7651, %v7745
        %v7765 = vmax.f32 %v7652, %v7747
        %v7766 = vmax.f32 %v7653, %v7749
        %v7767 = vmax.f32 %v7654, %v7748
        %v7777 = vrot.slane %v7663, 1
        %v7778 = vrot.slane %v7664, 1
        %v7779 = vsel %vm1050, %v7777, %v7778
        %v7780 = vrot.slane %v7665, 1
        %v7781 = vsel %vm1050, %v7778, %v7780
        %v7782 = vrot.slane %v7666, 1
        %v7783 = vsel %vm1050, %v7780, %v7782
        %v7784 = vrot.slane %v7667, 1
        %v7785 = vsel %vm1050, %v7782, %v7784
        %v7786 = vrot.slane %v7668, 1
        %v7787 = vsel %vm1050, %v7784, %v7786
        %v7788 = vrot.slane %v7669, 1
        %v7789 = vsel %vm1050, %v7786, %v7788
        %v7790 = vrot.slane %v7670, 1
        %v7791 = vsel %vm1050, %v7788, %v7790
        %v7792 = vrot.slane %v6809, 1
        %v7793 = vsel %vm1050, %v7790, %v7792
        %v7802 = vmax.f32 %v7632, %v7779
        %v7803 = vmax.f32 %v7633, %v7781
        %v7804 = vmax.f32 %v7634, %v7783
        %v7805 = vmax.f32 %v7635, %v7785
        %v7806 = vmax.f32 %v7636, %v7787
        %v7807 = vmax.f32 %v7637, %v7789
        %v7808 = vmax.f32 %v7638, %v7791
        %v7809 = vmax.f32 %v7639, %v7793
        %v7811 = vrot.slane %v7639, 1
        %v7812 = vsel %vm1050, %v7705, %v7811
        %v7813 = vsel %vm1050, %v7811, %v5024
        %v7817 = vmax.f32 %v7671, %v7695
        %v7818 = vmax.f32 %v7672, %v7698
        %v7819 = vmax.f32 %v7673, %v7700
        %v7820 = vmax.f32 %v7674, %v7702
        %v7821 = vmax.f32 %v7675, %v7704
        %v7822 = vmax.f32 %v7676, %v7706
        %v7823 = vmax.f32 %v7677, %v7812
        %v7824 = vmax.f32 %v7678, %v7813
        %v7825 = vmax.f32 %v6940, %v5024
        %v7835 = vrot.slane %v7759, 2
        %v7836 = vrot.slane %v7760, 2
        %v7837 = vsel %vm3623, %v7835, %v7836
        %v7838 = vrot.slane %v7761, 2
        %v7839 = vsel %vm3623, %v7836, %v7838
        %v7840 = vrot.slane %v7762, 2
        %v7841 = vsel %vm3623, %v7838, %v7840
        %v7842 = vrot.slane %v7763, 2
        %v7843 = vsel %vm3623, %v7840, %v7842
        %v7844 = vrot.slane %v7764, 2
        %v7845 = vsel %vm3623, %v7842, %v7844
        %v7846 = vrot.slane %v7765, 2
        %v7847 = vsel %vm3623, %v7844, %v7846
        %v7848 = vrot.slane %v7766, 2
        %v7849 = vsel %vm3623, %v7846, %v7848
        %v7850 = vrot.slane %v7767, 2
        %v7851 = vsel %vm3623, %v7848, %v7850
        %v7861 = vmax.f32 %v7715, %v7835
        %v7862 = vmax.f32 %v7716, %v7837
        %v7863 = vmax.f32 %v7717, %v7839
        %v7864 = vmax.f32 %v7718, %v7841
        %v7865 = vmax.f32 %v7719, %v7843
        %v7866 = vmax.f32 %v7720, %v7845
        %v7867 = vmax.f32 %v7721, %v7847
        %v7868 = vmax.f32 %v7722, %v7849
        %v7869 = vmax.f32 %v7723, %v7851
        %v7879 = vrot.slane %v7817, 7
        %v7880 = vrot.slane %v7818, 7
        %v7881 = vsel %vm1604, %v7879, %v7880
        %v7882 = vrot.slane %v7819, 7
        %v7883 = vsel %vm1604, %v7880, %v7882
        %v7884 = vrot.slane %v7820, 7
        %v7885 = vsel %vm1604, %v7882, %v7884
        %v7886 = vrot.slane %v7821, 7
        %v7887 = vsel %vm1604, %v7884, %v7886
        %v7888 = vrot.slane %v7822, 7
        %v7889 = vsel %vm1604, %v7886, %v7888
        %v7890 = vrot.slane %v7823, 7
        %v7891 = vsel %vm1604, %v7888, %v7890
        %v7892 = vrot.slane %v7824, 7
        %v7893 = vsel %vm1604, %v7890, %v7892
        %v7894 = vrot.slane %v7825, 7
        %v7895 = vsel %vm1604, %v7892, %v7894
        %v7904 = vmax.f32 %v7802, %v7881
        %v7905 = vmax.f32 %v7803, %v7883
        %v7906 = vmax.f32 %v7804, %v7885
        %v7907 = vmax.f32 %v7805, %v7887
        %v7908 = vmax.f32 %v7806, %v7889
        %v7909 = vmax.f32 %v7807, %v7891
        %v7910 = vmax.f32 %v7808, %v7893
        %v7911 = vmax.f32 %v7809, %v7895
        %v7920 = vrot.slane %v7904, 1
        %v7921 = vrot.slane %v7905, 1
        %v7922 = vsel %vm1050, %v7920, %v7921
        %v7923 = vrot.slane %v7906, 1
        %v7924 = vsel %vm1050, %v7921, %v7923
        %v7925 = vrot.slane %v7907, 1
        %v7926 = vsel %vm1050, %v7923, %v7925
        %v7927 = vrot.slane %v7908, 1
        %v7928 = vsel %vm1050, %v7925, %v7927
        %v7929 = vrot.slane %v7909, 1
        %v7930 = vsel %vm1050, %v7927, %v7929
        %v7931 = vrot.slane %v7910, 1
        %v7932 = vsel %vm1050, %v7929, %v7931
        %v7933 = vrot.slane %v7911, 1
        %v7934 = vsel %vm1050, %v7931, %v7933
        %v7944 = vmax.f32 %v7861, %v7920
        %v7945 = vmax.f32 %v7862, %v7922
        %v7946 = vmax.f32 %v7863, %v7924
        %v7947 = vmax.f32 %v7864, %v7926
        %v7948 = vmax.f32 %v7865, %v7928
        %v7949 = vmax.f32 %v7866, %v7930
        %v7950 = vmax.f32 %v7867, %v7932
        %v7951 = vmax.f32 %v7868, %v7934
        %v7952 = vmax.f32 %v7869, %v7933
        %v7961 = vrot.slane %v7679, 2
        %v7962 = vrot.slane %v7680, 2
        %v7963 = vsel %vm3623, %v7961, %v7962
        %v7964 = vrot.slane %v7681, 2
        %v7965 = vsel %vm3623, %v7962, %v7964
        %v7966 = vrot.slane %v7682, 2
        %v7967 = vsel %vm3623, %v7964, %v7966
        %v7968 = vrot.slane %v7683, 2
        %v7969 = vsel %vm3623, %v7966, %v7968
        %v7970 = vrot.slane %v7684, 2
        %v7971 = vsel %vm3623, %v7968, %v7970
        %v7972 = vrot.slane %v7685, 2
        %v7973 = vsel %vm3623, %v7970, %v7972
        %v7974 = vrot.slane %v7025, 2
        %v7975 = vsel %vm3623, %v7972, %v7974
        %v7976 = vrot.slane %v6809, 2
        %v7977 = vsel %vm3623, %v7974, %v7976
        %v7987 = vmax.f32 %v7944, %v7961
        %v7988 = vmax.f32 %v7945, %v7963
        %v7989 = vmax.f32 %v7946, %v7965
        %v7990 = vmax.f32 %v7947, %v7967
        %v7991 = vmax.f32 %v7948, %v7969
        %v7992 = vmax.f32 %v7949, %v7971
        %v7993 = vmax.f32 %v7950, %v7973
        %v7994 = vmax.f32 %v7951, %v7975
        %v7995 = vmax.f32 %v7952, %v7977
        %v7996 = vld [vmem:[%s23] sm:$0xff]
        %v7997 = vld [vmem:[%s23 + $0x8] sm:$0xff]
        %v8007 = vrot.slane %v7987, 7
        %v8008 = vrot.slane %v7988, 7
        %v8009 = vsel %vm1604, %v8007, %v8008
        %v8010 = vrot.slane %v7989, 7
        %v8011 = vsel %vm1604, %v8008, %v8010
        %v8012 = vrot.slane %v7990, 7
        %v8013 = vsel %vm1604, %v8010, %v8012
        %v8014 = vrot.slane %v7991, 7
        %v8015 = vsel %vm1604, %v8012, %v8014
        %v8016 = vrot.slane %v7992, 7
        %v8017 = vsel %vm1604, %v8014, %v8016
        %v8018 = vrot.slane %v7993, 7
        %v8019 = vsel %vm1604, %v8016, %v8018
        %v8020 = vrot.slane %v7994, 7
        %v8021 = vsel %vm1604, %v8018, %v8020
        %v8022 = vrot.slane %v7995, 7
        %v8023 = vsel %vm1604, %v8020, %v8022
        %vm8032 = vcmask 523264
        %v8034 = vsel %vm8032, %v6431, 0
        %v8037 = vsel %vm8032, %v6432, 0
        %8039 = vmatprep.subr.mxu0 0.0
        %8040 = vmatpush1.msra.mxu0 %v8009
        %8041 = vmatprep.subr.mxu0 0.0
        %8042 = vmatpush1.msra.mxu0 %v8011
        %8043 = vmatprep.subr.mxu0 0.0
        %8044 = vmatpush1.msra.mxu0 %v8013
        %8045 = vmatprep.subr.mxu0 0.0
        %8046 = vmatpush1.msra.mxu0 %v8015
        %8047 = vmatprep.subr.mxu0 0.0
        %8048 = vmatpush1.msra.mxu0 %v8017
        %8049 = vmatprep.subr.mxu0 0.0
        %8050 = vmatpush1.msra.mxu0 %v8019
        %8051 = vmatprep.subr.mxu0 0.0
        %8052 = vmatpush1.msra.mxu0 %v8021
        %8053 = vmatprep.subr.mxu0 0.0
        %8054 = vmatpush1.msra.mxu0 %v8023
        %8055 = vmatprep.subr.mxu0 0.0
        %8056 = vmatpush1.msra.mxu0 0.0
        %8057 = vmatprep.subr.mxu0 0.0
        %8058 = vmatpush1.msra.mxu0 0.0
        %8059 = vmatprep.subr.mxu0 0.0
        %8060 = vmatpush1.msra.mxu0 0.0
        %8061 = vmatprep.subr.mxu0 0.0
        %8062 = vmatpush1.msra.mxu0 0.0
        %8063 = vmatprep.subr.mxu0 0.0
        %8064 = vmatpush1.msra.mxu0 0.0
        %8065 = vmatprep.subr.mxu0 0.0
        %8066 = vmatpush1.msra.mxu0 0.0
        %8067 = vmatprep.subr.mxu0 0.0
        %8068 = vmatpush1.msra.mxu0 0.0
        %8069 = vmatprep.subr.mxu0 0.0
        %8070 = vmatpush1.msra.mxu0 0.0
        %8071 = vmatprep.subr.mxu0 0.0
        %8072 = vmatpush1.msra.mxu0 0.0
        %8073 = vmatprep.subr.mxu0 0.0
        %8074 = vmatpush1.msra.mxu0 0.0
        %8075 = vmatprep.subr.mxu0 0.0
        %8076 = vmatpush1.msra.mxu0 0.0
        %8077 = vmatprep.subr.mxu0 0.0
        %8078 = vmatpush1.msra.mxu0 0.0
        %8079 = vmatprep.subr.mxu0 0.0
        %8080 = vmatpush1.msra.mxu0 0.0
        %8081 = vmatprep.subr.mxu0 0.0
        %8082 = vmatpush1.msra.mxu0 0.0
        %8083 = vmatprep.subr.mxu0 0.0
        %8084 = vmatpush1.msra.mxu0 0.0
        %8085 = vmatprep.subr.mxu0 0.0
        %8086 = vmatpush1.msra.mxu0 0.0
        %8087 = vmatprep.subr.mxu0 0.0
        %8088 = vmatpush1.msra.mxu0 0.0
        %8089 = vmatprep.subr.mxu0 0.0
        %8090 = vmatpush1.msra.mxu0 0.0
        %8091 = vmatprep.subr.mxu0 0.0
        %8092 = vmatpush1.msra.mxu0 0.0
        %8093 = vmatprep.subr.mxu0 0.0
        %8094 = vmatpush1.msra.mxu0 0.0
        %8095 = vmatprep.subr.mxu0 0.0
        %8096 = vmatpush1.msra.mxu0 0.0
        %8097 = vmatprep.subr.mxu0 0.0
        %8098 = vmatpush1.msra.mxu0 0.0
        %8099 = vmatprep.subr.mxu0 0.0
        %8100 = vmatpush1.msra.mxu0 0.0
        %8101 = vmatprep.subr.mxu0 0.0
        %8102 = vmatpush1.msra.mxu0 0.0
        %8103 = vmatprep.mubr.f32.mxu0 0.0
        %8104 = vmatmul.mubr.f32.gmra.mrb[0].mxu0 %v8034
        %v8105 = vpop.f32.mrb[0].mxu0
        %v8106 = vadd.f32 %v7996, %v8105
        %v8107 = vpop.f32.mrb[0].mxu0
        %8108 = vmatprep.mubr.f32.mxu0 0.0
        %8109 = vmatmul.mubr.f32.gmra.mrb[0].mxu0 %v8037
        %v8110 = vpop.f32.mrb[0].mxu0
        %v8111 = vadd.f32 %v7997, %v8110
        %v8112 = vpop.f32.mrb[0].mxu0
        %8113 = vdwg.mxu0
        %v8114 = vld [vmem:[%s25] sm:$0x1]
        %v8115 = vld [vmem:[%s27] sm:$0x1]
        %vm8116 = vcmask 261120
        %v8117 = vsel %vm8116, %v8106, 0.0
        %8118 = vadd.xlane.f32.xlu0 %v8117
        %v8119 = vpop.xlane.xlu0 %8118
        %v8120 = vsel %vm8116, %v8111, 0.0
        %8121 = vadd.xlane.f32.xlu0 %v8120
        %v8122 = vpop.xlane.xlu0 %8121
        %v8123 = vrcp.pop 32.0
        %v8124 = vmul.f32 %v8119, %v8123
        %v8125 = vmul.f32 %v8122, %v8123
        %v8126 = vsub.f32 %v8106, %v8124
        %v8127 = vsub.f32 %v8111, %v8125
        %v8128 = vmul.f32 %v8126, %v8126
        %v8129 = vmul.f32 %v8127, %v8127
        %v8130 = vsel %vm8116, %v8128, 0.0
        %8131 = vadd.xlane.f32.xlu0 %v8130
        %v8132 = vpop.xlane.xlu0 %8131
        %v8133 = vsel %vm8116, %v8129, 0.0
        %8134 = vadd.xlane.f32.xlu0 %v8133
        %v8135 = vpop.xlane.xlu0 %8134
        %v8136 = vmul.f32 %v8132, %v8123
        %v8137 = vmul.f32 %v8135, %v8123
        %v8138 = vadd.f32 %v8136, 1e-05
        %v8139 = vadd.f32 %v8137, 1e-05
        %v8140 = vrsqrt.pop %v8138
        %v8141 = vrsqrt.pop %v8139
        %v8142 = vmul.f32 %v8126, %v8140
        %v8143 = vmul.f32 %v8127, %v8141
        %v8145 = vlaneseq
        %v8146 = vshrl.u32 %v8145, 7
        %v8147 = vsub.s32 0, %v8146
        %v8148 = vrot.slane %v8114, %v8147
        %v8150 = vmul.f32 %v8142, %v8148
        %v8151 = vmul.f32 %v8143, %v8148
        %v8153 = vlaneseq
        %v8154 = vshrl.u32 %v8153, 7
        %v8155 = vsub.s32 0, %v8154
        %v8156 = vrot.slane %v8115, %v8155
        %v8158 = vadd.f32 %v8150, %v8156
        %v8159 = vadd.f32 %v8151, %v8156
        %v8160 = vpack.c.bf16 %v8159, %v8158
        %v8161 = vld [vmem:[%s29] sm:$0xf]
        %v8162 = vld [vmem:[%s29 + $0x4] sm:$0xf]
        %v8163 = vld [vmem:[%s29 + $0x8] sm:$0xf]
        %v8164 = vld [vmem:[%s29 + $0xc] sm:$0xf]
        %v8169 = vunpack.c.l.b16 %v8161
        %v8170 = vunpack.c.l.b16 %v8162
        %v8171 = vunpack.c.l.b16 %v8163
        %v8172 = vunpack.c.l.b16 %v8164
        %v8173 = vpack.c.b16 %v8170, %v8169
        %v8174 = vpack.c.b16 %v8172, %v8171
        %v8178 = vsel %vm8116, %v8160, 0
        %8180 = vmatprep.subr.bf16.mxu0 0
        %8181 = vmatpush1.bf16.msra.mxu0 %v8173
        %8182 = vmatprep.subr.bf16.mxu0 0
        %8183 = vmatpush1.bf16.msra.mxu0 %v8174
        %8184 = vmatprep.subr.bf16.mxu0 0
        %8185 = vmatpush1.bf16.msra.mxu0 0
        %8186 = vmatprep.subr.bf16.mxu0 0
        %8187 = vmatpush1.bf16.msra.mxu0 0
        %8188 = vmatprep.subr.bf16.mxu0 0
        %8189 = vmatpush1.bf16.msra.mxu0 0
        %8190 = vmatprep.subr.bf16.mxu0 0
        %8191 = vmatpush1.bf16.msra.mxu0 0
        %8192 = vmatprep.subr.bf16.mxu0 0
        %8193 = vmatpush1.bf16.msra.mxu0 0
        %8194 = vmatprep.subr.bf16.mxu0 0
        %8195 = vmatpush1.bf16.msra.mxu0 0
        %8196 = vmatprep.subr.bf16.mxu0 0
        %8197 = vmatpush1.bf16.msra.mxu0 0
        %8198 = vmatprep.subr.bf16.mxu0 0
        %8199 = vmatpush1.bf16.msra.mxu0 0
        %8200 = vmatprep.subr.bf16.mxu0 0
        %8201 = vmatpush1.bf16.msra.mxu0 0
        %8202 = vmatprep.subr.bf16.mxu0 0
        %8203 = vmatpush1.bf16.msra.mxu0 0
        %8204 = vmatprep.subr.bf16.mxu0 0
        %8205 = vmatpush1.bf16.msra.mxu0 0
        %8206 = vmatprep.subr.bf16.mxu0 0
        %8207 = vmatpush1.bf16.msra.mxu0 0
        %8208 = vmatprep.subr.bf16.mxu0 0
        %8209 = vmatpush1.bf16.msra.mxu0 0
        %8210 = vmatprep.subr.bf16.mxu0 0
        %8211 = vmatpush1.bf16.msra.mxu0 0
        %8212 = vmatprep.mubr.bf16.mxu0 0
        %8213 = vmatmul.mubr.bf16.gmra.mrb[0].mxu0 %v8178
        %v8214 = vpop.f32.mrb[0].mxu0
        %v8215 = vadd.f32 0.0, %v8214
        %v8216 = vpop.f32.mrb[0].mxu0
        %v8217 = vpop.f32.mrb[0].mxu0
        %v8218 = vadd.f32 0.0, %v8217
        %v8219 = vpop.f32.mrb[0].mxu0
        %8220 = vdwg.mxu0
        %v8221 = vpack.c.bf16 %v8218, %v8215
        %8223 = vrot.lane.b32.xlu0 %v8221, 96
        %v8224 = vpop.permute.xlu0 %8223
        %vm8225 = vcmask 130048
        %v8227 = vsel %vm8225, %v8221, 0
        %v8230 = vsel %vm8225, %v8224, 0
        %8232 = vmatprep.subr.bf16.mxu0 0
        %8233 = vmatpush1.bf16.xpose.msra.mxu0 %v8230
        %8234 = vmatprep.subr.bf16.mxu0 0
        %8235 = vmatpush1.bf16.xpose.msra.mxu0 0
        %8236 = vmatprep.subr.bf16.mxu0 0
        %8237 = vmatpush1.bf16.xpose.msra.mxu0 0
        %8238 = vmatprep.subr.bf16.mxu0 0
        %8239 = vmatpush1.bf16.xpose.msra.mxu0 0
        %8240 = vmatprep.subr.bf16.mxu0 0
        %8241 = vmatpush1.bf16.xpose.msra.mxu0 0
        %8242 = vmatprep.subr.bf16.mxu0 0
        %8243 = vmatpush1.bf16.xpose.msra.mxu0 0
        %8244 = vmatprep.subr.bf16.mxu0 0
        %8245 = vmatpush1.bf16.xpose.msra.mxu0 0
        %8246 = vmatprep.subr.bf16.mxu0 0
        %8247 = vmatpush1.bf16.xpose.msra.mxu0 0
        %8248 = vmatprep.subr.bf16.mxu0 0
        %8249 = vmatpush1.bf16.xpose.msra.mxu0 0
        %8250 = vmatprep.subr.bf16.mxu0 0
        %8251 = vmatpush1.bf16.xpose.msra.mxu0 0
        %8252 = vmatprep.subr.bf16.mxu0 0
        %8253 = vmatpush1.bf16.xpose.msra.mxu0 0
        %8254 = vmatprep.subr.bf16.mxu0 0
        %8255 = vmatpush1.bf16.xpose.msra.mxu0 0
        %8256 = vmatprep.subr.bf16.mxu0 0
        %8257 = vmatpush1.bf16.xpose.msra.mxu0 0
        %8258 = vmatprep.subr.bf16.mxu0 0
        %8259 = vmatpush1.bf16.xpose.msra.mxu0 0
        %8260 = vmatprep.subr.bf16.mxu0 0
        %8261 = vmatpush1.bf16.xpose.msra.mxu0 0
        %8262 = vmatprep.subr.bf16.mxu0 0
        %8263 = vmatpush1.bf16.xpose.msra.mxu0 0
        %8264 = vmatprep.mubr.bf16.mxu0 0
        %8265 = vmatmul.mubr.bf16.gmra.mrb[0].mxu0 %v8227
        %v8266 = vpop.f32.mrb[0].mxu0
        %v8267 = vadd.f32 0.0, %v8266
        %v8268 = vpop.f32.mrb[0].mxu0
        %v8269 = vpop.f32.mrb[0].mxu0
        %v8270 = vadd.f32 0.0, %v8269
        %v8271 = vpop.f32.mrb[0].mxu0
        %8272 = vdwg.mxu0
        %v8273 = vmul.f32 %v8267, 0.25
        %v8274 = vmul.f32 %v8270, 0.25
        %v8275 = vsel %vm8225, %v8273, -inf
        %8276 = vmax.xlane.f32.xlu0 %v8275
        %v8277 = vpop.xlane.xlu0 %8276
        %v8278 = vsel %vm8225, %v8274, -inf
        %8279 = vmax.xlane.f32.xlu0 %v8278
        %v8280 = vpop.xlane.xlu0 %8279
        %v8281 = vsub.f32 %v8273, %v8277
        %v8282 = vsub.f32 %v8274, %v8280
        %v8283 = vmul.f32 %v8281, 1.442695
        %v8284 = vpow.pop %v8283
        %v8285 = vmul.f32 %v8282, 1.442695
        %v8286 = vpow.pop %v8285
        %v8287 = vsel %vm8225, %v8284, 0.0
        %8288 = vadd.xlane.f32.xlu0 %v8287
        %v8289 = vpop.xlane.xlu0 %8288
        %v8290 = vsel %vm8225, %v8286, 0.0
        %8291 = vadd.xlane.f32.xlu0 %v8290
        %v8292 = vpop.xlane.xlu0 %8291
        %v8293 = vrcp.pop %v8289
        %v8294 = vrcp.pop %v8292
        %v8295 = vmul.f32 %v8284, %v8293
        %v8296 = vmul.f32 %v8286, %v8294
        %v8297 = vpack.c.bf16 %v8296, %v8295
        %8298 = vrot.lane.b32.xlu0 %v8221, 64
        %v8299 = vpop.permute.xlu0 %8298
        %v8302 = vsel %vm8225, %v8297, 0
        %8304 = vmatprep.subr.bf16.mxu0 0
        %8305 = vmatpush1.bf16.msra.mxu0 %v8299
        %8306 = vmatprep.subr.bf16.mxu0 0
        %8307 = vmatpush1.bf16.msra.mxu0 0
        %8308 = vmatprep.subr.bf16.mxu0 0
        %8309 = vmatpush1.bf16.msra.mxu0 0
        %8310 = vmatprep.subr.bf16.mxu0 0
        %8311 = vmatpush1.bf16.msra.mxu0 0
        %8312 = vmatprep.subr.bf16.mxu0 0
        %8313 = vmatpush1.bf16.msra.mxu0 0
        %8314 = vmatprep.subr.bf16.mxu0 0
        %8315 = vmatpush1.bf16.msra.mxu0 0
        %8316 = vmatprep.subr.bf16.mxu0 0
        %8317 = vmatpush1.bf16.msra.mxu0 0
        %8318 = vmatprep.subr.bf16.mxu0 0
        %8319 = vmatpush1.bf16.msra.mxu0 0
        %8320 = vmatprep.subr.bf16.mxu0 0
        %8321 = vmatpush1.bf16.msra.mxu0 0
        %8322 = vmatprep.subr.bf16.mxu0 0
        %8323 = vmatpush1.bf16.msra.mxu0 0
        %8324 = vmatprep.subr.bf16.mxu0 0
        %8325 = vmatpush1.bf16.msra.mxu0 0
        %8326 = vmatprep.subr.bf16.mxu0 0
        %8327 = vmatpush1.bf16.msra.mxu0 0
        %8328 = vmatprep.subr.bf16.mxu0 0
        %8329 = vmatpush1.bf16.msra.mxu0 0
        %8330 = vmatprep.subr.bf16.mxu0 0
        %8331 = vmatpush1.bf16.msra.mxu0 0
        %8332 = vmatprep.subr.bf16.mxu0 0
        %8333 = vmatpush1.bf16.msra.mxu0 0
        %8334 = vmatprep.subr.bf16.mxu0 0
        %8335 = vmatpush1.bf16.msra.mxu0 0
        %8336 = vmatprep.mubr.bf16.mxu0 0
        %8337 = vmatmul.mubr.bf16.gmra.mrb[0].mxu0 %v8302
        %v8338 = vpop.f32.mrb[0].mxu0
        %v8339 = vadd.f32 0.0, %v8338
        %v8340 = vpop.f32.mrb[0].mxu0
        %v8341 = vpop.f32.mrb[0].mxu0
        %v8342 = vadd.f32 0.0, %v8341
        %v8343 = vpop.f32.mrb[0].mxu0
        %8344 = vdwg.mxu0
        %8345 = vst.msk [vmem:[#allocation2] sm:$0xff] %vm8225, %v8339
        %8346 = vst.msk [vmem:[#allocation2 + $0x8] sm:$0xff] %vm8225, %v8342
        %8347 = vrot.lane.b32.xlu0 %v8221, 112
        %v8348 = vpop.permute.xlu0 %8347
        %8349 = vrot.lane.b32.xlu0 %v8221, 80
        %v8350 = vpop.permute.xlu0 %8349
        %v8352 = vsel %vm8225, %v8348, 0
        %v8355 = vsel %vm8225, %v8350, 0
        %8357 = vmatprep.subr.bf16.mxu0 0
        %8358 = vmatpush1.bf16.xpose.msra.mxu0 %v8355
        %8359 = vmatprep.subr.bf16.mxu0 0
        %8360 = vmatpush1.bf16.xpose.msra.mxu0 0
        %8361 = vmatprep.subr.bf16.mxu0 0
        %8362 = vmatpush1.bf16.xpose.msra.mxu0 0
        %8363 = vmatprep.subr.bf16.mxu0 0
        %8364 = vmatpush1.bf16.xpose.msra.mxu0 0
        %8365 = vmatprep.subr.bf16.mxu0 0
        %8366 = vmatpush1.bf16.xpose.msra.mxu0 0
        %8367 = vmatprep.subr.bf16.mxu0 0
        %8368 = vmatpush1.bf16.xpose.msra.mxu0 0
        %8369 = vmatprep.subr.bf16.mxu0 0
        %8370 = vmatpush1.bf16.xpose.msra.mxu0 0
        %8371 = vmatprep.subr.bf16.mxu0 0
        %8372 = vmatpush1.bf16.xpose.msra.mxu0 0
        %8373 = vmatprep.subr.bf16.mxu0 0
        %8374 = vmatpush1.bf16.xpose.msra.mxu0 0
        %8375 = vmatprep.subr.bf16.mxu0 0
        %8376 = vmatpush1.bf16.xpose.msra.mxu0 0
        %8377 = vmatprep.subr.bf16.mxu0 0
        %8378 = vmatpush1.bf16.xpose.msra.mxu0 0
        %8379 = vmatprep.subr.bf16.mxu0 0
        %8380 = vmatpush1.bf16.xpose.msra.mxu0 0
        %8381 = vmatprep.subr.bf16.mxu0 0
        %8382 = vmatpush1.bf16.xpose.msra.mxu0 0
        %8383 = vmatprep.subr.bf16.mxu0 0
        %8384 = vmatpush1.bf16.xpose.msra.mxu0 0
        %8385 = vmatprep.subr.bf16.mxu0 0
        %8386 = vmatpush1.bf16.xpose.msra.mxu0 0
        %8387 = vmatprep.subr.bf16.mxu0 0
        %8388 = vmatpush1.bf16.xpose.msra.mxu0 0
        %8389 = vmatprep.mubr.bf16.mxu0 0
        %8390 = vmatmul.mubr.bf16.gmra.mrb[0].mxu0 %v8352
        %v8391 = vpop.f32.mrb[0].mxu0
        %v8392 = vadd.f32 0.0, %v8391
        %v8393 = vpop.f32.mrb[0].mxu0
        %v8394 = vpop.f32.mrb[0].mxu0
        %v8395 = vadd.f32 0.0, %v8394
        %v8396 = vpop.f32.mrb[0].mxu0
        %8397 = vdwg.mxu0
        %v8398 = vmul.f32 %v8392, 0.25
        %v8399 = vmul.f32 %v8395, 0.25
        %v8400 = vsel %vm8225, %v8398, -inf
        %8401 = vmax.xlane.f32.xlu0 %v8400
        %v8402 = vpop.xlane.xlu0 %8401
        %v8403 = vsel %vm8225, %v8399, -inf
        %8404 = vmax.xlane.f32.xlu0 %v8403
        %v8405 = vpop.xlane.xlu0 %8404
        %v8406 = vsub.f32 %v8398, %v8402
        %v8407 = vsub.f32 %v8399, %v8405
        %v8408 = vmul.f32 %v8406, 1.442695
        %v8409 = vpow.pop %v8408
        %v8410 = vmul.f32 %v8407, 1.442695
        %v8411 = vpow.pop %v8410
        %v8412 = vsel %vm8225, %v8409, 0.0
        %8413 = vadd.xlane.f32.xlu0 %v8412
        %v8414 = vpop.xlane.xlu0 %8413
        %v8415 = vsel %vm8225, %v8411, 0.0
        %8416 = vadd.xlane.f32.xlu0 %v8415
        %v8417 = vpop.xlane.xlu0 %8416
        %v8418 = vrcp.pop %v8414
        %v8419 = vrcp.pop %v8417
        %v8420 = vmul.f32 %v8409, %v8418
        %v8421 = vmul.f32 %v8411, %v8419
        %v8422 = vpack.c.bf16 %v8421, %v8420
        %8423 = vrot.lane.b32.xlu0 %v8221, 48
        %v8424 = vpop.permute.xlu0 %8423
        %v8427 = vsel %vm8225, %v8422, 0
        %8429 = vmatprep.subr.bf16.mxu0 0
        %8430 = vmatpush1.bf16.msra.mxu0 %v8424
        %8431 = vmatprep.subr.bf16.mxu0 0
        %8432 = vmatpush1.bf16.msra.mxu0 0
        %8433 = vmatprep.subr.bf16.mxu0 0
        %8434 = vmatpush1.bf16.msra.mxu0 0
        %8435 = vmatprep.subr.bf16.mxu0 0
        %8436 = vmatpush1.bf16.msra.mxu0 0
        %8437 = vmatprep.subr.bf16.mxu0 0
        %8438 = vmatpush1.bf16.msra.mxu0 0
        %8439 = vmatprep.subr.bf16.mxu0 0
        %8440 = vmatpush1.bf16.msra.mxu0 0
        %8441 = vmatprep.subr.bf16.mxu0 0
        %8442 = vmatpush1.bf16.msra.mxu0 0
        %8443 = vmatprep.subr.bf16.mxu0 0
        %8444 = vmatpush1.bf16.msra.mxu0 0
        %8445 = vmatprep.subr.bf16.mxu0 0
        %8446 = vmatpush1.bf16.msra.mxu0 0
        %8447 = vmatprep.subr.bf16.mxu0 0
        %8448 = vmatpush1.bf16.msra.mxu0 0
        %8449 = vmatprep.subr.bf16.mxu0 0
        %8450 = vmatpush1.bf16.msra.mxu0 0
        %8451 = vmatprep.subr.bf16.mxu0 0
        %8452 = vmatpush1.bf16.msra.mxu0 0
        %8453 = vmatprep.subr.bf16.mxu0 0
        %8454 = vmatpush1.bf16.msra.mxu0 0
        %8455 = vmatprep.subr.bf16.mxu0 0
        %8456 = vmatpush1.bf16.msra.mxu0 0
        %8457 = vmatprep.subr.bf16.mxu0 0
        %8458 = vmatpush1.bf16.msra.mxu0 0
        %8459 = vmatprep.subr.bf16.mxu0 0
        %8460 = vmatpush1.bf16.msra.mxu0 0
        %8461 = vmatprep.mubr.bf16.mxu0 0
        %8462 = vmatmul.mubr.bf16.gmra.mrb[0].mxu0 %v8427
        %v8463 = vpop.f32.mrb[0].mxu0
        %v8464 = vadd.f32 0.0, %v8463
        %v8465 = vpop.f32.mrb[0].mxu0
        %v8466 = vpop.f32.mrb[0].mxu0
        %v8467 = vadd.f32 0.0, %v8466
        %v8468 = vpop.f32.mrb[0].mxu0
        %8469 = vdwg.mxu0
        %8472 = vrot.lane.b32.xlu0 %v8464, 16
        %v8473 = vpop.permute.xlu0 %8472
        %8474 = vrot.lane.b32.xlu0 %v8467, 16
        %v8475 = vpop.permute.xlu0 %8474
        %vm8478 = vcmask 261248
        %8479 = vst.msk [vmem:[#allocation2] sm:$0xff] %vm8478, %v8473
        %8480 = vst.msk [vmem:[#allocation2 + $0x8] sm:$0xff] %vm8478, %v8475
        %v8481 = vld [vmem:[#allocation2] sm:$0xff]
        %v8482 = vld [vmem:[#allocation2 + $0x8] sm:$0xff]
        %v8483 = vpack.c.bf16 %v8482, %v8481
        %v8484 = vld [vmem:[%s31] sm:$0xf]
        %v8485 = vld [vmem:[%s31 + $0x4] sm:$0xf]
        %v8486 = vld [vmem:[%s31 + $0x8] sm:$0xf]
        %v8487 = vld [vmem:[%s31 + $0xc] sm:$0xf]
        %v8488 = vld [vmem:[%s33] sm:$0x1]
        %v8490 = vlaneseq
        %v8491 = vshrl.u32 %v8490, 7
        %v8492 = vsub.s32 0, %v8491
        %v8493 = vrot.slane %v8488, %v8492
        %v8499 = vunpack.c.l.b16 %v8484
        %v8500 = vunpack.c.l.b16 %v8485
        %v8501 = vunpack.c.l.b16 %v8486
        %v8502 = vunpack.c.l.b16 %v8487
        %v8503 = vpack.c.b16 %v8500, %v8499
        %v8504 = vpack.c.b16 %v8502, %v8501
        %v8508 = vsel %vm8116, %v8483, 0
        %8510 = vmatprep.subr.bf16.mxu0 0
        %8511 = vmatpush1.bf16.msra.mxu0 %v8503
        %8512 = vmatprep.subr.bf16.mxu0 0
        %8513 = vmatpush1.bf16.msra.mxu0 %v8504
        %8514 = vmatprep.subr.bf16.mxu0 0
        %8515 = vmatpush1.bf16.msra.mxu0 0
        %8516 = vmatprep.subr.bf16.mxu0 0
        %8517 = vmatpush1.bf16.msra.mxu0 0
        %8518 = vmatprep.subr.bf16.mxu0 0
        %8519 = vmatpush1.bf16.msra.mxu0 0
        %8520 = vmatprep.subr.bf16.mxu0 0
        %8521 = vmatpush1.bf16.msra.mxu0 0
        %8522 = vmatprep.subr.bf16.mxu0 0
        %8523 = vmatpush1.bf16.msra.mxu0 0
        %8524 = vmatprep.subr.bf16.mxu0 0
        %8525 = vmatpush1.bf16.msra.mxu0 0
        %8526 = vmatprep.subr.bf16.mxu0 0
        %8527 = vmatpush1.bf16.msra.mxu0 0
        %8528 = vmatprep.subr.bf16.mxu0 0
        %8529 = vmatpush1.bf16.msra.mxu0 0
        %8530 = vmatprep.subr.bf16.mxu0 0
        %8531 = vmatpush1.bf16.msra.mxu0 0
        %8532 = vmatprep.subr.bf16.mxu0 0
        %8533 = vmatpush1.bf16.msra.mxu0 0
        %8534 = vmatprep.subr.bf16.mxu0 0
        %8535 = vmatpush1.bf16.msra.mxu0 0
        %8536 = vmatprep.subr.bf16.mxu0 0
        %8537 = vmatpush1.bf16.msra.mxu0 0
        %8538 = vmatprep.subr.bf16.mxu0 0
        %8539 = vmatpush1.bf16.msra.mxu0 0
        %8540 = vmatprep.subr.bf16.mxu0 0
        %8541 = vmatpush1.bf16.msra.mxu0 0
        %8542 = vmatprep.mubr.bf16.mxu0 0
        %8543 = vmatmul.mubr.bf16.gmra.mrb[0].mxu0 %v8508
        %v8544 = vpop.f32.mrb[0].mxu0
        %v8545 = vadd.f32 %v8493, %v8544
        %v8546 = vpop.f32.mrb[0].mxu0
        %v8547 = vpop.f32.mrb[0].mxu0
        %v8548 = vadd.f32 %v8493, %v8547
        %v8549 = vpop.f32.mrb[0].mxu0
        %8550 = vdwg.mxu0
        %v8551 = vadd.f32 %v8106, %v8545
        %v8552 = vadd.f32 %v8111, %v8548
        %v8553 = vld [vmem:[%s35] sm:$0x1]
        %v8554 = vld [vmem:[%s37] sm:$0x1]
        %v8555 = vsel %vm8116, %v8551, 0.0
        %8556 = vadd.xlane.f32.xlu0 %v8555
        %v8557 = vpop.xlane.xlu0 %8556
        %v8558 = vsel %vm8116, %v8552, 0.0
        %8559 = vadd.xlane.f32.xlu0 %v8558
        %v8560 = vpop.xlane.xlu0 %8559
        %v8561 = vmul.f32 %v8557, %v8123
        %v8562 = vmul.f32 %v8560, %v8123
        %v8563 = vsub.f32 %v8551, %v8561
        %v8564 = vsub.f32 %v8552, %v8562
        %v8565 = vmul.f32 %v8563, %v8563
        %v8566 = vmul.f32 %v8564, %v8564
        %v8567 = vsel %vm8116, %v8565, 0.0
        %8568 = vadd.xlane.f32.xlu0 %v8567
        %v8569 = vpop.xlane.xlu0 %8568
        %v8570 = vsel %vm8116, %v8566, 0.0
        %8571 = vadd.xlane.f32.xlu0 %v8570
        %v8572 = vpop.xlane.xlu0 %8571
        %v8573 = vmul.f32 %v8569, %v8123
        %v8574 = vmul.f32 %v8572, %v8123
        %v8575 = vadd.f32 %v8573, 1e-05
        %v8576 = vadd.f32 %v8574, 1e-05
        %v8577 = vrsqrt.pop %v8575
        %v8578 = vrsqrt.pop %v8576
        %v8579 = vmul.f32 %v8563, %v8577
        %v8580 = vmul.f32 %v8564, %v8578
        %v8582 = vlaneseq
        %v8583 = vshrl.u32 %v8582, 7
        %v8584 = vsub.s32 0, %v8583
        %v8585 = vrot.slane %v8553, %v8584
        %v8587 = vmul.f32 %v8579, %v8585
        %v8588 = vmul.f32 %v8580, %v8585
        %v8590 = vlaneseq
        %v8591 = vshrl.u32 %v8590, 7
        %v8592 = vsub.s32 0, %v8591
        %v8593 = vrot.slane %v8554, %v8592
        %v8595 = vadd.f32 %v8587, %v8593
        %v8596 = vadd.f32 %v8588, %v8593
        %v8597 = vpack.c.bf16 %v8596, %v8595
        %v8598 = vld [vmem:[%s39] sm:$0xf]
        %v8599 = vld [vmem:[%s39 + $0x4] sm:$0xf]
        %v8600 = vld [vmem:[%s39 + $0x8] sm:$0xf]
        %v8601 = vld [vmem:[%s39 + $0xc] sm:$0xf]
        %v8602 = vld [vmem:[%s41] sm:$0x1]
        %v8604 = vlaneseq
        %v8605 = vshrl.u32 %v8604, 7
        %v8606 = vsub.s32 0, %v8605
        %v8607 = vrot.slane %v8602, %v8606
        %v8613 = vunpack.c.l.b16 %v8598
        %v8614 = vunpack.c.l.b16 %v8599
        %v8615 = vunpack.c.l.b16 %v8600
        %v8616 = vunpack.c.l.b16 %v8601
        %v8617 = vpack.c.b16 %v8614, %v8613
        %v8618 = vpack.c.b16 %v8616, %v8615
        %v8622 = vsel %vm8116, %v8597, 0
        %8624 = vmatprep.subr.bf16.mxu0 0
        %8625 = vmatpush1.bf16.msra.mxu0 %v8617
        %8626 = vmatprep.subr.bf16.mxu0 0
        %8627 = vmatpush1.bf16.msra.mxu0 %v8618
        %8628 = vmatprep.subr.bf16.mxu0 0
        %8629 = vmatpush1.bf16.msra.mxu0 0
        %8630 = vmatprep.subr.bf16.mxu0 0
        %8631 = vmatpush1.bf16.msra.mxu0 0
        %8632 = vmatprep.subr.bf16.mxu0 0
        %8633 = vmatpush1.bf16.msra.mxu0 0
        %8634 = vmatprep.subr.bf16.mxu0 0
        %8635 = vmatpush1.bf16.msra.mxu0 0
        %8636 = vmatprep.subr.bf16.mxu0 0
        %8637 = vmatpush1.bf16.msra.mxu0 0
        %8638 = vmatprep.subr.bf16.mxu0 0
        %8639 = vmatpush1.bf16.msra.mxu0 0
        %8640 = vmatprep.subr.bf16.mxu0 0
        %8641 = vmatpush1.bf16.msra.mxu0 0
        %8642 = vmatprep.subr.bf16.mxu0 0
        %8643 = vmatpush1.bf16.msra.mxu0 0
        %8644 = vmatprep.subr.bf16.mxu0 0
        %8645 = vmatpush1.bf16.msra.mxu0 0
        %8646 = vmatprep.subr.bf16.mxu0 0
        %8647 = vmatpush1.bf16.msra.mxu0 0
        %8648 = vmatprep.subr.bf16.mxu0 0
        %8649 = vmatpush1.bf16.msra.mxu0 0
        %8650 = vmatprep.subr.bf16.mxu0 0
        %8651 = vmatpush1.bf16.msra.mxu0 0
        %8652 = vmatprep.subr.bf16.mxu0 0
        %8653 = vmatpush1.bf16.msra.mxu0 0
        %8654 = vmatprep.subr.bf16.mxu0 0
        %8655 = vmatpush1.bf16.msra.mxu0 0
        %8656 = vmatprep.mubr.bf16.mxu0 0
        %8657 = vmatmul.mubr.bf16.gmra.mrb[0].mxu0 %v8622
        %v8658 = vpop.f32.mrb[0].mxu0
        %v8659 = vadd.f32 %v8607, %v8658
        %v8660 = vpop.f32.mrb[0].mxu0
        %v8661 = vpop.f32.mrb[0].mxu0
        %v8662 = vadd.f32 %v8607, %v8661
        %v8663 = vpop.f32.mrb[0].mxu0
        %8664 = vdwg.mxu0
        %v8665 = vmul.f32 %v8659, 0.5
        %v8666 = vmul.f32 %v8662, 0.5
        %v8667 = vrcp.pop 1.4142135
        %v8668 = vmul.f32 %v8659, %v8667
        %v8669 = vmul.f32 %v8662, %v8667
        %v8670 = verf.f32.pop %v8668
        %v8671 = verf.f32.pop %v8669
        %v8672 = vadd.f32 %v8670, 1.0
        %v8673 = vadd.f32 %v8671, 1.0
        %v8674 = vmul.f32 %v8665, %v8672
        %v8675 = vmul.f32 %v8666, %v8673
        %v8676 = vpack.c.bf16 %v8675, %v8674
        %v8677 = vld [vmem:[%s43] sm:$0xf]
        %v8678 = vld [vmem:[%s43 + $0x4] sm:$0xf]
        %v8679 = vld [vmem:[%s43 + $0x8] sm:$0xf]
        %v8680 = vld [vmem:[%s43 + $0xc] sm:$0xf]
        %v8681 = vld [vmem:[%s43 + $0x10] sm:$0xf]
        %v8682 = vld [vmem:[%s43 + $0x14] sm:$0xf]
        %v8683 = vld [vmem:[%s43 + $0x18] sm:$0xf]
        %v8684 = vld [vmem:[%s43 + $0x1c] sm:$0xf]
        %v8693 = vunpack.c.l.b16 %v8677
        %v8694 = vunpack.c.l.b16 %v8678
        %v8695 = vunpack.c.l.b16 %v8679
        %v8696 = vunpack.c.l.b16 %v8680
        %v8697 = vunpack.c.l.b16 %v8681
        %v8698 = vunpack.c.l.b16 %v8682
        %v8699 = vunpack.c.l.b16 %v8683
        %v8700 = vunpack.c.l.b16 %v8684
        %v8701 = vpack.c.b16 %v8694, %v8693
        %v8702 = vpack.c.b16 %v8696, %v8695
        %v8703 = vpack.c.b16 %v8698, %v8697
        %v8704 = vpack.c.b16 %v8700, %v8699
        %v8710 = vsel %vm8032, %v8676, 0
        %8712 = vmatprep.subr.bf16.mxu0 0
        %8713 = vmatpush1.bf16.msra.mxu0 %v8701
        %8714 = vmatprep.subr.bf16.mxu0 0
        %8715 = vmatpush1.bf16.msra.mxu0 %v8702
        %8716 = vmatprep.subr.bf16.mxu0 0
        %8717 = vmatpush1.bf16.msra.mxu0 %v8703
        %8718 = vmatprep.subr.bf16.mxu0 0
        %8719 = vmatpush1.bf16.msra.mxu0 %v8704
        %8720 = vmatprep.subr.bf16.mxu0 0
        %8721 = vmatpush1.bf16.msra.mxu0 0
        %8722 = vmatprep.subr.bf16.mxu0 0
        %8723 = vmatpush1.bf16.msra.mxu0 0
        %8724 = vmatprep.subr.bf16.mxu0 0
        %8725 = vmatpush1.bf16.msra.mxu0 0
        %8726 = vmatprep.subr.bf16.mxu0 0
        %8727 = vmatpush1.bf16.msra.mxu0 0
        %8728 = vmatprep.subr.bf16.mxu0 0
        %8729 = vmatpush1.bf16.msra.mxu0 0
        %8730 = vmatprep.subr.bf16.mxu0 0
        %8731 = vmatpush1.bf16.msra.mxu0 0
        %8732 = vmatprep.subr.bf16.mxu0 0
        %8733 = vmatpush1.bf16.msra.mxu0 0
        %8734 = vmatprep.subr.bf16.mxu0 0
        %8735 = vmatpush1.bf16.msra.mxu0 0
        %8736 = vmatprep.subr.bf16.mxu0 0
        %8737 = vmatpush1.bf16.msra.mxu0 0
        %8738 = vmatprep.subr.bf16.mxu0 0
        %8739 = vmatpush1.bf16.msra.mxu0 0
        %8740 = vmatprep.subr.bf16.mxu0 0
        %8741 = vmatpush1.bf16.msra.mxu0 0
        %8742 = vmatprep.subr.bf16.mxu0 0
        %8743 = vmatpush1.bf16.msra.mxu0 0
        %8744 = vmatprep.mubr.bf16.mxu0 0
        %8745 = vmatmul.mubr.bf16.gmra.mrb[0].mxu0 %v8710
        %v8746 = vpop.f32.mrb[0].mxu0
        %v8747 = vadd.f32 0.0, %v8746
        %v8748 = vpop.f32.mrb[0].mxu0
        %v8749 = vpop.f32.mrb[0].mxu0
        %v8750 = vadd.f32 0.0, %v8749
        %v8751 = vpop.f32.mrb[0].mxu0
        %8752 = vdwg.mxu0
        %v8753 = vadd.f32 %v8551, %v8747
        %v8754 = vadd.f32 %v8552, %v8750
        %v8755 = vld [vmem:[%s45] sm:$0x1]
        %v8757 = vlaneseq
        %v8758 = vshrl.u32 %v8757, 7
        %v8759 = vsub.s32 0, %v8758
        %v8760 = vrot.slane %v8755, %v8759
        %v8762 = vadd.f32 %v8753, %v8760
        %v8763 = vadd.f32 %v8754, %v8760
        %s8764 = scalar_lea.vmem %s25, 1
        %v8765 = vld [vmem:[%s8764] sm:$0x1]
        %s8766 = scalar_lea.vmem %s27, 1
        %v8767 = vld [vmem:[%s8766] sm:$0x1]
        %v8768 = vsel %vm8116, %v8762, 0.0
        %8769 = vadd.xlane.f32.xlu0 %v8768
        %v8770 = vpop.xlane.xlu0 %8769
        %v8771 = vsel %vm8116, %v8763, 0.0
        %8772 = vadd.xlane.f32.xlu0 %v8771
        %v8773 = vpop.xlane.xlu0 %8772
        %v8774 = vmul.f32 %v8770, %v8123
        %v8775 = vmul.f32 %v8773, %v8123
        %v8776 = vsub.f32 %v8762, %v8774
        %v8777 = vsub.f32 %v8763, %v8775
        %v8778 = vmul.f32 %v8776, %v8776
        %v8779 = vmul.f32 %v8777, %v8777
        %v8780 = vsel %vm8116, %v8778, 0.0
        %8781 = vadd.xlane.f32.xlu0 %v8780
        %v8782 = vpop.xlane.xlu0 %8781
        %v8783 = vsel %vm8116, %v8779, 0.0
        %8784 = vadd.xlane.f32.xlu0 %v8783
        %v8785 = vpop.xlane.xlu0 %8784
        %v8786 = vmul.f32 %v8782, %v8123
        %v8787 = vmul.f32 %v8785, %v8123
        %v8788 = vadd.f32 %v8786, 1e-05
        %v8789 = vadd.f32 %v8787, 1e-05
        %v8790 = vrsqrt.pop %v8788
        %v8791 = vrsqrt.pop %v8789
        %v8792 = vmul.f32 %v8776, %v8790
        %v8793 = vmul.f32 %v8777, %v8791
        %v8795 = vlaneseq
        %v8796 = vshrl.u32 %v8795, 7
        %v8797 = vsub.s32 0, %v8796
        %v8798 = vrot.slane %v8765, %v8797
        %v8800 = vmul.f32 %v8792, %v8798
        %v8801 = vmul.f32 %v8793, %v8798
        %v8803 = vlaneseq
        %v8804 = vshrl.u32 %v8803, 7
        %v8805 = vsub.s32 0, %v8804
        %v8806 = vrot.slane %v8767, %v8805
        %v8808 = vadd.f32 %v8800, %v8806
        %v8809 = vadd.f32 %v8801, %v8806
        %v8810 = vpack.c.bf16 %v8809, %v8808
        %s8811 = scalar_lea.vmem %s29, 16
        %v8812 = vld [vmem:[%s8811] sm:$0xf]
        %v8813 = vld [vmem:[%s8811 + $0x4] sm:$0xf]
        %v8814 = vld [vmem:[%s8811 + $0x8] sm:$0xf]
        %v8815 = vld [vmem:[%s8811 + $0xc] sm:$0xf]
        %v8820 = vunpack.c.l.b16 %v8812
        %v8821 = vunpack.c.l.b16 %v8813
        %v8822 = vunpack.c.l.b16 %v8814
        %v8823 = vunpack.c.l.b16 %v8815
        %v8824 = vpack.c.b16 %v8821, %v8820
        %v8825 = vpack.c.b16 %v8823, %v8822
        %v8829 = vsel %vm8116, %v8810, 0
        %8831 = vmatprep.subr.bf16.mxu0 0
        %8832 = vmatpush1.bf16.msra.mxu0 %v8824
        %8833 = vmatprep.subr.bf16.mxu0 0
        %8834 = vmatpush1.bf16.msra.mxu0 %v8825
        %8835 = vmatprep.subr.bf16.mxu0 0
        %8836 = vmatpush1.bf16.msra.mxu0 0
        %8837 = vmatprep.subr.bf16.mxu0 0
        %8838 = vmatpush1.bf16.msra.mxu0 0
        %8839 = vmatprep.subr.bf16.mxu0 0
        %8840 = vmatpush1.bf16.msra.mxu0 0
        %8841 = vmatprep.subr.bf16.mxu0 0
        %8842 = vmatpush1.bf16.msra.mxu0 0
        %8843 = vmatprep.subr.bf16.mxu0 0
        %8844 = vmatpush1.bf16.msra.mxu0 0
        %8845 = vmatprep.subr.bf16.mxu0 0
        %8846 = vmatpush1.bf16.msra.mxu0 0
        %8847 = vmatprep.subr.bf16.mxu0 0
        %8848 = vmatpush1.bf16.msra.mxu0 0
        %8849 = vmatprep.subr.bf16.mxu0 0
        %8850 = vmatpush1.bf16.msra.mxu0 0
        %8851 = vmatprep.subr.bf16.mxu0 0
        %8852 = vmatpush1.bf16.msra.mxu0 0
        %8853 = vmatprep.subr.bf16.mxu0 0
        %8854 = vmatpush1.bf16.msra.mxu0 0
        %8855 = vmatprep.subr.bf16.mxu0 0
        %8856 = vmatpush1.bf16.msra.mxu0 0
        %8857 = vmatprep.subr.bf16.mxu0 0
        %8858 = vmatpush1.bf16.msra.mxu0 0
        %8859 = vmatprep.subr.bf16.mxu0 0
        %8860 = vmatpush1.bf16.msra.mxu0 0
        %8861 = vmatprep.subr.bf16.mxu0 0
        %8862 = vmatpush1.bf16.msra.mxu0 0
        %8863 = vmatprep.mubr.bf16.mxu0 0
        %8864 = vmatmul.mubr.bf16.gmra.mrb[0].mxu0 %v8829
        %v8865 = vpop.f32.mrb[0].mxu0
        %v8866 = vadd.f32 0.0, %v8865
        %v8867 = vpop.f32.mrb[0].mxu0
        %v8868 = vpop.f32.mrb[0].mxu0
        %v8869 = vadd.f32 0.0, %v8868
        %v8870 = vpop.f32.mrb[0].mxu0
        %8871 = vdwg.mxu0
        %v8872 = vpack.c.bf16 %v8869, %v8866
        %8874 = vrot.lane.b32.xlu0 %v8872, 96
        %v8875 = vpop.permute.xlu0 %8874
        %v8877 = vsel %vm8225, %v8872, 0
        %v8880 = vsel %vm8225, %v8875, 0
        %8882 = vmatprep.subr.bf16.mxu0 0
        %8883 = vmatpush1.bf16.xpose.msra.mxu0 %v8880
        %8884 = vmatprep.subr.bf16.mxu0 0
        %8885 = vmatpush1.bf16.xpose.msra.mxu0 0
        %8886 = vmatprep.subr.bf16.mxu0 0
        %8887 = vmatpush1.bf16.xpose.msra.mxu0 0
        %8888 = vmatprep.subr.bf16.mxu0 0
        %8889 = vmatpush1.bf16.xpose.msra.mxu0 0
        %8890 = vmatprep.subr.bf16.mxu0 0
        %8891 = vmatpush1.bf16.xpose.msra.mxu0 0
        %8892 = vmatprep.subr.bf16.mxu0 0
        %8893 = vmatpush1.bf16.xpose.msra.mxu0 0
        %8894 = vmatprep.subr.bf16.mxu0 0
        %8895 = vmatpush1.bf16.xpose.msra.mxu0 0
        %8896 = vmatprep.subr.bf16.mxu0 0
        %8897 = vmatpush1.bf16.xpose.msra.mxu0 0
        %8898 = vmatprep.subr.bf16.mxu0 0
        %8899 = vmatpush1.bf16.xpose.msra.mxu0 0
        %8900 = vmatprep.subr.bf16.mxu0 0
        %8901 = vmatpush1.bf16.xpose.msra.mxu0 0
        %8902 = vmatprep.subr.bf16.mxu0 0
        %8903 = vmatpush1.bf16.xpose.msra.mxu0 0
        %8904 = vmatprep.subr.bf16.mxu0 0
        %8905 = vmatpush1.bf16.xpose.msra.mxu0 0
        %8906 = vmatprep.subr.bf16.mxu0 0
        %8907 = vmatpush1.bf16.xpose.msra.mxu0 0
        %8908 = vmatprep.subr.bf16.mxu0 0
        %8909 = vmatpush1.bf16.xpose.msra.mxu0 0
        %8910 = vmatprep.subr.bf16.mxu0 0
        %8911 = vmatpush1.bf16.xpose.msra.mxu0 0
        %8912 = vmatprep.subr.bf16.mxu0 0
        %8913 = vmatpush1.bf16.xpose.msra.mxu0 0
        %8914 = vmatprep.mubr.bf16.mxu0 0
        %8915 = vmatmul.mubr.bf16.gmra.mrb[0].mxu0 %v8877
        %v8916 = vpop.f32.mrb[0].mxu0
        %v8917 = vadd.f32 0.0, %v8916
        %v8918 = vpop.f32.mrb[0].mxu0
        %v8919 = vpop.f32.mrb[0].mxu0
        %v8920 = vadd.f32 0.0, %v8919
        %v8921 = vpop.f32.mrb[0].mxu0
        %8922 = vdwg.mxu0
        %v8923 = vmul.f32 %v8917, 0.25
        %v8924 = vmul.f32 %v8920, 0.25
        %v8925 = vsel %vm8225, %v8923, -inf
        %8926 = vmax.xlane.f32.xlu0 %v8925
        %v8927 = vpop.xlane.xlu0 %8926
        %v8928 = vsel %vm8225, %v8924, -inf
        %8929 = vmax.xlane.f32.xlu0 %v8928
        %v8930 = vpop.xlane.xlu0 %8929
        %v8931 = vsub.f32 %v8923, %v8927
        %v8932 = vsub.f32 %v8924, %v8930
        %v8933 = vmul.f32 %v8931, 1.442695
        %v8934 = vpow.pop %v8933
        %v8935 = vmul.f32 %v8932, 1.442695
        %v8936 = vpow.pop %v8935
        %v8937 = vsel %vm8225, %v8934, 0.0
        %8938 = vadd.xlane.f32.xlu0 %v8937
        %v8939 = vpop.xlane.xlu0 %8938
        %v8940 = vsel %vm8225, %v8936, 0.0
        %8941 = vadd.xlane.f32.xlu0 %v8940
        %v8942 = vpop.xlane.xlu0 %8941
        %v8943 = vrcp.pop %v8939
        %v8944 = vrcp.pop %v8942
        %v8945 = vmul.f32 %v8934, %v8943
        %v8946 = vmul.f32 %v8936, %v8944
        %v8947 = vpack.c.bf16 %v8946, %v8945
        %8948 = vrot.lane.b32.xlu0 %v8872, 64
        %v8949 = vpop.permute.xlu0 %8948
        %v8952 = vsel %vm8225, %v8947, 0
        %8954 = vmatprep.subr.bf16.mxu0 0
        %8955 = vmatpush1.bf16.msra.mxu0 %v8949
        %8956 = vmatprep.subr.bf16.mxu0 0
        %8957 = vmatpush1.bf16.msra.mxu0 0
        %8958 = vmatprep.subr.bf16.mxu0 0
        %8959 = vmatpush1.bf16.msra.mxu0 0
        %8960 = vmatprep.subr.bf16.mxu0 0
        %8961 = vmatpush1.bf16.msra.mxu0 0
        %8962 = vmatprep.subr.bf16.mxu0 0
        %8963 = vmatpush1.bf16.msra.mxu0 0
        %8964 = vmatprep.subr.bf16.mxu0 0
        %8965 = vmatpush1.bf16.msra.mxu0 0
        %8966 = vmatprep.subr.bf16.mxu0 0
        %8967 = vmatpush1.bf16.msra.mxu0 0
        %8968 = vmatprep.subr.bf16.mxu0 0
        %8969 = vmatpush1.bf16.msra.mxu0 0
        %8970 = vmatprep.subr.bf16.mxu0 0
        %8971 = vmatpush1.bf16.msra.mxu0 0
        %8972 = vmatprep.subr.bf16.mxu0 0
        %8973 = vmatpush1.bf16.msra.mxu0 0
        %8974 = vmatprep.subr.bf16.mxu0 0
        %8975 = vmatpush1.bf16.msra.mxu0 0
        %8976 = vmatprep.subr.bf16.mxu0 0
        %8977 = vmatpush1.bf16.msra.mxu0 0
        %8978 = vmatprep.subr.bf16.mxu0 0
        %8979 = vmatpush1.bf16.msra.mxu0 0
        %8980 = vmatprep.subr.bf16.mxu0 0
        %8981 = vmatpush1.bf16.msra.mxu0 0
        %8982 = vmatprep.subr.bf16.mxu0 0
        %8983 = vmatpush1.bf16.msra.mxu0 0
        %8984 = vmatprep.subr.bf16.mxu0 0
        %8985 = vmatpush1.bf16.msra.mxu0 0
        %8986 = vmatprep.mubr.bf16.mxu0 0
        %8987 = vmatmul.mubr.bf16.gmra.mrb[0].mxu0 %v8952
        %v8988 = vpop.f32.mrb[0].mxu0
        %v8989 = vadd.f32 0.0, %v8988
        %v8990 = vpop.f32.mrb[0].mxu0
        %v8991 = vpop.f32.mrb[0].mxu0
        %v8992 = vadd.f32 0.0, %v8991
        %v8993 = vpop.f32.mrb[0].mxu0
        %8994 = vdwg.mxu0
        %8995 = vst.msk [vmem:[#allocation2] sm:$0xff] %vm8225, %v8989
        %8996 = vst.msk [vmem:[#allocation2 + $0x8] sm:$0xff] %vm8225, %v8992
        %8997 = vrot.lane.b32.xlu0 %v8872, 112
        %v8998 = vpop.permute.xlu0 %8997
        %8999 = vrot.lane.b32.xlu0 %v8872, 80
        %v9000 = vpop.permute.xlu0 %8999
        %v9002 = vsel %vm8225, %v8998, 0
        %v9005 = vsel %vm8225, %v9000, 0
        %9007 = vmatprep.subr.bf16.mxu0 0
        %9008 = vmatpush1.bf16.xpose.msra.mxu0 %v9005
        %9009 = vmatprep.subr.bf16.mxu0 0
        %9010 = vmatpush1.bf16.xpose.msra.mxu0 0
        %9011 = vmatprep.subr.bf16.mxu0 0
        %9012 = vmatpush1.bf16.xpose.msra.mxu0 0
        %9013 = vmatprep.subr.bf16.mxu0 0
        %9014 = vmatpush1.bf16.xpose.msra.mxu0 0
        %9015 = vmatprep.subr.bf16.mxu0 0
        %9016 = vmatpush1.bf16.xpose.msra.mxu0 0
        %9017 = vmatprep.subr.bf16.mxu0 0
        %9018 = vmatpush1.bf16.xpose.msra.mxu0 0
        %9019 = vmatprep.subr.bf16.mxu0 0
        %9020 = vmatpush1.bf16.xpose.msra.mxu0 0
        %9021 = vmatprep.subr.bf16.mxu0 0
        %9022 = vmatpush1.bf16.xpose.msra.mxu0 0
        %9023 = vmatprep.subr.bf16.mxu0 0
        %9024 = vmatpush1.bf16.xpose.msra.mxu0 0
        %9025 = vmatprep.subr.bf16.mxu0 0
        %9026 = vmatpush1.bf16.xpose.msra.mxu0 0
        %9027 = vmatprep.subr.bf16.mxu0 0
        %9028 = vmatpush1.bf16.xpose.msra.mxu0 0
        %9029 = vmatprep.subr.bf16.mxu0 0
        %9030 = vmatpush1.bf16.xpose.msra.mxu0 0
        %9031 = vmatprep.subr.bf16.mxu0 0
        %9032 = vmatpush1.bf16.xpose.msra.mxu0 0
        %9033 = vmatprep.subr.bf16.mxu0 0
        %9034 = vmatpush1.bf16.xpose.msra.mxu0 0
        %9035 = vmatprep.subr.bf16.mxu0 0
        %9036 = vmatpush1.bf16.xpose.msra.mxu0 0
        %9037 = vmatprep.subr.bf16.mxu0 0
        %9038 = vmatpush1.bf16.xpose.msra.mxu0 0
        %9039 = vmatprep.mubr.bf16.mxu0 0
        %9040 = vmatmul.mubr.bf16.gmra.mrb[0].mxu0 %v9002
        %v9041 = vpop.f32.mrb[0].mxu0
        %v9042 = vadd.f32 0.0, %v9041
        %v9043 = vpop.f32.mrb[0].mxu0
        %v9044 = vpop.f32.mrb[0].mxu0
        %v9045 = vadd.f32 0.0, %v9044
        %v9046 = vpop.f32.mrb[0].mxu0
        %9047 = vdwg.mxu0
        %v9048 = vmul.f32 %v9042, 0.25
        %v9049 = vmul.f32 %v9045, 0.25
        %v9050 = vsel %vm8225, %v9048, -inf
        %9051 = vmax.xlane.f32.xlu0 %v9050
        %v9052 = vpop.xlane.xlu0 %9051
        %v9053 = vsel %vm8225, %v9049, -inf
        %9054 = vmax.xlane.f32.xlu0 %v9053
        %v9055 = vpop.xlane.xlu0 %9054
        %v9056 = vsub.f32 %v9048, %v9052
        %v9057 = vsub.f32 %v9049, %v9055
        %v9058 = vmul.f32 %v9056, 1.442695
        %v9059 = vpow.pop %v9058
        %v9060 = vmul.f32 %v9057, 1.442695
        %v9061 = vpow.pop %v9060
        %v9062 = vsel %vm8225, %v9059, 0.0
        %9063 = vadd.xlane.f32.xlu0 %v9062
        %v9064 = vpop.xlane.xlu0 %9063
        %v9065 = vsel %vm8225, %v9061, 0.0
        %9066 = vadd.xlane.f32.xlu0 %v9065
        %v9067 = vpop.xlane.xlu0 %9066
        %v9068 = vrcp.pop %v9064
        %v9069 = vrcp.pop %v9067
        %v9070 = vmul.f32 %v9059, %v9068
        %v9071 = vmul.f32 %v9061, %v9069
        %v9072 = vpack.c.bf16 %v9071, %v9070
        %9073 = vrot.lane.b32.xlu0 %v8872, 48
        %v9074 = vpop.permute.xlu0 %9073
        %v9077 = vsel %vm8225, %v9072, 0
        %9079 = vmatprep.subr.bf16.mxu0 0
        %9080 = vmatpush1.bf16.msra.mxu0 %v9074
        %9081 = vmatprep.subr.bf16.mxu0 0
        %9082 = vmatpush1.bf16.msra.mxu0 0
        %9083 = vmatprep.subr.bf16.mxu0 0
        %9084 = vmatpush1.bf16.msra.mxu0 0
        %9085 = vmatprep.subr.bf16.mxu0 0
        %9086 = vmatpush1.bf16.msra.mxu0 0
        %9087 = vmatprep.subr.bf16.mxu0 0
        %9088 = vmatpush1.bf16.msra.mxu0 0
        %9089 = vmatprep.subr.bf16.mxu0 0
        %9090 = vmatpush1.bf16.msra.mxu0 0
        %9091 = vmatprep.subr.bf16.mxu0 0
        %9092 = vmatpush1.bf16.msra.mxu0 0
        %9093 = vmatprep.subr.bf16.mxu0 0
        %9094 = vmatpush1.bf16.msra.mxu0 0
        %9095 = vmatprep.subr.bf16.mxu0 0
        %9096 = vmatpush1.bf16.msra.mxu0 0
        %9097 = vmatprep.subr.bf16.mxu0 0
        %9098 = vmatpush1.bf16.msra.mxu0 0
        %9099 = vmatprep.subr.bf16.mxu0 0
        %9100 = vmatpush1.bf16.msra.mxu0 0
        %9101 = vmatprep.subr.bf16.mxu0 0
        %9102 = vmatpush1.bf16.msra.mxu0 0
        %9103 = vmatprep.subr.bf16.mxu0 0
        %9104 = vmatpush1.bf16.msra.mxu0 0
        %9105 = vmatprep.subr.bf16.mxu0 0
        %9106 = vmatpush1.bf16.msra.mxu0 0
        %9107 = vmatprep.subr.bf16.mxu0 0
        %9108 = vmatpush1.bf16.msra.mxu0 0
        %9109 = vmatprep.subr.bf16.mxu0 0
        %9110 = vmatpush1.bf16.msra.mxu0 0
        %9111 = vmatprep.mubr.bf16.mxu0 0
        %9112 = vmatmul.mubr.bf16.gmra.mrb[0].mxu0 %v9077
        %v9113 = vpop.f32.mrb[0].mxu0
        %v9114 = vadd.f32 0.0, %v9113
        %v9115 = vpop.f32.mrb[0].mxu0
        %v9116 = vpop.f32.mrb[0].mxu0
        %v9117 = vadd.f32 0.0, %v9116
        %v9118 = vpop.f32.mrb[0].mxu0
        %9119 = vdwg.mxu0
        %9122 = vrot.lane.b32.xlu0 %v9114, 16
        %v9123 = vpop.permute.xlu0 %9122
        %9124 = vrot.lane.b32.xlu0 %v9117, 16
        %v9125 = vpop.permute.xlu0 %9124
        %9128 = vst.msk [vmem:[#allocation2] sm:$0xff] %vm8478, %v9123
        %9129 = vst.msk [vmem:[#allocation2 + $0x8] sm:$0xff] %vm8478, %v9125
        %v9130 = vld [vmem:[#allocation2] sm:$0xff]
        %v9131 = vld [vmem:[#allocation2 + $0x8] sm:$0xff]
        %v9132 = vpack.c.bf16 %v9131, %v9130
        %s9133 = scalar_lea.vmem %s31, 16
        %v9134 = vld [vmem:[%s9133] sm:$0xf]
        %v9135 = vld [vmem:[%s9133 + $0x4] sm:$0xf]
        %v9136 = vld [vmem:[%s9133 + $0x8] sm:$0xf]
        %v9137 = vld [vmem:[%s9133 + $0xc] sm:$0xf]
        %s9138 = scalar_lea.vmem %s33, 1
        %v9139 = vld [vmem:[%s9138] sm:$0x1]
        %v9141 = vlaneseq
        %v9142 = vshrl.u32 %v9141, 7
        %v9143 = vsub.s32 0, %v9142
        %v9144 = vrot.slane %v9139, %v9143
        %v9150 = vunpack.c.l.b16 %v9134
        %v9151 = vunpack.c.l.b16 %v9135
        %v9152 = vunpack.c.l.b16 %v9136
        %v9153 = vunpack.c.l.b16 %v9137
        %v9154 = vpack.c.b16 %v9151, %v9150
        %v9155 = vpack.c.b16 %v9153, %v9152
        %v9159 = vsel %vm8116, %v9132, 0
        %9161 = vmatprep.subr.bf16.mxu0 0
        %9162 = vmatpush1.bf16.msra.mxu0 %v9154
        %9163 = vmatprep.subr.bf16.mxu0 0
        %9164 = vmatpush1.bf16.msra.mxu0 %v9155
        %9165 = vmatprep.subr.bf16.mxu0 0
        %9166 = vmatpush1.bf16.msra.mxu0 0
        %9167 = vmatprep.subr.bf16.mxu0 0
        %9168 = vmatpush1.bf16.msra.mxu0 0
        %9169 = vmatprep.subr.bf16.mxu0 0
        %9170 = vmatpush1.bf16.msra.mxu0 0
        %9171 = vmatprep.subr.bf16.mxu0 0
        %9172 = vmatpush1.bf16.msra.mxu0 0
        %9173 = vmatprep.subr.bf16.mxu0 0
        %9174 = vmatpush1.bf16.msra.mxu0 0
        %9175 = vmatprep.subr.bf16.mxu0 0
        %9176 = vmatpush1.bf16.msra.mxu0 0
        %9177 = vmatprep.subr.bf16.mxu0 0
        %9178 = vmatpush1.bf16.msra.mxu0 0
        %9179 = vmatprep.subr.bf16.mxu0 0
        %9180 = vmatpush1.bf16.msra.mxu0 0
        %9181 = vmatprep.subr.bf16.mxu0 0
        %9182 = vmatpush1.bf16.msra.mxu0 0
        %9183 = vmatprep.subr.bf16.mxu0 0
        %9184 = vmatpush1.bf16.msra.mxu0 0
        %9185 = vmatprep.subr.bf16.mxu0 0
        %9186 = vmatpush1.bf16.msra.mxu0 0
        %9187 = vmatprep.subr.bf16.mxu0 0
        %9188 = vmatpush1.bf16.msra.mxu0 0
        %9189 = vmatprep.subr.bf16.mxu0 0
        %9190 = vmatpush1.bf16.msra.mxu0 0
        %9191 = vmatprep.subr.bf16.mxu0 0
        %9192 = vmatpush1.bf16.msra.mxu0 0
        %9193 = vmatprep.mubr.bf16.mxu0 0
        %9194 = vmatmul.mubr.bf16.gmra.mrb[0].mxu0 %v9159
        %v9195 = vpop.f32.mrb[0].mxu0
        %v9196 = vadd.f32 %v9144, %v9195
        %v9197 = vpop.f32.mrb[0].mxu0
        %v9198 = vpop.f32.mrb[0].mxu0
        %v9199 = vadd.f32 %v9144, %v9198
        %v9200 = vpop.f32.mrb[0].mxu0
        %9201 = vdwg.mxu0
        %v9202 = vadd.f32 %v8762, %v9196
        %v9203 = vadd.f32 %v8763, %v9199
        %s9204 = scalar_lea.vmem %s35, 1
        %v9205 = vld [vmem:[%s9204] sm:$0x1]
        %s9206 = scalar_lea.vmem %s37, 1
        %v9207 = vld [vmem:[%s9206] sm:$0x1]
        %v9208 = vsel %vm8116, %v9202, 0.0
        %9209 = vadd.xlane.f32.xlu0 %v9208
        %v9210 = vpop.xlane.xlu0 %9209
        %v9211 = vsel %vm8116, %v9203, 0.0
        %9212 = vadd.xlane.f32.xlu0 %v9211
        %v9213 = vpop.xlane.xlu0 %9212
        %v9214 = vmul.f32 %v9210, %v8123
        %v9215 = vmul.f32 %v9213, %v8123
        %v9216 = vsub.f32 %v9202, %v9214
        %v9217 = vsub.f32 %v9203, %v9215
        %v9218 = vmul.f32 %v9216, %v9216
        %v9219 = vmul.f32 %v9217, %v9217
        %v9220 = vsel %vm8116, %v9218, 0.0
        %9221 = vadd.xlane.f32.xlu0 %v9220
        %v9222 = vpop.xlane.xlu0 %9221
        %v9223 = vsel %vm8116, %v9219, 0.0
        %9224 = vadd.xlane.f32.xlu0 %v9223
        %v9225 = vpop.xlane.xlu0 %9224
        %v9226 = vmul.f32 %v9222, %v8123
        %v9227 = vmul.f32 %v9225, %v8123
        %v9228 = vadd.f32 %v9226, 1e-05
        %v9229 = vadd.f32 %v9227, 1e-05
        %v9230 = vrsqrt.pop %v9228
        %v9231 = vrsqrt.pop %v9229
        %v9232 = vmul.f32 %v9216, %v9230
        %v9233 = vmul.f32 %v9217, %v9231
        %v9235 = vlaneseq
        %v9236 = vshrl.u32 %v9235, 7
        %v9237 = vsub.s32 0, %v9236
        %v9238 = vrot.slane %v9205, %v9237
        %v9240 = vmul.f32 %v9232, %v9238
        %v9241 = vmul.f32 %v9233, %v9238
        %v9243 = vlaneseq
        %v9244 = vshrl.u32 %v9243, 7
        %v9245 = vsub.s32 0, %v9244
        %v9246 = vrot.slane %v9207, %v9245
        %v9248 = vadd.f32 %v9240, %v9246
        %v9249 = vadd.f32 %v9241, %v9246
        %v9250 = vpack.c.bf16 %v9249, %v9248
        %s9251 = scalar_lea.vmem %s39, 16
        %v9252 = vld [vmem:[%s9251] sm:$0xf]
        %v9253 = vld [vmem:[%s9251 + $0x4] sm:$0xf]
        %v9254 = vld [vmem:[%s9251 + $0x8] sm:$0xf]
        %v9255 = vld [vmem:[%s9251 + $0xc] sm:$0xf]
        %s9256 = scalar_lea.vmem %s41, 1
        %v9257 = vld [vmem:[%s9256] sm:$0x1]
        %v9259 = vlaneseq
        %v9260 = vshrl.u32 %v9259, 7
        %v9261 = vsub.s32 0, %v9260
        %v9262 = vrot.slane %v9257, %v9261
        %v9268 = vunpack.c.l.b16 %v9252
        %v9269 = vunpack.c.l.b16 %v9253
        %v9270 = vunpack.c.l.b16 %v9254
        %v9271 = vunpack.c.l.b16 %v9255
        %v9272 = vpack.c.b16 %v9269, %v9268
        %v9273 = vpack.c.b16 %v9271, %v9270
        %v9277 = vsel %vm8116, %v9250, 0
        %9279 = vmatprep.subr.bf16.mxu0 0
        %9280 = vmatpush1.bf16.msra.mxu0 %v9272
        %9281 = vmatprep.subr.bf16.mxu0 0
        %9282 = vmatpush1.bf16.msra.mxu0 %v9273
        %9283 = vmatprep.subr.bf16.mxu0 0
        %9284 = vmatpush1.bf16.msra.mxu0 0
        %9285 = vmatprep.subr.bf16.mxu0 0
        %9286 = vmatpush1.bf16.msra.mxu0 0
        %9287 = vmatprep.subr.bf16.mxu0 0
        %9288 = vmatpush1.bf16.msra.mxu0 0
        %9289 = vmatprep.subr.bf16.mxu0 0
        %9290 = vmatpush1.bf16.msra.mxu0 0
        %9291 = vmatprep.subr.bf16.mxu0 0
        %9292 = vmatpush1.bf16.msra.mxu0 0
        %9293 = vmatprep.subr.bf16.mxu0 0
        %9294 = vmatpush1.bf16.msra.mxu0 0
        %9295 = vmatprep.subr.bf16.mxu0 0
        %9296 = vmatpush1.bf16.msra.mxu0 0
        %9297 = vmatprep.subr.bf16.mxu0 0
        %9298 = vmatpush1.bf16.msra.mxu0 0
        %9299 = vmatprep.subr.bf16.mxu0 0
        %9300 = vmatpush1.bf16.msra.mxu0 0
        %9301 = vmatprep.subr.bf16.mxu0 0
        %9302 = vmatpush1.bf16.msra.mxu0 0
        %9303 = vmatprep.subr.bf16.mxu0 0
        %9304 = vmatpush1.bf16.msra.mxu0 0
        %9305 = vmatprep.subr.bf16.mxu0 0
        %9306 = vmatpush1.bf16.msra.mxu0 0
        %9307 = vmatprep.subr.bf16.mxu0 0
        %9308 = vmatpush1.bf16.msra.mxu0 0
        %9309 = vmatprep.subr.bf16.mxu0 0
        %9310 = vmatpush1.bf16.msra.mxu0 0
        %9311 = vmatprep.mubr.bf16.mxu0 0
        %9312 = vmatmul.mubr.bf16.gmra.mrb[0].mxu0 %v9277
        %v9313 = vpop.f32.mrb[0].mxu0
        %v9314 = vadd.f32 %v9262, %v9313
        %v9315 = vpop.f32.mrb[0].mxu0
        %v9316 = vpop.f32.mrb[0].mxu0
        %v9317 = vadd.f32 %v9262, %v9316
        %v9318 = vpop.f32.mrb[0].mxu0
        %9319 = vdwg.mxu0
        %v9320 = vmul.f32 %v9314, 0.5
        %v9321 = vmul.f32 %v9317, 0.5
        %v9322 = vmul.f32 %v9314, %v8667
        %v9323 = vmul.f32 %v9317, %v8667
        %v9324 = verf.f32.pop %v9322
        %v9325 = verf.f32.pop %v9323
        %v9326 = vadd.f32 %v9324, 1.0
        %v9327 = vadd.f32 %v9325, 1.0
        %v9328 = vmul.f32 %v9320, %v9326
        %v9329 = vmul.f32 %v9321, %v9327
        %v9330 = vpack.c.bf16 %v9329, %v9328
        %s9331 = scalar_lea.vmem %s43, 32
        %v9332 = vld [vmem:[%s9331] sm:$0xf]
        %v9333 = vld [vmem:[%s9331 + $0x4] sm:$0xf]
        %v9334 = vld [vmem:[%s9331 + $0x8] sm:$0xf]
        %v9335 = vld [vmem:[%s9331 + $0xc] sm:$0xf]
        %v9336 = vld [vmem:[%s9331 + $0x10] sm:$0xf]
        %v9337 = vld [vmem:[%s9331 + $0x14] sm:$0xf]
        %v9338 = vld [vmem:[%s9331 + $0x18] sm:$0xf]
        %v9339 = vld [vmem:[%s9331 + $0x1c] sm:$0xf]
        %v9348 = vunpack.c.l.b16 %v9332
        %v9349 = vunpack.c.l.b16 %v9333
        %v9350 = vunpack.c.l.b16 %v9334
        %v9351 = vunpack.c.l.b16 %v9335
        %v9352 = vunpack.c.l.b16 %v9336
        %v9353 = vunpack.c.l.b16 %v9337
        %v9354 = vunpack.c.l.b16 %v9338
        %v9355 = vunpack.c.l.b16 %v9339
        %v9356 = vpack.c.b16 %v9349, %v9348
        %v9357 = vpack.c.b16 %v9351, %v9350
        %v9358 = vpack.c.b16 %v9353, %v9352
        %v9359 = vpack.c.b16 %v9355, %v9354
        %v9365 = vsel %vm8032, %v9330, 0
        %9367 = vmatprep.subr.bf16.mxu0 0
        %9368 = vmatpush1.bf16.msra.mxu0 %v9356
        %9369 = vmatprep.subr.bf16.mxu0 0
        %9370 = vmatpush1.bf16.msra.mxu0 %v9357
        %9371 = vmatprep.subr.bf16.mxu0 0
        %9372 = vmatpush1.bf16.msra.mxu0 %v9358
        %9373 = vmatprep.subr.bf16.mxu0 0
        %9374 = vmatpush1.bf16.msra.mxu0 %v9359
        %9375 = vmatprep.subr.bf16.mxu0 0
        %9376 = vmatpush1.bf16.msra.mxu0 0
        %9377 = vmatprep.subr.bf16.mxu0 0
        %9378 = vmatpush1.bf16.msra.mxu0 0
        %9379 = vmatprep.subr.bf16.mxu0 0
        %9380 = vmatpush1.bf16.msra.mxu0 0
        %9381 = vmatprep.subr.bf16.mxu0 0
        %9382 = vmatpush1.bf16.msra.mxu0 0
        %9383 = vmatprep.subr.bf16.mxu0 0
        %9384 = vmatpush1.bf16.msra.mxu0 0
        %9385 = vmatprep.subr.bf16.mxu0 0
        %9386 = vmatpush1.bf16.msra.mxu0 0
        %9387 = vmatprep.subr.bf16.mxu0 0
        %9388 = vmatpush1.bf16.msra.mxu0 0
        %9389 = vmatprep.subr.bf16.mxu0 0
        %9390 = vmatpush1.bf16.msra.mxu0 0
        %9391 = vmatprep.subr.bf16.mxu0 0
        %9392 = vmatpush1.bf16.msra.mxu0 0
        %9393 = vmatprep.subr.bf16.mxu0 0
        %9394 = vmatpush1.bf16.msra.mxu0 0
        %9395 = vmatprep.subr.bf16.mxu0 0
        %9396 = vmatpush1.bf16.msra.mxu0 0
        %9397 = vmatprep.subr.bf16.mxu0 0
        %9398 = vmatpush1.bf16.msra.mxu0 0
        %9399 = vmatprep.mubr.bf16.mxu0 0
        %9400 = vmatmul.mubr.bf16.gmra.mrb[0].mxu0 %v9365
        %v9401 = vpop.f32.mrb[0].mxu0
        %v9402 = vadd.f32 0.0, %v9401
        %v9403 = vpop.f32.mrb[0].mxu0
        %v9404 = vpop.f32.mrb[0].mxu0
        %v9405 = vadd.f32 0.0, %v9404
        %v9406 = vpop.f32.mrb[0].mxu0
        %9407 = vdwg.mxu0
        %v9408 = vadd.f32 %v9202, %v9402
        %v9409 = vadd.f32 %v9203, %v9405
        %s9410 = scalar_lea.vmem %s45, 1
        %v9411 = vld [vmem:[%s9410] sm:$0x1]
        %v9413 = vlaneseq
        %v9414 = vshrl.u32 %v9413, 7
        %v9415 = vsub.s32 0, %v9414
        %v9416 = vrot.slane %v9411, %v9415
        %v9418 = vadd.f32 %v9408, %v9416
        %v9419 = vadd.f32 %v9409, %v9416
        %v9420 = vld [vmem:[%s47] sm:$0x1]
        %v9421 = vld [vmem:[%s49] sm:$0x1]
        %v9422 = vsel %vm8116, %v9418, 0.0
        %9423 = vadd.xlane.f32.xlu0 %v9422
        %v9424 = vpop.xlane.xlu0 %9423
        %v9425 = vsel %vm8116, %v9419, 0.0
        %9426 = vadd.xlane.f32.xlu0 %v9425
        %v9427 = vpop.xlane.xlu0 %9426
        %v9428 = vmul.f32 %v9424, %v8123
        %v9429 = vmul.f32 %v9427, %v8123
        %v9430 = vsub.f32 %v9418, %v9428
        %v9431 = vsub.f32 %v9419, %v9429
        %v9432 = vmul.f32 %v9430, %v9430
        %v9433 = vmul.f32 %v9431, %v9431
        %v9434 = vsel %vm8116, %v9432, 0.0
        %9435 = vadd.xlane.f32.xlu0 %v9434
        %v9436 = vpop.xlane.xlu0 %9435
        %v9437 = vsel %vm8116, %v9433, 0.0
        %9438 = vadd.xlane.f32.xlu0 %v9437
        %v9439 = vpop.xlane.xlu0 %9438
        %v9440 = vmul.f32 %v9436, %v8123
        %v9441 = vmul.f32 %v9439, %v8123
        %v9442 = vadd.f32 %v9440, 1e-05
        %v9443 = vadd.f32 %v9441, 1e-05
        %v9444 = vrsqrt.pop %v9442
        %v9445 = vrsqrt.pop %v9443
        %v9446 = vmul.f32 %v9430, %v9444
        %v9447 = vmul.f32 %v9431, %v9445
        %v9449 = vlaneseq
        %v9450 = vshrl.u32 %v9449, 7
        %v9451 = vsub.s32 0, %v9450
        %v9452 = vrot.slane %v9420, %v9451
        %v9454 = vmul.f32 %v9446, %v9452
        %v9455 = vmul.f32 %v9447, %v9452
        %v9457 = vlaneseq
        %v9458 = vshrl.u32 %v9457, 7
        %v9459 = vsub.s32 0, %v9458
        %v9460 = vrot.slane %v9421, %v9459
        %v9462 = vadd.f32 %v9454, %v9460
        %v9463 = vadd.f32 %v9455, %v9460
        %v9464 = vld [vmem:[%s51] sm:$0x1]
        %v9466 = vlaneseq
        %v9467 = vshrl.u32 %v9466, 7
        %v9468 = vsub.s32 0, %v9467
        %v9469 = vrot.slane %v9464, %v9468
        %v9471 = vmul.f32 %v9462, %v9469
        %v9472 = vmul.f32 %v9463, %v9469
        %v9473 = vsel %vm8116, %v9471, 0.0
        %9474 = vadd.xlane.f32.xlu0 %v9473
        %v9475 = vpop.xlane.xlu0 %9474
        %v9476 = vsel %vm8116, %v9472, 0.0
        %9477 = vadd.xlane.f32.xlu0 %v9476
        %v9478 = vpop.xlane.xlu0 %9477
        %v9479 = vld [vmem:[#allocation3] sm:$0x1]
        %v9481 = vlaneseq
        %v9482 = vshrl.u32 %v9481, 7
        %v9483 = vsub.s32 0, %v9482
        %v9484 = vrot.slane %v9479, %v9483
        %v9486 = vadd.f32 %v9475, %v9484
        %v9487 = vadd.f32 %v9478, %v9484
        %vm9488 = vcmask 7168
        %v9489 = vsel %vm9488, %v9486, -inf
        %v9490 = vsel %vm9488, %v9487, -inf
        %v9491 = vmax.f32 %v9489, %v9490
        %v9492 = vrot.slane %v9491, 4
        %v9493 = vmax.f32 %v9491, %v9492
        %v9494 = vrot.slane %v9493, 2
        %v9495 = vmax.f32 %v9493, %v9494
        %v9496 = vrot.slane %v9495, 1
        %v9497 = vmax.f32 %v9495, %v9496
        %v9498 = vsub.f32 %v9486, %v9497
        %v9499 = vsub.f32 %v9487, %v9497
        %v9500 = vmul.f32 %v9498, 1.442695
        %v9501 = vpow.pop %v9500
        %v9502 = vmul.f32 %v9499, 1.442695
        %v9503 = vpow.pop %v9502
        %v9504 = vsel %vm9488, %v9501, 0.0
        %v9505 = vsel %vm9488, %v9503, 0.0
        %v9506 = vadd.f32 %v9504, %v9505
        %v9507 = vrot.slane %v9506, 4
        %v9508 = vadd.f32 %v9506, %v9507
        %v9509 = vrot.slane %v9508, 2
        %v9510 = vadd.f32 %v9508, %v9509
        %v9511 = vrot.slane %v9510, 1
        %v9512 = vadd.f32 %v9510, %v9511
        %v9513 = vrcp.pop %v9512
        %v9514 = vmul.f32 %v9501, %v9513
        %v9515 = vmul.f32 %v9503, %v9513
        %9517 = vset.pattern.permute.xlu0 0
        %9518 = vperm.xlu0 %9517, %v9514
        %v9519 = vpop.permute.xlu0 %9518
        %9522 = vset.pattern.permute.xlu0 0
        %9523 = vperm.xlu0 %9522, %v9515
        %v9524 = vpop.permute.xlu0 %9523
        %v9526 = vmul.f32 %v9519, %v9462
        %v9527 = vmul.f32 %v9524, %v9463
        %v9528 = vsel %vm8116, %v9526, 0.0
        %v9529 = vsel %vm8116, %v9527, 0.0
        %v9530 = vadd.f32 %v9528, %v9529
        %v9531 = vrot.slane %v9530, 4
        %v9532 = vadd.f32 %v9530, %v9531
        %v9533 = vrot.slane %v9532, 2
        %v9534 = vadd.f32 %v9532, %v9533
        %v9535 = vrot.slane %v9534, 1
        %v9536 = vadd.f32 %v9534, %v9535
        %v9537 = vpack.c.bf16 %v9536, %v9536
        %v9538 = vld [vmem:[%s55] sm:$0xf]
        %v9539 = vld [vmem:[%s55 + $0x4] sm:$0xf]
        %v9540 = vld [vmem:[%s55 + $0x8] sm:$0xf]
        %v9541 = vld [vmem:[%s55 + $0xc] sm:$0xf]
        %v9542 = vld [vmem:[%s57] sm:$0x1]
        %v9547 = vunpack.c.l.b16 %v9538
        %v9548 = vunpack.c.l.b16 %v9539
        %v9549 = vunpack.c.l.b16 %v9540
        %v9550 = vunpack.c.l.b16 %v9541
        %v9551 = vpack.c.b16 %v9548, %v9547
        %v9552 = vpack.c.b16 %v9550, %v9549
        %v9556 = vsel %vm8116, %v9537, 0
        %9558 = vmatprep.subr.bf16.mxu0 0
        %9559 = vmatpush1.bf16.msra.mxu0 %v9551
        %9560 = vmatprep.subr.bf16.mxu0 0
        %9561 = vmatpush1.bf16.msra.mxu0 %v9552
        %9562 = vmatprep.subr.bf16.mxu0 0
        %9563 = vmatpush1.bf16.msra.mxu0 0
        %9564 = vmatprep.subr.bf16.mxu0 0
        %9565 = vmatpush1.bf16.msra.mxu0 0
        %9566 = vmatprep.subr.bf16.mxu0 0
        %9567 = vmatpush1.bf16.msra.mxu0 0
        %9568 = vmatprep.subr.bf16.mxu0 0
        %9569 = vmatpush1.bf16.msra.mxu0 0
        %9570 = vmatprep.subr.bf16.mxu0 0
        %9571 = vmatpush1.bf16.msra.mxu0 0
        %9572 = vmatprep.subr.bf16.mxu0 0
        %9573 = vmatpush1.bf16.msra.mxu0 0
        %9574 = vmatprep.subr.bf16.mxu0 0
        %9575 = vmatpush1.bf16.msra.mxu0 0
        %9576 = vmatprep.subr.bf16.mxu0 0
        %9577 = vmatpush1.bf16.msra.mxu0 0
        %9578 = vmatprep.subr.bf16.mxu0 0
        %9579 = vmatpush1.bf16.msra.mxu0 0
        %9580 = vmatprep.subr.bf16.mxu0 0
        %9581 = vmatpush1.bf16.msra.mxu0 0
        %9582 = vmatprep.subr.bf16.mxu0 0
        %9583 = vmatpush1.bf16.msra.mxu0 0
        %9584 = vmatprep.subr.bf16.mxu0 0
        %9585 = vmatpush1.bf16.msra.mxu0 0
        %9586 = vmatprep.subr.bf16.mxu0 0
        %9587 = vmatpush1.bf16.msra.mxu0 0
        %9588 = vmatprep.subr.bf16.mxu0 0
        %9589 = vmatpush1.bf16.msra.mxu0 0
        %9590 = vmatprep.mubr.bf16.mxu0 0
        %9591 = vmatmul.mubr.bf16.gmra.mrb[0].mxu0 %v9556
        %v9592 = vpop.f32.mrb[0].mxu0
        %v9593 = vadd.f32 %v9542, %v9592
        %v9594 = vpop.f32.mrb[0].mxu0
        %v9595 = vpop.f32.mrb[0].mxu0
        %v9596 = vpop.f32.mrb[0].mxu0
        %9597 = vdwg.mxu0
        %vm9598 = vcmask 24576
        %9599 = vst.msk [vmem:[%s896] sm:$0x1] %vm9598, %v9593
        %s9600 = sand.u32 %s697, 1
        %s9601 = scalar_lea.sflag [#allocation5], %s9600
        %s9602 = sand.u32 %s697, 1
        %s9603 = scalar_lea.vmem [#allocation4], %s9602
        // Predicated region
        $region137: #{cct_forward.1} parent=135 // pred_check
          %p9604 = pneg %p707
        $region138: #{cct_forward.1} parent=135 // pred_check_branch
          %9606 = sbr.rel (%p9604) target = $region140
        $region139: #{cct_forward.1} parent=135 // pred_region
          %s9608 = ssub.s32 16, 16
          %9609 = vsyncadd %s9601, %s9608
          %s9610 = smul.addr %s75, 16
          %s9611 = scalar_lea.hbm %s59, %s9610
          %s9613 = sshll.u32 %s9603, 4
          %s9614 = int_to_ptr.vmem [resolvable:$true] %s9613
          %9616 = dma.vmem_to_hbm [thread:$0]  %s9614, 16, %s9611, %s9601
        $region140: #{cct_forward.1} parent=135 // pred_fallthru
          _
      $region136: #{cct_forward.1} parent=5 // pred_fallthru
        _
      %p9617 = scmp.le.s32.totalorder 2, %s70
      // Predicated region
      $region141: #{cct_forward.1} parent=5 // pred_check
        %p9618 = pneg %p9617
      $region142: #{cct_forward.1} parent=5 // pred_check_branch
        %9620 = sbr.rel (%p9618) target = $region144
      $region143: #{cct_forward.1} parent=5 // pred_region
        %s9621 = ssub.s32 %s70, 2
        // Predicated region
        $region145: #{cct_forward.1} parent=143 // pred_check
          %p9622 = pneg %p713
        $region146: #{cct_forward.1} parent=143 // pred_check_branch
          %9624 = sbr.rel (%p9622) target = $region148
        $region147: #{cct_forward.1} parent=143 // pred_region
          %s9625 = sand.u32 %s698, 1
          %s9626 = scalar_lea.sflag [#allocation5], %s9625
          %s9627 = sand.u32 %s698, 1
          %s9628 = scalar_lea.vmem [#allocation4], %s9627
          %9629 = dma.done %s9626, 16
        $region148: #{cct_forward.1} parent=143 // pred_fallthru
          _
      $region144: #{cct_forward.1} parent=5 // pred_fallthru
        _
    $region6: #{cct_forward.1} parent=1 // loop_footer
      %s74 = sadd.s32 1, %s70
    $region7: #{cct_forward.1} parent=1 // loop_footer_branch
      %69 = sbr.rel target = $region3
    $region8: #{cct_forward.1} parent=1 // loop_exit
      _
    %9630 = vsyncpa [#allocation5], 1
    %s9631 = scalar_lea.sflag [#allocation5], 1
    %9632 = vsyncpa %s9631, 1

</llo_original>
